<compile_context>
chip_gen: v5e
topology: v5e:2x2
jax: 0.10.0
libtpu: 0.0.40
codegen_flags: <defaults>
</compile_context>

<pallas_src>
import functools

import jax
import jax.numpy as jnp
from jax.experimental import pallas as pl
from jax.experimental.pallas import tpu as pltpu


# ----------------------------- Pallas kernel ------------------------------ #

def _cheb_layer(lbd_ref, x2d, w_flat_ref, b_ref, K, ts_ref):
    """One ChebConv layer over all G graphs of this grid step at once.

    lbd_ref:    [GN, GN] block-diagonal scaled Laplacian (GN = G*n)
    x2d:        [GN, F]  f32 node features (graphs stacked along rows)
    w_flat_ref: [K*F, f1] Chebyshev-order axis flattened into the contraction dim
    b_ref:      [1, f1]
    ts_ref:     [GN, >= K*F] persistent VMEM scratch for the stacked Chebyshev basis
    returns     [GN, f1] f32
    """
    GN, F = x2d.shape
    ts_ref[:, 0:F] = x2d                                             # T_0 * X
    if K > 1:
        t_prev = x2d
        t_cur = jnp.dot(lbd_ref[...], x2d,
                        preferred_element_type=jnp.float32)          # T_1 * X
        ts_ref[:, F:2 * F] = t_cur
        for k in range(2, K):
            # 2*(L @ T) == L @ (T + T): double the small [GN, F] operand, never the big L.
            t_next = jnp.dot(lbd_ref[...], t_cur + t_cur,
                             preferred_element_type=jnp.float32) - t_prev
            ts_ref[:, k * F:(k + 1) * F] = t_next
            t_prev, t_cur = t_cur, t_next
    # One big MXU matmul over the stacked basis: [GN, K*F] @ [K*F, f1].
    return jnp.dot(ts_ref[:, 0:K * F], w_flat_ref[...],
                   preferred_element_type=jnp.float32) + b_ref[...]


def chebc_kernel(lbd_ref, x_ref, w1_ref, b1_ref, w2_ref, b2_ref,
                 wfc_ref, bfc_ref, out_ref, ts_ref, *, K, n, f1, readout):
    # conv1 + ReLU (f32 elementwise -- safe on v5e's VPU too)
    h = _cheb_layer(lbd_ref, x_ref[...], w1_ref, b1_ref, K, ts_ref)
    h = jnp.maximum(h, 0.0)
    # conv2
    h = _cheb_layer(lbd_ref, h, w2_ref, b2_ref, K, ts_ref)          # [GN, f1]

    GN = h.shape[0]
    h3 = h.reshape(GN // n, n, f1)                                   # leading-dim split only
    r_sum = jnp.sum(h3, axis=1)                                      # [G, f1]

    if readout == 'meanmax':
        # Split FC (no lane concat); 1/n of the mean half is folded into wfc in the wrapper.
        r_max = jnp.max(h3, axis=1)                                  # [G, f1]
        out = (jnp.dot(r_sum, wfc_ref[0:f1, :], preferred_element_type=jnp.float32)
               + jnp.dot(r_max, wfc_ref[f1:2 * f1, :], preferred_element_type=jnp.float32))
    else:  # 'mean' (1/n folded into wfc) or 'sum'
        out = jnp.dot(r_sum, wfc_ref[...], preferred_element_type=jnp.float32)

    out_ref[...] = out + bfc_ref[...]                                # [G, f2]


# ------------------------------ JAX wrapper -------------------------------- #

def _default_num_steps():
    """2 grid steps on dual-TensorCore v7x, 1 step on single-TC v5e/v6e/v4."""
    try:
        kind = jax.devices()[0].device_kind.lower()
    except Exception:
        return 1
    return 2 if 'v7' in kind else 1


def scaled_laplacian(adj, lambda_max=2.0):
    """PyG ChebConv normalization: L_hat = (2/lambda_max)*(I - D^-1/2 A D^-1/2) - I."""
    deg = jnp.sum(adj, axis=-1)
    dinv = jnp.where(deg > 0, 1.0 / jnp.sqrt(jnp.where(deg > 0, deg, 1.0)), 0.0)
    a_norm = adj * dinv[:, :, None] * dinv[:, None, :]
    n = adj.shape[-1]
    eye = jnp.eye(n, dtype=adj.dtype)
    lap = eye[None] - a_norm
    return (2.0 / lambda_max) * lap - eye[None]


@functools.partial(jax.jit, static_argnames=('K', 'readout', 'num_steps'))
def _chebc_forward_jit(adj, x, params, *, K, readout, num_steps):
    B, n, fin = x.shape
    w1, b1, w2, b2, wfc, bfc = params
    f1 = w1.shape[-1]
    f2 = wfc.shape[-1]
    last_dim = 2 if readout == 'meanmax' else 1
    if readout not in ('mean', 'meanmax', 'sum'):
        raise ValueError('Undefined readout operation')

    # Graphs per grid step; pad the batch so it divides evenly and G is sublane-aligned.
    num_steps = max(1, min(num_steps, B))
    G = -(-B // num_steps)
    if num_steps > 1:
        G = -(-G // 8) * 8
    Bp = G * num_steps
    pad = Bp - B
    if pad:
        adj = jnp.pad(adj, ((0, pad), (0, 0), (0, 0)))
        x = jnp.pad(x, ((0, pad), (0, 0), (0, 0)))
    GN = G * n

    # Laplacian normalization + block-diagonal build fuse into one XLA op under jit:
    # L_bd[s] has each graph's n x n L_hat on the diagonal -> per-graph math is preserved.
    lhat = scaled_laplacian(adj)                                     # [Bp, n, n]
    lhat_g = lhat.reshape(num_steps, G, n, n)
    eye_g = jnp.eye(G, dtype=jnp.float32)
    l_bd = jnp.einsum('sgij,gh->sgihj', lhat_g, eye_g)
    l_bd = l_bd.reshape(num_steps * GN, GN)                          # [(S*GN), GN]

    x2d = x.reshape(num_steps * GN, fin)                             # [(S*GN), fin]

    # Flatten the Chebyshev-order axis of the conv weights -> one matmul per layer.
    w1f = w1.reshape(K * fin, f1)
    w2f = w2.reshape(K * f1, f1)
    # Fold 1/n of the mean readout into the FC weight (kernel always uses a sum readout).
    if readout == 'mean':
        wfc_k = wfc * (1.0 / n)
    elif readout == 'meanmax':
        wfc_k = jnp.concatenate([wfc[:f1] * (1.0 / n), wfc[f1:]], axis=0)
    else:
        wfc_k = wfc

    kern = functools.partial(chebc_kernel, K=K, n=n, f1=f1, readout=readout)

    flops_per_step = (2 * (K - 1) * GN * GN * fin      # conv1 recurrence (block-diag matmuls)
                      + 2 * GN * (K * fin) * f1        # conv1 weight matmul
                      + 2 * (K - 1) * GN * GN * f1     # conv2 recurrence
                      + 2 * GN * (K * f1) * f1         # conv2 weight matmul
                      + 2 * G * (f1 * last_dim) * f2)  # fc
    bytes_accessed = 4 * int(l_bd.size + x2d.size + w1f.size + b1.size + w2f.size
                             + b2.size + wfc_k.size + bfc.size + Bp * f2)

    grid_spec = pltpu.PrefetchScalarGridSpec(
        num_scalar_prefetch=0,
        grid=(num_steps,),
        in_specs=[
            pl.BlockSpec((GN, GN), lambda s: (s, 0)),             # block-diag L_hat per step
            pl.BlockSpec((GN, fin), lambda s: (s, 0)),            # X (graphs stacked in rows)
            pl.BlockSpec((K * fin, f1), lambda s: (0, 0)),        # W1 flat (shared)
            pl.BlockSpec((1, f1), lambda s: (0, 0)),              # b1
            pl.BlockSpec((K * f1, f1), lambda s: (0, 0)),         # W2 flat (shared)
            pl.BlockSpec((1, f1), lambda s: (0, 0)),              # b2
            pl.BlockSpec((f1 * last_dim, f2), lambda s: (0, 0)),  # Wfc (mean part pre-scaled)
            pl.BlockSpec((1, f2), lambda s: (0, 0)),              # bfc
        ],
        out_specs=pl.BlockSpec((G, f2), lambda s: (s, 0)),
        scratch_shapes=[pltpu.VMEM((GN, K * max(fin, f1)), jnp.float32)],  # T_k slab
    )
    out = pl.pallas_call(
        kern,
        out_shape=jax.ShapeDtypeStruct((Bp, f2), jnp.float32),
        grid_spec=grid_spec,
        compiler_params=pltpu.CompilerParams(dimension_semantics=("parallel",)),
        cost_estimate=pl.CostEstimate(flops=num_steps * flops_per_step,
                                      transcendentals=0,
                                      bytes_accessed=bytes_accessed),
    )(l_bd, x2d, w1f, b1, w2f, b2, wfc_k, bfc)
    return out[:B]


def chebc_forward(adj, x, params, *, K, readout, num_steps=None):
    """adj: [B, n, n] dense adjacency, x: [B, n, F_in]  ->  [B, f2]."""
    if num_steps is None:
        num_steps = _default_num_steps()
    return _chebc_forward_jit(adj, x, params, K=K, readout=readout, num_steps=num_steps)


# ------------------------- init + pure-JAX reference ----------------------- #

def xavier_uniform(key, shape):
    fan_in, fan_out = shape[-2], shape[-1]
    lim = jnp.sqrt(6.0 / (fan_in + fan_out))
    return jax.random.uniform(key, shape, jnp.float32, -lim, lim)


def init_params(key, num_nodes, f1, f2, K, readout):
    last_dim = 2 if readout == 'meanmax' else 1
    k1, k2, k3, k4, k5, k6 = jax.random.split(key, 6)
    # _reset_parameters(): dim>1 -> xavier_uniform, dim==1 -> uniform[0,1)
    w1 = xavier_uniform(k1, (K, num_nodes, f1))
    b1 = jax.random.uniform(k2, (1, f1), jnp.float32)
    w2 = xavier_uniform(k3, (K, f1, f1))
    b2 = jax.random.uniform(k4, (1, f1), jnp.float32)
    wfc = xavier_uniform(k5, (f1 * last_dim, f2))
    bfc = jax.random.uniform(k6, (1, f2), jnp.float32)
    return (w1, b1, w2, b2, wfc, bfc)


def ref_forward(lhat, x, params, K, readout):
    """Pure-JAX reference of the same math (sanity check)."""
    w1, b1, w2, b2, wfc, bfc = params

    def cheb(L, X, W, b):
        out = X @ W[0]
        if K > 1:
            txp, txc = X, L @ X
            out = out + txc @ W[1]
            for k in range(2, K):
                txn = 2.0 * (L @ txc) - txp
                out = out + txn @ W[k]
                txp, txc = txc, txn
        return out + b

    outs = []
    for g in range(x.shape[0]):
        h = jax.nn.relu(cheb(lhat[g], x[g], w1, b1))
        h = cheb(lhat[g], h, w2, b2)
        if readout == 'mean':
            r = h.mean(0, keepdims=True)
        elif readout == 'meanmax':
            r = jnp.concatenate([h.mean(0, keepdims=True),
                                 h.max(0, keepdims=True)], axis=1)
        else:
            r = h.sum(0, keepdims=True)
        outs.append(r @ wfc + bfc)
    return jnp.concatenate(outs, axis=0)


# ---------------------------------- main ----------------------------------- #

if __name__ == "__main__":
    # 32 graphs x 16 nodes.  On v5e/v6e: 1 grid step, block-diag matmuls of 512x512.
    # On v7x: 2 parallel steps of 16 graphs (256x256 matmuls), one per TensorCore.
    B, n_nodes, f1, f2, K = 32, 16, 32, 8, 3
    readout = 'meanmax'           # ChebC supports 'mean' / 'meanmax' / 'sum'

    key = jax.random.PRNGKey(0)
    k_adj, k_x, k_par = jax.random.split(key, 3)

    # synthetic symmetric weighted adjacency, zero diagonal (stand-in for adj.coo())
    a = jax.random.uniform(k_adj, (B, n_nodes, n_nodes), jnp.float32)
    adj = 0.5 * (a + jnp.swapaxes(a, 1, 2)) * (1.0 - jnp.eye(n_nodes, dtype=jnp.float32))

    # node features: [B, n_nodes, num_nodes]  (in_channels of conv1 == num_nodes)
    x = jax.random.normal(k_x, (B, n_nodes, n_nodes), jnp.float32)

    params = init_params(k_par, n_nodes, f1, f2, K, readout)

    out = chebc_forward(adj, x, params, K=K, readout=readout)
    out = jax.block_until_ready(out)

    lhat = scaled_laplacian(adj)
    ref = ref_forward(lhat, x, params, K, readout)
    assert out.shape == (B, f2)
    assert jnp.allclose(out, ref, atol=1e-3, rtol=1e-3), "mismatch vs JAX reference"

    print("KERNEL_OK")
</pallas_src>

<mosaic_0001>
module attributes {stable_mosaic.version = 11 : i64} {
  func.func @chebc_kernel(%arg0: i32, %arg1: memref<512x512xf32, #tpu.memory_space<vmem>>, %arg2: memref<512x16xf32, #tpu.memory_space<vmem>>, %arg3: memref<48x32xf32, #tpu.memory_space<vmem>>, %arg4: memref<1x32xf32, #tpu.memory_space<vmem>>, %arg5: memref<96x32xf32, #tpu.memory_space<vmem>>, %arg6: memref<1x32xf32, #tpu.memory_space<vmem>>, %arg7: memref<64x8xf32, #tpu.memory_space<vmem>>, %arg8: memref<1x8xf32, #tpu.memory_space<vmem>>, %arg9: memref<32x8xf32, #tpu.memory_space<vmem>>, %arg10: memref<512x96xf32, #tpu.memory_space<vmem>>) attributes {dimension_semantics = [#tpu.dimension_semantics<parallel>], iteration_bounds = array<i64: 1>, scalar_prefetch = 0 : i64, scratch_operands = 1 : i64, tpu.core_type = #tpu.core_type<tc>, window_params = [{transform_indices = @transform_0, window_bounds = array<i64: 512, 512>}, {transform_indices = @transform_1, window_bounds = array<i64: 512, 16>}, {pipeline_mode = #tpu.pipeline_mode<synchronous>, transform_indices = @transform_2, window_bounds = array<i64: 48, 32>}, {pipeline_mode = #tpu.pipeline_mode<synchronous>, transform_indices = @transform_3, window_bounds = array<i64: 1, 32>}, {pipeline_mode = #tpu.pipeline_mode<synchronous>, transform_indices = @transform_4, window_bounds = array<i64: 96, 32>}, {pipeline_mode = #tpu.pipeline_mode<synchronous>, transform_indices = @transform_5, window_bounds = array<i64: 1, 32>}, {pipeline_mode = #tpu.pipeline_mode<synchronous>, transform_indices = @transform_6, window_bounds = array<i64: 64, 8>}, {pipeline_mode = #tpu.pipeline_mode<synchronous>, transform_indices = @transform_7, window_bounds = array<i64: 1, 8>}, {transform_indices = @transform_8, window_bounds = array<i64: 32, 8>}]} {
    %c0 = arith.constant 0 : index
    %c0_0 = arith.constant 0 : index
    %0 = vector.load %arg2[%c0, %c0_0] : memref<512x16xf32, #tpu.memory_space<vmem>>, vector<512x16xf32>
    %c0_1 = arith.constant 0 : index
    %c0_2 = arith.constant 0 : index
    %1 = vector.load %arg10[%c0_1, %c0_2] : memref<512x96xf32, #tpu.memory_space<vmem>>, vector<512x16xf32>
    tpu.vector_store %arg10[%c0_1, %c0_2], %0 {strides = array<i32>} : memref<512x96xf32, #tpu.memory_space<vmem>>, vector<512x16xf32>,
    %c0_3 = arith.constant 0 : index
    %c0_4 = arith.constant 0 : index
    %2 = vector.load %arg1[%c0_3, %c0_4] : memref<512x512xf32, #tpu.memory_space<vmem>>, vector<512x512xf32>
    %cst = arith.constant dense<0.000000e+00> : vector<512x16xf32>
    %3 = tpu.matmul %2, %0, %cst {dimension_numbers = #tpu.dot_dimension_numbers<[1], [0], [0], [1], [0, 0, 1, 1], [], []>} : vector<512x512xf32>, vector<512x16xf32>, vector<512x16xf32> -> vector<512x16xf32>
    %c0_5 = arith.constant 0 : index
    %c16 = arith.constant 16 : index
    %4 = vector.load %arg10[%c0_5, %c16] : memref<512x96xf32, #tpu.memory_space<vmem>>, vector<512x16xf32>
    tpu.vector_store %arg10[%c0_5, %c16], %3 {strides = array<i32>} : memref<512x96xf32, #tpu.memory_space<vmem>>, vector<512x16xf32>,
    %c0_6 = arith.constant 0 : index
    %c0_7 = arith.constant 0 : index
    %5 = vector.load %arg1[%c0_6, %c0_7] : memref<512x512xf32, #tpu.memory_space<vmem>>, vector<512x512xf32>
    %6 = arith.addf %3, %3 : vector<512x16xf32>
    %cst_8 = arith.constant dense<0.000000e+00> : vector<512x16xf32>
    %7 = tpu.matmul %5, %6, %cst_8 {dimension_numbers = #tpu.dot_dimension_numbers<[1], [0], [0], [1], [0, 0, 1, 1], [], []>} : vector<512x512xf32>, vector<512x16xf32>, vector<512x16xf32> -> vector<512x16xf32>
    %8 = arith.subf %7, %0 : vector<512x16xf32>
    %c0_9 = arith.constant 0 : index
    %c32 = arith.constant 32 : index
    %9 = vector.load %arg10[%c0_9, %c32] : memref<512x96xf32, #tpu.memory_space<vmem>>, vector<512x16xf32>
    tpu.vector_store %arg10[%c0_9, %c32], %8 {strides = array<i32>} : memref<512x96xf32, #tpu.memory_space<vmem>>, vector<512x16xf32>,
    %c0_10 = arith.constant 0 : index
    %c0_11 = arith.constant 0 : index
    %10 = vector.load %arg10[%c0_10, %c0_11] : memref<512x96xf32, #tpu.memory_space<vmem>>, vector<512x48xf32>
    %c0_12 = arith.constant 0 : index
    %c0_13 = arith.constant 0 : index
    %11 = vector.load %arg3[%c0_12, %c0_13] : memref<48x32xf32, #tpu.memory_space<vmem>>, vector<48x32xf32>
    %cst_14 = arith.constant dense<0.000000e+00> : vector<512x32xf32>
    %12 = tpu.matmul %10, %11, %cst_14 {dimension_numbers = #tpu.dot_dimension_numbers<[1], [0], [0], [1], [0, 0, 1, 1], [], []>} : vector<512x48xf32>, vector<48x32xf32>, vector<512x32xf32> -> vector<512x32xf32>
    %c0_15 = arith.constant 0 : index
    %c0_16 = arith.constant 0 : index
    %13 = vector.load %arg4[%c0_15, %c0_16] : memref<1x32xf32, #tpu.memory_space<vmem>>, vector<1x32xf32>
    %14 = vector.broadcast %13 : vector<1x32xf32> to vector<512x32xf32>
    %15 = arith.addf %12, %14 : vector<512x32xf32>
    %cst_17 = arith.constant 0.000000e+00 : f32
    %16 = vector.broadcast %cst_17 : f32 to vector<512x32xf32>
    %17 = arith.maximumf %15, %16 : vector<512x32xf32>
    %c0_18 = arith.constant 0 : index
    %c0_19 = arith.constant 0 : index
    %18 = vector.load %arg10[%c0_18, %c0_19] : memref<512x96xf32, #tpu.memory_space<vmem>>, vector<512x32xf32>
    tpu.vector_store %arg10[%c0_18, %c0_19], %17 {strides = array<i32>} : memref<512x96xf32, #tpu.memory_space<vmem>>, vector<512x32xf32>,
    %c0_20 = arith.constant 0 : index
    %c0_21 = arith.constant 0 : index
    %19 = vector.load %arg1[%c0_20, %c0_21] : memref<512x512xf32, #tpu.memory_space<vmem>>, vector<512x512xf32>
    %cst_22 = arith.constant dense<0.000000e+00> : vector<512x32xf32>
    %20 = tpu.matmul %19, %17, %cst_22 {dimension_numbers = #tpu.dot_dimension_numbers<[1], [0], [0], [1], [0, 0, 1, 1], [], []>} : vector<512x512xf32>, vector<512x32xf32>, vector<512x32xf32> -> vector<512x32xf32>
    %c0_23 = arith.constant 0 : index
    %c32_24 = arith.constant 32 : index
    %21 = vector.load %arg10[%c0_23, %c32_24] : memref<512x96xf32, #tpu.memory_space<vmem>>, vector<512x32xf32>
    tpu.vector_store %arg10[%c0_23, %c32_24], %20 {strides = array<i32>} : memref<512x96xf32, #tpu.memory_space<vmem>>, vector<512x32xf32>,
    %c0_25 = arith.constant 0 : index
    %c0_26 = arith.constant 0 : index
    %22 = vector.load %arg1[%c0_25, %c0_26] : memref<512x512xf32, #tpu.memory_space<vmem>>, vector<512x512xf32>
    %23 = arith.addf %20, %20 : vector<512x32xf32>
    %cst_27 = arith.constant dense<0.000000e+00> : vector<512x32xf32>
    %24 = tpu.matmul %22, %23, %cst_27 {dimension_numbers = #tpu.dot_dimension_numbers<[1], [0], [0], [1], [0, 0, 1, 1], [], []>} : vector<512x512xf32>, vector<512x32xf32>, vector<512x32xf32> -> vector<512x32xf32>
    %25 = arith.subf %24, %17 : vector<512x32xf32>
    %c0_28 = arith.constant 0 : index
    %c64 = arith.constant 64 : index
    %26 = vector.load %arg10[%c0_28, %c64] : memref<512x96xf32, #tpu.memory_space<vmem>>, vector<512x32xf32>
    tpu.vector_store %arg10[%c0_28, %c64], %25 {strides = array<i32>} : memref<512x96xf32, #tpu.memory_space<vmem>>, vector<512x32xf32>,
    %c0_29 = arith.constant 0 : index
    %c0_30 = arith.constant 0 : index
    %27 = vector.load %arg10[%c0_29, %c0_30] : memref<512x96xf32, #tpu.memory_space<vmem>>, vector<512x96xf32>
    %c0_31 = arith.constant 0 : index
    %c0_32 = arith.constant 0 : index
    %28 = vector.load %arg5[%c0_31, %c0_32] : memref<96x32xf32, #tpu.memory_space<vmem>>, vector<96x32xf32>
    %cst_33 = arith.constant dense<0.000000e+00> : vector<512x32xf32>
    %29 = tpu.matmul %27, %28, %cst_33 {dimension_numbers = #tpu.dot_dimension_numbers<[1], [0], [0], [1], [0, 0, 1, 1], [], []>} : vector<512x96xf32>, vector<96x32xf32>, vector<512x32xf32> -> vector<512x32xf32>
    %c0_34 = arith.constant 0 : index
    %c0_35 = arith.constant 0 : index
    %30 = vector.load %arg6[%c0_34, %c0_35] : memref<1x32xf32, #tpu.memory_space<vmem>>, vector<1x32xf32>
    %31 = vector.broadcast %30 : vector<1x32xf32> to vector<512x32xf32>
    %32 = arith.addf %29, %31 : vector<512x32xf32>
    %33 = vector.shape_cast %32 : vector<512x32xf32> to vector<32x16x32xf32>
    %cst_36 = arith.constant dense<0.000000e+00> : vector<32x32xf32>
    %34 = vector.multi_reduction <add>, %33, %cst_36 [1] : vector<32x16x32xf32> to vector<32x32xf32>
    %cst_37 = arith.constant dense<0xFF800000> : vector<32x32xf32>
    %35 = vector.multi_reduction <maximumf>, %33, %cst_37 [1] : vector<32x16x32xf32> to vector<32x32xf32>
    %c0_38 = arith.constant 0 : index
    %c0_39 = arith.constant 0 : index
    %36 = vector.load %arg7[%c0_38, %c0_39] : memref<64x8xf32, #tpu.memory_space<vmem>>, vector<32x8xf32>
    %cst_40 = arith.constant dense<0.000000e+00> : vector<32x8xf32>
    %37 = tpu.matmul %34, %36, %cst_40 {dimension_numbers = #tpu.dot_dimension_numbers<[1], [0], [0], [1], [0, 0, 1, 1], [], []>} : vector<32x32xf32>, vector<32x8xf32>, vector<32x8xf32> -> vector<32x8xf32>
    %c32_41 = arith.constant 32 : index
    %c0_42 = arith.constant 0 : index
    %38 = vector.load %arg7[%c32_41, %c0_42] : memref<64x8xf32, #tpu.memory_space<vmem>>, vector<32x8xf32>
    %cst_43 = arith.constant dense<0.000000e+00> : vector<32x8xf32>
    %39 = tpu.matmul %35, %38, %cst_43 {dimension_numbers = #tpu.dot_dimension_numbers<[1], [0], [0], [1], [0, 0, 1, 1], [], []>} : vector<32x32xf32>, vector<32x8xf32>, vector<32x8xf32> -> vector<32x8xf32>
    %40 = arith.addf %37, %39 : vector<32x8xf32>
    %c0_44 = arith.constant 0 : index
    %c0_45 = arith.constant 0 : index
    %41 = vector.load %arg8[%c0_44, %c0_45] : memref<1x8xf32, #tpu.memory_space<vmem>>, vector<1x8xf32>
    %42 = vector.broadcast %41 : vector<1x8xf32> to vector<32x8xf32>
    %43 = arith.addf %40, %42 : vector<32x8xf32>
    %c0_46 = arith.constant 0 : index
    %c0_47 = arith.constant 0 : index
    %44 = vector.load %arg9[%c0_46, %c0_47] : memref<32x8xf32, #tpu.memory_space<vmem>>, vector<32x8xf32>
    tpu.vector_store %arg9[%c0_46, %c0_47], %43 {strides = array<i32>} : memref<32x8xf32, #tpu.memory_space<vmem>>, vector<32x8xf32>,
    return
  }
  func.func @transform_0(%arg0: i32) -> (i32, i32) {
    %c0_i32 = arith.constant 0 : i32
    %c0_i32_0 = arith.constant 0 : i32
    return %arg0, %c0_i32 : i32, i32
  }
  func.func @transform_1(%arg0: i32) -> (i32, i32) {
    %c0_i32 = arith.constant 0 : i32
    %c0_i32_0 = arith.constant 0 : i32
    return %arg0, %c0_i32 : i32, i32
  }
  func.func @transform_2(%arg0: i32) -> (i32, i32) {
    %c0_i32 = arith.constant 0 : i32
    %c0_i32_0 = arith.constant 0 : i32
    %c0_i32_1 = arith.constant 0 : i32
    return %c0_i32, %c0_i32_0 : i32, i32
  }
  func.func @transform_3(%arg0: i32) -> (i32, i32) {
    %c0_i32 = arith.constant 0 : i32
    %c0_i32_0 = arith.constant 0 : i32
    %c0_i32_1 = arith.constant 0 : i32
    return %c0_i32, %c0_i32_0 : i32, i32
  }
  func.func @transform_4(%arg0: i32) -> (i32, i32) {
    %c0_i32 = arith.constant 0 : i32
    %c0_i32_0 = arith.constant 0 : i32
    %c0_i32_1 = arith.constant 0 : i32
    return %c0_i32, %c0_i32_0 : i32, i32
  }
  func.func @transform_5(%arg0: i32) -> (i32, i32) {
    %c0_i32 = arith.constant 0 : i32
    %c0_i32_0 = arith.constant 0 : i32
    %c0_i32_1 = arith.constant 0 : i32
    return %c0_i32, %c0_i32_0 : i32, i32
  }
  func.func @transform_6(%arg0: i32) -> (i32, i32) {
    %c0_i32 = arith.constant 0 : i32
    %c0_i32_0 = arith.constant 0 : i32
    %c0_i32_1 = arith.constant 0 : i32
    return %c0_i32, %c0_i32_0 : i32, i32
  }
  func.func @transform_7(%arg0: i32) -> (i32, i32) {
    %c0_i32 = arith.constant 0 : i32
    %c0_i32_0 = arith.constant 0 : i32
    %c0_i32_1 = arith.constant 0 : i32
    return %c0_i32, %c0_i32_0 : i32, i32
  }
  func.func @transform_8(%arg0: i32) -> (i32, i32) {
    %c0_i32 = arith.constant 0 : i32
    %c0_i32_0 = arith.constant 0 : i32
    return %arg0, %c0_i32 : i32, i32
  }
}

</mosaic_0001>

<llo_original>
// kernel: _chebc_forward_jit.1
$region0: #{_chebc_forward_jit.1}
  #allocation0 [shape = 'u32[]', space=smem, size = 0x4, offset = 0x4, fixed_abs, tag = 'smem constant byte address 0x4 - core index']
  #allocation1 [shape = 'u32[72,128]{1,0:T(1,128)}', space=vmem, size = 0x9000, scoped, tag = 'internal scratch']
  #allocation2 [shape = 'f32[512,96]{1,0:T(8,128)}', space=vmem, size = 0x40000, scoped, tag = 'scratch operand']
  %s0 = inlined_call_operand.vmem [shape: f32[512,512], index: 0, kind: input, shape index: {}]
  %s1 = inlined_call_operand.vmem [shape: f32[512,16], index: 1, kind: input, shape index: {}]
  %s2 = inlined_call_operand.vmem [shape: f32[48,32], index: 2, kind: input, shape index: {}]
  %s3 = inlined_call_operand.vmem [shape: f32[1,32], index: 3, kind: input, shape index: {}]
  %s4 = inlined_call_operand.vmem [shape: f32[96,32], index: 4, kind: input, shape index: {}]
  %s5 = inlined_call_operand.vmem [shape: f32[1,32], index: 5, kind: input, shape index: {}]
  %s6 = inlined_call_operand.vmem [shape: f32[64,8], index: 6, kind: input, shape index: {}]
  %s7 = inlined_call_operand.vmem [shape: f32[1,8], index: 7, kind: input, shape index: {}]
  %s8 = inlined_call_operand.vmem [shape: f32[32,8], index: 8, kind: output, shape index: {}]
  %s9 = sld [smem:[#allocation0]]
  $region42: #{_chebc_forward_jit.1} parent=0
    _
  %s11 = ssub.s32 1, %s9
  %s12 = scalar_select 0, %s11, %s9
  // Predicated region
  $region2: #{_chebc_forward_jit.1} parent=0 // pred_check
    _
  $region3: #{_chebc_forward_jit.1} parent=0 // pred_check_branch
    %14 = sbr.rel (0) target = $region5
  $region4: #{_chebc_forward_jit.1} parent=0 // pred_region
    _
  $region5: #{_chebc_forward_jit.1} parent=0 // pred_fallthru
    _
  // Predicated region
  $region6: #{_chebc_forward_jit.1} parent=0 // pred_check
    _
  $region7: #{_chebc_forward_jit.1} parent=0 // pred_check_branch
    %16 = sbr.rel (0) target = $region9
  $region8: #{_chebc_forward_jit.1} parent=0 // pred_region
    _
  $region9: #{_chebc_forward_jit.1} parent=0 // pred_fallthru
    _
  // Predicated region
  $region10: #{_chebc_forward_jit.1} parent=0 // pred_check
    _
  $region11: #{_chebc_forward_jit.1} parent=0 // pred_check_branch
    %18 = sbr.rel (0) target = $region13
  $region12: #{_chebc_forward_jit.1} parent=0 // pred_region
    _
  $region13: #{_chebc_forward_jit.1} parent=0 // pred_fallthru
    _
  // Predicated region
  $region14: #{_chebc_forward_jit.1} parent=0 // pred_check
    _
  $region15: #{_chebc_forward_jit.1} parent=0 // pred_check_branch
    %20 = sbr.rel (0) target = $region17
  $region16: #{_chebc_forward_jit.1} parent=0 // pred_region
    _
  $region17: #{_chebc_forward_jit.1} parent=0 // pred_fallthru
    _
  // Predicated region
  $region18: #{_chebc_forward_jit.1} parent=0 // pred_check
    _
  $region19: #{_chebc_forward_jit.1} parent=0 // pred_check_branch
    %22 = sbr.rel (0) target = $region21
  $region20: #{_chebc_forward_jit.1} parent=0 // pred_region
    _
  $region21: #{_chebc_forward_jit.1} parent=0 // pred_fallthru
    _
  // Predicated region
  $region22: #{_chebc_forward_jit.1} parent=0 // pred_check
    _
  $region23: #{_chebc_forward_jit.1} parent=0 // pred_check_branch
    %24 = sbr.rel (0) target = $region25
  $region24: #{_chebc_forward_jit.1} parent=0 // pred_region
    _
  $region25: #{_chebc_forward_jit.1} parent=0 // pred_fallthru
    _
  // Predicated region
  $region26: #{_chebc_forward_jit.1} parent=0 // pred_check
    _
  $region27: #{_chebc_forward_jit.1} parent=0 // pred_check_branch
    %26 = sbr.rel (0) target = $region29
  $region28: #{_chebc_forward_jit.1} parent=0 // pred_region
    _
  $region29: #{_chebc_forward_jit.1} parent=0 // pred_fallthru
    _
  // Predicated region
  $region30: #{_chebc_forward_jit.1} parent=0 // pred_check
    _
  $region31: #{_chebc_forward_jit.1} parent=0 // pred_check_branch
    %28 = sbr.rel (0) target = $region33
  $region32: #{_chebc_forward_jit.1} parent=0 // pred_region
    _
  $region33: #{_chebc_forward_jit.1} parent=0 // pred_fallthru
    _
  %v29 = vld [vmem:[%s1] sm:$0xff]
  %v30 = vld [vmem:[%s1 + $0x8] sm:$0xff]
  %v31 = vld [vmem:[%s1 + $0x10] sm:$0xff]
  %v32 = vld [vmem:[%s1 + $0x18] sm:$0xff]
  %v33 = vld [vmem:[%s1 + $0x20] sm:$0xff]
  %v34 = vld [vmem:[%s1 + $0x28] sm:$0xff]
  %v35 = vld [vmem:[%s1 + $0x30] sm:$0xff]
  %v36 = vld [vmem:[%s1 + $0x38] sm:$0xff]
  %v37 = vld [vmem:[%s1 + $0x40] sm:$0xff]
  %v38 = vld [vmem:[%s1 + $0x48] sm:$0xff]
  %v39 = vld [vmem:[%s1 + $0x50] sm:$0xff]
  %v40 = vld [vmem:[%s1 + $0x58] sm:$0xff]
  %v41 = vld [vmem:[%s1 + $0x60] sm:$0xff]
  %v42 = vld [vmem:[%s1 + $0x68] sm:$0xff]
  %v43 = vld [vmem:[%s1 + $0x70] sm:$0xff]
  %v44 = vld [vmem:[%s1 + $0x78] sm:$0xff]
  %v45 = vld [vmem:[%s1 + $0x80] sm:$0xff]
  %v46 = vld [vmem:[%s1 + $0x88] sm:$0xff]
  %v47 = vld [vmem:[%s1 + $0x90] sm:$0xff]
  %v48 = vld [vmem:[%s1 + $0x98] sm:$0xff]
  %v49 = vld [vmem:[%s1 + $0xa0] sm:$0xff]
  %v50 = vld [vmem:[%s1 + $0xa8] sm:$0xff]
  %v51 = vld [vmem:[%s1 + $0xb0] sm:$0xff]
  %v52 = vld [vmem:[%s1 + $0xb8] sm:$0xff]
  %v53 = vld [vmem:[%s1 + $0xc0] sm:$0xff]
  %v54 = vld [vmem:[%s1 + $0xc8] sm:$0xff]
  %v55 = vld [vmem:[%s1 + $0xd0] sm:$0xff]
  %v56 = vld [vmem:[%s1 + $0xd8] sm:$0xff]
  %v57 = vld [vmem:[%s1 + $0xe0] sm:$0xff]
  %v58 = vld [vmem:[%s1 + $0xe8] sm:$0xff]
  %v59 = vld [vmem:[%s1 + $0xf0] sm:$0xff]
  %v60 = vld [vmem:[%s1 + $0xf8] sm:$0xff]
  %v61 = vld [vmem:[%s1 + $0x100] sm:$0xff]
  %v62 = vld [vmem:[%s1 + $0x108] sm:$0xff]
  %v63 = vld [vmem:[%s1 + $0x110] sm:$0xff]
  %v64 = vld [vmem:[%s1 + $0x118] sm:$0xff]
  %v65 = vld [vmem:[%s1 + $0x120] sm:$0xff]
  %v66 = vld [vmem:[%s1 + $0x128] sm:$0xff]
  %v67 = vld [vmem:[%s1 + $0x130] sm:$0xff]
  %v68 = vld [vmem:[%s1 + $0x138] sm:$0xff]
  %v69 = vld [vmem:[%s1 + $0x140] sm:$0xff]
  %v70 = vld [vmem:[%s1 + $0x148] sm:$0xff]
  %v71 = vld [vmem:[%s1 + $0x150] sm:$0xff]
  %v72 = vld [vmem:[%s1 + $0x158] sm:$0xff]
  %v73 = vld [vmem:[%s1 + $0x160] sm:$0xff]
  %v74 = vld [vmem:[%s1 + $0x168] sm:$0xff]
  %v75 = vld [vmem:[%s1 + $0x170] sm:$0xff]
  %v76 = vld [vmem:[%s1 + $0x178] sm:$0xff]
  %v77 = vld [vmem:[%s1 + $0x180] sm:$0xff]
  %v78 = vld [vmem:[%s1 + $0x188] sm:$0xff]
  %v79 = vld [vmem:[%s1 + $0x190] sm:$0xff]
  %v80 = vld [vmem:[%s1 + $0x198] sm:$0xff]
  %v81 = vld [vmem:[%s1 + $0x1a0] sm:$0xff]
  %v82 = vld [vmem:[%s1 + $0x1a8] sm:$0xff]
  %v83 = vld [vmem:[%s1 + $0x1b0] sm:$0xff]
  %v84 = vld [vmem:[%s1 + $0x1b8] sm:$0xff]
  %v85 = vld [vmem:[%s1 + $0x1c0] sm:$0xff]
  %v86 = vld [vmem:[%s1 + $0x1c8] sm:$0xff]
  %v87 = vld [vmem:[%s1 + $0x1d0] sm:$0xff]
  %v88 = vld [vmem:[%s1 + $0x1d8] sm:$0xff]
  %v89 = vld [vmem:[%s1 + $0x1e0] sm:$0xff]
  %v90 = vld [vmem:[%s1 + $0x1e8] sm:$0xff]
  %v91 = vld [vmem:[%s1 + $0x1f0] sm:$0xff]
  %v92 = vld [vmem:[%s1 + $0x1f8] sm:$0xff]
  %vm93 = vcmask 130048
  %94 = vst.msk [vmem:[#allocation2] sm:$0xff] %vm93, %v29
  %95 = vst.msk [vmem:[#allocation2 + $0x8] sm:$0xff] %vm93, %v30
  %96 = vst.msk [vmem:[#allocation2 + $0x10] sm:$0xff] %vm93, %v31
  %97 = vst.msk [vmem:[#allocation2 + $0x18] sm:$0xff] %vm93, %v32
  %98 = vst.msk [vmem:[#allocation2 + $0x20] sm:$0xff] %vm93, %v33
  %99 = vst.msk [vmem:[#allocation2 + $0x28] sm:$0xff] %vm93, %v34
  %100 = vst.msk [vmem:[#allocation2 + $0x30] sm:$0xff] %vm93, %v35
  %101 = vst.msk [vmem:[#allocation2 + $0x38] sm:$0xff] %vm93, %v36
  %102 = vst.msk [vmem:[#allocation2 + $0x40] sm:$0xff] %vm93, %v37
  %103 = vst.msk [vmem:[#allocation2 + $0x48] sm:$0xff] %vm93, %v38
  %104 = vst.msk [vmem:[#allocation2 + $0x50] sm:$0xff] %vm93, %v39
  %105 = vst.msk [vmem:[#allocation2 + $0x58] sm:$0xff] %vm93, %v40
  %106 = vst.msk [vmem:[#allocation2 + $0x60] sm:$0xff] %vm93, %v41
  %107 = vst.msk [vmem:[#allocation2 + $0x68] sm:$0xff] %vm93, %v42
  %108 = vst.msk [vmem:[#allocation2 + $0x70] sm:$0xff] %vm93, %v43
  %109 = vst.msk [vmem:[#allocation2 + $0x78] sm:$0xff] %vm93, %v44
  %110 = vst.msk [vmem:[#allocation2 + $0x80] sm:$0xff] %vm93, %v45
  %111 = vst.msk [vmem:[#allocation2 + $0x88] sm:$0xff] %vm93, %v46
  %112 = vst.msk [vmem:[#allocation2 + $0x90] sm:$0xff] %vm93, %v47
  %113 = vst.msk [vmem:[#allocation2 + $0x98] sm:$0xff] %vm93, %v48
  %114 = vst.msk [vmem:[#allocation2 + $0xa0] sm:$0xff] %vm93, %v49
  %115 = vst.msk [vmem:[#allocation2 + $0xa8] sm:$0xff] %vm93, %v50
  %116 = vst.msk [vmem:[#allocation2 + $0xb0] sm:$0xff] %vm93, %v51
  %117 = vst.msk [vmem:[#allocation2 + $0xb8] sm:$0xff] %vm93, %v52
  %118 = vst.msk [vmem:[#allocation2 + $0xc0] sm:$0xff] %vm93, %v53
  %119 = vst.msk [vmem:[#allocation2 + $0xc8] sm:$0xff] %vm93, %v54
  %120 = vst.msk [vmem:[#allocation2 + $0xd0] sm:$0xff] %vm93, %v55
  %121 = vst.msk [vmem:[#allocation2 + $0xd8] sm:$0xff] %vm93, %v56
  %122 = vst.msk [vmem:[#allocation2 + $0xe0] sm:$0xff] %vm93, %v57
  %123 = vst.msk [vmem:[#allocation2 + $0xe8] sm:$0xff] %vm93, %v58
  %124 = vst.msk [vmem:[#allocation2 + $0xf0] sm:$0xff] %vm93, %v59
  %125 = vst.msk [vmem:[#allocation2 + $0xf8] sm:$0xff] %vm93, %v60
  %126 = vst.msk [vmem:[#allocation2 + $0x100] sm:$0xff] %vm93, %v61
  %127 = vst.msk [vmem:[#allocation2 + $0x108] sm:$0xff] %vm93, %v62
  %128 = vst.msk [vmem:[#allocation2 + $0x110] sm:$0xff] %vm93, %v63
  %129 = vst.msk [vmem:[#allocation2 + $0x118] sm:$0xff] %vm93, %v64
  %130 = vst.msk [vmem:[#allocation2 + $0x120] sm:$0xff] %vm93, %v65
  %131 = vst.msk [vmem:[#allocation2 + $0x128] sm:$0xff] %vm93, %v66
  %132 = vst.msk [vmem:[#allocation2 + $0x130] sm:$0xff] %vm93, %v67
  %133 = vst.msk [vmem:[#allocation2 + $0x138] sm:$0xff] %vm93, %v68
  %134 = vst.msk [vmem:[#allocation2 + $0x140] sm:$0xff] %vm93, %v69
  %135 = vst.msk [vmem:[#allocation2 + $0x148] sm:$0xff] %vm93, %v70
  %136 = vst.msk [vmem:[#allocation2 + $0x150] sm:$0xff] %vm93, %v71
  %137 = vst.msk [vmem:[#allocation2 + $0x158] sm:$0xff] %vm93, %v72
  %138 = vst.msk [vmem:[#allocation2 + $0x160] sm:$0xff] %vm93, %v73
  %139 = vst.msk [vmem:[#allocation2 + $0x168] sm:$0xff] %vm93, %v74
  %140 = vst.msk [vmem:[#allocation2 + $0x170] sm:$0xff] %vm93, %v75
  %141 = vst.msk [vmem:[#allocation2 + $0x178] sm:$0xff] %vm93, %v76
  %142 = vst.msk [vmem:[#allocation2 + $0x180] sm:$0xff] %vm93, %v77
  %143 = vst.msk [vmem:[#allocation2 + $0x188] sm:$0xff] %vm93, %v78
  %144 = vst.msk [vmem:[#allocation2 + $0x190] sm:$0xff] %vm93, %v79
  %145 = vst.msk [vmem:[#allocation2 + $0x198] sm:$0xff] %vm93, %v80
  %146 = vst.msk [vmem:[#allocation2 + $0x1a0] sm:$0xff] %vm93, %v81
  %147 = vst.msk [vmem:[#allocation2 + $0x1a8] sm:$0xff] %vm93, %v82
  %148 = vst.msk [vmem:[#allocation2 + $0x1b0] sm:$0xff] %vm93, %v83
  %149 = vst.msk [vmem:[#allocation2 + $0x1b8] sm:$0xff] %vm93, %v84
  %150 = vst.msk [vmem:[#allocation2 + $0x1c0] sm:$0xff] %vm93, %v85
  %151 = vst.msk [vmem:[#allocation2 + $0x1c8] sm:$0xff] %vm93, %v86
  %152 = vst.msk [vmem:[#allocation2 + $0x1d0] sm:$0xff] %vm93, %v87
  %153 = vst.msk [vmem:[#allocation2 + $0x1d8] sm:$0xff] %vm93, %v88
  %154 = vst.msk [vmem:[#allocation2 + $0x1e0] sm:$0xff] %vm93, %v89
  %155 = vst.msk [vmem:[#allocation2 + $0x1e8] sm:$0xff] %vm93, %v90
  %156 = vst.msk [vmem:[#allocation2 + $0x1f0] sm:$0xff] %vm93, %v91
  %157 = vst.msk [vmem:[#allocation2 + $0x1f8] sm:$0xff] %vm93, %v92
  %v158 = vld [vmem:[%s0] sm:$0xff]
  %v159 = vld [vmem:[%s0 + $0x8] sm:$0xff]
  %v160 = vld [vmem:[%s0 + $0x10] sm:$0xff]
  %v161 = vld [vmem:[%s0 + $0x18] sm:$0xff]
  %v162 = vld [vmem:[%s0 + $0x20] sm:$0xff]
  %v163 = vld [vmem:[%s0 + $0x28] sm:$0xff]
  %v164 = vld [vmem:[%s0 + $0x30] sm:$0xff]
  %v165 = vld [vmem:[%s0 + $0x38] sm:$0xff]
  %v166 = vld [vmem:[%s0 + $0x40] sm:$0xff]
  %v167 = vld [vmem:[%s0 + $0x48] sm:$0xff]
  %v168 = vld [vmem:[%s0 + $0x50] sm:$0xff]
  %v169 = vld [vmem:[%s0 + $0x58] sm:$0xff]
  %v170 = vld [vmem:[%s0 + $0x60] sm:$0xff]
  %v171 = vld [vmem:[%s0 + $0x68] sm:$0xff]
  %v172 = vld [vmem:[%s0 + $0x70] sm:$0xff]
  %v173 = vld [vmem:[%s0 + $0x78] sm:$0xff]
  %v174 = vld [vmem:[%s0 + $0x80] sm:$0xff]
  %v175 = vld [vmem:[%s0 + $0x88] sm:$0xff]
  %v176 = vld [vmem:[%s0 + $0x90] sm:$0xff]
  %v177 = vld [vmem:[%s0 + $0x98] sm:$0xff]
  %v178 = vld [vmem:[%s0 + $0xa0] sm:$0xff]
  %v179 = vld [vmem:[%s0 + $0xa8] sm:$0xff]
  %v180 = vld [vmem:[%s0 + $0xb0] sm:$0xff]
  %v181 = vld [vmem:[%s0 + $0xb8] sm:$0xff]
  %v182 = vld [vmem:[%s0 + $0xc0] sm:$0xff]
  %v183 = vld [vmem:[%s0 + $0xc8] sm:$0xff]
  %v184 = vld [vmem:[%s0 + $0xd0] sm:$0xff]
  %v185 = vld [vmem:[%s0 + $0xd8] sm:$0xff]
  %v186 = vld [vmem:[%s0 + $0xe0] sm:$0xff]
  %v187 = vld [vmem:[%s0 + $0xe8] sm:$0xff]
  %v188 = vld [vmem:[%s0 + $0xf0] sm:$0xff]
  %v189 = vld [vmem:[%s0 + $0xf8] sm:$0xff]
  %v190 = vld [vmem:[%s0 + $0x100] sm:$0xff]
  %v191 = vld [vmem:[%s0 + $0x108] sm:$0xff]
  %v192 = vld [vmem:[%s0 + $0x110] sm:$0xff]
  %v193 = vld [vmem:[%s0 + $0x118] sm:$0xff]
  %v194 = vld [vmem:[%s0 + $0x120] sm:$0xff]
  %v195 = vld [vmem:[%s0 + $0x128] sm:$0xff]
  %v196 = vld [vmem:[%s0 + $0x130] sm:$0xff]
  %v197 = vld [vmem:[%s0 + $0x138] sm:$0xff]
  %v198 = vld [vmem:[%s0 + $0x140] sm:$0xff]
  %v199 = vld [vmem:[%s0 + $0x148] sm:$0xff]
  %v200 = vld [vmem:[%s0 + $0x150] sm:$0xff]
  %v201 = vld [vmem:[%s0 + $0x158] sm:$0xff]
  %v202 = vld [vmem:[%s0 + $0x160] sm:$0xff]
  %v203 = vld [vmem:[%s0 + $0x168] sm:$0xff]
  %v204 = vld [vmem:[%s0 + $0x170] sm:$0xff]
  %v205 = vld [vmem:[%s0 + $0x178] sm:$0xff]
  %v206 = vld [vmem:[%s0 + $0x180] sm:$0xff]
  %v207 = vld [vmem:[%s0 + $0x188] sm:$0xff]
  %v208 = vld [vmem:[%s0 + $0x190] sm:$0xff]
  %v209 = vld [vmem:[%s0 + $0x198] sm:$0xff]
  %v210 = vld [vmem:[%s0 + $0x1a0] sm:$0xff]
  %v211 = vld [vmem:[%s0 + $0x1a8] sm:$0xff]
  %v212 = vld [vmem:[%s0 + $0x1b0] sm:$0xff]
  %v213 = vld [vmem:[%s0 + $0x1b8] sm:$0xff]
  %v214 = vld [vmem:[%s0 + $0x1c0] sm:$0xff]
  %v215 = vld [vmem:[%s0 + $0x1c8] sm:$0xff]
  %v216 = vld [vmem:[%s0 + $0x1d0] sm:$0xff]
  %v217 = vld [vmem:[%s0 + $0x1d8] sm:$0xff]
  %v218 = vld [vmem:[%s0 + $0x1e0] sm:$0xff]
  %v219 = vld [vmem:[%s0 + $0x1e8] sm:$0xff]
  %v220 = vld [vmem:[%s0 + $0x1f0] sm:$0xff]
  %v221 = vld [vmem:[%s0 + $0x1f8] sm:$0xff]
  %v222 = vld [vmem:[%s0 + $0x200] sm:$0xff]
  %v223 = vld [vmem:[%s0 + $0x208] sm:$0xff]
  %v224 = vld [vmem:[%s0 + $0x210] sm:$0xff]
  %v225 = vld [vmem:[%s0 + $0x218] sm:$0xff]
  %v226 = vld [vmem:[%s0 + $0x220] sm:$0xff]
  %v227 = vld [vmem:[%s0 + $0x228] sm:$0xff]
  %v228 = vld [vmem:[%s0 + $0x230] sm:$0xff]
  %v229 = vld [vmem:[%s0 + $0x238] sm:$0xff]
  %v230 = vld [vmem:[%s0 + $0x240] sm:$0xff]
  %v231 = vld [vmem:[%s0 + $0x248] sm:$0xff]
  %v232 = vld [vmem:[%s0 + $0x250] sm:$0xff]
  %v233 = vld [vmem:[%s0 + $0x258] sm:$0xff]
  %v234 = vld [vmem:[%s0 + $0x260] sm:$0xff]
  %v235 = vld [vmem:[%s0 + $0x268] sm:$0xff]
  %v236 = vld [vmem:[%s0 + $0x270] sm:$0xff]
  %v237 = vld [vmem:[%s0 + $0x278] sm:$0xff]
  %v238 = vld [vmem:[%s0 + $0x280] sm:$0xff]
  %v239 = vld [vmem:[%s0 + $0x288] sm:$0xff]
  %v240 = vld [vmem:[%s0 + $0x290] sm:$0xff]
  %v241 = vld [vmem:[%s0 + $0x298] sm:$0xff]
  %v242 = vld [vmem:[%s0 + $0x2a0] sm:$0xff]
  %v243 = vld [vmem:[%s0 + $0x2a8] sm:$0xff]
  %v244 = vld [vmem:[%s0 + $0x2b0] sm:$0xff]
  %v245 = vld [vmem:[%s0 + $0x2b8] sm:$0xff]
  %v246 = vld [vmem:[%s0 + $0x2c0] sm:$0xff]
  %v247 = vld [vmem:[%s0 + $0x2c8] sm:$0xff]
  %v248 = vld [vmem:[%s0 + $0x2d0] sm:$0xff]
  %v249 = vld [vmem:[%s0 + $0x2d8] sm:$0xff]
  %v250 = vld [vmem:[%s0 + $0x2e0] sm:$0xff]
  %v251 = vld [vmem:[%s0 + $0x2e8] sm:$0xff]
  %v252 = vld [vmem:[%s0 + $0x2f0] sm:$0xff]
  %v253 = vld [vmem:[%s0 + $0x2f8] sm:$0xff]
  %v254 = vld [vmem:[%s0 + $0x300] sm:$0xff]
  %v255 = vld [vmem:[%s0 + $0x308] sm:$0xff]
  %v256 = vld [vmem:[%s0 + $0x310] sm:$0xff]
  %v257 = vld [vmem:[%s0 + $0x318] sm:$0xff]
  %v258 = vld [vmem:[%s0 + $0x320] sm:$0xff]
  %v259 = vld [vmem:[%s0 + $0x328] sm:$0xff]
  %v260 = vld [vmem:[%s0 + $0x330] sm:$0xff]
  %v261 = vld [vmem:[%s0 + $0x338] sm:$0xff]
  %v262 = vld [vmem:[%s0 + $0x340] sm:$0xff]
  %v263 = vld [vmem:[%s0 + $0x348] sm:$0xff]
  %v264 = vld [vmem:[%s0 + $0x350] sm:$0xff]
  %v265 = vld [vmem:[%s0 + $0x358] sm:$0xff]
  %v266 = vld [vmem:[%s0 + $0x360] sm:$0xff]
  %v267 = vld [vmem:[%s0 + $0x368] sm:$0xff]
  %v268 = vld [vmem:[%s0 + $0x370] sm:$0xff]
  %v269 = vld [vmem:[%s0 + $0x378] sm:$0xff]
  %v270 = vld [vmem:[%s0 + $0x380] sm:$0xff]
  %v271 = vld [vmem:[%s0 + $0x388] sm:$0xff]
  %v272 = vld [vmem:[%s0 + $0x390] sm:$0xff]
  %v273 = vld [vmem:[%s0 + $0x398] sm:$0xff]
  %v274 = vld [vmem:[%s0 + $0x3a0] sm:$0xff]
  %v275 = vld [vmem:[%s0 + $0x3a8] sm:$0xff]
  %v276 = vld [vmem:[%s0 + $0x3b0] sm:$0xff]
  %v277 = vld [vmem:[%s0 + $0x3b8] sm:$0xff]
  %v278 = vld [vmem:[%s0 + $0x3c0] sm:$0xff]
  %v279 = vld [vmem:[%s0 + $0x3c8] sm:$0xff]
  %v280 = vld [vmem:[%s0 + $0x3d0] sm:$0xff]
  %v281 = vld [vmem:[%s0 + $0x3d8] sm:$0xff]
  %v282 = vld [vmem:[%s0 + $0x3e0] sm:$0xff]
  %v283 = vld [vmem:[%s0 + $0x3e8] sm:$0xff]
  %v284 = vld [vmem:[%s0 + $0x3f0] sm:$0xff]
  %v285 = vld [vmem:[%s0 + $0x3f8] sm:$0xff]
  %v286 = vld [vmem:[%s0 + $0x400] sm:$0xff]
  %v287 = vld [vmem:[%s0 + $0x408] sm:$0xff]
  %v288 = vld [vmem:[%s0 + $0x410] sm:$0xff]
  %v289 = vld [vmem:[%s0 + $0x418] sm:$0xff]
  %v290 = vld [vmem:[%s0 + $0x420] sm:$0xff]
  %v291 = vld [vmem:[%s0 + $0x428] sm:$0xff]
  %v292 = vld [vmem:[%s0 + $0x430] sm:$0xff]
  %v293 = vld [vmem:[%s0 + $0x438] sm:$0xff]
  %v294 = vld [vmem:[%s0 + $0x440] sm:$0xff]
  %v295 = vld [vmem:[%s0 + $0x448] sm:$0xff]
  %v296 = vld [vmem:[%s0 + $0x450] sm:$0xff]
  %v297 = vld [vmem:[%s0 + $0x458] sm:$0xff]
  %v298 = vld [vmem:[%s0 + $0x460] sm:$0xff]
  %v299 = vld [vmem:[%s0 + $0x468] sm:$0xff]
  %v300 = vld [vmem:[%s0 + $0x470] sm:$0xff]
  %v301 = vld [vmem:[%s0 + $0x478] sm:$0xff]
  %v302 = vld [vmem:[%s0 + $0x480] sm:$0xff]
  %v303 = vld [vmem:[%s0 + $0x488] sm:$0xff]
  %v304 = vld [vmem:[%s0 + $0x490] sm:$0xff]
  %v305 = vld [vmem:[%s0 + $0x498] sm:$0xff]
  %v306 = vld [vmem:[%s0 + $0x4a0] sm:$0xff]
  %v307 = vld [vmem:[%s0 + $0x4a8] sm:$0xff]
  %v308 = vld [vmem:[%s0 + $0x4b0] sm:$0xff]
  %v309 = vld [vmem:[%s0 + $0x4b8] sm:$0xff]
  %v310 = vld [vmem:[%s0 + $0x4c0] sm:$0xff]
  %v311 = vld [vmem:[%s0 + $0x4c8] sm:$0xff]
  %v312 = vld [vmem:[%s0 + $0x4d0] sm:$0xff]
  %v313 = vld [vmem:[%s0 + $0x4d8] sm:$0xff]
  %v314 = vld [vmem:[%s0 + $0x4e0] sm:$0xff]
  %v315 = vld [vmem:[%s0 + $0x4e8] sm:$0xff]
  %v316 = vld [vmem:[%s0 + $0x4f0] sm:$0xff]
  %v317 = vld [vmem:[%s0 + $0x4f8] sm:$0xff]
  %v318 = vld [vmem:[%s0 + $0x500] sm:$0xff]
  %v319 = vld [vmem:[%s0 + $0x508] sm:$0xff]
  %v320 = vld [vmem:[%s0 + $0x510] sm:$0xff]
  %v321 = vld [vmem:[%s0 + $0x518] sm:$0xff]
  %v322 = vld [vmem:[%s0 + $0x520] sm:$0xff]
  %v323 = vld [vmem:[%s0 + $0x528] sm:$0xff]
  %v324 = vld [vmem:[%s0 + $0x530] sm:$0xff]
  %v325 = vld [vmem:[%s0 + $0x538] sm:$0xff]
  %v326 = vld [vmem:[%s0 + $0x540] sm:$0xff]
  %v327 = vld [vmem:[%s0 + $0x548] sm:$0xff]
  %v328 = vld [vmem:[%s0 + $0x550] sm:$0xff]
  %v329 = vld [vmem:[%s0 + $0x558] sm:$0xff]
  %v330 = vld [vmem:[%s0 + $0x560] sm:$0xff]
  %v331 = vld [vmem:[%s0 + $0x568] sm:$0xff]
  %v332 = vld [vmem:[%s0 + $0x570] sm:$0xff]
  %v333 = vld [vmem:[%s0 + $0x578] sm:$0xff]
  %v334 = vld [vmem:[%s0 + $0x580] sm:$0xff]
  %v335 = vld [vmem:[%s0 + $0x588] sm:$0xff]
  %v336 = vld [vmem:[%s0 + $0x590] sm:$0xff]
  %v337 = vld [vmem:[%s0 + $0x598] sm:$0xff]
  %v338 = vld [vmem:[%s0 + $0x5a0] sm:$0xff]
  %v339 = vld [vmem:[%s0 + $0x5a8] sm:$0xff]
  %v340 = vld [vmem:[%s0 + $0x5b0] sm:$0xff]
  %v341 = vld [vmem:[%s0 + $0x5b8] sm:$0xff]
  %v342 = vld [vmem:[%s0 + $0x5c0] sm:$0xff]
  %v343 = vld [vmem:[%s0 + $0x5c8] sm:$0xff]
  %v344 = vld [vmem:[%s0 + $0x5d0] sm:$0xff]
  %v345 = vld [vmem:[%s0 + $0x5d8] sm:$0xff]
  %v346 = vld [vmem:[%s0 + $0x5e0] sm:$0xff]
  %v347 = vld [vmem:[%s0 + $0x5e8] sm:$0xff]
  %v348 = vld [vmem:[%s0 + $0x5f0] sm:$0xff]
  %v349 = vld [vmem:[%s0 + $0x5f8] sm:$0xff]
  %v350 = vld [vmem:[%s0 + $0x600] sm:$0xff]
  %v351 = vld [vmem:[%s0 + $0x608] sm:$0xff]
  %v352 = vld [vmem:[%s0 + $0x610] sm:$0xff]
  %v353 = vld [vmem:[%s0 + $0x618] sm:$0xff]
  %v354 = vld [vmem:[%s0 + $0x620] sm:$0xff]
  %v355 = vld [vmem:[%s0 + $0x628] sm:$0xff]
  %v356 = vld [vmem:[%s0 + $0x630] sm:$0xff]
  %v357 = vld [vmem:[%s0 + $0x638] sm:$0xff]
  %v358 = vld [vmem:[%s0 + $0x640] sm:$0xff]
  %v359 = vld [vmem:[%s0 + $0x648] sm:$0xff]
  %v360 = vld [vmem:[%s0 + $0x650] sm:$0xff]
  %v361 = vld [vmem:[%s0 + $0x658] sm:$0xff]
  %v362 = vld [vmem:[%s0 + $0x660] sm:$0xff]
  %v363 = vld [vmem:[%s0 + $0x668] sm:$0xff]
  %v364 = vld [vmem:[%s0 + $0x670] sm:$0xff]
  %v365 = vld [vmem:[%s0 + $0x678] sm:$0xff]
  %v366 = vld [vmem:[%s0 + $0x680] sm:$0xff]
  %v367 = vld [vmem:[%s0 + $0x688] sm:$0xff]
  %v368 = vld [vmem:[%s0 + $0x690] sm:$0xff]
  %v369 = vld [vmem:[%s0 + $0x698] sm:$0xff]
  %v370 = vld [vmem:[%s0 + $0x6a0] sm:$0xff]
  %v371 = vld [vmem:[%s0 + $0x6a8] sm:$0xff]
  %v372 = vld [vmem:[%s0 + $0x6b0] sm:$0xff]
  %v373 = vld [vmem:[%s0 + $0x6b8] sm:$0xff]
  %v374 = vld [vmem:[%s0 + $0x6c0] sm:$0xff]
  %v375 = vld [vmem:[%s0 + $0x6c8] sm:$0xff]
  %v376 = vld [vmem:[%s0 + $0x6d0] sm:$0xff]
  %v377 = vld [vmem:[%s0 + $0x6d8] sm:$0xff]
  %v378 = vld [vmem:[%s0 + $0x6e0] sm:$0xff]
  %v379 = vld [vmem:[%s0 + $0x6e8] sm:$0xff]
  %v380 = vld [vmem:[%s0 + $0x6f0] sm:$0xff]
  %v381 = vld [vmem:[%s0 + $0x6f8] sm:$0xff]
  %v382 = vld [vmem:[%s0 + $0x700] sm:$0xff]
  %v383 = vld [vmem:[%s0 + $0x708] sm:$0xff]
  %v384 = vld [vmem:[%s0 + $0x710] sm:$0xff]
  %v385 = vld [vmem:[%s0 + $0x718] sm:$0xff]
  %v386 = vld [vmem:[%s0 + $0x720] sm:$0xff]
  %v387 = vld [vmem:[%s0 + $0x728] sm:$0xff]
  %v388 = vld [vmem:[%s0 + $0x730] sm:$0xff]
  %v389 = vld [vmem:[%s0 + $0x738] sm:$0xff]
  %v390 = vld [vmem:[%s0 + $0x740] sm:$0xff]
  %v391 = vld [vmem:[%s0 + $0x748] sm:$0xff]
  %v392 = vld [vmem:[%s0 + $0x750] sm:$0xff]
  %v393 = vld [vmem:[%s0 + $0x758] sm:$0xff]
  %v394 = vld [vmem:[%s0 + $0x760] sm:$0xff]
  %v395 = vld [vmem:[%s0 + $0x768] sm:$0xff]
  %v396 = vld [vmem:[%s0 + $0x770] sm:$0xff]
  %v397 = vld [vmem:[%s0 + $0x778] sm:$0xff]
  %v398 = vld [vmem:[%s0 + $0x780] sm:$0xff]
  %v399 = vld [vmem:[%s0 + $0x788] sm:$0xff]
  %v400 = vld [vmem:[%s0 + $0x790] sm:$0xff]
  %v401 = vld [vmem:[%s0 + $0x798] sm:$0xff]
  %v402 = vld [vmem:[%s0 + $0x7a0] sm:$0xff]
  %v403 = vld [vmem:[%s0 + $0x7a8] sm:$0xff]
  %v404 = vld [vmem:[%s0 + $0x7b0] sm:$0xff]
  %v405 = vld [vmem:[%s0 + $0x7b8] sm:$0xff]
  %v406 = vld [vmem:[%s0 + $0x7c0] sm:$0xff]
  %v407 = vld [vmem:[%s0 + $0x7c8] sm:$0xff]
  %v408 = vld [vmem:[%s0 + $0x7d0] sm:$0xff]
  %v409 = vld [vmem:[%s0 + $0x7d8] sm:$0xff]
  %v410 = vld [vmem:[%s0 + $0x7e0] sm:$0xff]
  %v411 = vld [vmem:[%s0 + $0x7e8] sm:$0xff]
  %v412 = vld [vmem:[%s0 + $0x7f0] sm:$0xff]
  %v413 = vld [vmem:[%s0 + $0x7f8] sm:$0xff]
  %414 = vmatpush.msra.mxu0 %v44
  %415 = vmatpush.msra.mxu0 %v43
  %416 = vmatpush.msra.mxu0 %v42
  %417 = vmatpush.msra.mxu0 %v41
  %418 = vmatpush.msra.mxu0 %v40
  %419 = vmatpush.msra.mxu0 %v39
  %420 = vmatpush.msra.mxu0 %v38
  %421 = vmatpush.msra.mxu0 %v37
  %422 = vmatpush.msra.mxu0 %v36
  %423 = vmatpush.msra.mxu0 %v35
  %424 = vmatpush.msra.mxu0 %v34
  %425 = vmatpush.msra.mxu0 %v33
  %426 = vmatpush.msra.mxu0 %v32
  %427 = vmatpush.msra.mxu0 %v31
  %428 = vmatpush.msra.mxu0 %v30
  %429 = vmatpush.msra.mxu0 %v29
  %430 = vmatmul.f32.gmra.mxu0 %v158
  %v431 = vpop.f32.mrf.mxu0
  %v432 = vadd.f32 0.0, %v431
  %433 = vmatmul.f32.gmra.mxu0 %v162
  %v434 = vpop.f32.mrf.mxu0
  %v435 = vadd.f32 0.0, %v434
  %436 = vmatmul.f32.gmra.mxu0 %v166
  %v437 = vpop.f32.mrf.mxu0
  %v438 = vadd.f32 0.0, %v437
  %439 = vmatmul.f32.gmra.mxu0 %v170
  %v440 = vpop.f32.mrf.mxu0
  %v441 = vadd.f32 0.0, %v440
  %442 = vmatmul.f32.gmra.mxu0 %v174
  %v443 = vpop.f32.mrf.mxu0
  %v444 = vadd.f32 0.0, %v443
  %445 = vmatmul.f32.gmra.mxu0 %v178
  %v446 = vpop.f32.mrf.mxu0
  %v447 = vadd.f32 0.0, %v446
  %448 = vmatmul.f32.gmra.mxu0 %v182
  %v449 = vpop.f32.mrf.mxu0
  %v450 = vadd.f32 0.0, %v449
  %451 = vmatmul.f32.gmra.mxu0 %v186
  %v452 = vpop.f32.mrf.mxu0
  %v453 = vadd.f32 0.0, %v452
  %454 = vmatmul.f32.gmra.mxu0 %v190
  %v455 = vpop.f32.mrf.mxu0
  %v456 = vadd.f32 0.0, %v455
  %457 = vmatmul.f32.gmra.mxu0 %v194
  %v458 = vpop.f32.mrf.mxu0
  %v459 = vadd.f32 0.0, %v458
  %460 = vmatmul.f32.gmra.mxu0 %v198
  %v461 = vpop.f32.mrf.mxu0
  %v462 = vadd.f32 0.0, %v461
  %463 = vmatmul.f32.gmra.mxu0 %v202
  %v464 = vpop.f32.mrf.mxu0
  %v465 = vadd.f32 0.0, %v464
  %466 = vmatmul.f32.gmra.mxu0 %v206
  %v467 = vpop.f32.mrf.mxu0
  %v468 = vadd.f32 0.0, %v467
  %469 = vmatmul.f32.gmra.mxu0 %v210
  %v470 = vpop.f32.mrf.mxu0
  %v471 = vadd.f32 0.0, %v470
  %472 = vmatmul.f32.gmra.mxu0 %v214
  %v473 = vpop.f32.mrf.mxu0
  %v474 = vadd.f32 0.0, %v473
  %475 = vmatmul.f32.gmra.mxu0 %v218
  %v476 = vpop.f32.mrf.mxu0
  %v477 = vadd.f32 0.0, %v476
  %478 = vmatmul.f32.gmra.mxu0 %v222
  %v479 = vpop.f32.mrf.mxu0
  %v480 = vadd.f32 0.0, %v479
  %481 = vmatmul.f32.gmra.mxu0 %v226
  %v482 = vpop.f32.mrf.mxu0
  %v483 = vadd.f32 0.0, %v482
  %484 = vmatmul.f32.gmra.mxu0 %v230
  %v485 = vpop.f32.mrf.mxu0
  %v486 = vadd.f32 0.0, %v485
  %487 = vmatmul.f32.gmra.mxu0 %v234
  %v488 = vpop.f32.mrf.mxu0
  %v489 = vadd.f32 0.0, %v488
  %490 = vmatmul.f32.gmra.mxu0 %v238
  %v491 = vpop.f32.mrf.mxu0
  %v492 = vadd.f32 0.0, %v491
  %493 = vmatmul.f32.gmra.mxu0 %v242
  %v494 = vpop.f32.mrf.mxu0
  %v495 = vadd.f32 0.0, %v494
  %496 = vmatmul.f32.gmra.mxu0 %v246
  %v497 = vpop.f32.mrf.mxu0
  %v498 = vadd.f32 0.0, %v497
  %499 = vmatmul.f32.gmra.mxu0 %v250
  %v500 = vpop.f32.mrf.mxu0
  %v501 = vadd.f32 0.0, %v500
  %502 = vmatmul.f32.gmra.mxu0 %v254
  %v503 = vpop.f32.mrf.mxu0
  %v504 = vadd.f32 0.0, %v503
  %505 = vmatmul.f32.gmra.mxu0 %v258
  %v506 = vpop.f32.mrf.mxu0
  %v507 = vadd.f32 0.0, %v506
  %508 = vmatmul.f32.gmra.mxu0 %v262
  %v509 = vpop.f32.mrf.mxu0
  %v510 = vadd.f32 0.0, %v509
  %511 = vmatmul.f32.gmra.mxu0 %v266
  %v512 = vpop.f32.mrf.mxu0
  %v513 = vadd.f32 0.0, %v512
  %514 = vmatmul.f32.gmra.mxu0 %v270
  %v515 = vpop.f32.mrf.mxu0
  %v516 = vadd.f32 0.0, %v515
  %517 = vmatmul.f32.gmra.mxu0 %v274
  %v518 = vpop.f32.mrf.mxu0
  %v519 = vadd.f32 0.0, %v518
  %520 = vmatmul.f32.gmra.mxu0 %v278
  %v521 = vpop.f32.mrf.mxu0
  %v522 = vadd.f32 0.0, %v521
  %523 = vmatmul.f32.gmra.mxu0 %v282
  %v524 = vpop.f32.mrf.mxu0
  %v525 = vadd.f32 0.0, %v524
  %526 = vmatmul.f32.gmra.mxu0 %v286
  %v527 = vpop.f32.mrf.mxu0
  %v528 = vadd.f32 0.0, %v527
  %529 = vmatmul.f32.gmra.mxu0 %v290
  %v530 = vpop.f32.mrf.mxu0
  %v531 = vadd.f32 0.0, %v530
  %532 = vmatmul.f32.gmra.mxu0 %v294
  %v533 = vpop.f32.mrf.mxu0
  %v534 = vadd.f32 0.0, %v533
  %535 = vmatmul.f32.gmra.mxu0 %v298
  %v536 = vpop.f32.mrf.mxu0
  %v537 = vadd.f32 0.0, %v536
  %538 = vmatmul.f32.gmra.mxu0 %v302
  %v539 = vpop.f32.mrf.mxu0
  %v540 = vadd.f32 0.0, %v539
  %541 = vmatmul.f32.gmra.mxu0 %v306
  %v542 = vpop.f32.mrf.mxu0
  %v543 = vadd.f32 0.0, %v542
  %544 = vmatmul.f32.gmra.mxu0 %v310
  %v545 = vpop.f32.mrf.mxu0
  %v546 = vadd.f32 0.0, %v545
  %547 = vmatmul.f32.gmra.mxu0 %v314
  %v548 = vpop.f32.mrf.mxu0
  %v549 = vadd.f32 0.0, %v548
  %550 = vmatmul.f32.gmra.mxu0 %v318
  %v551 = vpop.f32.mrf.mxu0
  %v552 = vadd.f32 0.0, %v551
  %553 = vmatmul.f32.gmra.mxu0 %v322
  %v554 = vpop.f32.mrf.mxu0
  %v555 = vadd.f32 0.0, %v554
  %556 = vmatmul.f32.gmra.mxu0 %v326
  %v557 = vpop.f32.mrf.mxu0
  %v558 = vadd.f32 0.0, %v557
  %559 = vmatmul.f32.gmra.mxu0 %v330
  %v560 = vpop.f32.mrf.mxu0
  %v561 = vadd.f32 0.0, %v560
  %562 = vmatmul.f32.gmra.mxu0 %v334
  %v563 = vpop.f32.mrf.mxu0
  %v564 = vadd.f32 0.0, %v563
  %565 = vmatmul.f32.gmra.mxu0 %v338
  %v566 = vpop.f32.mrf.mxu0
  %v567 = vadd.f32 0.0, %v566
  %568 = vmatmul.f32.gmra.mxu0 %v342
  %v569 = vpop.f32.mrf.mxu0
  %v570 = vadd.f32 0.0, %v569
  %571 = vmatmul.f32.gmra.mxu0 %v346
  %v572 = vpop.f32.mrf.mxu0
  %v573 = vadd.f32 0.0, %v572
  %574 = vmatmul.f32.gmra.mxu0 %v350
  %v575 = vpop.f32.mrf.mxu0
  %v576 = vadd.f32 0.0, %v575
  %577 = vmatmul.f32.gmra.mxu0 %v354
  %v578 = vpop.f32.mrf.mxu0
  %v579 = vadd.f32 0.0, %v578
  %580 = vmatmul.f32.gmra.mxu0 %v358
  %v581 = vpop.f32.mrf.mxu0
  %v582 = vadd.f32 0.0, %v581
  %583 = vmatmul.f32.gmra.mxu0 %v362
  %v584 = vpop.f32.mrf.mxu0
  %v585 = vadd.f32 0.0, %v584
  %586 = vmatmul.f32.gmra.mxu0 %v366
  %v587 = vpop.f32.mrf.mxu0
  %v588 = vadd.f32 0.0, %v587
  %589 = vmatmul.f32.gmra.mxu0 %v370
  %v590 = vpop.f32.mrf.mxu0
  %v591 = vadd.f32 0.0, %v590
  %592 = vmatmul.f32.gmra.mxu0 %v374
  %v593 = vpop.f32.mrf.mxu0
  %v594 = vadd.f32 0.0, %v593
  %595 = vmatmul.f32.gmra.mxu0 %v378
  %v596 = vpop.f32.mrf.mxu0
  %v597 = vadd.f32 0.0, %v596
  %598 = vmatmul.f32.gmra.mxu0 %v382
  %v599 = vpop.f32.mrf.mxu0
  %v600 = vadd.f32 0.0, %v599
  %601 = vmatmul.f32.gmra.mxu0 %v386
  %v602 = vpop.f32.mrf.mxu0
  %v603 = vadd.f32 0.0, %v602
  %604 = vmatmul.f32.gmra.mxu0 %v390
  %v605 = vpop.f32.mrf.mxu0
  %v606 = vadd.f32 0.0, %v605
  %607 = vmatmul.f32.gmra.mxu0 %v394
  %v608 = vpop.f32.mrf.mxu0
  %v609 = vadd.f32 0.0, %v608
  %610 = vmatmul.f32.gmra.mxu0 %v398
  %v611 = vpop.f32.mrf.mxu0
  %v612 = vadd.f32 0.0, %v611
  %613 = vmatmul.f32.gmra.mxu0 %v402
  %v614 = vpop.f32.mrf.mxu0
  %v615 = vadd.f32 0.0, %v614
  %616 = vmatmul.f32.gmra.mxu0 %v406
  %v617 = vpop.f32.mrf.mxu0
  %v618 = vadd.f32 0.0, %v617
  %619 = vmatmul.f32.gmra.mxu0 %v410
  %v620 = vpop.f32.mrf.mxu0
  %v621 = vadd.f32 0.0, %v620
  %622 = vdwg.mxu0
  %623 = vmatpush.msra.mxu0 %v60
  %624 = vmatpush.msra.mxu0 %v59
  %625 = vmatpush.msra.mxu0 %v58
  %626 = vmatpush.msra.mxu0 %v57
  %627 = vmatpush.msra.mxu0 %v56
  %628 = vmatpush.msra.mxu0 %v55
  %629 = vmatpush.msra.mxu0 %v54
  %630 = vmatpush.msra.mxu0 %v53
  %631 = vmatpush.msra.mxu0 %v52
  %632 = vmatpush.msra.mxu0 %v51
  %633 = vmatpush.msra.mxu0 %v50
  %634 = vmatpush.msra.mxu0 %v49
  %635 = vmatpush.msra.mxu0 %v48
  %636 = vmatpush.msra.mxu0 %v47
  %637 = vmatpush.msra.mxu0 %v46
  %638 = vmatpush.msra.mxu0 %v45
  %639 = vmatmul.f32.gmra.mxu0 %v159
  %v640 = vpop.f32.mrf.mxu0
  %v641 = vadd.f32 %v432, %v640
  %642 = vmatmul.f32.gmra.mxu0 %v163
  %v643 = vpop.f32.mrf.mxu0
  %v644 = vadd.f32 %v435, %v643
  %645 = vmatmul.f32.gmra.mxu0 %v167
  %v646 = vpop.f32.mrf.mxu0
  %v647 = vadd.f32 %v438, %v646
  %648 = vmatmul.f32.gmra.mxu0 %v171
  %v649 = vpop.f32.mrf.mxu0
  %v650 = vadd.f32 %v441, %v649
  %651 = vmatmul.f32.gmra.mxu0 %v175
  %v652 = vpop.f32.mrf.mxu0
  %v653 = vadd.f32 %v444, %v652
  %654 = vmatmul.f32.gmra.mxu0 %v179
  %v655 = vpop.f32.mrf.mxu0
  %v656 = vadd.f32 %v447, %v655
  %657 = vmatmul.f32.gmra.mxu0 %v183
  %v658 = vpop.f32.mrf.mxu0
  %v659 = vadd.f32 %v450, %v658
  %660 = vmatmul.f32.gmra.mxu0 %v187
  %v661 = vpop.f32.mrf.mxu0
  %v662 = vadd.f32 %v453, %v661
  %663 = vmatmul.f32.gmra.mxu0 %v191
  %v664 = vpop.f32.mrf.mxu0
  %v665 = vadd.f32 %v456, %v664
  %666 = vmatmul.f32.gmra.mxu0 %v195
  %v667 = vpop.f32.mrf.mxu0
  %v668 = vadd.f32 %v459, %v667
  %669 = vmatmul.f32.gmra.mxu0 %v199
  %v670 = vpop.f32.mrf.mxu0
  %v671 = vadd.f32 %v462, %v670
  %672 = vmatmul.f32.gmra.mxu0 %v203
  %v673 = vpop.f32.mrf.mxu0
  %v674 = vadd.f32 %v465, %v673
  %675 = vmatmul.f32.gmra.mxu0 %v207
  %v676 = vpop.f32.mrf.mxu0
  %v677 = vadd.f32 %v468, %v676
  %678 = vmatmul.f32.gmra.mxu0 %v211
  %v679 = vpop.f32.mrf.mxu0
  %v680 = vadd.f32 %v471, %v679
  %681 = vmatmul.f32.gmra.mxu0 %v215
  %v682 = vpop.f32.mrf.mxu0
  %v683 = vadd.f32 %v474, %v682
  %684 = vmatmul.f32.gmra.mxu0 %v219
  %v685 = vpop.f32.mrf.mxu0
  %v686 = vadd.f32 %v477, %v685
  %687 = vmatmul.f32.gmra.mxu0 %v223
  %v688 = vpop.f32.mrf.mxu0
  %v689 = vadd.f32 %v480, %v688
  %690 = vmatmul.f32.gmra.mxu0 %v227
  %v691 = vpop.f32.mrf.mxu0
  %v692 = vadd.f32 %v483, %v691
  %693 = vmatmul.f32.gmra.mxu0 %v231
  %v694 = vpop.f32.mrf.mxu0
  %v695 = vadd.f32 %v486, %v694
  %696 = vmatmul.f32.gmra.mxu0 %v235
  %v697 = vpop.f32.mrf.mxu0
  %v698 = vadd.f32 %v489, %v697
  %699 = vmatmul.f32.gmra.mxu0 %v239
  %v700 = vpop.f32.mrf.mxu0
  %v701 = vadd.f32 %v492, %v700
  %702 = vmatmul.f32.gmra.mxu0 %v243
  %v703 = vpop.f32.mrf.mxu0
  %v704 = vadd.f32 %v495, %v703
  %705 = vmatmul.f32.gmra.mxu0 %v247
  %v706 = vpop.f32.mrf.mxu0
  %v707 = vadd.f32 %v498, %v706
  %708 = vmatmul.f32.gmra.mxu0 %v251
  %v709 = vpop.f32.mrf.mxu0
  %v710 = vadd.f32 %v501, %v709
  %711 = vmatmul.f32.gmra.mxu0 %v255
  %v712 = vpop.f32.mrf.mxu0
  %v713 = vadd.f32 %v504, %v712
  %714 = vmatmul.f32.gmra.mxu0 %v259
  %v715 = vpop.f32.mrf.mxu0
  %v716 = vadd.f32 %v507, %v715
  %717 = vmatmul.f32.gmra.mxu0 %v263
  %v718 = vpop.f32.mrf.mxu0
  %v719 = vadd.f32 %v510, %v718
  %720 = vmatmul.f32.gmra.mxu0 %v267
  %v721 = vpop.f32.mrf.mxu0
  %v722 = vadd.f32 %v513, %v721
  %723 = vmatmul.f32.gmra.mxu0 %v271
  %v724 = vpop.f32.mrf.mxu0
  %v725 = vadd.f32 %v516, %v724
  %726 = vmatmul.f32.gmra.mxu0 %v275
  %v727 = vpop.f32.mrf.mxu0
  %v728 = vadd.f32 %v519, %v727
  %729 = vmatmul.f32.gmra.mxu0 %v279
  %v730 = vpop.f32.mrf.mxu0
  %v731 = vadd.f32 %v522, %v730
  %732 = vmatmul.f32.gmra.mxu0 %v283
  %v733 = vpop.f32.mrf.mxu0
  %v734 = vadd.f32 %v525, %v733
  %735 = vmatmul.f32.gmra.mxu0 %v287
  %v736 = vpop.f32.mrf.mxu0
  %v737 = vadd.f32 %v528, %v736
  %738 = vmatmul.f32.gmra.mxu0 %v291
  %v739 = vpop.f32.mrf.mxu0
  %v740 = vadd.f32 %v531, %v739
  %741 = vmatmul.f32.gmra.mxu0 %v295
  %v742 = vpop.f32.mrf.mxu0
  %v743 = vadd.f32 %v534, %v742
  %744 = vmatmul.f32.gmra.mxu0 %v299
  %v745 = vpop.f32.mrf.mxu0
  %v746 = vadd.f32 %v537, %v745
  %747 = vmatmul.f32.gmra.mxu0 %v303
  %v748 = vpop.f32.mrf.mxu0
  %v749 = vadd.f32 %v540, %v748
  %750 = vmatmul.f32.gmra.mxu0 %v307
  %v751 = vpop.f32.mrf.mxu0
  %v752 = vadd.f32 %v543, %v751
  %753 = vmatmul.f32.gmra.mxu0 %v311
  %v754 = vpop.f32.mrf.mxu0
  %v755 = vadd.f32 %v546, %v754
  %756 = vmatmul.f32.gmra.mxu0 %v315
  %v757 = vpop.f32.mrf.mxu0
  %v758 = vadd.f32 %v549, %v757
  %759 = vmatmul.f32.gmra.mxu0 %v319
  %v760 = vpop.f32.mrf.mxu0
  %v761 = vadd.f32 %v552, %v760
  %762 = vmatmul.f32.gmra.mxu0 %v323
  %v763 = vpop.f32.mrf.mxu0
  %v764 = vadd.f32 %v555, %v763
  %765 = vmatmul.f32.gmra.mxu0 %v327
  %v766 = vpop.f32.mrf.mxu0
  %v767 = vadd.f32 %v558, %v766
  %768 = vmatmul.f32.gmra.mxu0 %v331
  %v769 = vpop.f32.mrf.mxu0
  %v770 = vadd.f32 %v561, %v769
  %771 = vmatmul.f32.gmra.mxu0 %v335
  %v772 = vpop.f32.mrf.mxu0
  %v773 = vadd.f32 %v564, %v772
  %774 = vmatmul.f32.gmra.mxu0 %v339
  %v775 = vpop.f32.mrf.mxu0
  %v776 = vadd.f32 %v567, %v775
  %777 = vmatmul.f32.gmra.mxu0 %v343
  %v778 = vpop.f32.mrf.mxu0
  %v779 = vadd.f32 %v570, %v778
  %780 = vmatmul.f32.gmra.mxu0 %v347
  %v781 = vpop.f32.mrf.mxu0
  %v782 = vadd.f32 %v573, %v781
  %783 = vmatmul.f32.gmra.mxu0 %v351
  %v784 = vpop.f32.mrf.mxu0
  %v785 = vadd.f32 %v576, %v784
  %786 = vmatmul.f32.gmra.mxu0 %v355
  %v787 = vpop.f32.mrf.mxu0
  %v788 = vadd.f32 %v579, %v787
  %789 = vmatmul.f32.gmra.mxu0 %v359
  %v790 = vpop.f32.mrf.mxu0
  %v791 = vadd.f32 %v582, %v790
  %792 = vmatmul.f32.gmra.mxu0 %v363
  %v793 = vpop.f32.mrf.mxu0
  %v794 = vadd.f32 %v585, %v793
  %795 = vmatmul.f32.gmra.mxu0 %v367
  %v796 = vpop.f32.mrf.mxu0
  %v797 = vadd.f32 %v588, %v796
  %798 = vmatmul.f32.gmra.mxu0 %v371
  %v799 = vpop.f32.mrf.mxu0
  %v800 = vadd.f32 %v591, %v799
  %801 = vmatmul.f32.gmra.mxu0 %v375
  %v802 = vpop.f32.mrf.mxu0
  %v803 = vadd.f32 %v594, %v802
  %804 = vmatmul.f32.gmra.mxu0 %v379
  %v805 = vpop.f32.mrf.mxu0
  %v806 = vadd.f32 %v597, %v805
  %807 = vmatmul.f32.gmra.mxu0 %v383
  %v808 = vpop.f32.mrf.mxu0
  %v809 = vadd.f32 %v600, %v808
  %810 = vmatmul.f32.gmra.mxu0 %v387
  %v811 = vpop.f32.mrf.mxu0
  %v812 = vadd.f32 %v603, %v811
  %813 = vmatmul.f32.gmra.mxu0 %v391
  %v814 = vpop.f32.mrf.mxu0
  %v815 = vadd.f32 %v606, %v814
  %816 = vmatmul.f32.gmra.mxu0 %v395
  %v817 = vpop.f32.mrf.mxu0
  %v818 = vadd.f32 %v609, %v817
  %819 = vmatmul.f32.gmra.mxu0 %v399
  %v820 = vpop.f32.mrf.mxu0
  %v821 = vadd.f32 %v612, %v820
  %822 = vmatmul.f32.gmra.mxu0 %v403
  %v823 = vpop.f32.mrf.mxu0
  %v824 = vadd.f32 %v615, %v823
  %825 = vmatmul.f32.gmra.mxu0 %v407
  %v826 = vpop.f32.mrf.mxu0
  %v827 = vadd.f32 %v618, %v826
  %828 = vmatmul.f32.gmra.mxu0 %v411
  %v829 = vpop.f32.mrf.mxu0
  %v830 = vadd.f32 %v621, %v829
  %831 = vdwg.mxu0
  %832 = vmatpush.msra.mxu0 %v76
  %833 = vmatpush.msra.mxu0 %v75
  %834 = vmatpush.msra.mxu0 %v74
  %835 = vmatpush.msra.mxu0 %v73
  %836 = vmatpush.msra.mxu0 %v72
  %837 = vmatpush.msra.mxu0 %v71
  %838 = vmatpush.msra.mxu0 %v70
  %839 = vmatpush.msra.mxu0 %v69
  %840 = vmatpush.msra.mxu0 %v68
  %841 = vmatpush.msra.mxu0 %v67
  %842 = vmatpush.msra.mxu0 %v66
  %843 = vmatpush.msra.mxu0 %v65
  %844 = vmatpush.msra.mxu0 %v64
  %845 = vmatpush.msra.mxu0 %v63
  %846 = vmatpush.msra.mxu0 %v62
  %847 = vmatpush.msra.mxu0 %v61
  %848 = vmatmul.f32.gmra.mxu0 %v160
  %v849 = vpop.f32.mrf.mxu0
  %v850 = vadd.f32 %v641, %v849
  %851 = vmatmul.f32.gmra.mxu0 %v164
  %v852 = vpop.f32.mrf.mxu0
  %v853 = vadd.f32 %v644, %v852
  %854 = vmatmul.f32.gmra.mxu0 %v168
  %v855 = vpop.f32.mrf.mxu0
  %v856 = vadd.f32 %v647, %v855
  %857 = vmatmul.f32.gmra.mxu0 %v172
  %v858 = vpop.f32.mrf.mxu0
  %v859 = vadd.f32 %v650, %v858
  %860 = vmatmul.f32.gmra.mxu0 %v176
  %v861 = vpop.f32.mrf.mxu0
  %v862 = vadd.f32 %v653, %v861
  %863 = vmatmul.f32.gmra.mxu0 %v180
  %v864 = vpop.f32.mrf.mxu0
  %v865 = vadd.f32 %v656, %v864
  %866 = vmatmul.f32.gmra.mxu0 %v184
  %v867 = vpop.f32.mrf.mxu0
  %v868 = vadd.f32 %v659, %v867
  %869 = vmatmul.f32.gmra.mxu0 %v188
  %v870 = vpop.f32.mrf.mxu0
  %v871 = vadd.f32 %v662, %v870
  %872 = vmatmul.f32.gmra.mxu0 %v192
  %v873 = vpop.f32.mrf.mxu0
  %v874 = vadd.f32 %v665, %v873
  %875 = vmatmul.f32.gmra.mxu0 %v196
  %v876 = vpop.f32.mrf.mxu0
  %v877 = vadd.f32 %v668, %v876
  %878 = vmatmul.f32.gmra.mxu0 %v200
  %v879 = vpop.f32.mrf.mxu0
  %v880 = vadd.f32 %v671, %v879
  %881 = vmatmul.f32.gmra.mxu0 %v204
  %v882 = vpop.f32.mrf.mxu0
  %v883 = vadd.f32 %v674, %v882
  %884 = vmatmul.f32.gmra.mxu0 %v208
  %v885 = vpop.f32.mrf.mxu0
  %v886 = vadd.f32 %v677, %v885
  %887 = vmatmul.f32.gmra.mxu0 %v212
  %v888 = vpop.f32.mrf.mxu0
  %v889 = vadd.f32 %v680, %v888
  %890 = vmatmul.f32.gmra.mxu0 %v216
  %v891 = vpop.f32.mrf.mxu0
  %v892 = vadd.f32 %v683, %v891
  %893 = vmatmul.f32.gmra.mxu0 %v220
  %v894 = vpop.f32.mrf.mxu0
  %v895 = vadd.f32 %v686, %v894
  %896 = vmatmul.f32.gmra.mxu0 %v224
  %v897 = vpop.f32.mrf.mxu0
  %v898 = vadd.f32 %v689, %v897
  %899 = vmatmul.f32.gmra.mxu0 %v228
  %v900 = vpop.f32.mrf.mxu0
  %v901 = vadd.f32 %v692, %v900
  %902 = vmatmul.f32.gmra.mxu0 %v232
  %v903 = vpop.f32.mrf.mxu0
  %v904 = vadd.f32 %v695, %v903
  %905 = vmatmul.f32.gmra.mxu0 %v236
  %v906 = vpop.f32.mrf.mxu0
  %v907 = vadd.f32 %v698, %v906
  %908 = vmatmul.f32.gmra.mxu0 %v240
  %v909 = vpop.f32.mrf.mxu0
  %v910 = vadd.f32 %v701, %v909
  %911 = vmatmul.f32.gmra.mxu0 %v244
  %v912 = vpop.f32.mrf.mxu0
  %v913 = vadd.f32 %v704, %v912
  %914 = vmatmul.f32.gmra.mxu0 %v248
  %v915 = vpop.f32.mrf.mxu0
  %v916 = vadd.f32 %v707, %v915
  %917 = vmatmul.f32.gmra.mxu0 %v252
  %v918 = vpop.f32.mrf.mxu0
  %v919 = vadd.f32 %v710, %v918
  %920 = vmatmul.f32.gmra.mxu0 %v256
  %v921 = vpop.f32.mrf.mxu0
  %v922 = vadd.f32 %v713, %v921
  %923 = vmatmul.f32.gmra.mxu0 %v260
  %v924 = vpop.f32.mrf.mxu0
  %v925 = vadd.f32 %v716, %v924
  %926 = vmatmul.f32.gmra.mxu0 %v264
  %v927 = vpop.f32.mrf.mxu0
  %v928 = vadd.f32 %v719, %v927
  %929 = vmatmul.f32.gmra.mxu0 %v268
  %v930 = vpop.f32.mrf.mxu0
  %v931 = vadd.f32 %v722, %v930
  %932 = vmatmul.f32.gmra.mxu0 %v272
  %v933 = vpop.f32.mrf.mxu0
  %v934 = vadd.f32 %v725, %v933
  %935 = vmatmul.f32.gmra.mxu0 %v276
  %v936 = vpop.f32.mrf.mxu0
  %v937 = vadd.f32 %v728, %v936
  %938 = vmatmul.f32.gmra.mxu0 %v280
  %v939 = vpop.f32.mrf.mxu0
  %v940 = vadd.f32 %v731, %v939
  %941 = vmatmul.f32.gmra.mxu0 %v284
  %v942 = vpop.f32.mrf.mxu0
  %v943 = vadd.f32 %v734, %v942
  %944 = vmatmul.f32.gmra.mxu0 %v288
  %v945 = vpop.f32.mrf.mxu0
  %v946 = vadd.f32 %v737, %v945
  %947 = vmatmul.f32.gmra.mxu0 %v292
  %v948 = vpop.f32.mrf.mxu0
  %v949 = vadd.f32 %v740, %v948
  %950 = vmatmul.f32.gmra.mxu0 %v296
  %v951 = vpop.f32.mrf.mxu0
  %v952 = vadd.f32 %v743, %v951
  %953 = vmatmul.f32.gmra.mxu0 %v300
  %v954 = vpop.f32.mrf.mxu0
  %v955 = vadd.f32 %v746, %v954
  %956 = vmatmul.f32.gmra.mxu0 %v304
  %v957 = vpop.f32.mrf.mxu0
  %v958 = vadd.f32 %v749, %v957
  %959 = vmatmul.f32.gmra.mxu0 %v308
  %v960 = vpop.f32.mrf.mxu0
  %v961 = vadd.f32 %v752, %v960
  %962 = vmatmul.f32.gmra.mxu0 %v312
  %v963 = vpop.f32.mrf.mxu0
  %v964 = vadd.f32 %v755, %v963
  %965 = vmatmul.f32.gmra.mxu0 %v316
  %v966 = vpop.f32.mrf.mxu0
  %v967 = vadd.f32 %v758, %v966
  %968 = vmatmul.f32.gmra.mxu0 %v320
  %v969 = vpop.f32.mrf.mxu0
  %v970 = vadd.f32 %v761, %v969
  %971 = vmatmul.f32.gmra.mxu0 %v324
  %v972 = vpop.f32.mrf.mxu0
  %v973 = vadd.f32 %v764, %v972
  %974 = vmatmul.f32.gmra.mxu0 %v328
  %v975 = vpop.f32.mrf.mxu0
  %v976 = vadd.f32 %v767, %v975
  %977 = vmatmul.f32.gmra.mxu0 %v332
  %v978 = vpop.f32.mrf.mxu0
  %v979 = vadd.f32 %v770, %v978
  %980 = vmatmul.f32.gmra.mxu0 %v336
  %v981 = vpop.f32.mrf.mxu0
  %v982 = vadd.f32 %v773, %v981
  %983 = vmatmul.f32.gmra.mxu0 %v340
  %v984 = vpop.f32.mrf.mxu0
  %v985 = vadd.f32 %v776, %v984
  %986 = vmatmul.f32.gmra.mxu0 %v344
  %v987 = vpop.f32.mrf.mxu0
  %v988 = vadd.f32 %v779, %v987
  %989 = vmatmul.f32.gmra.mxu0 %v348
  %v990 = vpop.f32.mrf.mxu0
  %v991 = vadd.f32 %v782, %v990
  %992 = vmatmul.f32.gmra.mxu0 %v352
  %v993 = vpop.f32.mrf.mxu0
  %v994 = vadd.f32 %v785, %v993
  %995 = vmatmul.f32.gmra.mxu0 %v356
  %v996 = vpop.f32.mrf.mxu0
  %v997 = vadd.f32 %v788, %v996
  %998 = vmatmul.f32.gmra.mxu0 %v360
  %v999 = vpop.f32.mrf.mxu0
  %v1000 = vadd.f32 %v791, %v999
  %1001 = vmatmul.f32.gmra.mxu0 %v364
  %v1002 = vpop.f32.mrf.mxu0
  %v1003 = vadd.f32 %v794, %v1002
  %1004 = vmatmul.f32.gmra.mxu0 %v368
  %v1005 = vpop.f32.mrf.mxu0
  %v1006 = vadd.f32 %v797, %v1005
  %1007 = vmatmul.f32.gmra.mxu0 %v372
  %v1008 = vpop.f32.mrf.mxu0
  %v1009 = vadd.f32 %v800, %v1008
  %1010 = vmatmul.f32.gmra.mxu0 %v376
  %v1011 = vpop.f32.mrf.mxu0
  %v1012 = vadd.f32 %v803, %v1011
  %1013 = vmatmul.f32.gmra.mxu0 %v380
  %v1014 = vpop.f32.mrf.mxu0
  %v1015 = vadd.f32 %v806, %v1014
  %1016 = vmatmul.f32.gmra.mxu0 %v384
  %v1017 = vpop.f32.mrf.mxu0
  %v1018 = vadd.f32 %v809, %v1017
  %1019 = vmatmul.f32.gmra.mxu0 %v388
  %v1020 = vpop.f32.mrf.mxu0
  %v1021 = vadd.f32 %v812, %v1020
  %1022 = vmatmul.f32.gmra.mxu0 %v392
  %v1023 = vpop.f32.mrf.mxu0
  %v1024 = vadd.f32 %v815, %v1023
  %1025 = vmatmul.f32.gmra.mxu0 %v396
  %v1026 = vpop.f32.mrf.mxu0
  %v1027 = vadd.f32 %v818, %v1026
  %1028 = vmatmul.f32.gmra.mxu0 %v400
  %v1029 = vpop.f32.mrf.mxu0
  %v1030 = vadd.f32 %v821, %v1029
  %1031 = vmatmul.f32.gmra.mxu0 %v404
  %v1032 = vpop.f32.mrf.mxu0
  %v1033 = vadd.f32 %v824, %v1032
  %1034 = vmatmul.f32.gmra.mxu0 %v408
  %v1035 = vpop.f32.mrf.mxu0
  %v1036 = vadd.f32 %v827, %v1035
  %1037 = vmatmul.f32.gmra.mxu0 %v412
  %v1038 = vpop.f32.mrf.mxu0
  %v1039 = vadd.f32 %v830, %v1038
  %1040 = vdwg.mxu0
  %1041 = vmatpush.msra.mxu0 %v92
  %1042 = vmatpush.msra.mxu0 %v91
  %1043 = vmatpush.msra.mxu0 %v90
  %1044 = vmatpush.msra.mxu0 %v89
  %1045 = vmatpush.msra.mxu0 %v88
  %1046 = vmatpush.msra.mxu0 %v87
  %1047 = vmatpush.msra.mxu0 %v86
  %1048 = vmatpush.msra.mxu0 %v85
  %1049 = vmatpush.msra.mxu0 %v84
  %1050 = vmatpush.msra.mxu0 %v83
  %1051 = vmatpush.msra.mxu0 %v82
  %1052 = vmatpush.msra.mxu0 %v81
  %1053 = vmatpush.msra.mxu0 %v80
  %1054 = vmatpush.msra.mxu0 %v79
  %1055 = vmatpush.msra.mxu0 %v78
  %1056 = vmatpush.msra.mxu0 %v77
  %1057 = vmatmul.f32.gmra.mxu0 %v161
  %v1058 = vpop.f32.mrf.mxu0
  %v1059 = vadd.f32 %v850, %v1058
  %1060 = vmatmul.f32.gmra.mxu0 %v165
  %v1061 = vpop.f32.mrf.mxu0
  %v1062 = vadd.f32 %v853, %v1061
  %1063 = vmatmul.f32.gmra.mxu0 %v169
  %v1064 = vpop.f32.mrf.mxu0
  %v1065 = vadd.f32 %v856, %v1064
  %1066 = vmatmul.f32.gmra.mxu0 %v173
  %v1067 = vpop.f32.mrf.mxu0
  %v1068 = vadd.f32 %v859, %v1067
  %1069 = vmatmul.f32.gmra.mxu0 %v177
  %v1070 = vpop.f32.mrf.mxu0
  %v1071 = vadd.f32 %v862, %v1070
  %1072 = vmatmul.f32.gmra.mxu0 %v181
  %v1073 = vpop.f32.mrf.mxu0
  %v1074 = vadd.f32 %v865, %v1073
  %1075 = vmatmul.f32.gmra.mxu0 %v185
  %v1076 = vpop.f32.mrf.mxu0
  %v1077 = vadd.f32 %v868, %v1076
  %1078 = vmatmul.f32.gmra.mxu0 %v189
  %v1079 = vpop.f32.mrf.mxu0
  %v1080 = vadd.f32 %v871, %v1079
  %1081 = vmatmul.f32.gmra.mxu0 %v193
  %v1082 = vpop.f32.mrf.mxu0
  %v1083 = vadd.f32 %v874, %v1082
  %1084 = vmatmul.f32.gmra.mxu0 %v197
  %v1085 = vpop.f32.mrf.mxu0
  %v1086 = vadd.f32 %v877, %v1085
  %1087 = vmatmul.f32.gmra.mxu0 %v201
  %v1088 = vpop.f32.mrf.mxu0
  %v1089 = vadd.f32 %v880, %v1088
  %1090 = vmatmul.f32.gmra.mxu0 %v205
  %v1091 = vpop.f32.mrf.mxu0
  %v1092 = vadd.f32 %v883, %v1091
  %1093 = vmatmul.f32.gmra.mxu0 %v209
  %v1094 = vpop.f32.mrf.mxu0
  %v1095 = vadd.f32 %v886, %v1094
  %1096 = vmatmul.f32.gmra.mxu0 %v213
  %v1097 = vpop.f32.mrf.mxu0
  %v1098 = vadd.f32 %v889, %v1097
  %1099 = vmatmul.f32.gmra.mxu0 %v217
  %v1100 = vpop.f32.mrf.mxu0
  %v1101 = vadd.f32 %v892, %v1100
  %1102 = vmatmul.f32.gmra.mxu0 %v221
  %v1103 = vpop.f32.mrf.mxu0
  %v1104 = vadd.f32 %v895, %v1103
  %1105 = vmatmul.f32.gmra.mxu0 %v225
  %v1106 = vpop.f32.mrf.mxu0
  %v1107 = vadd.f32 %v898, %v1106
  %1108 = vmatmul.f32.gmra.mxu0 %v229
  %v1109 = vpop.f32.mrf.mxu0
  %v1110 = vadd.f32 %v901, %v1109
  %1111 = vmatmul.f32.gmra.mxu0 %v233
  %v1112 = vpop.f32.mrf.mxu0
  %v1113 = vadd.f32 %v904, %v1112
  %1114 = vmatmul.f32.gmra.mxu0 %v237
  %v1115 = vpop.f32.mrf.mxu0
  %v1116 = vadd.f32 %v907, %v1115
  %1117 = vmatmul.f32.gmra.mxu0 %v241
  %v1118 = vpop.f32.mrf.mxu0
  %v1119 = vadd.f32 %v910, %v1118
  %1120 = vmatmul.f32.gmra.mxu0 %v245
  %v1121 = vpop.f32.mrf.mxu0
  %v1122 = vadd.f32 %v913, %v1121
  %1123 = vmatmul.f32.gmra.mxu0 %v249
  %v1124 = vpop.f32.mrf.mxu0
  %v1125 = vadd.f32 %v916, %v1124
  %1126 = vmatmul.f32.gmra.mxu0 %v253
  %v1127 = vpop.f32.mrf.mxu0
  %v1128 = vadd.f32 %v919, %v1127
  %1129 = vmatmul.f32.gmra.mxu0 %v257
  %v1130 = vpop.f32.mrf.mxu0
  %v1131 = vadd.f32 %v922, %v1130
  %1132 = vmatmul.f32.gmra.mxu0 %v261
  %v1133 = vpop.f32.mrf.mxu0
  %v1134 = vadd.f32 %v925, %v1133
  %1135 = vmatmul.f32.gmra.mxu0 %v265
  %v1136 = vpop.f32.mrf.mxu0
  %v1137 = vadd.f32 %v928, %v1136
  %1138 = vmatmul.f32.gmra.mxu0 %v269
  %v1139 = vpop.f32.mrf.mxu0
  %v1140 = vadd.f32 %v931, %v1139
  %1141 = vmatmul.f32.gmra.mxu0 %v273
  %v1142 = vpop.f32.mrf.mxu0
  %v1143 = vadd.f32 %v934, %v1142
  %1144 = vmatmul.f32.gmra.mxu0 %v277
  %v1145 = vpop.f32.mrf.mxu0
  %v1146 = vadd.f32 %v937, %v1145
  %1147 = vmatmul.f32.gmra.mxu0 %v281
  %v1148 = vpop.f32.mrf.mxu0
  %v1149 = vadd.f32 %v940, %v1148
  %1150 = vmatmul.f32.gmra.mxu0 %v285
  %v1151 = vpop.f32.mrf.mxu0
  %v1152 = vadd.f32 %v943, %v1151
  %1153 = vmatmul.f32.gmra.mxu0 %v289
  %v1154 = vpop.f32.mrf.mxu0
  %v1155 = vadd.f32 %v946, %v1154
  %1156 = vmatmul.f32.gmra.mxu0 %v293
  %v1157 = vpop.f32.mrf.mxu0
  %v1158 = vadd.f32 %v949, %v1157
  %1159 = vmatmul.f32.gmra.mxu0 %v297
  %v1160 = vpop.f32.mrf.mxu0
  %v1161 = vadd.f32 %v952, %v1160
  %1162 = vmatmul.f32.gmra.mxu0 %v301
  %v1163 = vpop.f32.mrf.mxu0
  %v1164 = vadd.f32 %v955, %v1163
  %1165 = vmatmul.f32.gmra.mxu0 %v305
  %v1166 = vpop.f32.mrf.mxu0
  %v1167 = vadd.f32 %v958, %v1166
  %1168 = vmatmul.f32.gmra.mxu0 %v309
  %v1169 = vpop.f32.mrf.mxu0
  %v1170 = vadd.f32 %v961, %v1169
  %1171 = vmatmul.f32.gmra.mxu0 %v313
  %v1172 = vpop.f32.mrf.mxu0
  %v1173 = vadd.f32 %v964, %v1172
  %1174 = vmatmul.f32.gmra.mxu0 %v317
  %v1175 = vpop.f32.mrf.mxu0
  %v1176 = vadd.f32 %v967, %v1175
  %1177 = vmatmul.f32.gmra.mxu0 %v321
  %v1178 = vpop.f32.mrf.mxu0
  %v1179 = vadd.f32 %v970, %v1178
  %1180 = vmatmul.f32.gmra.mxu0 %v325
  %v1181 = vpop.f32.mrf.mxu0
  %v1182 = vadd.f32 %v973, %v1181
  %1183 = vmatmul.f32.gmra.mxu0 %v329
  %v1184 = vpop.f32.mrf.mxu0
  %v1185 = vadd.f32 %v976, %v1184
  %1186 = vmatmul.f32.gmra.mxu0 %v333
  %v1187 = vpop.f32.mrf.mxu0
  %v1188 = vadd.f32 %v979, %v1187
  %1189 = vmatmul.f32.gmra.mxu0 %v337
  %v1190 = vpop.f32.mrf.mxu0
  %v1191 = vadd.f32 %v982, %v1190
  %1192 = vmatmul.f32.gmra.mxu0 %v341
  %v1193 = vpop.f32.mrf.mxu0
  %v1194 = vadd.f32 %v985, %v1193
  %1195 = vmatmul.f32.gmra.mxu0 %v345
  %v1196 = vpop.f32.mrf.mxu0
  %v1197 = vadd.f32 %v988, %v1196
  %1198 = vmatmul.f32.gmra.mxu0 %v349
  %v1199 = vpop.f32.mrf.mxu0
  %v1200 = vadd.f32 %v991, %v1199
  %1201 = vmatmul.f32.gmra.mxu0 %v353
  %v1202 = vpop.f32.mrf.mxu0
  %v1203 = vadd.f32 %v994, %v1202
  %1204 = vmatmul.f32.gmra.mxu0 %v357
  %v1205 = vpop.f32.mrf.mxu0
  %v1206 = vadd.f32 %v997, %v1205
  %1207 = vmatmul.f32.gmra.mxu0 %v361
  %v1208 = vpop.f32.mrf.mxu0
  %v1209 = vadd.f32 %v1000, %v1208
  %1210 = vmatmul.f32.gmra.mxu0 %v365
  %v1211 = vpop.f32.mrf.mxu0
  %v1212 = vadd.f32 %v1003, %v1211
  %1213 = vmatmul.f32.gmra.mxu0 %v369
  %v1214 = vpop.f32.mrf.mxu0
  %v1215 = vadd.f32 %v1006, %v1214
  %1216 = vmatmul.f32.gmra.mxu0 %v373
  %v1217 = vpop.f32.mrf.mxu0
  %v1218 = vadd.f32 %v1009, %v1217
  %1219 = vmatmul.f32.gmra.mxu0 %v377
  %v1220 = vpop.f32.mrf.mxu0
  %v1221 = vadd.f32 %v1012, %v1220
  %1222 = vmatmul.f32.gmra.mxu0 %v381
  %v1223 = vpop.f32.mrf.mxu0
  %v1224 = vadd.f32 %v1015, %v1223
  %1225 = vmatmul.f32.gmra.mxu0 %v385
  %v1226 = vpop.f32.mrf.mxu0
  %v1227 = vadd.f32 %v1018, %v1226
  %1228 = vmatmul.f32.gmra.mxu0 %v389
  %v1229 = vpop.f32.mrf.mxu0
  %v1230 = vadd.f32 %v1021, %v1229
  %1231 = vmatmul.f32.gmra.mxu0 %v393
  %v1232 = vpop.f32.mrf.mxu0
  %v1233 = vadd.f32 %v1024, %v1232
  %1234 = vmatmul.f32.gmra.mxu0 %v397
  %v1235 = vpop.f32.mrf.mxu0
  %v1236 = vadd.f32 %v1027, %v1235
  %1237 = vmatmul.f32.gmra.mxu0 %v401
  %v1238 = vpop.f32.mrf.mxu0
  %v1239 = vadd.f32 %v1030, %v1238
  %1240 = vmatmul.f32.gmra.mxu0 %v405
  %v1241 = vpop.f32.mrf.mxu0
  %v1242 = vadd.f32 %v1033, %v1241
  %1243 = vmatmul.f32.gmra.mxu0 %v409
  %v1244 = vpop.f32.mrf.mxu0
  %v1245 = vadd.f32 %v1036, %v1244
  %1246 = vmatmul.f32.gmra.mxu0 %v413
  %v1247 = vpop.f32.mrf.mxu0
  %v1248 = vadd.f32 %v1039, %v1247
  %1249 = vdwg.mxu0
  %1314 = vrot.lane.b32.xlu0 %v1059, 16
  %v1315 = vpop.permute.xlu0 %1314
  %1316 = vrot.lane.b32.xlu0 %v1062, 16
  %v1317 = vpop.permute.xlu0 %1316
  %1318 = vrot.lane.b32.xlu0 %v1065, 16
  %v1319 = vpop.permute.xlu0 %1318
  %1320 = vrot.lane.b32.xlu0 %v1068, 16
  %v1321 = vpop.permute.xlu0 %1320
  %1322 = vrot.lane.b32.xlu0 %v1071, 16
  %v1323 = vpop.permute.xlu0 %1322
  %1324 = vrot.lane.b32.xlu0 %v1074, 16
  %v1325 = vpop.permute.xlu0 %1324
  %1326 = vrot.lane.b32.xlu0 %v1077, 16
  %v1327 = vpop.permute.xlu0 %1326
  %1328 = vrot.lane.b32.xlu0 %v1080, 16
  %v1329 = vpop.permute.xlu0 %1328
  %1330 = vrot.lane.b32.xlu0 %v1083, 16
  %v1331 = vpop.permute.xlu0 %1330
  %1332 = vrot.lane.b32.xlu0 %v1086, 16
  %v1333 = vpop.permute.xlu0 %1332
  %1334 = vrot.lane.b32.xlu0 %v1089, 16
  %v1335 = vpop.permute.xlu0 %1334
  %1336 = vrot.lane.b32.xlu0 %v1092, 16
  %v1337 = vpop.permute.xlu0 %1336
  %1338 = vrot.lane.b32.xlu0 %v1095, 16
  %v1339 = vpop.permute.xlu0 %1338
  %1340 = vrot.lane.b32.xlu0 %v1098, 16
  %v1341 = vpop.permute.xlu0 %1340
  %1342 = vrot.lane.b32.xlu0 %v1101, 16
  %v1343 = vpop.permute.xlu0 %1342
  %1344 = vrot.lane.b32.xlu0 %v1104, 16
  %v1345 = vpop.permute.xlu0 %1344
  %1346 = vrot.lane.b32.xlu0 %v1107, 16
  %v1347 = vpop.permute.xlu0 %1346
  %1348 = vrot.lane.b32.xlu0 %v1110, 16
  %v1349 = vpop.permute.xlu0 %1348
  %1350 = vrot.lane.b32.xlu0 %v1113, 16
  %v1351 = vpop.permute.xlu0 %1350
  %1352 = vrot.lane.b32.xlu0 %v1116, 16
  %v1353 = vpop.permute.xlu0 %1352
  %1354 = vrot.lane.b32.xlu0 %v1119, 16
  %v1355 = vpop.permute.xlu0 %1354
  %1356 = vrot.lane.b32.xlu0 %v1122, 16
  %v1357 = vpop.permute.xlu0 %1356
  %1358 = vrot.lane.b32.xlu0 %v1125, 16
  %v1359 = vpop.permute.xlu0 %1358
  %1360 = vrot.lane.b32.xlu0 %v1128, 16
  %v1361 = vpop.permute.xlu0 %1360
  %1362 = vrot.lane.b32.xlu0 %v1131, 16
  %v1363 = vpop.permute.xlu0 %1362
  %1364 = vrot.lane.b32.xlu0 %v1134, 16
  %v1365 = vpop.permute.xlu0 %1364
  %1366 = vrot.lane.b32.xlu0 %v1137, 16
  %v1367 = vpop.permute.xlu0 %1366
  %1368 = vrot.lane.b32.xlu0 %v1140, 16
  %v1369 = vpop.permute.xlu0 %1368
  %1370 = vrot.lane.b32.xlu0 %v1143, 16
  %v1371 = vpop.permute.xlu0 %1370
  %1372 = vrot.lane.b32.xlu0 %v1146, 16
  %v1373 = vpop.permute.xlu0 %1372
  %1374 = vrot.lane.b32.xlu0 %v1149, 16
  %v1375 = vpop.permute.xlu0 %1374
  %1376 = vrot.lane.b32.xlu0 %v1152, 16
  %v1377 = vpop.permute.xlu0 %1376
  %1378 = vrot.lane.b32.xlu0 %v1155, 16
  %v1379 = vpop.permute.xlu0 %1378
  %1380 = vrot.lane.b32.xlu0 %v1158, 16
  %v1381 = vpop.permute.xlu0 %1380
  %1382 = vrot.lane.b32.xlu0 %v1161, 16
  %v1383 = vpop.permute.xlu0 %1382
  %1384 = vrot.lane.b32.xlu0 %v1164, 16
  %v1385 = vpop.permute.xlu0 %1384
  %1386 = vrot.lane.b32.xlu0 %v1167, 16
  %v1387 = vpop.permute.xlu0 %1386
  %1388 = vrot.lane.b32.xlu0 %v1170, 16
  %v1389 = vpop.permute.xlu0 %1388
  %1390 = vrot.lane.b32.xlu0 %v1173, 16
  %v1391 = vpop.permute.xlu0 %1390
  %1392 = vrot.lane.b32.xlu0 %v1176, 16
  %v1393 = vpop.permute.xlu0 %1392
  %1394 = vrot.lane.b32.xlu0 %v1179, 16
  %v1395 = vpop.permute.xlu0 %1394
  %1396 = vrot.lane.b32.xlu0 %v1182, 16
  %v1397 = vpop.permute.xlu0 %1396
  %1398 = vrot.lane.b32.xlu0 %v1185, 16
  %v1399 = vpop.permute.xlu0 %1398
  %1400 = vrot.lane.b32.xlu0 %v1188, 16
  %v1401 = vpop.permute.xlu0 %1400
  %1402 = vrot.lane.b32.xlu0 %v1191, 16
  %v1403 = vpop.permute.xlu0 %1402
  %1404 = vrot.lane.b32.xlu0 %v1194, 16
  %v1405 = vpop.permute.xlu0 %1404
  %1406 = vrot.lane.b32.xlu0 %v1197, 16
  %v1407 = vpop.permute.xlu0 %1406
  %1408 = vrot.lane.b32.xlu0 %v1200, 16
  %v1409 = vpop.permute.xlu0 %1408
  %1410 = vrot.lane.b32.xlu0 %v1203, 16
  %v1411 = vpop.permute.xlu0 %1410
  %1412 = vrot.lane.b32.xlu0 %v1206, 16
  %v1413 = vpop.permute.xlu0 %1412
  %1414 = vrot.lane.b32.xlu0 %v1209, 16
  %v1415 = vpop.permute.xlu0 %1414
  %1416 = vrot.lane.b32.xlu0 %v1212, 16
  %v1417 = vpop.permute.xlu0 %1416
  %1418 = vrot.lane.b32.xlu0 %v1215, 16
  %v1419 = vpop.permute.xlu0 %1418
  %1420 = vrot.lane.b32.xlu0 %v1218, 16
  %v1421 = vpop.permute.xlu0 %1420
  %1422 = vrot.lane.b32.xlu0 %v1221, 16
  %v1423 = vpop.permute.xlu0 %1422
  %1424 = vrot.lane.b32.xlu0 %v1224, 16
  %v1425 = vpop.permute.xlu0 %1424
  %1426 = vrot.lane.b32.xlu0 %v1227, 16
  %v1427 = vpop.permute.xlu0 %1426
  %1428 = vrot.lane.b32.xlu0 %v1230, 16
  %v1429 = vpop.permute.xlu0 %1428
  %1430 = vrot.lane.b32.xlu0 %v1233, 16
  %v1431 = vpop.permute.xlu0 %1430
  %1432 = vrot.lane.b32.xlu0 %v1236, 16
  %v1433 = vpop.permute.xlu0 %1432
  %1434 = vrot.lane.b32.xlu0 %v1239, 16
  %v1435 = vpop.permute.xlu0 %1434
  %1436 = vrot.lane.b32.xlu0 %v1242, 16
  %v1437 = vpop.permute.xlu0 %1436
  %1438 = vrot.lane.b32.xlu0 %v1245, 16
  %v1439 = vpop.permute.xlu0 %1438
  %1440 = vrot.lane.b32.xlu0 %v1248, 16
  %v1441 = vpop.permute.xlu0 %1440
  %vm1506 = vcmask 261248
  %1507 = vst.msk [vmem:[#allocation2] sm:$0xff] %vm1506, %v1315
  %1508 = vst.msk [vmem:[#allocation2 + $0x8] sm:$0xff] %vm1506, %v1317
  %1509 = vst.msk [vmem:[#allocation2 + $0x10] sm:$0xff] %vm1506, %v1319
  %1510 = vst.msk [vmem:[#allocation2 + $0x18] sm:$0xff] %vm1506, %v1321
  %1511 = vst.msk [vmem:[#allocation2 + $0x20] sm:$0xff] %vm1506, %v1323
  %1512 = vst.msk [vmem:[#allocation2 + $0x28] sm:$0xff] %vm1506, %v1325
  %1513 = vst.msk [vmem:[#allocation2 + $0x30] sm:$0xff] %vm1506, %v1327
  %1514 = vst.msk [vmem:[#allocation2 + $0x38] sm:$0xff] %vm1506, %v1329
  %1515 = vst.msk [vmem:[#allocation2 + $0x40] sm:$0xff] %vm1506, %v1331
  %1516 = vst.msk [vmem:[#allocation2 + $0x48] sm:$0xff] %vm1506, %v1333
  %1517 = vst.msk [vmem:[#allocation2 + $0x50] sm:$0xff] %vm1506, %v1335
  %1518 = vst.msk [vmem:[#allocation2 + $0x58] sm:$0xff] %vm1506, %v1337
  %1519 = vst.msk [vmem:[#allocation2 + $0x60] sm:$0xff] %vm1506, %v1339
  %1520 = vst.msk [vmem:[#allocation2 + $0x68] sm:$0xff] %vm1506, %v1341
  %1521 = vst.msk [vmem:[#allocation2 + $0x70] sm:$0xff] %vm1506, %v1343
  %1522 = vst.msk [vmem:[#allocation2 + $0x78] sm:$0xff] %vm1506, %v1345
  %1523 = vst.msk [vmem:[#allocation2 + $0x80] sm:$0xff] %vm1506, %v1347
  %1524 = vst.msk [vmem:[#allocation2 + $0x88] sm:$0xff] %vm1506, %v1349
  %1525 = vst.msk [vmem:[#allocation2 + $0x90] sm:$0xff] %vm1506, %v1351
  %1526 = vst.msk [vmem:[#allocation2 + $0x98] sm:$0xff] %vm1506, %v1353
  %1527 = vst.msk [vmem:[#allocation2 + $0xa0] sm:$0xff] %vm1506, %v1355
  %1528 = vst.msk [vmem:[#allocation2 + $0xa8] sm:$0xff] %vm1506, %v1357
  %1529 = vst.msk [vmem:[#allocation2 + $0xb0] sm:$0xff] %vm1506, %v1359
  %1530 = vst.msk [vmem:[#allocation2 + $0xb8] sm:$0xff] %vm1506, %v1361
  %1531 = vst.msk [vmem:[#allocation2 + $0xc0] sm:$0xff] %vm1506, %v1363
  %1532 = vst.msk [vmem:[#allocation2 + $0xc8] sm:$0xff] %vm1506, %v1365
  %1533 = vst.msk [vmem:[#allocation2 + $0xd0] sm:$0xff] %vm1506, %v1367
  %1534 = vst.msk [vmem:[#allocation2 + $0xd8] sm:$0xff] %vm1506, %v1369
  %1535 = vst.msk [vmem:[#allocation2 + $0xe0] sm:$0xff] %vm1506, %v1371
  %1536 = vst.msk [vmem:[#allocation2 + $0xe8] sm:$0xff] %vm1506, %v1373
  %1537 = vst.msk [vmem:[#allocation2 + $0xf0] sm:$0xff] %vm1506, %v1375
  %1538 = vst.msk [vmem:[#allocation2 + $0xf8] sm:$0xff] %vm1506, %v1377
  %1539 = vst.msk [vmem:[#allocation2 + $0x100] sm:$0xff] %vm1506, %v1379
  %1540 = vst.msk [vmem:[#allocation2 + $0x108] sm:$0xff] %vm1506, %v1381
  %1541 = vst.msk [vmem:[#allocation2 + $0x110] sm:$0xff] %vm1506, %v1383
  %1542 = vst.msk [vmem:[#allocation2 + $0x118] sm:$0xff] %vm1506, %v1385
  %1543 = vst.msk [vmem:[#allocation2 + $0x120] sm:$0xff] %vm1506, %v1387
  %1544 = vst.msk [vmem:[#allocation2 + $0x128] sm:$0xff] %vm1506, %v1389
  %1545 = vst.msk [vmem:[#allocation2 + $0x130] sm:$0xff] %vm1506, %v1391
  %1546 = vst.msk [vmem:[#allocation2 + $0x138] sm:$0xff] %vm1506, %v1393
  %1547 = vst.msk [vmem:[#allocation2 + $0x140] sm:$0xff] %vm1506, %v1395
  %1548 = vst.msk [vmem:[#allocation2 + $0x148] sm:$0xff] %vm1506, %v1397
  %1549 = vst.msk [vmem:[#allocation2 + $0x150] sm:$0xff] %vm1506, %v1399
  %1550 = vst.msk [vmem:[#allocation2 + $0x158] sm:$0xff] %vm1506, %v1401
  %1551 = vst.msk [vmem:[#allocation2 + $0x160] sm:$0xff] %vm1506, %v1403
  %1552 = vst.msk [vmem:[#allocation2 + $0x168] sm:$0xff] %vm1506, %v1405
  %1553 = vst.msk [vmem:[#allocation2 + $0x170] sm:$0xff] %vm1506, %v1407
  %1554 = vst.msk [vmem:[#allocation2 + $0x178] sm:$0xff] %vm1506, %v1409
  %1555 = vst.msk [vmem:[#allocation2 + $0x180] sm:$0xff] %vm1506, %v1411
  %1556 = vst.msk [vmem:[#allocation2 + $0x188] sm:$0xff] %vm1506, %v1413
  %1557 = vst.msk [vmem:[#allocation2 + $0x190] sm:$0xff] %vm1506, %v1415
  %1558 = vst.msk [vmem:[#allocation2 + $0x198] sm:$0xff] %vm1506, %v1417
  %1559 = vst.msk [vmem:[#allocation2 + $0x1a0] sm:$0xff] %vm1506, %v1419
  %1560 = vst.msk [vmem:[#allocation2 + $0x1a8] sm:$0xff] %vm1506, %v1421
  %1561 = vst.msk [vmem:[#allocation2 + $0x1b0] sm:$0xff] %vm1506, %v1423
  %1562 = vst.msk [vmem:[#allocation2 + $0x1b8] sm:$0xff] %vm1506, %v1425
  %1563 = vst.msk [vmem:[#allocation2 + $0x1c0] sm:$0xff] %vm1506, %v1427
  %1564 = vst.msk [vmem:[#allocation2 + $0x1c8] sm:$0xff] %vm1506, %v1429
  %1565 = vst.msk [vmem:[#allocation2 + $0x1d0] sm:$0xff] %vm1506, %v1431
  %1566 = vst.msk [vmem:[#allocation2 + $0x1d8] sm:$0xff] %vm1506, %v1433
  %1567 = vst.msk [vmem:[#allocation2 + $0x1e0] sm:$0xff] %vm1506, %v1435
  %1568 = vst.msk [vmem:[#allocation2 + $0x1e8] sm:$0xff] %vm1506, %v1437
  %1569 = vst.msk [vmem:[#allocation2 + $0x1f0] sm:$0xff] %vm1506, %v1439
  %1570 = vst.msk [vmem:[#allocation2 + $0x1f8] sm:$0xff] %vm1506, %v1441
  %v1571 = vld [vmem:[%s0] sm:$0xff]
  %v1572 = vld [vmem:[%s0 + $0x8] sm:$0xff]
  %v1573 = vld [vmem:[%s0 + $0x10] sm:$0xff]
  %v1574 = vld [vmem:[%s0 + $0x18] sm:$0xff]
  %v1575 = vld [vmem:[%s0 + $0x20] sm:$0xff]
  %v1576 = vld [vmem:[%s0 + $0x28] sm:$0xff]
  %v1577 = vld [vmem:[%s0 + $0x30] sm:$0xff]
  %v1578 = vld [vmem:[%s0 + $0x38] sm:$0xff]
  %v1579 = vld [vmem:[%s0 + $0x40] sm:$0xff]
  %v1580 = vld [vmem:[%s0 + $0x48] sm:$0xff]
  %v1581 = vld [vmem:[%s0 + $0x50] sm:$0xff]
  %v1582 = vld [vmem:[%s0 + $0x58] sm:$0xff]
  %v1583 = vld [vmem:[%s0 + $0x60] sm:$0xff]
  %v1584 = vld [vmem:[%s0 + $0x68] sm:$0xff]
  %v1585 = vld [vmem:[%s0 + $0x70] sm:$0xff]
  %v1586 = vld [vmem:[%s0 + $0x78] sm:$0xff]
  %v1587 = vld [vmem:[%s0 + $0x80] sm:$0xff]
  %v1588 = vld [vmem:[%s0 + $0x88] sm:$0xff]
  %v1589 = vld [vmem:[%s0 + $0x90] sm:$0xff]
  %v1590 = vld [vmem:[%s0 + $0x98] sm:$0xff]
  %v1591 = vld [vmem:[%s0 + $0xa0] sm:$0xff]
  %v1592 = vld [vmem:[%s0 + $0xa8] sm:$0xff]
  %v1593 = vld [vmem:[%s0 + $0xb0] sm:$0xff]
  %v1594 = vld [vmem:[%s0 + $0xb8] sm:$0xff]
  %v1595 = vld [vmem:[%s0 + $0xc0] sm:$0xff]
  %v1596 = vld [vmem:[%s0 + $0xc8] sm:$0xff]
  %v1597 = vld [vmem:[%s0 + $0xd0] sm:$0xff]
  %v1598 = vld [vmem:[%s0 + $0xd8] sm:$0xff]
  %v1599 = vld [vmem:[%s0 + $0xe0] sm:$0xff]
  %v1600 = vld [vmem:[%s0 + $0xe8] sm:$0xff]
  %v1601 = vld [vmem:[%s0 + $0xf0] sm:$0xff]
  %v1602 = vld [vmem:[%s0 + $0xf8] sm:$0xff]
  %v1603 = vld [vmem:[%s0 + $0x100] sm:$0xff]
  %v1604 = vld [vmem:[%s0 + $0x108] sm:$0xff]
  %v1605 = vld [vmem:[%s0 + $0x110] sm:$0xff]
  %v1606 = vld [vmem:[%s0 + $0x118] sm:$0xff]
  %v1607 = vld [vmem:[%s0 + $0x120] sm:$0xff]
  %v1608 = vld [vmem:[%s0 + $0x128] sm:$0xff]
  %v1609 = vld [vmem:[%s0 + $0x130] sm:$0xff]
  %v1610 = vld [vmem:[%s0 + $0x138] sm:$0xff]
  %v1611 = vld [vmem:[%s0 + $0x140] sm:$0xff]
  %v1612 = vld [vmem:[%s0 + $0x148] sm:$0xff]
  %v1613 = vld [vmem:[%s0 + $0x150] sm:$0xff]
  %v1614 = vld [vmem:[%s0 + $0x158] sm:$0xff]
  %v1615 = vld [vmem:[%s0 + $0x160] sm:$0xff]
  %v1616 = vld [vmem:[%s0 + $0x168] sm:$0xff]
  %v1617 = vld [vmem:[%s0 + $0x170] sm:$0xff]
  %v1618 = vld [vmem:[%s0 + $0x178] sm:$0xff]
  %v1619 = vld [vmem:[%s0 + $0x180] sm:$0xff]
  %v1620 = vld [vmem:[%s0 + $0x188] sm:$0xff]
  %v1621 = vld [vmem:[%s0 + $0x190] sm:$0xff]
  %v1622 = vld [vmem:[%s0 + $0x198] sm:$0xff]
  %v1623 = vld [vmem:[%s0 + $0x1a0] sm:$0xff]
  %v1624 = vld [vmem:[%s0 + $0x1a8] sm:$0xff]
  %v1625 = vld [vmem:[%s0 + $0x1b0] sm:$0xff]
  %v1626 = vld [vmem:[%s0 + $0x1b8] sm:$0xff]
  %v1627 = vld [vmem:[%s0 + $0x1c0] sm:$0xff]
  %v1628 = vld [vmem:[%s0 + $0x1c8] sm:$0xff]
  %v1629 = vld [vmem:[%s0 + $0x1d0] sm:$0xff]
  %v1630 = vld [vmem:[%s0 + $0x1d8] sm:$0xff]
  %v1631 = vld [vmem:[%s0 + $0x1e0] sm:$0xff]
  %v1632 = vld [vmem:[%s0 + $0x1e8] sm:$0xff]
  %v1633 = vld [vmem:[%s0 + $0x1f0] sm:$0xff]
  %v1634 = vld [vmem:[%s0 + $0x1f8] sm:$0xff]
  %v1635 = vld [vmem:[%s0 + $0x200] sm:$0xff]
  %v1636 = vld [vmem:[%s0 + $0x208] sm:$0xff]
  %v1637 = vld [vmem:[%s0 + $0x210] sm:$0xff]
  %v1638 = vld [vmem:[%s0 + $0x218] sm:$0xff]
  %v1639 = vld [vmem:[%s0 + $0x220] sm:$0xff]
  %v1640 = vld [vmem:[%s0 + $0x228] sm:$0xff]
  %v1641 = vld [vmem:[%s0 + $0x230] sm:$0xff]
  %v1642 = vld [vmem:[%s0 + $0x238] sm:$0xff]
  %v1643 = vld [vmem:[%s0 + $0x240] sm:$0xff]
  %v1644 = vld [vmem:[%s0 + $0x248] sm:$0xff]
  %v1645 = vld [vmem:[%s0 + $0x250] sm:$0xff]
  %v1646 = vld [vmem:[%s0 + $0x258] sm:$0xff]
  %v1647 = vld [vmem:[%s0 + $0x260] sm:$0xff]
  %v1648 = vld [vmem:[%s0 + $0x268] sm:$0xff]
  %v1649 = vld [vmem:[%s0 + $0x270] sm:$0xff]
  %v1650 = vld [vmem:[%s0 + $0x278] sm:$0xff]
  %v1651 = vld [vmem:[%s0 + $0x280] sm:$0xff]
  %v1652 = vld [vmem:[%s0 + $0x288] sm:$0xff]
  %v1653 = vld [vmem:[%s0 + $0x290] sm:$0xff]
  %v1654 = vld [vmem:[%s0 + $0x298] sm:$0xff]
  %v1655 = vld [vmem:[%s0 + $0x2a0] sm:$0xff]
  %v1656 = vld [vmem:[%s0 + $0x2a8] sm:$0xff]
  %v1657 = vld [vmem:[%s0 + $0x2b0] sm:$0xff]
  %v1658 = vld [vmem:[%s0 + $0x2b8] sm:$0xff]
  %v1659 = vld [vmem:[%s0 + $0x2c0] sm:$0xff]
  %v1660 = vld [vmem:[%s0 + $0x2c8] sm:$0xff]
  %v1661 = vld [vmem:[%s0 + $0x2d0] sm:$0xff]
  %v1662 = vld [vmem:[%s0 + $0x2d8] sm:$0xff]
  %v1663 = vld [vmem:[%s0 + $0x2e0] sm:$0xff]
  %v1664 = vld [vmem:[%s0 + $0x2e8] sm:$0xff]
  %v1665 = vld [vmem:[%s0 + $0x2f0] sm:$0xff]
  %v1666 = vld [vmem:[%s0 + $0x2f8] sm:$0xff]
  %v1667 = vld [vmem:[%s0 + $0x300] sm:$0xff]
  %v1668 = vld [vmem:[%s0 + $0x308] sm:$0xff]
  %v1669 = vld [vmem:[%s0 + $0x310] sm:$0xff]
  %v1670 = vld [vmem:[%s0 + $0x318] sm:$0xff]
  %v1671 = vld [vmem:[%s0 + $0x320] sm:$0xff]
  %v1672 = vld [vmem:[%s0 + $0x328] sm:$0xff]
  %v1673 = vld [vmem:[%s0 + $0x330] sm:$0xff]
  %v1674 = vld [vmem:[%s0 + $0x338] sm:$0xff]
  %v1675 = vld [vmem:[%s0 + $0x340] sm:$0xff]
  %v1676 = vld [vmem:[%s0 + $0x348] sm:$0xff]
  %v1677 = vld [vmem:[%s0 + $0x350] sm:$0xff]
  %v1678 = vld [vmem:[%s0 + $0x358] sm:$0xff]
  %v1679 = vld [vmem:[%s0 + $0x360] sm:$0xff]
  %v1680 = vld [vmem:[%s0 + $0x368] sm:$0xff]
  %v1681 = vld [vmem:[%s0 + $0x370] sm:$0xff]
  %v1682 = vld [vmem:[%s0 + $0x378] sm:$0xff]
  %v1683 = vld [vmem:[%s0 + $0x380] sm:$0xff]
  %v1684 = vld [vmem:[%s0 + $0x388] sm:$0xff]
  %v1685 = vld [vmem:[%s0 + $0x390] sm:$0xff]
  %v1686 = vld [vmem:[%s0 + $0x398] sm:$0xff]
  %v1687 = vld [vmem:[%s0 + $0x3a0] sm:$0xff]
  %v1688 = vld [vmem:[%s0 + $0x3a8] sm:$0xff]
  %v1689 = vld [vmem:[%s0 + $0x3b0] sm:$0xff]
  %v1690 = vld [vmem:[%s0 + $0x3b8] sm:$0xff]
  %v1691 = vld [vmem:[%s0 + $0x3c0] sm:$0xff]
  %v1692 = vld [vmem:[%s0 + $0x3c8] sm:$0xff]
  %v1693 = vld [vmem:[%s0 + $0x3d0] sm:$0xff]
  %v1694 = vld [vmem:[%s0 + $0x3d8] sm:$0xff]
  %v1695 = vld [vmem:[%s0 + $0x3e0] sm:$0xff]
  %v1696 = vld [vmem:[%s0 + $0x3e8] sm:$0xff]
  %v1697 = vld [vmem:[%s0 + $0x3f0] sm:$0xff]
  %v1698 = vld [vmem:[%s0 + $0x3f8] sm:$0xff]
  %v1699 = vld [vmem:[%s0 + $0x400] sm:$0xff]
  %v1700 = vld [vmem:[%s0 + $0x408] sm:$0xff]
  %v1701 = vld [vmem:[%s0 + $0x410] sm:$0xff]
  %v1702 = vld [vmem:[%s0 + $0x418] sm:$0xff]
  %v1703 = vld [vmem:[%s0 + $0x420] sm:$0xff]
  %v1704 = vld [vmem:[%s0 + $0x428] sm:$0xff]
  %v1705 = vld [vmem:[%s0 + $0x430] sm:$0xff]
  %v1706 = vld [vmem:[%s0 + $0x438] sm:$0xff]
  %v1707 = vld [vmem:[%s0 + $0x440] sm:$0xff]
  %v1708 = vld [vmem:[%s0 + $0x448] sm:$0xff]
  %v1709 = vld [vmem:[%s0 + $0x450] sm:$0xff]
  %v1710 = vld [vmem:[%s0 + $0x458] sm:$0xff]
  %v1711 = vld [vmem:[%s0 + $0x460] sm:$0xff]
  %v1712 = vld [vmem:[%s0 + $0x468] sm:$0xff]
  %v1713 = vld [vmem:[%s0 + $0x470] sm:$0xff]
  %v1714 = vld [vmem:[%s0 + $0x478] sm:$0xff]
  %v1715 = vld [vmem:[%s0 + $0x480] sm:$0xff]
  %v1716 = vld [vmem:[%s0 + $0x488] sm:$0xff]
  %v1717 = vld [vmem:[%s0 + $0x490] sm:$0xff]
  %v1718 = vld [vmem:[%s0 + $0x498] sm:$0xff]
  %v1719 = vld [vmem:[%s0 + $0x4a0] sm:$0xff]
  %v1720 = vld [vmem:[%s0 + $0x4a8] sm:$0xff]
  %v1721 = vld [vmem:[%s0 + $0x4b0] sm:$0xff]
  %v1722 = vld [vmem:[%s0 + $0x4b8] sm:$0xff]
  %v1723 = vld [vmem:[%s0 + $0x4c0] sm:$0xff]
  %v1724 = vld [vmem:[%s0 + $0x4c8] sm:$0xff]
  %v1725 = vld [vmem:[%s0 + $0x4d0] sm:$0xff]
  %v1726 = vld [vmem:[%s0 + $0x4d8] sm:$0xff]
  %v1727 = vld [vmem:[%s0 + $0x4e0] sm:$0xff]
  %v1728 = vld [vmem:[%s0 + $0x4e8] sm:$0xff]
  %v1729 = vld [vmem:[%s0 + $0x4f0] sm:$0xff]
  %v1730 = vld [vmem:[%s0 + $0x4f8] sm:$0xff]
  %v1731 = vld [vmem:[%s0 + $0x500] sm:$0xff]
  %v1732 = vld [vmem:[%s0 + $0x508] sm:$0xff]
  %v1733 = vld [vmem:[%s0 + $0x510] sm:$0xff]
  %v1734 = vld [vmem:[%s0 + $0x518] sm:$0xff]
  %v1735 = vld [vmem:[%s0 + $0x520] sm:$0xff]
  %v1736 = vld [vmem:[%s0 + $0x528] sm:$0xff]
  %v1737 = vld [vmem:[%s0 + $0x530] sm:$0xff]
  %v1738 = vld [vmem:[%s0 + $0x538] sm:$0xff]
  %v1739 = vld [vmem:[%s0 + $0x540] sm:$0xff]
  %v1740 = vld [vmem:[%s0 + $0x548] sm:$0xff]
  %v1741 = vld [vmem:[%s0 + $0x550] sm:$0xff]
  %v1742 = vld [vmem:[%s0 + $0x558] sm:$0xff]
  %v1743 = vld [vmem:[%s0 + $0x560] sm:$0xff]
  %v1744 = vld [vmem:[%s0 + $0x568] sm:$0xff]
  %v1745 = vld [vmem:[%s0 + $0x570] sm:$0xff]
  %v1746 = vld [vmem:[%s0 + $0x578] sm:$0xff]
  %v1747 = vld [vmem:[%s0 + $0x580] sm:$0xff]
  %v1748 = vld [vmem:[%s0 + $0x588] sm:$0xff]
  %v1749 = vld [vmem:[%s0 + $0x590] sm:$0xff]
  %v1750 = vld [vmem:[%s0 + $0x598] sm:$0xff]
  %v1751 = vld [vmem:[%s0 + $0x5a0] sm:$0xff]
  %v1752 = vld [vmem:[%s0 + $0x5a8] sm:$0xff]
  %v1753 = vld [vmem:[%s0 + $0x5b0] sm:$0xff]
  %v1754 = vld [vmem:[%s0 + $0x5b8] sm:$0xff]
  %v1755 = vld [vmem:[%s0 + $0x5c0] sm:$0xff]
  %v1756 = vld [vmem:[%s0 + $0x5c8] sm:$0xff]
  %v1757 = vld [vmem:[%s0 + $0x5d0] sm:$0xff]
  %v1758 = vld [vmem:[%s0 + $0x5d8] sm:$0xff]
  %v1759 = vld [vmem:[%s0 + $0x5e0] sm:$0xff]
  %v1760 = vld [vmem:[%s0 + $0x5e8] sm:$0xff]
  %v1761 = vld [vmem:[%s0 + $0x5f0] sm:$0xff]
  %v1762 = vld [vmem:[%s0 + $0x5f8] sm:$0xff]
  %v1763 = vld [vmem:[%s0 + $0x600] sm:$0xff]
  %v1764 = vld [vmem:[%s0 + $0x608] sm:$0xff]
  %v1765 = vld [vmem:[%s0 + $0x610] sm:$0xff]
  %v1766 = vld [vmem:[%s0 + $0x618] sm:$0xff]
  %v1767 = vld [vmem:[%s0 + $0x620] sm:$0xff]
  %v1768 = vld [vmem:[%s0 + $0x628] sm:$0xff]
  %v1769 = vld [vmem:[%s0 + $0x630] sm:$0xff]
  %v1770 = vld [vmem:[%s0 + $0x638] sm:$0xff]
  %v1771 = vld [vmem:[%s0 + $0x640] sm:$0xff]
  %v1772 = vld [vmem:[%s0 + $0x648] sm:$0xff]
  %v1773 = vld [vmem:[%s0 + $0x650] sm:$0xff]
  %v1774 = vld [vmem:[%s0 + $0x658] sm:$0xff]
  %v1775 = vld [vmem:[%s0 + $0x660] sm:$0xff]
  %v1776 = vld [vmem:[%s0 + $0x668] sm:$0xff]
  %v1777 = vld [vmem:[%s0 + $0x670] sm:$0xff]
  %v1778 = vld [vmem:[%s0 + $0x678] sm:$0xff]
  %v1779 = vld [vmem:[%s0 + $0x680] sm:$0xff]
  %v1780 = vld [vmem:[%s0 + $0x688] sm:$0xff]
  %v1781 = vld [vmem:[%s0 + $0x690] sm:$0xff]
  %v1782 = vld [vmem:[%s0 + $0x698] sm:$0xff]
  %v1783 = vld [vmem:[%s0 + $0x6a0] sm:$0xff]
  %v1784 = vld [vmem:[%s0 + $0x6a8] sm:$0xff]
  %v1785 = vld [vmem:[%s0 + $0x6b0] sm:$0xff]
  %v1786 = vld [vmem:[%s0 + $0x6b8] sm:$0xff]
  %v1787 = vld [vmem:[%s0 + $0x6c0] sm:$0xff]
  %v1788 = vld [vmem:[%s0 + $0x6c8] sm:$0xff]
  %v1789 = vld [vmem:[%s0 + $0x6d0] sm:$0xff]
  %v1790 = vld [vmem:[%s0 + $0x6d8] sm:$0xff]
  %v1791 = vld [vmem:[%s0 + $0x6e0] sm:$0xff]
  %v1792 = vld [vmem:[%s0 + $0x6e8] sm:$0xff]
  %v1793 = vld [vmem:[%s0 + $0x6f0] sm:$0xff]
  %v1794 = vld [vmem:[%s0 + $0x6f8] sm:$0xff]
  %v1795 = vld [vmem:[%s0 + $0x700] sm:$0xff]
  %v1796 = vld [vmem:[%s0 + $0x708] sm:$0xff]
  %v1797 = vld [vmem:[%s0 + $0x710] sm:$0xff]
  %v1798 = vld [vmem:[%s0 + $0x718] sm:$0xff]
  %v1799 = vld [vmem:[%s0 + $0x720] sm:$0xff]
  %v1800 = vld [vmem:[%s0 + $0x728] sm:$0xff]
  %v1801 = vld [vmem:[%s0 + $0x730] sm:$0xff]
  %v1802 = vld [vmem:[%s0 + $0x738] sm:$0xff]
  %v1803 = vld [vmem:[%s0 + $0x740] sm:$0xff]
  %v1804 = vld [vmem:[%s0 + $0x748] sm:$0xff]
  %v1805 = vld [vmem:[%s0 + $0x750] sm:$0xff]
  %v1806 = vld [vmem:[%s0 + $0x758] sm:$0xff]
  %v1807 = vld [vmem:[%s0 + $0x760] sm:$0xff]
  %v1808 = vld [vmem:[%s0 + $0x768] sm:$0xff]
  %v1809 = vld [vmem:[%s0 + $0x770] sm:$0xff]
  %v1810 = vld [vmem:[%s0 + $0x778] sm:$0xff]
  %v1811 = vld [vmem:[%s0 + $0x780] sm:$0xff]
  %v1812 = vld [vmem:[%s0 + $0x788] sm:$0xff]
  %v1813 = vld [vmem:[%s0 + $0x790] sm:$0xff]
  %v1814 = vld [vmem:[%s0 + $0x798] sm:$0xff]
  %v1815 = vld [vmem:[%s0 + $0x7a0] sm:$0xff]
  %v1816 = vld [vmem:[%s0 + $0x7a8] sm:$0xff]
  %v1817 = vld [vmem:[%s0 + $0x7b0] sm:$0xff]
  %v1818 = vld [vmem:[%s0 + $0x7b8] sm:$0xff]
  %v1819 = vld [vmem:[%s0 + $0x7c0] sm:$0xff]
  %v1820 = vld [vmem:[%s0 + $0x7c8] sm:$0xff]
  %v1821 = vld [vmem:[%s0 + $0x7d0] sm:$0xff]
  %v1822 = vld [vmem:[%s0 + $0x7d8] sm:$0xff]
  %v1823 = vld [vmem:[%s0 + $0x7e0] sm:$0xff]
  %v1824 = vld [vmem:[%s0 + $0x7e8] sm:$0xff]
  %v1825 = vld [vmem:[%s0 + $0x7f0] sm:$0xff]
  %v1826 = vld [vmem:[%s0 + $0x7f8] sm:$0xff]
  %v1827 = vadd.f32 %v1059, %v1059
  %v1828 = vadd.f32 %v1062, %v1062
  %v1829 = vadd.f32 %v1065, %v1065
  %v1830 = vadd.f32 %v1068, %v1068
  %v1831 = vadd.f32 %v1071, %v1071
  %v1832 = vadd.f32 %v1074, %v1074
  %v1833 = vadd.f32 %v1077, %v1077
  %v1834 = vadd.f32 %v1080, %v1080
  %v1835 = vadd.f32 %v1083, %v1083
  %v1836 = vadd.f32 %v1086, %v1086
  %v1837 = vadd.f32 %v1089, %v1089
  %v1838 = vadd.f32 %v1092, %v1092
  %v1839 = vadd.f32 %v1095, %v1095
  %v1840 = vadd.f32 %v1098, %v1098
  %v1841 = vadd.f32 %v1101, %v1101
  %v1842 = vadd.f32 %v1104, %v1104
  %v1843 = vadd.f32 %v1107, %v1107
  %v1844 = vadd.f32 %v1110, %v1110
  %v1845 = vadd.f32 %v1113, %v1113
  %v1846 = vadd.f32 %v1116, %v1116
  %v1847 = vadd.f32 %v1119, %v1119
  %v1848 = vadd.f32 %v1122, %v1122
  %v1849 = vadd.f32 %v1125, %v1125
  %v1850 = vadd.f32 %v1128, %v1128
  %v1851 = vadd.f32 %v1131, %v1131
  %v1852 = vadd.f32 %v1134, %v1134
  %v1853 = vadd.f32 %v1137, %v1137
  %v1854 = vadd.f32 %v1140, %v1140
  %v1855 = vadd.f32 %v1143, %v1143
  %v1856 = vadd.f32 %v1146, %v1146
  %v1857 = vadd.f32 %v1149, %v1149
  %v1858 = vadd.f32 %v1152, %v1152
  %v1859 = vadd.f32 %v1155, %v1155
  %v1860 = vadd.f32 %v1158, %v1158
  %v1861 = vadd.f32 %v1161, %v1161
  %v1862 = vadd.f32 %v1164, %v1164
  %v1863 = vadd.f32 %v1167, %v1167
  %v1864 = vadd.f32 %v1170, %v1170
  %v1865 = vadd.f32 %v1173, %v1173
  %v1866 = vadd.f32 %v1176, %v1176
  %v1867 = vadd.f32 %v1179, %v1179
  %v1868 = vadd.f32 %v1182, %v1182
  %v1869 = vadd.f32 %v1185, %v1185
  %v1870 = vadd.f32 %v1188, %v1188
  %v1871 = vadd.f32 %v1191, %v1191
  %v1872 = vadd.f32 %v1194, %v1194
  %v1873 = vadd.f32 %v1197, %v1197
  %v1874 = vadd.f32 %v1200, %v1200
  %v1875 = vadd.f32 %v1203, %v1203
  %v1876 = vadd.f32 %v1206, %v1206
  %v1877 = vadd.f32 %v1209, %v1209
  %v1878 = vadd.f32 %v1212, %v1212
  %v1879 = vadd.f32 %v1215, %v1215
  %v1880 = vadd.f32 %v1218, %v1218
  %v1881 = vadd.f32 %v1221, %v1221
  %v1882 = vadd.f32 %v1224, %v1224
  %v1883 = vadd.f32 %v1227, %v1227
  %v1884 = vadd.f32 %v1230, %v1230
  %v1885 = vadd.f32 %v1233, %v1233
  %v1886 = vadd.f32 %v1236, %v1236
  %v1887 = vadd.f32 %v1239, %v1239
  %v1888 = vadd.f32 %v1242, %v1242
  %v1889 = vadd.f32 %v1245, %v1245
  %v1890 = vadd.f32 %v1248, %v1248
  %1891 = vmatpush.msra.mxu0 %v1842
  %1892 = vmatpush.msra.mxu0 %v1841
  %1893 = vmatpush.msra.mxu0 %v1840
  %1894 = vmatpush.msra.mxu0 %v1839
  %1895 = vmatpush.msra.mxu0 %v1838
  %1896 = vmatpush.msra.mxu0 %v1837
  %1897 = vmatpush.msra.mxu0 %v1836
  %1898 = vmatpush.msra.mxu0 %v1835
  %1899 = vmatpush.msra.mxu0 %v1834
  %1900 = vmatpush.msra.mxu0 %v1833
  %1901 = vmatpush.msra.mxu0 %v1832
  %1902 = vmatpush.msra.mxu0 %v1831
  %1903 = vmatpush.msra.mxu0 %v1830
  %1904 = vmatpush.msra.mxu0 %v1829
  %1905 = vmatpush.msra.mxu0 %v1828
  %1906 = vmatpush.msra.mxu0 %v1827
  %1907 = vmatmul.f32.gmra.mxu0 %v1571
  %v1908 = vpop.f32.mrf.mxu0
  %v1909 = vadd.f32 0.0, %v1908
  %1910 = vmatmul.f32.gmra.mxu0 %v1575
  %v1911 = vpop.f32.mrf.mxu0
  %v1912 = vadd.f32 0.0, %v1911
  %1913 = vmatmul.f32.gmra.mxu0 %v1579
  %v1914 = vpop.f32.mrf.mxu0
  %v1915 = vadd.f32 0.0, %v1914
  %1916 = vmatmul.f32.gmra.mxu0 %v1583
  %v1917 = vpop.f32.mrf.mxu0
  %v1918 = vadd.f32 0.0, %v1917
  %1919 = vmatmul.f32.gmra.mxu0 %v1587
  %v1920 = vpop.f32.mrf.mxu0
  %v1921 = vadd.f32 0.0, %v1920
  %1922 = vmatmul.f32.gmra.mxu0 %v1591
  %v1923 = vpop.f32.mrf.mxu0
  %v1924 = vadd.f32 0.0, %v1923
  %1925 = vmatmul.f32.gmra.mxu0 %v1595
  %v1926 = vpop.f32.mrf.mxu0
  %v1927 = vadd.f32 0.0, %v1926
  %1928 = vmatmul.f32.gmra.mxu0 %v1599
  %v1929 = vpop.f32.mrf.mxu0
  %v1930 = vadd.f32 0.0, %v1929
  %1931 = vmatmul.f32.gmra.mxu0 %v1603
  %v1932 = vpop.f32.mrf.mxu0
  %v1933 = vadd.f32 0.0, %v1932
  %1934 = vmatmul.f32.gmra.mxu0 %v1607
  %v1935 = vpop.f32.mrf.mxu0
  %v1936 = vadd.f32 0.0, %v1935
  %1937 = vmatmul.f32.gmra.mxu0 %v1611
  %v1938 = vpop.f32.mrf.mxu0
  %v1939 = vadd.f32 0.0, %v1938
  %1940 = vmatmul.f32.gmra.mxu0 %v1615
  %v1941 = vpop.f32.mrf.mxu0
  %v1942 = vadd.f32 0.0, %v1941
  %1943 = vmatmul.f32.gmra.mxu0 %v1619
  %v1944 = vpop.f32.mrf.mxu0
  %v1945 = vadd.f32 0.0, %v1944
  %1946 = vmatmul.f32.gmra.mxu0 %v1623
  %v1947 = vpop.f32.mrf.mxu0
  %v1948 = vadd.f32 0.0, %v1947
  %1949 = vmatmul.f32.gmra.mxu0 %v1627
  %v1950 = vpop.f32.mrf.mxu0
  %v1951 = vadd.f32 0.0, %v1950
  %1952 = vmatmul.f32.gmra.mxu0 %v1631
  %v1953 = vpop.f32.mrf.mxu0
  %v1954 = vadd.f32 0.0, %v1953
  %1955 = vmatmul.f32.gmra.mxu0 %v1635
  %v1956 = vpop.f32.mrf.mxu0
  %v1957 = vadd.f32 0.0, %v1956
  %1958 = vmatmul.f32.gmra.mxu0 %v1639
  %v1959 = vpop.f32.mrf.mxu0
  %v1960 = vadd.f32 0.0, %v1959
  %1961 = vmatmul.f32.gmra.mxu0 %v1643
  %v1962 = vpop.f32.mrf.mxu0
  %v1963 = vadd.f32 0.0, %v1962
  %1964 = vmatmul.f32.gmra.mxu0 %v1647
  %v1965 = vpop.f32.mrf.mxu0
  %v1966 = vadd.f32 0.0, %v1965
  %1967 = vmatmul.f32.gmra.mxu0 %v1651
  %v1968 = vpop.f32.mrf.mxu0
  %v1969 = vadd.f32 0.0, %v1968
  %1970 = vmatmul.f32.gmra.mxu0 %v1655
  %v1971 = vpop.f32.mrf.mxu0
  %v1972 = vadd.f32 0.0, %v1971
  %1973 = vmatmul.f32.gmra.mxu0 %v1659
  %v1974 = vpop.f32.mrf.mxu0
  %v1975 = vadd.f32 0.0, %v1974
  %1976 = vmatmul.f32.gmra.mxu0 %v1663
  %v1977 = vpop.f32.mrf.mxu0
  %v1978 = vadd.f32 0.0, %v1977
  %1979 = vmatmul.f32.gmra.mxu0 %v1667
  %v1980 = vpop.f32.mrf.mxu0
  %v1981 = vadd.f32 0.0, %v1980
  %1982 = vmatmul.f32.gmra.mxu0 %v1671
  %v1983 = vpop.f32.mrf.mxu0
  %v1984 = vadd.f32 0.0, %v1983
  %1985 = vmatmul.f32.gmra.mxu0 %v1675
  %v1986 = vpop.f32.mrf.mxu0
  %v1987 = vadd.f32 0.0, %v1986
  %1988 = vmatmul.f32.gmra.mxu0 %v1679
  %v1989 = vpop.f32.mrf.mxu0
  %v1990 = vadd.f32 0.0, %v1989
  %1991 = vmatmul.f32.gmra.mxu0 %v1683
  %v1992 = vpop.f32.mrf.mxu0
  %v1993 = vadd.f32 0.0, %v1992
  %1994 = vmatmul.f32.gmra.mxu0 %v1687
  %v1995 = vpop.f32.mrf.mxu0
  %v1996 = vadd.f32 0.0, %v1995
  %1997 = vmatmul.f32.gmra.mxu0 %v1691
  %v1998 = vpop.f32.mrf.mxu0
  %v1999 = vadd.f32 0.0, %v1998
  %2000 = vmatmul.f32.gmra.mxu0 %v1695
  %v2001 = vpop.f32.mrf.mxu0
  %v2002 = vadd.f32 0.0, %v2001
  %2003 = vmatmul.f32.gmra.mxu0 %v1699
  %v2004 = vpop.f32.mrf.mxu0
  %v2005 = vadd.f32 0.0, %v2004
  %2006 = vmatmul.f32.gmra.mxu0 %v1703
  %v2007 = vpop.f32.mrf.mxu0
  %v2008 = vadd.f32 0.0, %v2007
  %2009 = vmatmul.f32.gmra.mxu0 %v1707
  %v2010 = vpop.f32.mrf.mxu0
  %v2011 = vadd.f32 0.0, %v2010
  %2012 = vmatmul.f32.gmra.mxu0 %v1711
  %v2013 = vpop.f32.mrf.mxu0
  %v2014 = vadd.f32 0.0, %v2013
  %2015 = vmatmul.f32.gmra.mxu0 %v1715
  %v2016 = vpop.f32.mrf.mxu0
  %v2017 = vadd.f32 0.0, %v2016
  %2018 = vmatmul.f32.gmra.mxu0 %v1719
  %v2019 = vpop.f32.mrf.mxu0
  %v2020 = vadd.f32 0.0, %v2019
  %2021 = vmatmul.f32.gmra.mxu0 %v1723
  %v2022 = vpop.f32.mrf.mxu0
  %v2023 = vadd.f32 0.0, %v2022
  %2024 = vmatmul.f32.gmra.mxu0 %v1727
  %v2025 = vpop.f32.mrf.mxu0
  %v2026 = vadd.f32 0.0, %v2025
  %2027 = vmatmul.f32.gmra.mxu0 %v1731
  %v2028 = vpop.f32.mrf.mxu0
  %v2029 = vadd.f32 0.0, %v2028
  %2030 = vmatmul.f32.gmra.mxu0 %v1735
  %v2031 = vpop.f32.mrf.mxu0
  %v2032 = vadd.f32 0.0, %v2031
  %2033 = vmatmul.f32.gmra.mxu0 %v1739
  %v2034 = vpop.f32.mrf.mxu0
  %v2035 = vadd.f32 0.0, %v2034
  %2036 = vmatmul.f32.gmra.mxu0 %v1743
  %v2037 = vpop.f32.mrf.mxu0
  %v2038 = vadd.f32 0.0, %v2037
  %2039 = vmatmul.f32.gmra.mxu0 %v1747
  %v2040 = vpop.f32.mrf.mxu0
  %v2041 = vadd.f32 0.0, %v2040
  %2042 = vmatmul.f32.gmra.mxu0 %v1751
  %v2043 = vpop.f32.mrf.mxu0
  %v2044 = vadd.f32 0.0, %v2043
  %2045 = vmatmul.f32.gmra.mxu0 %v1755
  %v2046 = vpop.f32.mrf.mxu0
  %v2047 = vadd.f32 0.0, %v2046
  %2048 = vmatmul.f32.gmra.mxu0 %v1759
  %v2049 = vpop.f32.mrf.mxu0
  %v2050 = vadd.f32 0.0, %v2049
  %2051 = vmatmul.f32.gmra.mxu0 %v1763
  %v2052 = vpop.f32.mrf.mxu0
  %v2053 = vadd.f32 0.0, %v2052
  %2054 = vmatmul.f32.gmra.mxu0 %v1767
  %v2055 = vpop.f32.mrf.mxu0
  %v2056 = vadd.f32 0.0, %v2055
  %2057 = vmatmul.f32.gmra.mxu0 %v1771
  %v2058 = vpop.f32.mrf.mxu0
  %v2059 = vadd.f32 0.0, %v2058
  %2060 = vmatmul.f32.gmra.mxu0 %v1775
  %v2061 = vpop.f32.mrf.mxu0
  %v2062 = vadd.f32 0.0, %v2061
  %2063 = vmatmul.f32.gmra.mxu0 %v1779
  %v2064 = vpop.f32.mrf.mxu0
  %v2065 = vadd.f32 0.0, %v2064
  %2066 = vmatmul.f32.gmra.mxu0 %v1783
  %v2067 = vpop.f32.mrf.mxu0
  %v2068 = vadd.f32 0.0, %v2067
  %2069 = vmatmul.f32.gmra.mxu0 %v1787
  %v2070 = vpop.f32.mrf.mxu0
  %v2071 = vadd.f32 0.0, %v2070
  %2072 = vmatmul.f32.gmra.mxu0 %v1791
  %v2073 = vpop.f32.mrf.mxu0
  %v2074 = vadd.f32 0.0, %v2073
  %2075 = vmatmul.f32.gmra.mxu0 %v1795
  %v2076 = vpop.f32.mrf.mxu0
  %v2077 = vadd.f32 0.0, %v2076
  %2078 = vmatmul.f32.gmra.mxu0 %v1799
  %v2079 = vpop.f32.mrf.mxu0
  %v2080 = vadd.f32 0.0, %v2079
  %2081 = vmatmul.f32.gmra.mxu0 %v1803
  %v2082 = vpop.f32.mrf.mxu0
  %v2083 = vadd.f32 0.0, %v2082
  %2084 = vmatmul.f32.gmra.mxu0 %v1807
  %v2085 = vpop.f32.mrf.mxu0
  %v2086 = vadd.f32 0.0, %v2085
  %2087 = vmatmul.f32.gmra.mxu0 %v1811
  %v2088 = vpop.f32.mrf.mxu0
  %v2089 = vadd.f32 0.0, %v2088
  %2090 = vmatmul.f32.gmra.mxu0 %v1815
  %v2091 = vpop.f32.mrf.mxu0
  %v2092 = vadd.f32 0.0, %v2091
  %2093 = vmatmul.f32.gmra.mxu0 %v1819
  %v2094 = vpop.f32.mrf.mxu0
  %v2095 = vadd.f32 0.0, %v2094
  %2096 = vmatmul.f32.gmra.mxu0 %v1823
  %v2097 = vpop.f32.mrf.mxu0
  %v2098 = vadd.f32 0.0, %v2097
  %2099 = vdwg.mxu0
  %2100 = vmatpush.msra.mxu0 %v1858
  %2101 = vmatpush.msra.mxu0 %v1857
  %2102 = vmatpush.msra.mxu0 %v1856
  %2103 = vmatpush.msra.mxu0 %v1855
  %2104 = vmatpush.msra.mxu0 %v1854
  %2105 = vmatpush.msra.mxu0 %v1853
  %2106 = vmatpush.msra.mxu0 %v1852
  %2107 = vmatpush.msra.mxu0 %v1851
  %2108 = vmatpush.msra.mxu0 %v1850
  %2109 = vmatpush.msra.mxu0 %v1849
  %2110 = vmatpush.msra.mxu0 %v1848
  %2111 = vmatpush.msra.mxu0 %v1847
  %2112 = vmatpush.msra.mxu0 %v1846
  %2113 = vmatpush.msra.mxu0 %v1845
  %2114 = vmatpush.msra.mxu0 %v1844
  %2115 = vmatpush.msra.mxu0 %v1843
  %2116 = vmatmul.f32.gmra.mxu0 %v1572
  %v2117 = vpop.f32.mrf.mxu0
  %v2118 = vadd.f32 %v1909, %v2117
  %2119 = vmatmul.f32.gmra.mxu0 %v1576
  %v2120 = vpop.f32.mrf.mxu0
  %v2121 = vadd.f32 %v1912, %v2120
  %2122 = vmatmul.f32.gmra.mxu0 %v1580
  %v2123 = vpop.f32.mrf.mxu0
  %v2124 = vadd.f32 %v1915, %v2123
  %2125 = vmatmul.f32.gmra.mxu0 %v1584
  %v2126 = vpop.f32.mrf.mxu0
  %v2127 = vadd.f32 %v1918, %v2126
  %2128 = vmatmul.f32.gmra.mxu0 %v1588
  %v2129 = vpop.f32.mrf.mxu0
  %v2130 = vadd.f32 %v1921, %v2129
  %2131 = vmatmul.f32.gmra.mxu0 %v1592
  %v2132 = vpop.f32.mrf.mxu0
  %v2133 = vadd.f32 %v1924, %v2132
  %2134 = vmatmul.f32.gmra.mxu0 %v1596
  %v2135 = vpop.f32.mrf.mxu0
  %v2136 = vadd.f32 %v1927, %v2135
  %2137 = vmatmul.f32.gmra.mxu0 %v1600
  %v2138 = vpop.f32.mrf.mxu0
  %v2139 = vadd.f32 %v1930, %v2138
  %2140 = vmatmul.f32.gmra.mxu0 %v1604
  %v2141 = vpop.f32.mrf.mxu0
  %v2142 = vadd.f32 %v1933, %v2141
  %2143 = vmatmul.f32.gmra.mxu0 %v1608
  %v2144 = vpop.f32.mrf.mxu0
  %v2145 = vadd.f32 %v1936, %v2144
  %2146 = vmatmul.f32.gmra.mxu0 %v1612
  %v2147 = vpop.f32.mrf.mxu0
  %v2148 = vadd.f32 %v1939, %v2147
  %2149 = vmatmul.f32.gmra.mxu0 %v1616
  %v2150 = vpop.f32.mrf.mxu0
  %v2151 = vadd.f32 %v1942, %v2150
  %2152 = vmatmul.f32.gmra.mxu0 %v1620
  %v2153 = vpop.f32.mrf.mxu0
  %v2154 = vadd.f32 %v1945, %v2153
  %2155 = vmatmul.f32.gmra.mxu0 %v1624
  %v2156 = vpop.f32.mrf.mxu0
  %v2157 = vadd.f32 %v1948, %v2156
  %2158 = vmatmul.f32.gmra.mxu0 %v1628
  %v2159 = vpop.f32.mrf.mxu0
  %v2160 = vadd.f32 %v1951, %v2159
  %2161 = vmatmul.f32.gmra.mxu0 %v1632
  %v2162 = vpop.f32.mrf.mxu0
  %v2163 = vadd.f32 %v1954, %v2162
  %2164 = vmatmul.f32.gmra.mxu0 %v1636
  %v2165 = vpop.f32.mrf.mxu0
  %v2166 = vadd.f32 %v1957, %v2165
  %2167 = vmatmul.f32.gmra.mxu0 %v1640
  %v2168 = vpop.f32.mrf.mxu0
  %v2169 = vadd.f32 %v1960, %v2168
  %2170 = vmatmul.f32.gmra.mxu0 %v1644
  %v2171 = vpop.f32.mrf.mxu0
  %v2172 = vadd.f32 %v1963, %v2171
  %2173 = vmatmul.f32.gmra.mxu0 %v1648
  %v2174 = vpop.f32.mrf.mxu0
  %v2175 = vadd.f32 %v1966, %v2174
  %2176 = vmatmul.f32.gmra.mxu0 %v1652
  %v2177 = vpop.f32.mrf.mxu0
  %v2178 = vadd.f32 %v1969, %v2177
  %2179 = vmatmul.f32.gmra.mxu0 %v1656
  %v2180 = vpop.f32.mrf.mxu0
  %v2181 = vadd.f32 %v1972, %v2180
  %2182 = vmatmul.f32.gmra.mxu0 %v1660
  %v2183 = vpop.f32.mrf.mxu0
  %v2184 = vadd.f32 %v1975, %v2183
  %2185 = vmatmul.f32.gmra.mxu0 %v1664
  %v2186 = vpop.f32.mrf.mxu0
  %v2187 = vadd.f32 %v1978, %v2186
  %2188 = vmatmul.f32.gmra.mxu0 %v1668
  %v2189 = vpop.f32.mrf.mxu0
  %v2190 = vadd.f32 %v1981, %v2189
  %2191 = vmatmul.f32.gmra.mxu0 %v1672
  %v2192 = vpop.f32.mrf.mxu0
  %v2193 = vadd.f32 %v1984, %v2192
  %2194 = vmatmul.f32.gmra.mxu0 %v1676
  %v2195 = vpop.f32.mrf.mxu0
  %v2196 = vadd.f32 %v1987, %v2195
  %2197 = vmatmul.f32.gmra.mxu0 %v1680
  %v2198 = vpop.f32.mrf.mxu0
  %v2199 = vadd.f32 %v1990, %v2198
  %2200 = vmatmul.f32.gmra.mxu0 %v1684
  %v2201 = vpop.f32.mrf.mxu0
  %v2202 = vadd.f32 %v1993, %v2201
  %2203 = vmatmul.f32.gmra.mxu0 %v1688
  %v2204 = vpop.f32.mrf.mxu0
  %v2205 = vadd.f32 %v1996, %v2204
  %2206 = vmatmul.f32.gmra.mxu0 %v1692
  %v2207 = vpop.f32.mrf.mxu0
  %v2208 = vadd.f32 %v1999, %v2207
  %2209 = vmatmul.f32.gmra.mxu0 %v1696
  %v2210 = vpop.f32.mrf.mxu0
  %v2211 = vadd.f32 %v2002, %v2210
  %2212 = vmatmul.f32.gmra.mxu0 %v1700
  %v2213 = vpop.f32.mrf.mxu0
  %v2214 = vadd.f32 %v2005, %v2213
  %2215 = vmatmul.f32.gmra.mxu0 %v1704
  %v2216 = vpop.f32.mrf.mxu0
  %v2217 = vadd.f32 %v2008, %v2216
  %2218 = vmatmul.f32.gmra.mxu0 %v1708
  %v2219 = vpop.f32.mrf.mxu0
  %v2220 = vadd.f32 %v2011, %v2219
  %2221 = vmatmul.f32.gmra.mxu0 %v1712
  %v2222 = vpop.f32.mrf.mxu0
  %v2223 = vadd.f32 %v2014, %v2222
  %2224 = vmatmul.f32.gmra.mxu0 %v1716
  %v2225 = vpop.f32.mrf.mxu0
  %v2226 = vadd.f32 %v2017, %v2225
  %2227 = vmatmul.f32.gmra.mxu0 %v1720
  %v2228 = vpop.f32.mrf.mxu0
  %v2229 = vadd.f32 %v2020, %v2228
  %2230 = vmatmul.f32.gmra.mxu0 %v1724
  %v2231 = vpop.f32.mrf.mxu0
  %v2232 = vadd.f32 %v2023, %v2231
  %2233 = vmatmul.f32.gmra.mxu0 %v1728
  %v2234 = vpop.f32.mrf.mxu0
  %v2235 = vadd.f32 %v2026, %v2234
  %2236 = vmatmul.f32.gmra.mxu0 %v1732
  %v2237 = vpop.f32.mrf.mxu0
  %v2238 = vadd.f32 %v2029, %v2237
  %2239 = vmatmul.f32.gmra.mxu0 %v1736
  %v2240 = vpop.f32.mrf.mxu0
  %v2241 = vadd.f32 %v2032, %v2240
  %2242 = vmatmul.f32.gmra.mxu0 %v1740
  %v2243 = vpop.f32.mrf.mxu0
  %v2244 = vadd.f32 %v2035, %v2243
  %2245 = vmatmul.f32.gmra.mxu0 %v1744
  %v2246 = vpop.f32.mrf.mxu0
  %v2247 = vadd.f32 %v2038, %v2246
  %2248 = vmatmul.f32.gmra.mxu0 %v1748
  %v2249 = vpop.f32.mrf.mxu0
  %v2250 = vadd.f32 %v2041, %v2249
  %2251 = vmatmul.f32.gmra.mxu0 %v1752
  %v2252 = vpop.f32.mrf.mxu0
  %v2253 = vadd.f32 %v2044, %v2252
  %2254 = vmatmul.f32.gmra.mxu0 %v1756
  %v2255 = vpop.f32.mrf.mxu0
  %v2256 = vadd.f32 %v2047, %v2255
  %2257 = vmatmul.f32.gmra.mxu0 %v1760
  %v2258 = vpop.f32.mrf.mxu0
  %v2259 = vadd.f32 %v2050, %v2258
  %2260 = vmatmul.f32.gmra.mxu0 %v1764
  %v2261 = vpop.f32.mrf.mxu0
  %v2262 = vadd.f32 %v2053, %v2261
  %2263 = vmatmul.f32.gmra.mxu0 %v1768
  %v2264 = vpop.f32.mrf.mxu0
  %v2265 = vadd.f32 %v2056, %v2264
  %2266 = vmatmul.f32.gmra.mxu0 %v1772
  %v2267 = vpop.f32.mrf.mxu0
  %v2268 = vadd.f32 %v2059, %v2267
  %2269 = vmatmul.f32.gmra.mxu0 %v1776
  %v2270 = vpop.f32.mrf.mxu0
  %v2271 = vadd.f32 %v2062, %v2270
  %2272 = vmatmul.f32.gmra.mxu0 %v1780
  %v2273 = vpop.f32.mrf.mxu0
  %v2274 = vadd.f32 %v2065, %v2273
  %2275 = vmatmul.f32.gmra.mxu0 %v1784
  %v2276 = vpop.f32.mrf.mxu0
  %v2277 = vadd.f32 %v2068, %v2276
  %2278 = vmatmul.f32.gmra.mxu0 %v1788
  %v2279 = vpop.f32.mrf.mxu0
  %v2280 = vadd.f32 %v2071, %v2279
  %2281 = vmatmul.f32.gmra.mxu0 %v1792
  %v2282 = vpop.f32.mrf.mxu0
  %v2283 = vadd.f32 %v2074, %v2282
  %2284 = vmatmul.f32.gmra.mxu0 %v1796
  %v2285 = vpop.f32.mrf.mxu0
  %v2286 = vadd.f32 %v2077, %v2285
  %2287 = vmatmul.f32.gmra.mxu0 %v1800
  %v2288 = vpop.f32.mrf.mxu0
  %v2289 = vadd.f32 %v2080, %v2288
  %2290 = vmatmul.f32.gmra.mxu0 %v1804
  %v2291 = vpop.f32.mrf.mxu0
  %v2292 = vadd.f32 %v2083, %v2291
  %2293 = vmatmul.f32.gmra.mxu0 %v1808
  %v2294 = vpop.f32.mrf.mxu0
  %v2295 = vadd.f32 %v2086, %v2294
  %2296 = vmatmul.f32.gmra.mxu0 %v1812
  %v2297 = vpop.f32.mrf.mxu0
  %v2298 = vadd.f32 %v2089, %v2297
  %2299 = vmatmul.f32.gmra.mxu0 %v1816
  %v2300 = vpop.f32.mrf.mxu0
  %v2301 = vadd.f32 %v2092, %v2300
  %2302 = vmatmul.f32.gmra.mxu0 %v1820
  %v2303 = vpop.f32.mrf.mxu0
  %v2304 = vadd.f32 %v2095, %v2303
  %2305 = vmatmul.f32.gmra.mxu0 %v1824
  %v2306 = vpop.f32.mrf.mxu0
  %v2307 = vadd.f32 %v2098, %v2306
  %2308 = vdwg.mxu0
  %2309 = vmatpush.msra.mxu0 %v1874
  %2310 = vmatpush.msra.mxu0 %v1873
  %2311 = vmatpush.msra.mxu0 %v1872
  %2312 = vmatpush.msra.mxu0 %v1871
  %2313 = vmatpush.msra.mxu0 %v1870
  %2314 = vmatpush.msra.mxu0 %v1869
  %2315 = vmatpush.msra.mxu0 %v1868
  %2316 = vmatpush.msra.mxu0 %v1867
  %2317 = vmatpush.msra.mxu0 %v1866
  %2318 = vmatpush.msra.mxu0 %v1865
  %2319 = vmatpush.msra.mxu0 %v1864
  %2320 = vmatpush.msra.mxu0 %v1863
  %2321 = vmatpush.msra.mxu0 %v1862
  %2322 = vmatpush.msra.mxu0 %v1861
  %2323 = vmatpush.msra.mxu0 %v1860
  %2324 = vmatpush.msra.mxu0 %v1859
  %2325 = vmatmul.f32.gmra.mxu0 %v1573
  %v2326 = vpop.f32.mrf.mxu0
  %v2327 = vadd.f32 %v2118, %v2326
  %2328 = vmatmul.f32.gmra.mxu0 %v1577
  %v2329 = vpop.f32.mrf.mxu0
  %v2330 = vadd.f32 %v2121, %v2329
  %2331 = vmatmul.f32.gmra.mxu0 %v1581
  %v2332 = vpop.f32.mrf.mxu0
  %v2333 = vadd.f32 %v2124, %v2332
  %2334 = vmatmul.f32.gmra.mxu0 %v1585
  %v2335 = vpop.f32.mrf.mxu0
  %v2336 = vadd.f32 %v2127, %v2335
  %2337 = vmatmul.f32.gmra.mxu0 %v1589
  %v2338 = vpop.f32.mrf.mxu0
  %v2339 = vadd.f32 %v2130, %v2338
  %2340 = vmatmul.f32.gmra.mxu0 %v1593
  %v2341 = vpop.f32.mrf.mxu0
  %v2342 = vadd.f32 %v2133, %v2341
  %2343 = vmatmul.f32.gmra.mxu0 %v1597
  %v2344 = vpop.f32.mrf.mxu0
  %v2345 = vadd.f32 %v2136, %v2344
  %2346 = vmatmul.f32.gmra.mxu0 %v1601
  %v2347 = vpop.f32.mrf.mxu0
  %v2348 = vadd.f32 %v2139, %v2347
  %2349 = vmatmul.f32.gmra.mxu0 %v1605
  %v2350 = vpop.f32.mrf.mxu0
  %v2351 = vadd.f32 %v2142, %v2350
  %2352 = vmatmul.f32.gmra.mxu0 %v1609
  %v2353 = vpop.f32.mrf.mxu0
  %v2354 = vadd.f32 %v2145, %v2353
  %2355 = vmatmul.f32.gmra.mxu0 %v1613
  %v2356 = vpop.f32.mrf.mxu0
  %v2357 = vadd.f32 %v2148, %v2356
  %2358 = vmatmul.f32.gmra.mxu0 %v1617
  %v2359 = vpop.f32.mrf.mxu0
  %v2360 = vadd.f32 %v2151, %v2359
  %2361 = vmatmul.f32.gmra.mxu0 %v1621
  %v2362 = vpop.f32.mrf.mxu0
  %v2363 = vadd.f32 %v2154, %v2362
  %2364 = vmatmul.f32.gmra.mxu0 %v1625
  %v2365 = vpop.f32.mrf.mxu0
  %v2366 = vadd.f32 %v2157, %v2365
  %2367 = vmatmul.f32.gmra.mxu0 %v1629
  %v2368 = vpop.f32.mrf.mxu0
  %v2369 = vadd.f32 %v2160, %v2368
  %2370 = vmatmul.f32.gmra.mxu0 %v1633
  %v2371 = vpop.f32.mrf.mxu0
  %v2372 = vadd.f32 %v2163, %v2371
  %2373 = vmatmul.f32.gmra.mxu0 %v1637
  %v2374 = vpop.f32.mrf.mxu0
  %v2375 = vadd.f32 %v2166, %v2374
  %2376 = vmatmul.f32.gmra.mxu0 %v1641
  %v2377 = vpop.f32.mrf.mxu0
  %v2378 = vadd.f32 %v2169, %v2377
  %2379 = vmatmul.f32.gmra.mxu0 %v1645
  %v2380 = vpop.f32.mrf.mxu0
  %v2381 = vadd.f32 %v2172, %v2380
  %2382 = vmatmul.f32.gmra.mxu0 %v1649
  %v2383 = vpop.f32.mrf.mxu0
  %v2384 = vadd.f32 %v2175, %v2383
  %2385 = vmatmul.f32.gmra.mxu0 %v1653
  %v2386 = vpop.f32.mrf.mxu0
  %v2387 = vadd.f32 %v2178, %v2386
  %2388 = vmatmul.f32.gmra.mxu0 %v1657
  %v2389 = vpop.f32.mrf.mxu0
  %v2390 = vadd.f32 %v2181, %v2389
  %2391 = vmatmul.f32.gmra.mxu0 %v1661
  %v2392 = vpop.f32.mrf.mxu0
  %v2393 = vadd.f32 %v2184, %v2392
  %2394 = vmatmul.f32.gmra.mxu0 %v1665
  %v2395 = vpop.f32.mrf.mxu0
  %v2396 = vadd.f32 %v2187, %v2395
  %2397 = vmatmul.f32.gmra.mxu0 %v1669
  %v2398 = vpop.f32.mrf.mxu0
  %v2399 = vadd.f32 %v2190, %v2398
  %2400 = vmatmul.f32.gmra.mxu0 %v1673
  %v2401 = vpop.f32.mrf.mxu0
  %v2402 = vadd.f32 %v2193, %v2401
  %2403 = vmatmul.f32.gmra.mxu0 %v1677
  %v2404 = vpop.f32.mrf.mxu0
  %v2405 = vadd.f32 %v2196, %v2404
  %2406 = vmatmul.f32.gmra.mxu0 %v1681
  %v2407 = vpop.f32.mrf.mxu0
  %v2408 = vadd.f32 %v2199, %v2407
  %2409 = vmatmul.f32.gmra.mxu0 %v1685
  %v2410 = vpop.f32.mrf.mxu0
  %v2411 = vadd.f32 %v2202, %v2410
  %2412 = vmatmul.f32.gmra.mxu0 %v1689
  %v2413 = vpop.f32.mrf.mxu0
  %v2414 = vadd.f32 %v2205, %v2413
  %2415 = vmatmul.f32.gmra.mxu0 %v1693
  %v2416 = vpop.f32.mrf.mxu0
  %v2417 = vadd.f32 %v2208, %v2416
  %2418 = vmatmul.f32.gmra.mxu0 %v1697
  %v2419 = vpop.f32.mrf.mxu0
  %v2420 = vadd.f32 %v2211, %v2419
  %2421 = vmatmul.f32.gmra.mxu0 %v1701
  %v2422 = vpop.f32.mrf.mxu0
  %v2423 = vadd.f32 %v2214, %v2422
  %2424 = vmatmul.f32.gmra.mxu0 %v1705
  %v2425 = vpop.f32.mrf.mxu0
  %v2426 = vadd.f32 %v2217, %v2425
  %2427 = vmatmul.f32.gmra.mxu0 %v1709
  %v2428 = vpop.f32.mrf.mxu0
  %v2429 = vadd.f32 %v2220, %v2428
  %2430 = vmatmul.f32.gmra.mxu0 %v1713
  %v2431 = vpop.f32.mrf.mxu0
  %v2432 = vadd.f32 %v2223, %v2431
  %2433 = vmatmul.f32.gmra.mxu0 %v1717
  %v2434 = vpop.f32.mrf.mxu0
  %v2435 = vadd.f32 %v2226, %v2434
  %2436 = vmatmul.f32.gmra.mxu0 %v1721
  %v2437 = vpop.f32.mrf.mxu0
  %v2438 = vadd.f32 %v2229, %v2437
  %2439 = vmatmul.f32.gmra.mxu0 %v1725
  %v2440 = vpop.f32.mrf.mxu0
  %v2441 = vadd.f32 %v2232, %v2440
  %2442 = vmatmul.f32.gmra.mxu0 %v1729
  %v2443 = vpop.f32.mrf.mxu0
  %v2444 = vadd.f32 %v2235, %v2443
  %2445 = vmatmul.f32.gmra.mxu0 %v1733
  %v2446 = vpop.f32.mrf.mxu0
  %v2447 = vadd.f32 %v2238, %v2446
  %2448 = vmatmul.f32.gmra.mxu0 %v1737
  %v2449 = vpop.f32.mrf.mxu0
  %v2450 = vadd.f32 %v2241, %v2449
  %2451 = vmatmul.f32.gmra.mxu0 %v1741
  %v2452 = vpop.f32.mrf.mxu0
  %v2453 = vadd.f32 %v2244, %v2452
  %2454 = vmatmul.f32.gmra.mxu0 %v1745
  %v2455 = vpop.f32.mrf.mxu0
  %v2456 = vadd.f32 %v2247, %v2455
  %2457 = vmatmul.f32.gmra.mxu0 %v1749
  %v2458 = vpop.f32.mrf.mxu0
  %v2459 = vadd.f32 %v2250, %v2458
  %2460 = vmatmul.f32.gmra.mxu0 %v1753
  %v2461 = vpop.f32.mrf.mxu0
  %v2462 = vadd.f32 %v2253, %v2461
  %2463 = vmatmul.f32.gmra.mxu0 %v1757
  %v2464 = vpop.f32.mrf.mxu0
  %v2465 = vadd.f32 %v2256, %v2464
  %2466 = vmatmul.f32.gmra.mxu0 %v1761
  %v2467 = vpop.f32.mrf.mxu0
  %v2468 = vadd.f32 %v2259, %v2467
  %2469 = vmatmul.f32.gmra.mxu0 %v1765
  %v2470 = vpop.f32.mrf.mxu0
  %v2471 = vadd.f32 %v2262, %v2470
  %2472 = vmatmul.f32.gmra.mxu0 %v1769
  %v2473 = vpop.f32.mrf.mxu0
  %v2474 = vadd.f32 %v2265, %v2473
  %2475 = vmatmul.f32.gmra.mxu0 %v1773
  %v2476 = vpop.f32.mrf.mxu0
  %v2477 = vadd.f32 %v2268, %v2476
  %2478 = vmatmul.f32.gmra.mxu0 %v1777
  %v2479 = vpop.f32.mrf.mxu0
  %v2480 = vadd.f32 %v2271, %v2479
  %2481 = vmatmul.f32.gmra.mxu0 %v1781
  %v2482 = vpop.f32.mrf.mxu0
  %v2483 = vadd.f32 %v2274, %v2482
  %2484 = vmatmul.f32.gmra.mxu0 %v1785
  %v2485 = vpop.f32.mrf.mxu0
  %v2486 = vadd.f32 %v2277, %v2485
  %2487 = vmatmul.f32.gmra.mxu0 %v1789
  %v2488 = vpop.f32.mrf.mxu0
  %v2489 = vadd.f32 %v2280, %v2488
  %2490 = vmatmul.f32.gmra.mxu0 %v1793
  %v2491 = vpop.f32.mrf.mxu0
  %v2492 = vadd.f32 %v2283, %v2491
  %2493 = vmatmul.f32.gmra.mxu0 %v1797
  %v2494 = vpop.f32.mrf.mxu0
  %v2495 = vadd.f32 %v2286, %v2494
  %2496 = vmatmul.f32.gmra.mxu0 %v1801
  %v2497 = vpop.f32.mrf.mxu0
  %v2498 = vadd.f32 %v2289, %v2497
  %2499 = vmatmul.f32.gmra.mxu0 %v1805
  %v2500 = vpop.f32.mrf.mxu0
  %v2501 = vadd.f32 %v2292, %v2500
  %2502 = vmatmul.f32.gmra.mxu0 %v1809
  %v2503 = vpop.f32.mrf.mxu0
  %v2504 = vadd.f32 %v2295, %v2503
  %2505 = vmatmul.f32.gmra.mxu0 %v1813
  %v2506 = vpop.f32.mrf.mxu0
  %v2507 = vadd.f32 %v2298, %v2506
  %2508 = vmatmul.f32.gmra.mxu0 %v1817
  %v2509 = vpop.f32.mrf.mxu0
  %v2510 = vadd.f32 %v2301, %v2509
  %2511 = vmatmul.f32.gmra.mxu0 %v1821
  %v2512 = vpop.f32.mrf.mxu0
  %v2513 = vadd.f32 %v2304, %v2512
  %2514 = vmatmul.f32.gmra.mxu0 %v1825
  %v2515 = vpop.f32.mrf.mxu0
  %v2516 = vadd.f32 %v2307, %v2515
  %2517 = vdwg.mxu0
  %2518 = vmatpush.msra.mxu0 %v1890
  %2519 = vmatpush.msra.mxu0 %v1889
  %2520 = vmatpush.msra.mxu0 %v1888
  %2521 = vmatpush.msra.mxu0 %v1887
  %2522 = vmatpush.msra.mxu0 %v1886
  %2523 = vmatpush.msra.mxu0 %v1885
  %2524 = vmatpush.msra.mxu0 %v1884
  %2525 = vmatpush.msra.mxu0 %v1883
  %2526 = vmatpush.msra.mxu0 %v1882
  %2527 = vmatpush.msra.mxu0 %v1881
  %2528 = vmatpush.msra.mxu0 %v1880
  %2529 = vmatpush.msra.mxu0 %v1879
  %2530 = vmatpush.msra.mxu0 %v1878
  %2531 = vmatpush.msra.mxu0 %v1877
  %2532 = vmatpush.msra.mxu0 %v1876
  %2533 = vmatpush.msra.mxu0 %v1875
  %2534 = vmatmul.f32.gmra.mxu0 %v1574
  %v2535 = vpop.f32.mrf.mxu0
  %v2536 = vadd.f32 %v2327, %v2535
  %2537 = vmatmul.f32.gmra.mxu0 %v1578
  %v2538 = vpop.f32.mrf.mxu0
  %v2539 = vadd.f32 %v2330, %v2538
  %2540 = vmatmul.f32.gmra.mxu0 %v1582
  %v2541 = vpop.f32.mrf.mxu0
  %v2542 = vadd.f32 %v2333, %v2541
  %2543 = vmatmul.f32.gmra.mxu0 %v1586
  %v2544 = vpop.f32.mrf.mxu0
  %v2545 = vadd.f32 %v2336, %v2544
  %2546 = vmatmul.f32.gmra.mxu0 %v1590
  %v2547 = vpop.f32.mrf.mxu0
  %v2548 = vadd.f32 %v2339, %v2547
  %2549 = vmatmul.f32.gmra.mxu0 %v1594
  %v2550 = vpop.f32.mrf.mxu0
  %v2551 = vadd.f32 %v2342, %v2550
  %2552 = vmatmul.f32.gmra.mxu0 %v1598
  %v2553 = vpop.f32.mrf.mxu0
  %v2554 = vadd.f32 %v2345, %v2553
  %2555 = vmatmul.f32.gmra.mxu0 %v1602
  %v2556 = vpop.f32.mrf.mxu0
  %v2557 = vadd.f32 %v2348, %v2556
  %2558 = vmatmul.f32.gmra.mxu0 %v1606
  %v2559 = vpop.f32.mrf.mxu0
  %v2560 = vadd.f32 %v2351, %v2559
  %2561 = vmatmul.f32.gmra.mxu0 %v1610
  %v2562 = vpop.f32.mrf.mxu0
  %v2563 = vadd.f32 %v2354, %v2562
  %2564 = vmatmul.f32.gmra.mxu0 %v1614
  %v2565 = vpop.f32.mrf.mxu0
  %v2566 = vadd.f32 %v2357, %v2565
  %2567 = vmatmul.f32.gmra.mxu0 %v1618
  %v2568 = vpop.f32.mrf.mxu0
  %v2569 = vadd.f32 %v2360, %v2568
  %2570 = vmatmul.f32.gmra.mxu0 %v1622
  %v2571 = vpop.f32.mrf.mxu0
  %v2572 = vadd.f32 %v2363, %v2571
  %2573 = vmatmul.f32.gmra.mxu0 %v1626
  %v2574 = vpop.f32.mrf.mxu0
  %v2575 = vadd.f32 %v2366, %v2574
  %2576 = vmatmul.f32.gmra.mxu0 %v1630
  %v2577 = vpop.f32.mrf.mxu0
  %v2578 = vadd.f32 %v2369, %v2577
  %2579 = vmatmul.f32.gmra.mxu0 %v1634
  %v2580 = vpop.f32.mrf.mxu0
  %v2581 = vadd.f32 %v2372, %v2580
  %2582 = vmatmul.f32.gmra.mxu0 %v1638
  %v2583 = vpop.f32.mrf.mxu0
  %v2584 = vadd.f32 %v2375, %v2583
  %2585 = vmatmul.f32.gmra.mxu0 %v1642
  %v2586 = vpop.f32.mrf.mxu0
  %v2587 = vadd.f32 %v2378, %v2586
  %2588 = vmatmul.f32.gmra.mxu0 %v1646
  %v2589 = vpop.f32.mrf.mxu0
  %v2590 = vadd.f32 %v2381, %v2589
  %2591 = vmatmul.f32.gmra.mxu0 %v1650
  %v2592 = vpop.f32.mrf.mxu0
  %v2593 = vadd.f32 %v2384, %v2592
  %2594 = vmatmul.f32.gmra.mxu0 %v1654
  %v2595 = vpop.f32.mrf.mxu0
  %v2596 = vadd.f32 %v2387, %v2595
  %2597 = vmatmul.f32.gmra.mxu0 %v1658
  %v2598 = vpop.f32.mrf.mxu0
  %v2599 = vadd.f32 %v2390, %v2598
  %2600 = vmatmul.f32.gmra.mxu0 %v1662
  %v2601 = vpop.f32.mrf.mxu0
  %v2602 = vadd.f32 %v2393, %v2601
  %2603 = vmatmul.f32.gmra.mxu0 %v1666
  %v2604 = vpop.f32.mrf.mxu0
  %v2605 = vadd.f32 %v2396, %v2604
  %2606 = vmatmul.f32.gmra.mxu0 %v1670
  %v2607 = vpop.f32.mrf.mxu0
  %v2608 = vadd.f32 %v2399, %v2607
  %2609 = vmatmul.f32.gmra.mxu0 %v1674
  %v2610 = vpop.f32.mrf.mxu0
  %v2611 = vadd.f32 %v2402, %v2610
  %2612 = vmatmul.f32.gmra.mxu0 %v1678
  %v2613 = vpop.f32.mrf.mxu0
  %v2614 = vadd.f32 %v2405, %v2613
  %2615 = vmatmul.f32.gmra.mxu0 %v1682
  %v2616 = vpop.f32.mrf.mxu0
  %v2617 = vadd.f32 %v2408, %v2616
  %2618 = vmatmul.f32.gmra.mxu0 %v1686
  %v2619 = vpop.f32.mrf.mxu0
  %v2620 = vadd.f32 %v2411, %v2619
  %2621 = vmatmul.f32.gmra.mxu0 %v1690
  %v2622 = vpop.f32.mrf.mxu0
  %v2623 = vadd.f32 %v2414, %v2622
  %2624 = vmatmul.f32.gmra.mxu0 %v1694
  %v2625 = vpop.f32.mrf.mxu0
  %v2626 = vadd.f32 %v2417, %v2625
  %2627 = vmatmul.f32.gmra.mxu0 %v1698
  %v2628 = vpop.f32.mrf.mxu0
  %v2629 = vadd.f32 %v2420, %v2628
  %2630 = vmatmul.f32.gmra.mxu0 %v1702
  %v2631 = vpop.f32.mrf.mxu0
  %v2632 = vadd.f32 %v2423, %v2631
  %2633 = vmatmul.f32.gmra.mxu0 %v1706
  %v2634 = vpop.f32.mrf.mxu0
  %v2635 = vadd.f32 %v2426, %v2634
  %2636 = vmatmul.f32.gmra.mxu0 %v1710
  %v2637 = vpop.f32.mrf.mxu0
  %v2638 = vadd.f32 %v2429, %v2637
  %2639 = vmatmul.f32.gmra.mxu0 %v1714
  %v2640 = vpop.f32.mrf.mxu0
  %v2641 = vadd.f32 %v2432, %v2640
  %2642 = vmatmul.f32.gmra.mxu0 %v1718
  %v2643 = vpop.f32.mrf.mxu0
  %v2644 = vadd.f32 %v2435, %v2643
  %2645 = vmatmul.f32.gmra.mxu0 %v1722
  %v2646 = vpop.f32.mrf.mxu0
  %v2647 = vadd.f32 %v2438, %v2646
  %2648 = vmatmul.f32.gmra.mxu0 %v1726
  %v2649 = vpop.f32.mrf.mxu0
  %v2650 = vadd.f32 %v2441, %v2649
  %2651 = vmatmul.f32.gmra.mxu0 %v1730
  %v2652 = vpop.f32.mrf.mxu0
  %v2653 = vadd.f32 %v2444, %v2652
  %2654 = vmatmul.f32.gmra.mxu0 %v1734
  %v2655 = vpop.f32.mrf.mxu0
  %v2656 = vadd.f32 %v2447, %v2655
  %2657 = vmatmul.f32.gmra.mxu0 %v1738
  %v2658 = vpop.f32.mrf.mxu0
  %v2659 = vadd.f32 %v2450, %v2658
  %2660 = vmatmul.f32.gmra.mxu0 %v1742
  %v2661 = vpop.f32.mrf.mxu0
  %v2662 = vadd.f32 %v2453, %v2661
  %2663 = vmatmul.f32.gmra.mxu0 %v1746
  %v2664 = vpop.f32.mrf.mxu0
  %v2665 = vadd.f32 %v2456, %v2664
  %2666 = vmatmul.f32.gmra.mxu0 %v1750
  %v2667 = vpop.f32.mrf.mxu0
  %v2668 = vadd.f32 %v2459, %v2667
  %2669 = vmatmul.f32.gmra.mxu0 %v1754
  %v2670 = vpop.f32.mrf.mxu0
  %v2671 = vadd.f32 %v2462, %v2670
  %2672 = vmatmul.f32.gmra.mxu0 %v1758
  %v2673 = vpop.f32.mrf.mxu0
  %v2674 = vadd.f32 %v2465, %v2673
  %2675 = vmatmul.f32.gmra.mxu0 %v1762
  %v2676 = vpop.f32.mrf.mxu0
  %v2677 = vadd.f32 %v2468, %v2676
  %2678 = vmatmul.f32.gmra.mxu0 %v1766
  %v2679 = vpop.f32.mrf.mxu0
  %v2680 = vadd.f32 %v2471, %v2679
  %2681 = vmatmul.f32.gmra.mxu0 %v1770
  %v2682 = vpop.f32.mrf.mxu0
  %v2683 = vadd.f32 %v2474, %v2682
  %2684 = vmatmul.f32.gmra.mxu0 %v1774
  %v2685 = vpop.f32.mrf.mxu0
  %v2686 = vadd.f32 %v2477, %v2685
  %2687 = vmatmul.f32.gmra.mxu0 %v1778
  %v2688 = vpop.f32.mrf.mxu0
  %v2689 = vadd.f32 %v2480, %v2688
  %2690 = vmatmul.f32.gmra.mxu0 %v1782
  %v2691 = vpop.f32.mrf.mxu0
  %v2692 = vadd.f32 %v2483, %v2691
  %2693 = vmatmul.f32.gmra.mxu0 %v1786
  %v2694 = vpop.f32.mrf.mxu0
  %v2695 = vadd.f32 %v2486, %v2694
  %2696 = vmatmul.f32.gmra.mxu0 %v1790
  %v2697 = vpop.f32.mrf.mxu0
  %v2698 = vadd.f32 %v2489, %v2697
  %2699 = vmatmul.f32.gmra.mxu0 %v1794
  %v2700 = vpop.f32.mrf.mxu0
  %v2701 = vadd.f32 %v2492, %v2700
  %2702 = vmatmul.f32.gmra.mxu0 %v1798
  %v2703 = vpop.f32.mrf.mxu0
  %v2704 = vadd.f32 %v2495, %v2703
  %2705 = vmatmul.f32.gmra.mxu0 %v1802
  %v2706 = vpop.f32.mrf.mxu0
  %v2707 = vadd.f32 %v2498, %v2706
  %2708 = vmatmul.f32.gmra.mxu0 %v1806
  %v2709 = vpop.f32.mrf.mxu0
  %v2710 = vadd.f32 %v2501, %v2709
  %2711 = vmatmul.f32.gmra.mxu0 %v1810
  %v2712 = vpop.f32.mrf.mxu0
  %v2713 = vadd.f32 %v2504, %v2712
  %2714 = vmatmul.f32.gmra.mxu0 %v1814
  %v2715 = vpop.f32.mrf.mxu0
  %v2716 = vadd.f32 %v2507, %v2715
  %2717 = vmatmul.f32.gmra.mxu0 %v1818
  %v2718 = vpop.f32.mrf.mxu0
  %v2719 = vadd.f32 %v2510, %v2718
  %2720 = vmatmul.f32.gmra.mxu0 %v1822
  %v2721 = vpop.f32.mrf.mxu0
  %v2722 = vadd.f32 %v2513, %v2721
  %2723 = vmatmul.f32.gmra.mxu0 %v1826
  %v2724 = vpop.f32.mrf.mxu0
  %v2725 = vadd.f32 %v2516, %v2724
  %2726 = vdwg.mxu0
  %v2727 = vsub.f32 %v2536, %v29
  %v2728 = vsub.f32 %v2539, %v30
  %v2729 = vsub.f32 %v2542, %v31
  %v2730 = vsub.f32 %v2545, %v32
  %v2731 = vsub.f32 %v2548, %v33
  %v2732 = vsub.f32 %v2551, %v34
  %v2733 = vsub.f32 %v2554, %v35
  %v2734 = vsub.f32 %v2557, %v36
  %v2735 = vsub.f32 %v2560, %v37
  %v2736 = vsub.f32 %v2563, %v38
  %v2737 = vsub.f32 %v2566, %v39
  %v2738 = vsub.f32 %v2569, %v40
  %v2739 = vsub.f32 %v2572, %v41
  %v2740 = vsub.f32 %v2575, %v42
  %v2741 = vsub.f32 %v2578, %v43
  %v2742 = vsub.f32 %v2581, %v44
  %v2743 = vsub.f32 %v2584, %v45
  %v2744 = vsub.f32 %v2587, %v46
  %v2745 = vsub.f32 %v2590, %v47
  %v2746 = vsub.f32 %v2593, %v48
  %v2747 = vsub.f32 %v2596, %v49
  %v2748 = vsub.f32 %v2599, %v50
  %v2749 = vsub.f32 %v2602, %v51
  %v2750 = vsub.f32 %v2605, %v52
  %v2751 = vsub.f32 %v2608, %v53
  %v2752 = vsub.f32 %v2611, %v54
  %v2753 = vsub.f32 %v2614, %v55
  %v2754 = vsub.f32 %v2617, %v56
  %v2755 = vsub.f32 %v2620, %v57
  %v2756 = vsub.f32 %v2623, %v58
  %v2757 = vsub.f32 %v2626, %v59
  %v2758 = vsub.f32 %v2629, %v60
  %v2759 = vsub.f32 %v2632, %v61
  %v2760 = vsub.f32 %v2635, %v62
  %v2761 = vsub.f32 %v2638, %v63
  %v2762 = vsub.f32 %v2641, %v64
  %v2763 = vsub.f32 %v2644, %v65
  %v2764 = vsub.f32 %v2647, %v66
  %v2765 = vsub.f32 %v2650, %v67
  %v2766 = vsub.f32 %v2653, %v68
  %v2767 = vsub.f32 %v2656, %v69
  %v2768 = vsub.f32 %v2659, %v70
  %v2769 = vsub.f32 %v2662, %v71
  %v2770 = vsub.f32 %v2665, %v72
  %v2771 = vsub.f32 %v2668, %v73
  %v2772 = vsub.f32 %v2671, %v74
  %v2773 = vsub.f32 %v2674, %v75
  %v2774 = vsub.f32 %v2677, %v76
  %v2775 = vsub.f32 %v2680, %v77
  %v2776 = vsub.f32 %v2683, %v78
  %v2777 = vsub.f32 %v2686, %v79
  %v2778 = vsub.f32 %v2689, %v80
  %v2779 = vsub.f32 %v2692, %v81
  %v2780 = vsub.f32 %v2695, %v82
  %v2781 = vsub.f32 %v2698, %v83
  %v2782 = vsub.f32 %v2701, %v84
  %v2783 = vsub.f32 %v2704, %v85
  %v2784 = vsub.f32 %v2707, %v86
  %v2785 = vsub.f32 %v2710, %v87
  %v2786 = vsub.f32 %v2713, %v88
  %v2787 = vsub.f32 %v2716, %v89
  %v2788 = vsub.f32 %v2719, %v90
  %v2789 = vsub.f32 %v2722, %v91
  %v2790 = vsub.f32 %v2725, %v92
  %2855 = vrot.lane.b32.xlu0 %v2727, 32
  %v2856 = vpop.permute.xlu0 %2855
  %2857 = vrot.lane.b32.xlu0 %v2728, 32
  %v2858 = vpop.permute.xlu0 %2857
  %2859 = vrot.lane.b32.xlu0 %v2729, 32
  %v2860 = vpop.permute.xlu0 %2859
  %2861 = vrot.lane.b32.xlu0 %v2730, 32
  %v2862 = vpop.permute.xlu0 %2861
  %2863 = vrot.lane.b32.xlu0 %v2731, 32
  %v2864 = vpop.permute.xlu0 %2863
  %2865 = vrot.lane.b32.xlu0 %v2732, 32
  %v2866 = vpop.permute.xlu0 %2865
  %2867 = vrot.lane.b32.xlu0 %v2733, 32
  %v2868 = vpop.permute.xlu0 %2867
  %2869 = vrot.lane.b32.xlu0 %v2734, 32
  %v2870 = vpop.permute.xlu0 %2869
  %2871 = vrot.lane.b32.xlu0 %v2735, 32
  %v2872 = vpop.permute.xlu0 %2871
  %2873 = vrot.lane.b32.xlu0 %v2736, 32
  %v2874 = vpop.permute.xlu0 %2873
  %2875 = vrot.lane.b32.xlu0 %v2737, 32
  %v2876 = vpop.permute.xlu0 %2875
  %2877 = vrot.lane.b32.xlu0 %v2738, 32
  %v2878 = vpop.permute.xlu0 %2877
  %2879 = vrot.lane.b32.xlu0 %v2739, 32
  %v2880 = vpop.permute.xlu0 %2879
  %2881 = vrot.lane.b32.xlu0 %v2740, 32
  %v2882 = vpop.permute.xlu0 %2881
  %2883 = vrot.lane.b32.xlu0 %v2741, 32
  %v2884 = vpop.permute.xlu0 %2883
  %2885 = vrot.lane.b32.xlu0 %v2742, 32
  %v2886 = vpop.permute.xlu0 %2885
  %2887 = vrot.lane.b32.xlu0 %v2743, 32
  %v2888 = vpop.permute.xlu0 %2887
  %2889 = vrot.lane.b32.xlu0 %v2744, 32
  %v2890 = vpop.permute.xlu0 %2889
  %2891 = vrot.lane.b32.xlu0 %v2745, 32
  %v2892 = vpop.permute.xlu0 %2891
  %2893 = vrot.lane.b32.xlu0 %v2746, 32
  %v2894 = vpop.permute.xlu0 %2893
  %2895 = vrot.lane.b32.xlu0 %v2747, 32
  %v2896 = vpop.permute.xlu0 %2895
  %2897 = vrot.lane.b32.xlu0 %v2748, 32
  %v2898 = vpop.permute.xlu0 %2897
  %2899 = vrot.lane.b32.xlu0 %v2749, 32
  %v2900 = vpop.permute.xlu0 %2899
  %2901 = vrot.lane.b32.xlu0 %v2750, 32
  %v2902 = vpop.permute.xlu0 %2901
  %2903 = vrot.lane.b32.xlu0 %v2751, 32
  %v2904 = vpop.permute.xlu0 %2903
  %2905 = vrot.lane.b32.xlu0 %v2752, 32
  %v2906 = vpop.permute.xlu0 %2905
  %2907 = vrot.lane.b32.xlu0 %v2753, 32
  %v2908 = vpop.permute.xlu0 %2907
  %2909 = vrot.lane.b32.xlu0 %v2754, 32
  %v2910 = vpop.permute.xlu0 %2909
  %2911 = vrot.lane.b32.xlu0 %v2755, 32
  %v2912 = vpop.permute.xlu0 %2911
  %2913 = vrot.lane.b32.xlu0 %v2756, 32
  %v2914 = vpop.permute.xlu0 %2913
  %2915 = vrot.lane.b32.xlu0 %v2757, 32
  %v2916 = vpop.permute.xlu0 %2915
  %2917 = vrot.lane.b32.xlu0 %v2758, 32
  %v2918 = vpop.permute.xlu0 %2917
  %2919 = vrot.lane.b32.xlu0 %v2759, 32
  %v2920 = vpop.permute.xlu0 %2919
  %2921 = vrot.lane.b32.xlu0 %v2760, 32
  %v2922 = vpop.permute.xlu0 %2921
  %2923 = vrot.lane.b32.xlu0 %v2761, 32
  %v2924 = vpop.permute.xlu0 %2923
  %2925 = vrot.lane.b32.xlu0 %v2762, 32
  %v2926 = vpop.permute.xlu0 %2925
  %2927 = vrot.lane.b32.xlu0 %v2763, 32
  %v2928 = vpop.permute.xlu0 %2927
  %2929 = vrot.lane.b32.xlu0 %v2764, 32
  %v2930 = vpop.permute.xlu0 %2929
  %2931 = vrot.lane.b32.xlu0 %v2765, 32
  %v2932 = vpop.permute.xlu0 %2931
  %2933 = vrot.lane.b32.xlu0 %v2766, 32
  %v2934 = vpop.permute.xlu0 %2933
  %2935 = vrot.lane.b32.xlu0 %v2767, 32
  %v2936 = vpop.permute.xlu0 %2935
  %2937 = vrot.lane.b32.xlu0 %v2768, 32
  %v2938 = vpop.permute.xlu0 %2937
  %2939 = vrot.lane.b32.xlu0 %v2769, 32
  %v2940 = vpop.permute.xlu0 %2939
  %2941 = vrot.lane.b32.xlu0 %v2770, 32
  %v2942 = vpop.permute.xlu0 %2941
  %2943 = vrot.lane.b32.xlu0 %v2771, 32
  %v2944 = vpop.permute.xlu0 %2943
  %2945 = vrot.lane.b32.xlu0 %v2772, 32
  %v2946 = vpop.permute.xlu0 %2945
  %2947 = vrot.lane.b32.xlu0 %v2773, 32
  %v2948 = vpop.permute.xlu0 %2947
  %2949 = vrot.lane.b32.xlu0 %v2774, 32
  %v2950 = vpop.permute.xlu0 %2949
  %2951 = vrot.lane.b32.xlu0 %v2775, 32
  %v2952 = vpop.permute.xlu0 %2951
  %2953 = vrot.lane.b32.xlu0 %v2776, 32
  %v2954 = vpop.permute.xlu0 %2953
  %2955 = vrot.lane.b32.xlu0 %v2777, 32
  %v2956 = vpop.permute.xlu0 %2955
  %2957 = vrot.lane.b32.xlu0 %v2778, 32
  %v2958 = vpop.permute.xlu0 %2957
  %2959 = vrot.lane.b32.xlu0 %v2779, 32
  %v2960 = vpop.permute.xlu0 %2959
  %2961 = vrot.lane.b32.xlu0 %v2780, 32
  %v2962 = vpop.permute.xlu0 %2961
  %2963 = vrot.lane.b32.xlu0 %v2781, 32
  %v2964 = vpop.permute.xlu0 %2963
  %2965 = vrot.lane.b32.xlu0 %v2782, 32
  %v2966 = vpop.permute.xlu0 %2965
  %2967 = vrot.lane.b32.xlu0 %v2783, 32
  %v2968 = vpop.permute.xlu0 %2967
  %2969 = vrot.lane.b32.xlu0 %v2784, 32
  %v2970 = vpop.permute.xlu0 %2969
  %2971 = vrot.lane.b32.xlu0 %v2785, 32
  %v2972 = vpop.permute.xlu0 %2971
  %2973 = vrot.lane.b32.xlu0 %v2786, 32
  %v2974 = vpop.permute.xlu0 %2973
  %2975 = vrot.lane.b32.xlu0 %v2787, 32
  %v2976 = vpop.permute.xlu0 %2975
  %2977 = vrot.lane.b32.xlu0 %v2788, 32
  %v2978 = vpop.permute.xlu0 %2977
  %2979 = vrot.lane.b32.xlu0 %v2789, 32
  %v2980 = vpop.permute.xlu0 %2979
  %2981 = vrot.lane.b32.xlu0 %v2790, 32
  %v2982 = vpop.permute.xlu0 %2981
  %vm3047 = vcmask 392448
  %3048 = vst.msk [vmem:[#allocation2] sm:$0xff] %vm3047, %v2856
  %3049 = vst.msk [vmem:[#allocation2 + $0x8] sm:$0xff] %vm3047, %v2858
  %3050 = vst.msk [vmem:[#allocation2 + $0x10] sm:$0xff] %vm3047, %v2860
  %3051 = vst.msk [vmem:[#allocation2 + $0x18] sm:$0xff] %vm3047, %v2862
  %3052 = vst.msk [vmem:[#allocation2 + $0x20] sm:$0xff] %vm3047, %v2864
  %3053 = vst.msk [vmem:[#allocation2 + $0x28] sm:$0xff] %vm3047, %v2866
  %3054 = vst.msk [vmem:[#allocation2 + $0x30] sm:$0xff] %vm3047, %v2868
  %3055 = vst.msk [vmem:[#allocation2 + $0x38] sm:$0xff] %vm3047, %v2870
  %3056 = vst.msk [vmem:[#allocation2 + $0x40] sm:$0xff] %vm3047, %v2872
  %3057 = vst.msk [vmem:[#allocation2 + $0x48] sm:$0xff] %vm3047, %v2874
  %3058 = vst.msk [vmem:[#allocation2 + $0x50] sm:$0xff] %vm3047, %v2876
  %3059 = vst.msk [vmem:[#allocation2 + $0x58] sm:$0xff] %vm3047, %v2878
  %3060 = vst.msk [vmem:[#allocation2 + $0x60] sm:$0xff] %vm3047, %v2880
  %3061 = vst.msk [vmem:[#allocation2 + $0x68] sm:$0xff] %vm3047, %v2882
  %3062 = vst.msk [vmem:[#allocation2 + $0x70] sm:$0xff] %vm3047, %v2884
  %3063 = vst.msk [vmem:[#allocation2 + $0x78] sm:$0xff] %vm3047, %v2886
  %3064 = vst.msk [vmem:[#allocation2 + $0x80] sm:$0xff] %vm3047, %v2888
  %3065 = vst.msk [vmem:[#allocation2 + $0x88] sm:$0xff] %vm3047, %v2890
  %3066 = vst.msk [vmem:[#allocation2 + $0x90] sm:$0xff] %vm3047, %v2892
  %3067 = vst.msk [vmem:[#allocation2 + $0x98] sm:$0xff] %vm3047, %v2894
  %3068 = vst.msk [vmem:[#allocation2 + $0xa0] sm:$0xff] %vm3047, %v2896
  %3069 = vst.msk [vmem:[#allocation2 + $0xa8] sm:$0xff] %vm3047, %v2898
  %3070 = vst.msk [vmem:[#allocation2 + $0xb0] sm:$0xff] %vm3047, %v2900
  %3071 = vst.msk [vmem:[#allocation2 + $0xb8] sm:$0xff] %vm3047, %v2902
  %3072 = vst.msk [vmem:[#allocation2 + $0xc0] sm:$0xff] %vm3047, %v2904
  %3073 = vst.msk [vmem:[#allocation2 + $0xc8] sm:$0xff] %vm3047, %v2906
  %3074 = vst.msk [vmem:[#allocation2 + $0xd0] sm:$0xff] %vm3047, %v2908
  %3075 = vst.msk [vmem:[#allocation2 + $0xd8] sm:$0xff] %vm3047, %v2910
  %3076 = vst.msk [vmem:[#allocation2 + $0xe0] sm:$0xff] %vm3047, %v2912
  %3077 = vst.msk [vmem:[#allocation2 + $0xe8] sm:$0xff] %vm3047, %v2914
  %3078 = vst.msk [vmem:[#allocation2 + $0xf0] sm:$0xff] %vm3047, %v2916
  %3079 = vst.msk [vmem:[#allocation2 + $0xf8] sm:$0xff] %vm3047, %v2918
  %3080 = vst.msk [vmem:[#allocation2 + $0x100] sm:$0xff] %vm3047, %v2920
  %3081 = vst.msk [vmem:[#allocation2 + $0x108] sm:$0xff] %vm3047, %v2922
  %3082 = vst.msk [vmem:[#allocation2 + $0x110] sm:$0xff] %vm3047, %v2924
  %3083 = vst.msk [vmem:[#allocation2 + $0x118] sm:$0xff] %vm3047, %v2926
  %3084 = vst.msk [vmem:[#allocation2 + $0x120] sm:$0xff] %vm3047, %v2928
  %3085 = vst.msk [vmem:[#allocation2 + $0x128] sm:$0xff] %vm3047, %v2930
  %3086 = vst.msk [vmem:[#allocation2 + $0x130] sm:$0xff] %vm3047, %v2932
  %3087 = vst.msk [vmem:[#allocation2 + $0x138] sm:$0xff] %vm3047, %v2934
  %3088 = vst.msk [vmem:[#allocation2 + $0x140] sm:$0xff] %vm3047, %v2936
  %3089 = vst.msk [vmem:[#allocation2 + $0x148] sm:$0xff] %vm3047, %v2938
  %3090 = vst.msk [vmem:[#allocation2 + $0x150] sm:$0xff] %vm3047, %v2940
  %3091 = vst.msk [vmem:[#allocation2 + $0x158] sm:$0xff] %vm3047, %v2942
  %3092 = vst.msk [vmem:[#allocation2 + $0x160] sm:$0xff] %vm3047, %v2944
  %3093 = vst.msk [vmem:[#allocation2 + $0x168] sm:$0xff] %vm3047, %v2946
  %3094 = vst.msk [vmem:[#allocation2 + $0x170] sm:$0xff] %vm3047, %v2948
  %3095 = vst.msk [vmem:[#allocation2 + $0x178] sm:$0xff] %vm3047, %v2950
  %3096 = vst.msk [vmem:[#allocation2 + $0x180] sm:$0xff] %vm3047, %v2952
  %3097 = vst.msk [vmem:[#allocation2 + $0x188] sm:$0xff] %vm3047, %v2954
  %3098 = vst.msk [vmem:[#allocation2 + $0x190] sm:$0xff] %vm3047, %v2956
  %3099 = vst.msk [vmem:[#allocation2 + $0x198] sm:$0xff] %vm3047, %v2958
  %3100 = vst.msk [vmem:[#allocation2 + $0x1a0] sm:$0xff] %vm3047, %v2960
  %3101 = vst.msk [vmem:[#allocation2 + $0x1a8] sm:$0xff] %vm3047, %v2962
  %3102 = vst.msk [vmem:[#allocation2 + $0x1b0] sm:$0xff] %vm3047, %v2964
  %3103 = vst.msk [vmem:[#allocation2 + $0x1b8] sm:$0xff] %vm3047, %v2966
  %3104 = vst.msk [vmem:[#allocation2 + $0x1c0] sm:$0xff] %vm3047, %v2968
  %3105 = vst.msk [vmem:[#allocation2 + $0x1c8] sm:$0xff] %vm3047, %v2970
  %3106 = vst.msk [vmem:[#allocation2 + $0x1d0] sm:$0xff] %vm3047, %v2972
  %3107 = vst.msk [vmem:[#allocation2 + $0x1d8] sm:$0xff] %vm3047, %v2974
  %3108 = vst.msk [vmem:[#allocation2 + $0x1e0] sm:$0xff] %vm3047, %v2976
  %3109 = vst.msk [vmem:[#allocation2 + $0x1e8] sm:$0xff] %vm3047, %v2978
  %3110 = vst.msk [vmem:[#allocation2 + $0x1f0] sm:$0xff] %vm3047, %v2980
  %3111 = vst.msk [vmem:[#allocation2 + $0x1f8] sm:$0xff] %vm3047, %v2982
  %v3112 = vld [vmem:[#allocation2] sm:$0xff]
  %v3113 = vld [vmem:[#allocation2 + $0x8] sm:$0xff]
  %v3114 = vld [vmem:[#allocation2 + $0x10] sm:$0xff]
  %v3115 = vld [vmem:[#allocation2 + $0x18] sm:$0xff]
  %v3116 = vld [vmem:[#allocation2 + $0x20] sm:$0xff]
  %v3117 = vld [vmem:[#allocation2 + $0x28] sm:$0xff]
  %v3118 = vld [vmem:[#allocation2 + $0x30] sm:$0xff]
  %v3119 = vld [vmem:[#allocation2 + $0x38] sm:$0xff]
  %v3120 = vld [vmem:[#allocation2 + $0x40] sm:$0xff]
  %v3121 = vld [vmem:[#allocation2 + $0x48] sm:$0xff]
  %v3122 = vld [vmem:[#allocation2 + $0x50] sm:$0xff]
  %v3123 = vld [vmem:[#allocation2 + $0x58] sm:$0xff]
  %v3124 = vld [vmem:[#allocation2 + $0x60] sm:$0xff]
  %v3125 = vld [vmem:[#allocation2 + $0x68] sm:$0xff]
  %v3126 = vld [vmem:[#allocation2 + $0x70] sm:$0xff]
  %v3127 = vld [vmem:[#allocation2 + $0x78] sm:$0xff]
  %v3128 = vld [vmem:[#allocation2 + $0x80] sm:$0xff]
  %v3129 = vld [vmem:[#allocation2 + $0x88] sm:$0xff]
  %v3130 = vld [vmem:[#allocation2 + $0x90] sm:$0xff]
  %v3131 = vld [vmem:[#allocation2 + $0x98] sm:$0xff]
  %v3132 = vld [vmem:[#allocation2 + $0xa0] sm:$0xff]
  %v3133 = vld [vmem:[#allocation2 + $0xa8] sm:$0xff]
  %v3134 = vld [vmem:[#allocation2 + $0xb0] sm:$0xff]
  %v3135 = vld [vmem:[#allocation2 + $0xb8] sm:$0xff]
  %v3136 = vld [vmem:[#allocation2 + $0xc0] sm:$0xff]
  %v3137 = vld [vmem:[#allocation2 + $0xc8] sm:$0xff]
  %v3138 = vld [vmem:[#allocation2 + $0xd0] sm:$0xff]
  %v3139 = vld [vmem:[#allocation2 + $0xd8] sm:$0xff]
  %v3140 = vld [vmem:[#allocation2 + $0xe0] sm:$0xff]
  %v3141 = vld [vmem:[#allocation2 + $0xe8] sm:$0xff]
  %v3142 = vld [vmem:[#allocation2 + $0xf0] sm:$0xff]
  %v3143 = vld [vmem:[#allocation2 + $0xf8] sm:$0xff]
  %v3144 = vld [vmem:[#allocation2 + $0x100] sm:$0xff]
  %v3145 = vld [vmem:[#allocation2 + $0x108] sm:$0xff]
  %v3146 = vld [vmem:[#allocation2 + $0x110] sm:$0xff]
  %v3147 = vld [vmem:[#allocation2 + $0x118] sm:$0xff]
  %v3148 = vld [vmem:[#allocation2 + $0x120] sm:$0xff]
  %v3149 = vld [vmem:[#allocation2 + $0x128] sm:$0xff]
  %v3150 = vld [vmem:[#allocation2 + $0x130] sm:$0xff]
  %v3151 = vld [vmem:[#allocation2 + $0x138] sm:$0xff]
  %v3152 = vld [vmem:[#allocation2 + $0x140] sm:$0xff]
  %v3153 = vld [vmem:[#allocation2 + $0x148] sm:$0xff]
  %v3154 = vld [vmem:[#allocation2 + $0x150] sm:$0xff]
  %v3155 = vld [vmem:[#allocation2 + $0x158] sm:$0xff]
  %v3156 = vld [vmem:[#allocation2 + $0x160] sm:$0xff]
  %v3157 = vld [vmem:[#allocation2 + $0x168] sm:$0xff]
  %v3158 = vld [vmem:[#allocation2 + $0x170] sm:$0xff]
  %v3159 = vld [vmem:[#allocation2 + $0x178] sm:$0xff]
  %v3160 = vld [vmem:[#allocation2 + $0x180] sm:$0xff]
  %v3161 = vld [vmem:[#allocation2 + $0x188] sm:$0xff]
  %v3162 = vld [vmem:[#allocation2 + $0x190] sm:$0xff]
  %v3163 = vld [vmem:[#allocation2 + $0x198] sm:$0xff]
  %v3164 = vld [vmem:[#allocation2 + $0x1a0] sm:$0xff]
  %v3165 = vld [vmem:[#allocation2 + $0x1a8] sm:$0xff]
  %v3166 = vld [vmem:[#allocation2 + $0x1b0] sm:$0xff]
  %v3167 = vld [vmem:[#allocation2 + $0x1b8] sm:$0xff]
  %v3168 = vld [vmem:[#allocation2 + $0x1c0] sm:$0xff]
  %v3169 = vld [vmem:[#allocation2 + $0x1c8] sm:$0xff]
  %v3170 = vld [vmem:[#allocation2 + $0x1d0] sm:$0xff]
  %v3171 = vld [vmem:[#allocation2 + $0x1d8] sm:$0xff]
  %v3172 = vld [vmem:[#allocation2 + $0x1e0] sm:$0xff]
  %v3173 = vld [vmem:[#allocation2 + $0x1e8] sm:$0xff]
  %v3174 = vld [vmem:[#allocation2 + $0x1f0] sm:$0xff]
  %v3175 = vld [vmem:[#allocation2 + $0x1f8] sm:$0xff]
  %v3176 = vld [vmem:[%s2] sm:$0xff]
  %v3177 = vld [vmem:[%s2 + $0x8] sm:$0xff]
  %v3178 = vld [vmem:[%s2 + $0x10] sm:$0xff]
  %v3179 = vld [vmem:[%s2 + $0x18] sm:$0xff]
  %v3180 = vld [vmem:[%s2 + $0x20] sm:$0xff]
  %v3181 = vld [vmem:[%s2 + $0x28] sm:$0xff]
  %v3182 = vld [vmem:[%s3] sm:$0x1]
  %v3184 = vperm.slane %v3182, 0
  %vm3186 = vcmask 392192
  %v3188 = vsel %vm3186, %v3112, 0
  %v3191 = vsel %vm3186, %v3113, 0
  %v3194 = vsel %vm3186, %v3114, 0
  %v3197 = vsel %vm3186, %v3115, 0
  %v3200 = vsel %vm3186, %v3116, 0
  %v3203 = vsel %vm3186, %v3117, 0
  %v3206 = vsel %vm3186, %v3118, 0
  %v3209 = vsel %vm3186, %v3119, 0
  %v3212 = vsel %vm3186, %v3120, 0
  %v3215 = vsel %vm3186, %v3121, 0
  %v3218 = vsel %vm3186, %v3122, 0
  %v3221 = vsel %vm3186, %v3123, 0
  %v3224 = vsel %vm3186, %v3124, 0
  %v3227 = vsel %vm3186, %v3125, 0
  %v3230 = vsel %vm3186, %v3126, 0
  %v3233 = vsel %vm3186, %v3127, 0
  %v3236 = vsel %vm3186, %v3128, 0
  %v3239 = vsel %vm3186, %v3129, 0
  %v3242 = vsel %vm3186, %v3130, 0
  %v3245 = vsel %vm3186, %v3131, 0
  %v3248 = vsel %vm3186, %v3132, 0
  %v3251 = vsel %vm3186, %v3133, 0
  %v3254 = vsel %vm3186, %v3134, 0
  %v3257 = vsel %vm3186, %v3135, 0
  %v3260 = vsel %vm3186, %v3136, 0
  %v3263 = vsel %vm3186, %v3137, 0
  %v3266 = vsel %vm3186, %v3138, 0
  %v3269 = vsel %vm3186, %v3139, 0
  %v3272 = vsel %vm3186, %v3140, 0
  %v3275 = vsel %vm3186, %v3141, 0
  %v3278 = vsel %vm3186, %v3142, 0
  %v3281 = vsel %vm3186, %v3143, 0
  %v3284 = vsel %vm3186, %v3144, 0
  %v3287 = vsel %vm3186, %v3145, 0
  %v3290 = vsel %vm3186, %v3146, 0
  %v3293 = vsel %vm3186, %v3147, 0
  %v3296 = vsel %vm3186, %v3148, 0
  %v3299 = vsel %vm3186, %v3149, 0
  %v3302 = vsel %vm3186, %v3150, 0
  %v3305 = vsel %vm3186, %v3151, 0
  %v3308 = vsel %vm3186, %v3152, 0
  %v3311 = vsel %vm3186, %v3153, 0
  %v3314 = vsel %vm3186, %v3154, 0
  %v3317 = vsel %vm3186, %v3155, 0
  %v3320 = vsel %vm3186, %v3156, 0
  %v3323 = vsel %vm3186, %v3157, 0
  %v3326 = vsel %vm3186, %v3158, 0
  %v3329 = vsel %vm3186, %v3159, 0
  %v3332 = vsel %vm3186, %v3160, 0
  %v3335 = vsel %vm3186, %v3161, 0
  %v3338 = vsel %vm3186, %v3162, 0
  %v3341 = vsel %vm3186, %v3163, 0
  %v3344 = vsel %vm3186, %v3164, 0
  %v3347 = vsel %vm3186, %v3165, 0
  %v3350 = vsel %vm3186, %v3166, 0
  %v3353 = vsel %vm3186, %v3167, 0
  %v3356 = vsel %vm3186, %v3168, 0
  %v3359 = vsel %vm3186, %v3169, 0
  %v3362 = vsel %vm3186, %v3170, 0
  %v3365 = vsel %vm3186, %v3171, 0
  %v3368 = vsel %vm3186, %v3172, 0
  %v3371 = vsel %vm3186, %v3173, 0
  %v3374 = vsel %vm3186, %v3174, 0
  %v3377 = vsel %vm3186, %v3175, 0
  %3379 = vmatpush.msra.mxu0 0.0
  %3380 = vmatpush.msra.mxu0 0.0
  %3381 = vmatpush.msra.mxu0 0.0
  %3382 = vmatpush.msra.mxu0 0.0
  %3383 = vmatpush.msra.mxu0 0.0
  %3384 = vmatpush.msra.mxu0 0.0
  %3385 = vmatpush.msra.mxu0 0.0
  %3386 = vmatpush.msra.mxu0 0.0
  %3387 = vmatpush.msra.mxu0 0.0
  %3388 = vmatpush.msra.mxu0 0.0
  %3389 = vmatpush.msra.mxu0 %v3181
  %3390 = vmatpush.msra.mxu0 %v3180
  %3391 = vmatpush.msra.mxu0 %v3179
  %3392 = vmatpush.msra.mxu0 %v3178
  %3393 = vmatpush.msra.mxu0 %v3177
  %3394 = vmatpush.msra.mxu0 %v3176
  %3395 = vmatmul.f32.gmra.mxu0 %v3188
  %v3396 = vpop.f32.mrf.mxu0
  %v3397 = vadd.f32 %v3184, %v3396
  %3398 = vmatmul.f32.gmra.mxu0 %v3191
  %v3399 = vpop.f32.mrf.mxu0
  %v3400 = vadd.f32 %v3184, %v3399
  %3401 = vmatmul.f32.gmra.mxu0 %v3194
  %v3402 = vpop.f32.mrf.mxu0
  %v3403 = vadd.f32 %v3184, %v3402
  %3404 = vmatmul.f32.gmra.mxu0 %v3197
  %v3405 = vpop.f32.mrf.mxu0
  %v3406 = vadd.f32 %v3184, %v3405
  %3407 = vmatmul.f32.gmra.mxu0 %v3200
  %v3408 = vpop.f32.mrf.mxu0
  %v3409 = vadd.f32 %v3184, %v3408
  %3410 = vmatmul.f32.gmra.mxu0 %v3203
  %v3411 = vpop.f32.mrf.mxu0
  %v3412 = vadd.f32 %v3184, %v3411
  %3413 = vmatmul.f32.gmra.mxu0 %v3206
  %v3414 = vpop.f32.mrf.mxu0
  %v3415 = vadd.f32 %v3184, %v3414
  %3416 = vmatmul.f32.gmra.mxu0 %v3209
  %v3417 = vpop.f32.mrf.mxu0
  %v3418 = vadd.f32 %v3184, %v3417
  %3419 = vmatmul.f32.gmra.mxu0 %v3212
  %v3420 = vpop.f32.mrf.mxu0
  %v3421 = vadd.f32 %v3184, %v3420
  %3422 = vmatmul.f32.gmra.mxu0 %v3215
  %v3423 = vpop.f32.mrf.mxu0
  %v3424 = vadd.f32 %v3184, %v3423
  %3425 = vmatmul.f32.gmra.mxu0 %v3218
  %v3426 = vpop.f32.mrf.mxu0
  %v3427 = vadd.f32 %v3184, %v3426
  %3428 = vmatmul.f32.gmra.mxu0 %v3221
  %v3429 = vpop.f32.mrf.mxu0
  %v3430 = vadd.f32 %v3184, %v3429
  %3431 = vmatmul.f32.gmra.mxu0 %v3224
  %v3432 = vpop.f32.mrf.mxu0
  %v3433 = vadd.f32 %v3184, %v3432
  %3434 = vmatmul.f32.gmra.mxu0 %v3227
  %v3435 = vpop.f32.mrf.mxu0
  %v3436 = vadd.f32 %v3184, %v3435
  %3437 = vmatmul.f32.gmra.mxu0 %v3230
  %v3438 = vpop.f32.mrf.mxu0
  %v3439 = vadd.f32 %v3184, %v3438
  %3440 = vmatmul.f32.gmra.mxu0 %v3233
  %v3441 = vpop.f32.mrf.mxu0
  %v3442 = vadd.f32 %v3184, %v3441
  %3443 = vmatmul.f32.gmra.mxu0 %v3236
  %v3444 = vpop.f32.mrf.mxu0
  %v3445 = vadd.f32 %v3184, %v3444
  %3446 = vmatmul.f32.gmra.mxu0 %v3239
  %v3447 = vpop.f32.mrf.mxu0
  %v3448 = vadd.f32 %v3184, %v3447
  %3449 = vmatmul.f32.gmra.mxu0 %v3242
  %v3450 = vpop.f32.mrf.mxu0
  %v3451 = vadd.f32 %v3184, %v3450
  %3452 = vmatmul.f32.gmra.mxu0 %v3245
  %v3453 = vpop.f32.mrf.mxu0
  %v3454 = vadd.f32 %v3184, %v3453
  %3455 = vmatmul.f32.gmra.mxu0 %v3248
  %v3456 = vpop.f32.mrf.mxu0
  %v3457 = vadd.f32 %v3184, %v3456
  %3458 = vmatmul.f32.gmra.mxu0 %v3251
  %v3459 = vpop.f32.mrf.mxu0
  %v3460 = vadd.f32 %v3184, %v3459
  %3461 = vmatmul.f32.gmra.mxu0 %v3254
  %v3462 = vpop.f32.mrf.mxu0
  %v3463 = vadd.f32 %v3184, %v3462
  %3464 = vmatmul.f32.gmra.mxu0 %v3257
  %v3465 = vpop.f32.mrf.mxu0
  %v3466 = vadd.f32 %v3184, %v3465
  %3467 = vmatmul.f32.gmra.mxu0 %v3260
  %v3468 = vpop.f32.mrf.mxu0
  %v3469 = vadd.f32 %v3184, %v3468
  %3470 = vmatmul.f32.gmra.mxu0 %v3263
  %v3471 = vpop.f32.mrf.mxu0
  %v3472 = vadd.f32 %v3184, %v3471
  %3473 = vmatmul.f32.gmra.mxu0 %v3266
  %v3474 = vpop.f32.mrf.mxu0
  %v3475 = vadd.f32 %v3184, %v3474
  %3476 = vmatmul.f32.gmra.mxu0 %v3269
  %v3477 = vpop.f32.mrf.mxu0
  %v3478 = vadd.f32 %v3184, %v3477
  %3479 = vmatmul.f32.gmra.mxu0 %v3272
  %v3480 = vpop.f32.mrf.mxu0
  %v3481 = vadd.f32 %v3184, %v3480
  %3482 = vmatmul.f32.gmra.mxu0 %v3275
  %v3483 = vpop.f32.mrf.mxu0
  %v3484 = vadd.f32 %v3184, %v3483
  %3485 = vmatmul.f32.gmra.mxu0 %v3278
  %v3486 = vpop.f32.mrf.mxu0
  %v3487 = vadd.f32 %v3184, %v3486
  %3488 = vmatmul.f32.gmra.mxu0 %v3281
  %v3489 = vpop.f32.mrf.mxu0
  %v3490 = vadd.f32 %v3184, %v3489
  %3491 = vmatmul.f32.gmra.mxu0 %v3284
  %v3492 = vpop.f32.mrf.mxu0
  %v3493 = vadd.f32 %v3184, %v3492
  %3494 = vmatmul.f32.gmra.mxu0 %v3287
  %v3495 = vpop.f32.mrf.mxu0
  %v3496 = vadd.f32 %v3184, %v3495
  %3497 = vmatmul.f32.gmra.mxu0 %v3290
  %v3498 = vpop.f32.mrf.mxu0
  %v3499 = vadd.f32 %v3184, %v3498
  %3500 = vmatmul.f32.gmra.mxu0 %v3293
  %v3501 = vpop.f32.mrf.mxu0
  %v3502 = vadd.f32 %v3184, %v3501
  %3503 = vmatmul.f32.gmra.mxu0 %v3296
  %v3504 = vpop.f32.mrf.mxu0
  %v3505 = vadd.f32 %v3184, %v3504
  %3506 = vmatmul.f32.gmra.mxu0 %v3299
  %v3507 = vpop.f32.mrf.mxu0
  %v3508 = vadd.f32 %v3184, %v3507
  %3509 = vmatmul.f32.gmra.mxu0 %v3302
  %v3510 = vpop.f32.mrf.mxu0
  %v3511 = vadd.f32 %v3184, %v3510
  %3512 = vmatmul.f32.gmra.mxu0 %v3305
  %v3513 = vpop.f32.mrf.mxu0
  %v3514 = vadd.f32 %v3184, %v3513
  %3515 = vmatmul.f32.gmra.mxu0 %v3308
  %v3516 = vpop.f32.mrf.mxu0
  %v3517 = vadd.f32 %v3184, %v3516
  %3518 = vmatmul.f32.gmra.mxu0 %v3311
  %v3519 = vpop.f32.mrf.mxu0
  %v3520 = vadd.f32 %v3184, %v3519
  %3521 = vmatmul.f32.gmra.mxu0 %v3314
  %v3522 = vpop.f32.mrf.mxu0
  %v3523 = vadd.f32 %v3184, %v3522
  %3524 = vmatmul.f32.gmra.mxu0 %v3317
  %v3525 = vpop.f32.mrf.mxu0
  %v3526 = vadd.f32 %v3184, %v3525
  %3527 = vmatmul.f32.gmra.mxu0 %v3320
  %v3528 = vpop.f32.mrf.mxu0
  %v3529 = vadd.f32 %v3184, %v3528
  %3530 = vmatmul.f32.gmra.mxu0 %v3323
  %v3531 = vpop.f32.mrf.mxu0
  %v3532 = vadd.f32 %v3184, %v3531
  %3533 = vmatmul.f32.gmra.mxu0 %v3326
  %v3534 = vpop.f32.mrf.mxu0
  %v3535 = vadd.f32 %v3184, %v3534
  %3536 = vmatmul.f32.gmra.mxu0 %v3329
  %v3537 = vpop.f32.mrf.mxu0
  %v3538 = vadd.f32 %v3184, %v3537
  %3539 = vmatmul.f32.gmra.mxu0 %v3332
  %v3540 = vpop.f32.mrf.mxu0
  %v3541 = vadd.f32 %v3184, %v3540
  %3542 = vmatmul.f32.gmra.mxu0 %v3335
  %v3543 = vpop.f32.mrf.mxu0
  %v3544 = vadd.f32 %v3184, %v3543
  %3545 = vmatmul.f32.gmra.mxu0 %v3338
  %v3546 = vpop.f32.mrf.mxu0
  %v3547 = vadd.f32 %v3184, %v3546
  %3548 = vmatmul.f32.gmra.mxu0 %v3341
  %v3549 = vpop.f32.mrf.mxu0
  %v3550 = vadd.f32 %v3184, %v3549
  %3551 = vmatmul.f32.gmra.mxu0 %v3344
  %v3552 = vpop.f32.mrf.mxu0
  %v3553 = vadd.f32 %v3184, %v3552
  %3554 = vmatmul.f32.gmra.mxu0 %v3347
  %v3555 = vpop.f32.mrf.mxu0
  %v3556 = vadd.f32 %v3184, %v3555
  %3557 = vmatmul.f32.gmra.mxu0 %v3350
  %v3558 = vpop.f32.mrf.mxu0
  %v3559 = vadd.f32 %v3184, %v3558
  %3560 = vmatmul.f32.gmra.mxu0 %v3353
  %v3561 = vpop.f32.mrf.mxu0
  %v3562 = vadd.f32 %v3184, %v3561
  %3563 = vmatmul.f32.gmra.mxu0 %v3356
  %v3564 = vpop.f32.mrf.mxu0
  %v3565 = vadd.f32 %v3184, %v3564
  %3566 = vmatmul.f32.gmra.mxu0 %v3359
  %v3567 = vpop.f32.mrf.mxu0
  %v3568 = vadd.f32 %v3184, %v3567
  %3569 = vmatmul.f32.gmra.mxu0 %v3362
  %v3570 = vpop.f32.mrf.mxu0
  %v3571 = vadd.f32 %v3184, %v3570
  %3572 = vmatmul.f32.gmra.mxu0 %v3365
  %v3573 = vpop.f32.mrf.mxu0
  %v3574 = vadd.f32 %v3184, %v3573
  %3575 = vmatmul.f32.gmra.mxu0 %v3368
  %v3576 = vpop.f32.mrf.mxu0
  %v3577 = vadd.f32 %v3184, %v3576
  %3578 = vmatmul.f32.gmra.mxu0 %v3371
  %v3579 = vpop.f32.mrf.mxu0
  %v3580 = vadd.f32 %v3184, %v3579
  %3581 = vmatmul.f32.gmra.mxu0 %v3374
  %v3582 = vpop.f32.mrf.mxu0
  %v3583 = vadd.f32 %v3184, %v3582
  %3584 = vmatmul.f32.gmra.mxu0 %v3377
  %v3585 = vpop.f32.mrf.mxu0
  %v3586 = vadd.f32 %v3184, %v3585
  %3587 = vdwg.mxu0
  %v3588 = vmax.f32 %v3397, 0.0
  %v3589 = vmax.f32 %v3400, 0.0
  %v3590 = vmax.f32 %v3403, 0.0
  %v3591 = vmax.f32 %v3406, 0.0
  %v3592 = vmax.f32 %v3409, 0.0
  %v3593 = vmax.f32 %v3412, 0.0
  %v3594 = vmax.f32 %v3415, 0.0
  %v3595 = vmax.f32 %v3418, 0.0
  %v3596 = vmax.f32 %v3421, 0.0
  %v3597 = vmax.f32 %v3424, 0.0
  %v3598 = vmax.f32 %v3427, 0.0
  %v3599 = vmax.f32 %v3430, 0.0
  %v3600 = vmax.f32 %v3433, 0.0
  %v3601 = vmax.f32 %v3436, 0.0
  %v3602 = vmax.f32 %v3439, 0.0
  %v3603 = vmax.f32 %v3442, 0.0
  %v3604 = vmax.f32 %v3445, 0.0
  %v3605 = vmax.f32 %v3448, 0.0
  %v3606 = vmax.f32 %v3451, 0.0
  %v3607 = vmax.f32 %v3454, 0.0
  %v3608 = vmax.f32 %v3457, 0.0
  %v3609 = vmax.f32 %v3460, 0.0
  %v3610 = vmax.f32 %v3463, 0.0
  %v3611 = vmax.f32 %v3466, 0.0
  %v3612 = vmax.f32 %v3469, 0.0
  %v3613 = vmax.f32 %v3472, 0.0
  %v3614 = vmax.f32 %v3475, 0.0
  %v3615 = vmax.f32 %v3478, 0.0
  %v3616 = vmax.f32 %v3481, 0.0
  %v3617 = vmax.f32 %v3484, 0.0
  %v3618 = vmax.f32 %v3487, 0.0
  %v3619 = vmax.f32 %v3490, 0.0
  %v3620 = vmax.f32 %v3493, 0.0
  %v3621 = vmax.f32 %v3496, 0.0
  %v3622 = vmax.f32 %v3499, 0.0
  %v3623 = vmax.f32 %v3502, 0.0
  %v3624 = vmax.f32 %v3505, 0.0
  %v3625 = vmax.f32 %v3508, 0.0
  %v3626 = vmax.f32 %v3511, 0.0
  %v3627 = vmax.f32 %v3514, 0.0
  %v3628 = vmax.f32 %v3517, 0.0
  %v3629 = vmax.f32 %v3520, 0.0
  %v3630 = vmax.f32 %v3523, 0.0
  %v3631 = vmax.f32 %v3526, 0.0
  %v3632 = vmax.f32 %v3529, 0.0
  %v3633 = vmax.f32 %v3532, 0.0
  %v3634 = vmax.f32 %v3535, 0.0
  %v3635 = vmax.f32 %v3538, 0.0
  %v3636 = vmax.f32 %v3541, 0.0
  %v3637 = vmax.f32 %v3544, 0.0
  %v3638 = vmax.f32 %v3547, 0.0
  %v3639 = vmax.f32 %v3550, 0.0
  %v3640 = vmax.f32 %v3553, 0.0
  %v3641 = vmax.f32 %v3556, 0.0
  %v3642 = vmax.f32 %v3559, 0.0
  %v3643 = vmax.f32 %v3562, 0.0
  %v3644 = vmax.f32 %v3565, 0.0
  %v3645 = vmax.f32 %v3568, 0.0
  %v3646 = vmax.f32 %v3571, 0.0
  %v3647 = vmax.f32 %v3574, 0.0
  %v3648 = vmax.f32 %v3577, 0.0
  %v3649 = vmax.f32 %v3580, 0.0
  %v3650 = vmax.f32 %v3583, 0.0
  %v3651 = vmax.f32 %v3586, 0.0
  %vm3652 = vcmask 261120
  %3653 = vst.msk [vmem:[#allocation2] sm:$0xff] %vm3652, %v3588
  %3654 = vst.msk [vmem:[#allocation2 + $0x8] sm:$0xff] %vm3652, %v3589
  %3655 = vst.msk [vmem:[#allocation2 + $0x10] sm:$0xff] %vm3652, %v3590
  %3656 = vst.msk [vmem:[#allocation2 + $0x18] sm:$0xff] %vm3652, %v3591
  %3657 = vst.msk [vmem:[#allocation2 + $0x20] sm:$0xff] %vm3652, %v3592
  %3658 = vst.msk [vmem:[#allocation2 + $0x28] sm:$0xff] %vm3652, %v3593
  %3659 = vst.msk [vmem:[#allocation2 + $0x30] sm:$0xff] %vm3652, %v3594
  %3660 = vst.msk [vmem:[#allocation2 + $0x38] sm:$0xff] %vm3652, %v3595
  %3661 = vst.msk [vmem:[#allocation2 + $0x40] sm:$0xff] %vm3652, %v3596
  %3662 = vst.msk [vmem:[#allocation2 + $0x48] sm:$0xff] %vm3652, %v3597
  %3663 = vst.msk [vmem:[#allocation2 + $0x50] sm:$0xff] %vm3652, %v3598
  %3664 = vst.msk [vmem:[#allocation2 + $0x58] sm:$0xff] %vm3652, %v3599
  %3665 = vst.msk [vmem:[#allocation2 + $0x60] sm:$0xff] %vm3652, %v3600
  %3666 = vst.msk [vmem:[#allocation2 + $0x68] sm:$0xff] %vm3652, %v3601
  %3667 = vst.msk [vmem:[#allocation2 + $0x70] sm:$0xff] %vm3652, %v3602
  %3668 = vst.msk [vmem:[#allocation2 + $0x78] sm:$0xff] %vm3652, %v3603
  %3669 = vst.msk [vmem:[#allocation2 + $0x80] sm:$0xff] %vm3652, %v3604
  %3670 = vst.msk [vmem:[#allocation2 + $0x88] sm:$0xff] %vm3652, %v3605
  %3671 = vst.msk [vmem:[#allocation2 + $0x90] sm:$0xff] %vm3652, %v3606
  %3672 = vst.msk [vmem:[#allocation2 + $0x98] sm:$0xff] %vm3652, %v3607
  %3673 = vst.msk [vmem:[#allocation2 + $0xa0] sm:$0xff] %vm3652, %v3608
  %3674 = vst.msk [vmem:[#allocation2 + $0xa8] sm:$0xff] %vm3652, %v3609
  %3675 = vst.msk [vmem:[#allocation2 + $0xb0] sm:$0xff] %vm3652, %v3610
  %3676 = vst.msk [vmem:[#allocation2 + $0xb8] sm:$0xff] %vm3652, %v3611
  %3677 = vst.msk [vmem:[#allocation2 + $0xc0] sm:$0xff] %vm3652, %v3612
  %3678 = vst.msk [vmem:[#allocation2 + $0xc8] sm:$0xff] %vm3652, %v3613
  %3679 = vst.msk [vmem:[#allocation2 + $0xd0] sm:$0xff] %vm3652, %v3614
  %3680 = vst.msk [vmem:[#allocation2 + $0xd8] sm:$0xff] %vm3652, %v3615
  %3681 = vst.msk [vmem:[#allocation2 + $0xe0] sm:$0xff] %vm3652, %v3616
  %3682 = vst.msk [vmem:[#allocation2 + $0xe8] sm:$0xff] %vm3652, %v3617
  %3683 = vst.msk [vmem:[#allocation2 + $0xf0] sm:$0xff] %vm3652, %v3618
  %3684 = vst.msk [vmem:[#allocation2 + $0xf8] sm:$0xff] %vm3652, %v3619
  %3685 = vst.msk [vmem:[#allocation2 + $0x100] sm:$0xff] %vm3652, %v3620
  %3686 = vst.msk [vmem:[#allocation2 + $0x108] sm:$0xff] %vm3652, %v3621
  %3687 = vst.msk [vmem:[#allocation2 + $0x110] sm:$0xff] %vm3652, %v3622
  %3688 = vst.msk [vmem:[#allocation2 + $0x118] sm:$0xff] %vm3652, %v3623
  %3689 = vst.msk [vmem:[#allocation2 + $0x120] sm:$0xff] %vm3652, %v3624
  %3690 = vst.msk [vmem:[#allocation2 + $0x128] sm:$0xff] %vm3652, %v3625
  %3691 = vst.msk [vmem:[#allocation2 + $0x130] sm:$0xff] %vm3652, %v3626
  %3692 = vst.msk [vmem:[#allocation2 + $0x138] sm:$0xff] %vm3652, %v3627
  %3693 = vst.msk [vmem:[#allocation2 + $0x140] sm:$0xff] %vm3652, %v3628
  %3694 = vst.msk [vmem:[#allocation2 + $0x148] sm:$0xff] %vm3652, %v3629
  %3695 = vst.msk [vmem:[#allocation2 + $0x150] sm:$0xff] %vm3652, %v3630
  %3696 = vst.msk [vmem:[#allocation2 + $0x158] sm:$0xff] %vm3652, %v3631
  %3697 = vst.msk [vmem:[#allocation2 + $0x160] sm:$0xff] %vm3652, %v3632
  %3698 = vst.msk [vmem:[#allocation2 + $0x168] sm:$0xff] %vm3652, %v3633
  %3699 = vst.msk [vmem:[#allocation2 + $0x170] sm:$0xff] %vm3652, %v3634
  %3700 = vst.msk [vmem:[#allocation2 + $0x178] sm:$0xff] %vm3652, %v3635
  %3701 = vst.msk [vmem:[#allocation2 + $0x180] sm:$0xff] %vm3652, %v3636
  %3702 = vst.msk [vmem:[#allocation2 + $0x188] sm:$0xff] %vm3652, %v3637
  %3703 = vst.msk [vmem:[#allocation2 + $0x190] sm:$0xff] %vm3652, %v3638
  %3704 = vst.msk [vmem:[#allocation2 + $0x198] sm:$0xff] %vm3652, %v3639
  %3705 = vst.msk [vmem:[#allocation2 + $0x1a0] sm:$0xff] %vm3652, %v3640
  %3706 = vst.msk [vmem:[#allocation2 + $0x1a8] sm:$0xff] %vm3652, %v3641
  %3707 = vst.msk [vmem:[#allocation2 + $0x1b0] sm:$0xff] %vm3652, %v3642
  %3708 = vst.msk [vmem:[#allocation2 + $0x1b8] sm:$0xff] %vm3652, %v3643
  %3709 = vst.msk [vmem:[#allocation2 + $0x1c0] sm:$0xff] %vm3652, %v3644
  %3710 = vst.msk [vmem:[#allocation2 + $0x1c8] sm:$0xff] %vm3652, %v3645
  %3711 = vst.msk [vmem:[#allocation2 + $0x1d0] sm:$0xff] %vm3652, %v3646
  %3712 = vst.msk [vmem:[#allocation2 + $0x1d8] sm:$0xff] %vm3652, %v3647
  %3713 = vst.msk [vmem:[#allocation2 + $0x1e0] sm:$0xff] %vm3652, %v3648
  %3714 = vst.msk [vmem:[#allocation2 + $0x1e8] sm:$0xff] %vm3652, %v3649
  %3715 = vst.msk [vmem:[#allocation2 + $0x1f0] sm:$0xff] %vm3652, %v3650
  %3716 = vst.msk [vmem:[#allocation2 + $0x1f8] sm:$0xff] %vm3652, %v3651
  %v3717 = vld [vmem:[%s0] sm:$0xff]
  %v3718 = vld [vmem:[%s0 + $0x8] sm:$0xff]
  %v3719 = vld [vmem:[%s0 + $0x10] sm:$0xff]
  %v3720 = vld [vmem:[%s0 + $0x18] sm:$0xff]
  %v3721 = vld [vmem:[%s0 + $0x20] sm:$0xff]
  %v3722 = vld [vmem:[%s0 + $0x28] sm:$0xff]
  %v3723 = vld [vmem:[%s0 + $0x30] sm:$0xff]
  %v3724 = vld [vmem:[%s0 + $0x38] sm:$0xff]
  %v3725 = vld [vmem:[%s0 + $0x40] sm:$0xff]
  %v3726 = vld [vmem:[%s0 + $0x48] sm:$0xff]
  %v3727 = vld [vmem:[%s0 + $0x50] sm:$0xff]
  %v3728 = vld [vmem:[%s0 + $0x58] sm:$0xff]
  %v3729 = vld [vmem:[%s0 + $0x60] sm:$0xff]
  %v3730 = vld [vmem:[%s0 + $0x68] sm:$0xff]
  %v3731 = vld [vmem:[%s0 + $0x70] sm:$0xff]
  %v3732 = vld [vmem:[%s0 + $0x78] sm:$0xff]
  %v3733 = vld [vmem:[%s0 + $0x80] sm:$0xff]
  %v3734 = vld [vmem:[%s0 + $0x88] sm:$0xff]
  %v3735 = vld [vmem:[%s0 + $0x90] sm:$0xff]
  %v3736 = vld [vmem:[%s0 + $0x98] sm:$0xff]
  %v3737 = vld [vmem:[%s0 + $0xa0] sm:$0xff]
  %v3738 = vld [vmem:[%s0 + $0xa8] sm:$0xff]
  %v3739 = vld [vmem:[%s0 + $0xb0] sm:$0xff]
  %v3740 = vld [vmem:[%s0 + $0xb8] sm:$0xff]
  %v3741 = vld [vmem:[%s0 + $0xc0] sm:$0xff]
  %v3742 = vld [vmem:[%s0 + $0xc8] sm:$0xff]
  %v3743 = vld [vmem:[%s0 + $0xd0] sm:$0xff]
  %v3744 = vld [vmem:[%s0 + $0xd8] sm:$0xff]
  %v3745 = vld [vmem:[%s0 + $0xe0] sm:$0xff]
  %v3746 = vld [vmem:[%s0 + $0xe8] sm:$0xff]
  %v3747 = vld [vmem:[%s0 + $0xf0] sm:$0xff]
  %v3748 = vld [vmem:[%s0 + $0xf8] sm:$0xff]
  %v3749 = vld [vmem:[%s0 + $0x100] sm:$0xff]
  %v3750 = vld [vmem:[%s0 + $0x108] sm:$0xff]
  %v3751 = vld [vmem:[%s0 + $0x110] sm:$0xff]
  %v3752 = vld [vmem:[%s0 + $0x118] sm:$0xff]
  %v3753 = vld [vmem:[%s0 + $0x120] sm:$0xff]
  %v3754 = vld [vmem:[%s0 + $0x128] sm:$0xff]
  %v3755 = vld [vmem:[%s0 + $0x130] sm:$0xff]
  %v3756 = vld [vmem:[%s0 + $0x138] sm:$0xff]
  %v3757 = vld [vmem:[%s0 + $0x140] sm:$0xff]
  %v3758 = vld [vmem:[%s0 + $0x148] sm:$0xff]
  %v3759 = vld [vmem:[%s0 + $0x150] sm:$0xff]
  %v3760 = vld [vmem:[%s0 + $0x158] sm:$0xff]
  %v3761 = vld [vmem:[%s0 + $0x160] sm:$0xff]
  %v3762 = vld [vmem:[%s0 + $0x168] sm:$0xff]
  %v3763 = vld [vmem:[%s0 + $0x170] sm:$0xff]
  %v3764 = vld [vmem:[%s0 + $0x178] sm:$0xff]
  %v3765 = vld [vmem:[%s0 + $0x180] sm:$0xff]
  %v3766 = vld [vmem:[%s0 + $0x188] sm:$0xff]
  %v3767 = vld [vmem:[%s0 + $0x190] sm:$0xff]
  %v3768 = vld [vmem:[%s0 + $0x198] sm:$0xff]
  %v3769 = vld [vmem:[%s0 + $0x1a0] sm:$0xff]
  %v3770 = vld [vmem:[%s0 + $0x1a8] sm:$0xff]
  %v3771 = vld [vmem:[%s0 + $0x1b0] sm:$0xff]
  %v3772 = vld [vmem:[%s0 + $0x1b8] sm:$0xff]
  %v3773 = vld [vmem:[%s0 + $0x1c0] sm:$0xff]
  %v3774 = vld [vmem:[%s0 + $0x1c8] sm:$0xff]
  %v3775 = vld [vmem:[%s0 + $0x1d0] sm:$0xff]
  %v3776 = vld [vmem:[%s0 + $0x1d8] sm:$0xff]
  %v3777 = vld [vmem:[%s0 + $0x1e0] sm:$0xff]
  %v3778 = vld [vmem:[%s0 + $0x1e8] sm:$0xff]
  %v3779 = vld [vmem:[%s0 + $0x1f0] sm:$0xff]
  %v3780 = vld [vmem:[%s0 + $0x1f8] sm:$0xff]
  %v3781 = vld [vmem:[%s0 + $0x200] sm:$0xff]
  %v3782 = vld [vmem:[%s0 + $0x208] sm:$0xff]
  %v3783 = vld [vmem:[%s0 + $0x210] sm:$0xff]
  %v3784 = vld [vmem:[%s0 + $0x218] sm:$0xff]
  %v3785 = vld [vmem:[%s0 + $0x220] sm:$0xff]
  %v3786 = vld [vmem:[%s0 + $0x228] sm:$0xff]
  %v3787 = vld [vmem:[%s0 + $0x230] sm:$0xff]
  %v3788 = vld [vmem:[%s0 + $0x238] sm:$0xff]
  %v3789 = vld [vmem:[%s0 + $0x240] sm:$0xff]
  %v3790 = vld [vmem:[%s0 + $0x248] sm:$0xff]
  %v3791 = vld [vmem:[%s0 + $0x250] sm:$0xff]
  %v3792 = vld [vmem:[%s0 + $0x258] sm:$0xff]
  %v3793 = vld [vmem:[%s0 + $0x260] sm:$0xff]
  %v3794 = vld [vmem:[%s0 + $0x268] sm:$0xff]
  %v3795 = vld [vmem:[%s0 + $0x270] sm:$0xff]
  %v3796 = vld [vmem:[%s0 + $0x278] sm:$0xff]
  %v3797 = vld [vmem:[%s0 + $0x280] sm:$0xff]
  %v3798 = vld [vmem:[%s0 + $0x288] sm:$0xff]
  %v3799 = vld [vmem:[%s0 + $0x290] sm:$0xff]
  %v3800 = vld [vmem:[%s0 + $0x298] sm:$0xff]
  %v3801 = vld [vmem:[%s0 + $0x2a0] sm:$0xff]
  %v3802 = vld [vmem:[%s0 + $0x2a8] sm:$0xff]
  %v3803 = vld [vmem:[%s0 + $0x2b0] sm:$0xff]
  %v3804 = vld [vmem:[%s0 + $0x2b8] sm:$0xff]
  %v3805 = vld [vmem:[%s0 + $0x2c0] sm:$0xff]
  %v3806 = vld [vmem:[%s0 + $0x2c8] sm:$0xff]
  %v3807 = vld [vmem:[%s0 + $0x2d0] sm:$0xff]
  %v3808 = vld [vmem:[%s0 + $0x2d8] sm:$0xff]
  %v3809 = vld [vmem:[%s0 + $0x2e0] sm:$0xff]
  %v3810 = vld [vmem:[%s0 + $0x2e8] sm:$0xff]
  %v3811 = vld [vmem:[%s0 + $0x2f0] sm:$0xff]
  %v3812 = vld [vmem:[%s0 + $0x2f8] sm:$0xff]
  %v3813 = vld [vmem:[%s0 + $0x300] sm:$0xff]
  %v3814 = vld [vmem:[%s0 + $0x308] sm:$0xff]
  %v3815 = vld [vmem:[%s0 + $0x310] sm:$0xff]
  %v3816 = vld [vmem:[%s0 + $0x318] sm:$0xff]
  %v3817 = vld [vmem:[%s0 + $0x320] sm:$0xff]
  %v3818 = vld [vmem:[%s0 + $0x328] sm:$0xff]
  %v3819 = vld [vmem:[%s0 + $0x330] sm:$0xff]
  %v3820 = vld [vmem:[%s0 + $0x338] sm:$0xff]
  %v3821 = vld [vmem:[%s0 + $0x340] sm:$0xff]
  %v3822 = vld [vmem:[%s0 + $0x348] sm:$0xff]
  %v3823 = vld [vmem:[%s0 + $0x350] sm:$0xff]
  %v3824 = vld [vmem:[%s0 + $0x358] sm:$0xff]
  %v3825 = vld [vmem:[%s0 + $0x360] sm:$0xff]
  %v3826 = vld [vmem:[%s0 + $0x368] sm:$0xff]
  %v3827 = vld [vmem:[%s0 + $0x370] sm:$0xff]
  %v3828 = vld [vmem:[%s0 + $0x378] sm:$0xff]
  %v3829 = vld [vmem:[%s0 + $0x380] sm:$0xff]
  %v3830 = vld [vmem:[%s0 + $0x388] sm:$0xff]
  %v3831 = vld [vmem:[%s0 + $0x390] sm:$0xff]
  %v3832 = vld [vmem:[%s0 + $0x398] sm:$0xff]
  %v3833 = vld [vmem:[%s0 + $0x3a0] sm:$0xff]
  %v3834 = vld [vmem:[%s0 + $0x3a8] sm:$0xff]
  %v3835 = vld [vmem:[%s0 + $0x3b0] sm:$0xff]
  %v3836 = vld [vmem:[%s0 + $0x3b8] sm:$0xff]
  %v3837 = vld [vmem:[%s0 + $0x3c0] sm:$0xff]
  %v3838 = vld [vmem:[%s0 + $0x3c8] sm:$0xff]
  %v3839 = vld [vmem:[%s0 + $0x3d0] sm:$0xff]
  %v3840 = vld [vmem:[%s0 + $0x3d8] sm:$0xff]
  %v3841 = vld [vmem:[%s0 + $0x3e0] sm:$0xff]
  %v3842 = vld [vmem:[%s0 + $0x3e8] sm:$0xff]
  %v3843 = vld [vmem:[%s0 + $0x3f0] sm:$0xff]
  %v3844 = vld [vmem:[%s0 + $0x3f8] sm:$0xff]
  %v3845 = vld [vmem:[%s0 + $0x400] sm:$0xff]
  %v3846 = vld [vmem:[%s0 + $0x408] sm:$0xff]
  %v3847 = vld [vmem:[%s0 + $0x410] sm:$0xff]
  %v3848 = vld [vmem:[%s0 + $0x418] sm:$0xff]
  %v3849 = vld [vmem:[%s0 + $0x420] sm:$0xff]
  %v3850 = vld [vmem:[%s0 + $0x428] sm:$0xff]
  %v3851 = vld [vmem:[%s0 + $0x430] sm:$0xff]
  %v3852 = vld [vmem:[%s0 + $0x438] sm:$0xff]
  %v3853 = vld [vmem:[%s0 + $0x440] sm:$0xff]
  %v3854 = vld [vmem:[%s0 + $0x448] sm:$0xff]
  %v3855 = vld [vmem:[%s0 + $0x450] sm:$0xff]
  %v3856 = vld [vmem:[%s0 + $0x458] sm:$0xff]
  %v3857 = vld [vmem:[%s0 + $0x460] sm:$0xff]
  %v3858 = vld [vmem:[%s0 + $0x468] sm:$0xff]
  %v3859 = vld [vmem:[%s0 + $0x470] sm:$0xff]
  %v3860 = vld [vmem:[%s0 + $0x478] sm:$0xff]
  %v3861 = vld [vmem:[%s0 + $0x480] sm:$0xff]
  %v3862 = vld [vmem:[%s0 + $0x488] sm:$0xff]
  %v3863 = vld [vmem:[%s0 + $0x490] sm:$0xff]
  %v3864 = vld [vmem:[%s0 + $0x498] sm:$0xff]
  %v3865 = vld [vmem:[%s0 + $0x4a0] sm:$0xff]
  %v3866 = vld [vmem:[%s0 + $0x4a8] sm:$0xff]
  %v3867 = vld [vmem:[%s0 + $0x4b0] sm:$0xff]
  %v3868 = vld [vmem:[%s0 + $0x4b8] sm:$0xff]
  %v3869 = vld [vmem:[%s0 + $0x4c0] sm:$0xff]
  %v3870 = vld [vmem:[%s0 + $0x4c8] sm:$0xff]
  %v3871 = vld [vmem:[%s0 + $0x4d0] sm:$0xff]
  %v3872 = vld [vmem:[%s0 + $0x4d8] sm:$0xff]
  %v3873 = vld [vmem:[%s0 + $0x4e0] sm:$0xff]
  %v3874 = vld [vmem:[%s0 + $0x4e8] sm:$0xff]
  %v3875 = vld [vmem:[%s0 + $0x4f0] sm:$0xff]
  %v3876 = vld [vmem:[%s0 + $0x4f8] sm:$0xff]
  %v3877 = vld [vmem:[%s0 + $0x500] sm:$0xff]
  %v3878 = vld [vmem:[%s0 + $0x508] sm:$0xff]
  %v3879 = vld [vmem:[%s0 + $0x510] sm:$0xff]
  %v3880 = vld [vmem:[%s0 + $0x518] sm:$0xff]
  %v3881 = vld [vmem:[%s0 + $0x520] sm:$0xff]
  %v3882 = vld [vmem:[%s0 + $0x528] sm:$0xff]
  %v3883 = vld [vmem:[%s0 + $0x530] sm:$0xff]
  %v3884 = vld [vmem:[%s0 + $0x538] sm:$0xff]
  %v3885 = vld [vmem:[%s0 + $0x540] sm:$0xff]
  %v3886 = vld [vmem:[%s0 + $0x548] sm:$0xff]
  %v3887 = vld [vmem:[%s0 + $0x550] sm:$0xff]
  %v3888 = vld [vmem:[%s0 + $0x558] sm:$0xff]
  %v3889 = vld [vmem:[%s0 + $0x560] sm:$0xff]
  %v3890 = vld [vmem:[%s0 + $0x568] sm:$0xff]
  %v3891 = vld [vmem:[%s0 + $0x570] sm:$0xff]
  %v3892 = vld [vmem:[%s0 + $0x578] sm:$0xff]
  %v3893 = vld [vmem:[%s0 + $0x580] sm:$0xff]
  %v3894 = vld [vmem:[%s0 + $0x588] sm:$0xff]
  %v3895 = vld [vmem:[%s0 + $0x590] sm:$0xff]
  %v3896 = vld [vmem:[%s0 + $0x598] sm:$0xff]
  %v3897 = vld [vmem:[%s0 + $0x5a0] sm:$0xff]
  %v3898 = vld [vmem:[%s0 + $0x5a8] sm:$0xff]
  %v3899 = vld [vmem:[%s0 + $0x5b0] sm:$0xff]
  %v3900 = vld [vmem:[%s0 + $0x5b8] sm:$0xff]
  %v3901 = vld [vmem:[%s0 + $0x5c0] sm:$0xff]
  %v3902 = vld [vmem:[%s0 + $0x5c8] sm:$0xff]
  %v3903 = vld [vmem:[%s0 + $0x5d0] sm:$0xff]
  %v3904 = vld [vmem:[%s0 + $0x5d8] sm:$0xff]
  %v3905 = vld [vmem:[%s0 + $0x5e0] sm:$0xff]
  %v3906 = vld [vmem:[%s0 + $0x5e8] sm:$0xff]
  %v3907 = vld [vmem:[%s0 + $0x5f0] sm:$0xff]
  %v3908 = vld [vmem:[%s0 + $0x5f8] sm:$0xff]
  %v3909 = vld [vmem:[%s0 + $0x600] sm:$0xff]
  %v3910 = vld [vmem:[%s0 + $0x608] sm:$0xff]
  %v3911 = vld [vmem:[%s0 + $0x610] sm:$0xff]
  %v3912 = vld [vmem:[%s0 + $0x618] sm:$0xff]
  %v3913 = vld [vmem:[%s0 + $0x620] sm:$0xff]
  %v3914 = vld [vmem:[%s0 + $0x628] sm:$0xff]
  %v3915 = vld [vmem:[%s0 + $0x630] sm:$0xff]
  %v3916 = vld [vmem:[%s0 + $0x638] sm:$0xff]
  %v3917 = vld [vmem:[%s0 + $0x640] sm:$0xff]
  %v3918 = vld [vmem:[%s0 + $0x648] sm:$0xff]
  %v3919 = vld [vmem:[%s0 + $0x650] sm:$0xff]
  %v3920 = vld [vmem:[%s0 + $0x658] sm:$0xff]
  %v3921 = vld [vmem:[%s0 + $0x660] sm:$0xff]
  %v3922 = vld [vmem:[%s0 + $0x668] sm:$0xff]
  %v3923 = vld [vmem:[%s0 + $0x670] sm:$0xff]
  %v3924 = vld [vmem:[%s0 + $0x678] sm:$0xff]
  %v3925 = vld [vmem:[%s0 + $0x680] sm:$0xff]
  %v3926 = vld [vmem:[%s0 + $0x688] sm:$0xff]
  %v3927 = vld [vmem:[%s0 + $0x690] sm:$0xff]
  %v3928 = vld [vmem:[%s0 + $0x698] sm:$0xff]
  %v3929 = vld [vmem:[%s0 + $0x6a0] sm:$0xff]
  %v3930 = vld [vmem:[%s0 + $0x6a8] sm:$0xff]
  %v3931 = vld [vmem:[%s0 + $0x6b0] sm:$0xff]
  %v3932 = vld [vmem:[%s0 + $0x6b8] sm:$0xff]
  %v3933 = vld [vmem:[%s0 + $0x6c0] sm:$0xff]
  %v3934 = vld [vmem:[%s0 + $0x6c8] sm:$0xff]
  %v3935 = vld [vmem:[%s0 + $0x6d0] sm:$0xff]
  %v3936 = vld [vmem:[%s0 + $0x6d8] sm:$0xff]
  %v3937 = vld [vmem:[%s0 + $0x6e0] sm:$0xff]
  %v3938 = vld [vmem:[%s0 + $0x6e8] sm:$0xff]
  %v3939 = vld [vmem:[%s0 + $0x6f0] sm:$0xff]
  %v3940 = vld [vmem:[%s0 + $0x6f8] sm:$0xff]
  %v3941 = vld [vmem:[%s0 + $0x700] sm:$0xff]
  %v3942 = vld [vmem:[%s0 + $0x708] sm:$0xff]
  %v3943 = vld [vmem:[%s0 + $0x710] sm:$0xff]
  %v3944 = vld [vmem:[%s0 + $0x718] sm:$0xff]
  %v3945 = vld [vmem:[%s0 + $0x720] sm:$0xff]
  %v3946 = vld [vmem:[%s0 + $0x728] sm:$0xff]
  %v3947 = vld [vmem:[%s0 + $0x730] sm:$0xff]
  %v3948 = vld [vmem:[%s0 + $0x738] sm:$0xff]
  %v3949 = vld [vmem:[%s0 + $0x740] sm:$0xff]
  %v3950 = vld [vmem:[%s0 + $0x748] sm:$0xff]
  %v3951 = vld [vmem:[%s0 + $0x750] sm:$0xff]
  %v3952 = vld [vmem:[%s0 + $0x758] sm:$0xff]
  %v3953 = vld [vmem:[%s0 + $0x760] sm:$0xff]
  %v3954 = vld [vmem:[%s0 + $0x768] sm:$0xff]
  %v3955 = vld [vmem:[%s0 + $0x770] sm:$0xff]
  %v3956 = vld [vmem:[%s0 + $0x778] sm:$0xff]
  %v3957 = vld [vmem:[%s0 + $0x780] sm:$0xff]
  %v3958 = vld [vmem:[%s0 + $0x788] sm:$0xff]
  %v3959 = vld [vmem:[%s0 + $0x790] sm:$0xff]
  %v3960 = vld [vmem:[%s0 + $0x798] sm:$0xff]
  %v3961 = vld [vmem:[%s0 + $0x7a0] sm:$0xff]
  %v3962 = vld [vmem:[%s0 + $0x7a8] sm:$0xff]
  %v3963 = vld [vmem:[%s0 + $0x7b0] sm:$0xff]
  %v3964 = vld [vmem:[%s0 + $0x7b8] sm:$0xff]
  %v3965 = vld [vmem:[%s0 + $0x7c0] sm:$0xff]
  %v3966 = vld [vmem:[%s0 + $0x7c8] sm:$0xff]
  %v3967 = vld [vmem:[%s0 + $0x7d0] sm:$0xff]
  %v3968 = vld [vmem:[%s0 + $0x7d8] sm:$0xff]
  %v3969 = vld [vmem:[%s0 + $0x7e0] sm:$0xff]
  %v3970 = vld [vmem:[%s0 + $0x7e8] sm:$0xff]
  %v3971 = vld [vmem:[%s0 + $0x7f0] sm:$0xff]
  %v3972 = vld [vmem:[%s0 + $0x7f8] sm:$0xff]
  %3973 = vmatpush.msra.mxu0 %v3603
  %3974 = vmatpush.msra.mxu0 %v3602
  %3975 = vmatpush.msra.mxu0 %v3601
  %3976 = vmatpush.msra.mxu0 %v3600
  %3977 = vmatpush.msra.mxu0 %v3599
  %3978 = vmatpush.msra.mxu0 %v3598
  %3979 = vmatpush.msra.mxu0 %v3597
  %3980 = vmatpush.msra.mxu0 %v3596
  %3981 = vmatpush.msra.mxu0 %v3595
  %3982 = vmatpush.msra.mxu0 %v3594
  %3983 = vmatpush.msra.mxu0 %v3593
  %3984 = vmatpush.msra.mxu0 %v3592
  %3985 = vmatpush.msra.mxu0 %v3591
  %3986 = vmatpush.msra.mxu0 %v3590
  %3987 = vmatpush.msra.mxu0 %v3589
  %3988 = vmatpush.msra.mxu0 %v3588
  %3989 = vmatmul.f32.gmra.mxu0 %v3717
  %v3990 = vpop.f32.mrf.mxu0
  %v3991 = vadd.f32 0.0, %v3990
  %3992 = vmatmul.f32.gmra.mxu0 %v3721
  %v3993 = vpop.f32.mrf.mxu0
  %v3994 = vadd.f32 0.0, %v3993
  %3995 = vmatmul.f32.gmra.mxu0 %v3725
  %v3996 = vpop.f32.mrf.mxu0
  %v3997 = vadd.f32 0.0, %v3996
  %3998 = vmatmul.f32.gmra.mxu0 %v3729
  %v3999 = vpop.f32.mrf.mxu0
  %v4000 = vadd.f32 0.0, %v3999
  %4001 = vmatmul.f32.gmra.mxu0 %v3733
  %v4002 = vpop.f32.mrf.mxu0
  %v4003 = vadd.f32 0.0, %v4002
  %4004 = vmatmul.f32.gmra.mxu0 %v3737
  %v4005 = vpop.f32.mrf.mxu0
  %v4006 = vadd.f32 0.0, %v4005
  %4007 = vmatmul.f32.gmra.mxu0 %v3741
  %v4008 = vpop.f32.mrf.mxu0
  %v4009 = vadd.f32 0.0, %v4008
  %4010 = vmatmul.f32.gmra.mxu0 %v3745
  %v4011 = vpop.f32.mrf.mxu0
  %v4012 = vadd.f32 0.0, %v4011
  %4013 = vmatmul.f32.gmra.mxu0 %v3749
  %v4014 = vpop.f32.mrf.mxu0
  %v4015 = vadd.f32 0.0, %v4014
  %4016 = vmatmul.f32.gmra.mxu0 %v3753
  %v4017 = vpop.f32.mrf.mxu0
  %v4018 = vadd.f32 0.0, %v4017
  %4019 = vmatmul.f32.gmra.mxu0 %v3757
  %v4020 = vpop.f32.mrf.mxu0
  %v4021 = vadd.f32 0.0, %v4020
  %4022 = vmatmul.f32.gmra.mxu0 %v3761
  %v4023 = vpop.f32.mrf.mxu0
  %v4024 = vadd.f32 0.0, %v4023
  %4025 = vmatmul.f32.gmra.mxu0 %v3765
  %v4026 = vpop.f32.mrf.mxu0
  %v4027 = vadd.f32 0.0, %v4026
  %4028 = vmatmul.f32.gmra.mxu0 %v3769
  %v4029 = vpop.f32.mrf.mxu0
  %v4030 = vadd.f32 0.0, %v4029
  %4031 = vmatmul.f32.gmra.mxu0 %v3773
  %v4032 = vpop.f32.mrf.mxu0
  %v4033 = vadd.f32 0.0, %v4032
  %4034 = vmatmul.f32.gmra.mxu0 %v3777
  %v4035 = vpop.f32.mrf.mxu0
  %v4036 = vadd.f32 0.0, %v4035
  %4037 = vmatmul.f32.gmra.mxu0 %v3781
  %v4038 = vpop.f32.mrf.mxu0
  %v4039 = vadd.f32 0.0, %v4038
  %4040 = vmatmul.f32.gmra.mxu0 %v3785
  %v4041 = vpop.f32.mrf.mxu0
  %v4042 = vadd.f32 0.0, %v4041
  %4043 = vmatmul.f32.gmra.mxu0 %v3789
  %v4044 = vpop.f32.mrf.mxu0
  %v4045 = vadd.f32 0.0, %v4044
  %4046 = vmatmul.f32.gmra.mxu0 %v3793
  %v4047 = vpop.f32.mrf.mxu0
  %v4048 = vadd.f32 0.0, %v4047
  %4049 = vmatmul.f32.gmra.mxu0 %v3797
  %v4050 = vpop.f32.mrf.mxu0
  %v4051 = vadd.f32 0.0, %v4050
  %4052 = vmatmul.f32.gmra.mxu0 %v3801
  %v4053 = vpop.f32.mrf.mxu0
  %v4054 = vadd.f32 0.0, %v4053
  %4055 = vmatmul.f32.gmra.mxu0 %v3805
  %v4056 = vpop.f32.mrf.mxu0
  %v4057 = vadd.f32 0.0, %v4056
  %4058 = vmatmul.f32.gmra.mxu0 %v3809
  %v4059 = vpop.f32.mrf.mxu0
  %v4060 = vadd.f32 0.0, %v4059
  %4061 = vmatmul.f32.gmra.mxu0 %v3813
  %v4062 = vpop.f32.mrf.mxu0
  %v4063 = vadd.f32 0.0, %v4062
  %4064 = vmatmul.f32.gmra.mxu0 %v3817
  %v4065 = vpop.f32.mrf.mxu0
  %v4066 = vadd.f32 0.0, %v4065
  %4067 = vmatmul.f32.gmra.mxu0 %v3821
  %v4068 = vpop.f32.mrf.mxu0
  %v4069 = vadd.f32 0.0, %v4068
  %4070 = vmatmul.f32.gmra.mxu0 %v3825
  %v4071 = vpop.f32.mrf.mxu0
  %v4072 = vadd.f32 0.0, %v4071
  %4073 = vmatmul.f32.gmra.mxu0 %v3829
  %v4074 = vpop.f32.mrf.mxu0
  %v4075 = vadd.f32 0.0, %v4074
  %4076 = vmatmul.f32.gmra.mxu0 %v3833
  %v4077 = vpop.f32.mrf.mxu0
  %v4078 = vadd.f32 0.0, %v4077
  %4079 = vmatmul.f32.gmra.mxu0 %v3837
  %v4080 = vpop.f32.mrf.mxu0
  %v4081 = vadd.f32 0.0, %v4080
  %4082 = vmatmul.f32.gmra.mxu0 %v3841
  %v4083 = vpop.f32.mrf.mxu0
  %v4084 = vadd.f32 0.0, %v4083
  %4085 = vmatmul.f32.gmra.mxu0 %v3845
  %v4086 = vpop.f32.mrf.mxu0
  %v4087 = vadd.f32 0.0, %v4086
  %4088 = vmatmul.f32.gmra.mxu0 %v3849
  %v4089 = vpop.f32.mrf.mxu0
  %v4090 = vadd.f32 0.0, %v4089
  %4091 = vmatmul.f32.gmra.mxu0 %v3853
  %v4092 = vpop.f32.mrf.mxu0
  %v4093 = vadd.f32 0.0, %v4092
  %4094 = vmatmul.f32.gmra.mxu0 %v3857
  %v4095 = vpop.f32.mrf.mxu0
  %v4096 = vadd.f32 0.0, %v4095
  %4097 = vmatmul.f32.gmra.mxu0 %v3861
  %v4098 = vpop.f32.mrf.mxu0
  %v4099 = vadd.f32 0.0, %v4098
  %4100 = vmatmul.f32.gmra.mxu0 %v3865
  %v4101 = vpop.f32.mrf.mxu0
  %v4102 = vadd.f32 0.0, %v4101
  %4103 = vmatmul.f32.gmra.mxu0 %v3869
  %v4104 = vpop.f32.mrf.mxu0
  %v4105 = vadd.f32 0.0, %v4104
  %4106 = vmatmul.f32.gmra.mxu0 %v3873
  %v4107 = vpop.f32.mrf.mxu0
  %v4108 = vadd.f32 0.0, %v4107
  %4109 = vmatmul.f32.gmra.mxu0 %v3877
  %v4110 = vpop.f32.mrf.mxu0
  %v4111 = vadd.f32 0.0, %v4110
  %4112 = vmatmul.f32.gmra.mxu0 %v3881
  %v4113 = vpop.f32.mrf.mxu0
  %v4114 = vadd.f32 0.0, %v4113
  %4115 = vmatmul.f32.gmra.mxu0 %v3885
  %v4116 = vpop.f32.mrf.mxu0
  %v4117 = vadd.f32 0.0, %v4116
  %4118 = vmatmul.f32.gmra.mxu0 %v3889
  %v4119 = vpop.f32.mrf.mxu0
  %v4120 = vadd.f32 0.0, %v4119
  %4121 = vmatmul.f32.gmra.mxu0 %v3893
  %v4122 = vpop.f32.mrf.mxu0
  %v4123 = vadd.f32 0.0, %v4122
  %4124 = vmatmul.f32.gmra.mxu0 %v3897
  %v4125 = vpop.f32.mrf.mxu0
  %v4126 = vadd.f32 0.0, %v4125
  %4127 = vmatmul.f32.gmra.mxu0 %v3901
  %v4128 = vpop.f32.mrf.mxu0
  %v4129 = vadd.f32 0.0, %v4128
  %4130 = vmatmul.f32.gmra.mxu0 %v3905
  %v4131 = vpop.f32.mrf.mxu0
  %v4132 = vadd.f32 0.0, %v4131
  %4133 = vmatmul.f32.gmra.mxu0 %v3909
  %v4134 = vpop.f32.mrf.mxu0
  %v4135 = vadd.f32 0.0, %v4134
  %4136 = vmatmul.f32.gmra.mxu0 %v3913
  %v4137 = vpop.f32.mrf.mxu0
  %v4138 = vadd.f32 0.0, %v4137
  %4139 = vmatmul.f32.gmra.mxu0 %v3917
  %v4140 = vpop.f32.mrf.mxu0
  %v4141 = vadd.f32 0.0, %v4140
  %4142 = vmatmul.f32.gmra.mxu0 %v3921
  %v4143 = vpop.f32.mrf.mxu0
  %v4144 = vadd.f32 0.0, %v4143
  %4145 = vmatmul.f32.gmra.mxu0 %v3925
  %v4146 = vpop.f32.mrf.mxu0
  %v4147 = vadd.f32 0.0, %v4146
  %4148 = vmatmul.f32.gmra.mxu0 %v3929
  %v4149 = vpop.f32.mrf.mxu0
  %v4150 = vadd.f32 0.0, %v4149
  %4151 = vmatmul.f32.gmra.mxu0 %v3933
  %v4152 = vpop.f32.mrf.mxu0
  %v4153 = vadd.f32 0.0, %v4152
  %4154 = vmatmul.f32.gmra.mxu0 %v3937
  %v4155 = vpop.f32.mrf.mxu0
  %v4156 = vadd.f32 0.0, %v4155
  %4157 = vmatmul.f32.gmra.mxu0 %v3941
  %v4158 = vpop.f32.mrf.mxu0
  %v4159 = vadd.f32 0.0, %v4158
  %4160 = vmatmul.f32.gmra.mxu0 %v3945
  %v4161 = vpop.f32.mrf.mxu0
  %v4162 = vadd.f32 0.0, %v4161
  %4163 = vmatmul.f32.gmra.mxu0 %v3949
  %v4164 = vpop.f32.mrf.mxu0
  %v4165 = vadd.f32 0.0, %v4164
  %4166 = vmatmul.f32.gmra.mxu0 %v3953
  %v4167 = vpop.f32.mrf.mxu0
  %v4168 = vadd.f32 0.0, %v4167
  %4169 = vmatmul.f32.gmra.mxu0 %v3957
  %v4170 = vpop.f32.mrf.mxu0
  %v4171 = vadd.f32 0.0, %v4170
  %4172 = vmatmul.f32.gmra.mxu0 %v3961
  %v4173 = vpop.f32.mrf.mxu0
  %v4174 = vadd.f32 0.0, %v4173
  %4175 = vmatmul.f32.gmra.mxu0 %v3965
  %v4176 = vpop.f32.mrf.mxu0
  %v4177 = vadd.f32 0.0, %v4176
  %4178 = vmatmul.f32.gmra.mxu0 %v3969
  %v4179 = vpop.f32.mrf.mxu0
  %v4180 = vadd.f32 0.0, %v4179
  %4181 = vdwg.mxu0
  %4182 = vmatpush.msra.mxu0 %v3619
  %4183 = vmatpush.msra.mxu0 %v3618
  %4184 = vmatpush.msra.mxu0 %v3617
  %4185 = vmatpush.msra.mxu0 %v3616
  %4186 = vmatpush.msra.mxu0 %v3615
  %4187 = vmatpush.msra.mxu0 %v3614
  %4188 = vmatpush.msra.mxu0 %v3613
  %4189 = vmatpush.msra.mxu0 %v3612
  %4190 = vmatpush.msra.mxu0 %v3611
  %4191 = vmatpush.msra.mxu0 %v3610
  %4192 = vmatpush.msra.mxu0 %v3609
  %4193 = vmatpush.msra.mxu0 %v3608
  %4194 = vmatpush.msra.mxu0 %v3607
  %4195 = vmatpush.msra.mxu0 %v3606
  %4196 = vmatpush.msra.mxu0 %v3605
  %4197 = vmatpush.msra.mxu0 %v3604
  %4198 = vmatmul.f32.gmra.mxu0 %v3718
  %v4199 = vpop.f32.mrf.mxu0
  %v4200 = vadd.f32 %v3991, %v4199
  %4201 = vmatmul.f32.gmra.mxu0 %v3722
  %v4202 = vpop.f32.mrf.mxu0
  %v4203 = vadd.f32 %v3994, %v4202
  %4204 = vmatmul.f32.gmra.mxu0 %v3726
  %v4205 = vpop.f32.mrf.mxu0
  %v4206 = vadd.f32 %v3997, %v4205
  %4207 = vmatmul.f32.gmra.mxu0 %v3730
  %v4208 = vpop.f32.mrf.mxu0
  %v4209 = vadd.f32 %v4000, %v4208
  %4210 = vmatmul.f32.gmra.mxu0 %v3734
  %v4211 = vpop.f32.mrf.mxu0
  %v4212 = vadd.f32 %v4003, %v4211
  %4213 = vmatmul.f32.gmra.mxu0 %v3738
  %v4214 = vpop.f32.mrf.mxu0
  %v4215 = vadd.f32 %v4006, %v4214
  %4216 = vmatmul.f32.gmra.mxu0 %v3742
  %v4217 = vpop.f32.mrf.mxu0
  %v4218 = vadd.f32 %v4009, %v4217
  %4219 = vmatmul.f32.gmra.mxu0 %v3746
  %v4220 = vpop.f32.mrf.mxu0
  %v4221 = vadd.f32 %v4012, %v4220
  %4222 = vmatmul.f32.gmra.mxu0 %v3750
  %v4223 = vpop.f32.mrf.mxu0
  %v4224 = vadd.f32 %v4015, %v4223
  %4225 = vmatmul.f32.gmra.mxu0 %v3754
  %v4226 = vpop.f32.mrf.mxu0
  %v4227 = vadd.f32 %v4018, %v4226
  %4228 = vmatmul.f32.gmra.mxu0 %v3758
  %v4229 = vpop.f32.mrf.mxu0
  %v4230 = vadd.f32 %v4021, %v4229
  %4231 = vmatmul.f32.gmra.mxu0 %v3762
  %v4232 = vpop.f32.mrf.mxu0
  %v4233 = vadd.f32 %v4024, %v4232
  %4234 = vmatmul.f32.gmra.mxu0 %v3766
  %v4235 = vpop.f32.mrf.mxu0
  %v4236 = vadd.f32 %v4027, %v4235
  %4237 = vmatmul.f32.gmra.mxu0 %v3770
  %v4238 = vpop.f32.mrf.mxu0
  %v4239 = vadd.f32 %v4030, %v4238
  %4240 = vmatmul.f32.gmra.mxu0 %v3774
  %v4241 = vpop.f32.mrf.mxu0
  %v4242 = vadd.f32 %v4033, %v4241
  %4243 = vmatmul.f32.gmra.mxu0 %v3778
  %v4244 = vpop.f32.mrf.mxu0
  %v4245 = vadd.f32 %v4036, %v4244
  %4246 = vmatmul.f32.gmra.mxu0 %v3782
  %v4247 = vpop.f32.mrf.mxu0
  %v4248 = vadd.f32 %v4039, %v4247
  %4249 = vmatmul.f32.gmra.mxu0 %v3786
  %v4250 = vpop.f32.mrf.mxu0
  %v4251 = vadd.f32 %v4042, %v4250
  %4252 = vmatmul.f32.gmra.mxu0 %v3790
  %v4253 = vpop.f32.mrf.mxu0
  %v4254 = vadd.f32 %v4045, %v4253
  %4255 = vmatmul.f32.gmra.mxu0 %v3794
  %v4256 = vpop.f32.mrf.mxu0
  %v4257 = vadd.f32 %v4048, %v4256
  %4258 = vmatmul.f32.gmra.mxu0 %v3798
  %v4259 = vpop.f32.mrf.mxu0
  %v4260 = vadd.f32 %v4051, %v4259
  %4261 = vmatmul.f32.gmra.mxu0 %v3802
  %v4262 = vpop.f32.mrf.mxu0
  %v4263 = vadd.f32 %v4054, %v4262
  %4264 = vmatmul.f32.gmra.mxu0 %v3806
  %v4265 = vpop.f32.mrf.mxu0
  %v4266 = vadd.f32 %v4057, %v4265
  %4267 = vmatmul.f32.gmra.mxu0 %v3810
  %v4268 = vpop.f32.mrf.mxu0
  %v4269 = vadd.f32 %v4060, %v4268
  %4270 = vmatmul.f32.gmra.mxu0 %v3814
  %v4271 = vpop.f32.mrf.mxu0
  %v4272 = vadd.f32 %v4063, %v4271
  %4273 = vmatmul.f32.gmra.mxu0 %v3818
  %v4274 = vpop.f32.mrf.mxu0
  %v4275 = vadd.f32 %v4066, %v4274
  %4276 = vmatmul.f32.gmra.mxu0 %v3822
  %v4277 = vpop.f32.mrf.mxu0
  %v4278 = vadd.f32 %v4069, %v4277
  %4279 = vmatmul.f32.gmra.mxu0 %v3826
  %v4280 = vpop.f32.mrf.mxu0
  %v4281 = vadd.f32 %v4072, %v4280
  %4282 = vmatmul.f32.gmra.mxu0 %v3830
  %v4283 = vpop.f32.mrf.mxu0
  %v4284 = vadd.f32 %v4075, %v4283
  %4285 = vmatmul.f32.gmra.mxu0 %v3834
  %v4286 = vpop.f32.mrf.mxu0
  %v4287 = vadd.f32 %v4078, %v4286
  %4288 = vmatmul.f32.gmra.mxu0 %v3838
  %v4289 = vpop.f32.mrf.mxu0
  %v4290 = vadd.f32 %v4081, %v4289
  %4291 = vmatmul.f32.gmra.mxu0 %v3842
  %v4292 = vpop.f32.mrf.mxu0
  %v4293 = vadd.f32 %v4084, %v4292
  %4294 = vmatmul.f32.gmra.mxu0 %v3846
  %v4295 = vpop.f32.mrf.mxu0
  %v4296 = vadd.f32 %v4087, %v4295
  %4297 = vmatmul.f32.gmra.mxu0 %v3850
  %v4298 = vpop.f32.mrf.mxu0
  %v4299 = vadd.f32 %v4090, %v4298
  %4300 = vmatmul.f32.gmra.mxu0 %v3854
  %v4301 = vpop.f32.mrf.mxu0
  %v4302 = vadd.f32 %v4093, %v4301
  %4303 = vmatmul.f32.gmra.mxu0 %v3858
  %v4304 = vpop.f32.mrf.mxu0
  %v4305 = vadd.f32 %v4096, %v4304
  %4306 = vmatmul.f32.gmra.mxu0 %v3862
  %v4307 = vpop.f32.mrf.mxu0
  %v4308 = vadd.f32 %v4099, %v4307
  %4309 = vmatmul.f32.gmra.mxu0 %v3866
  %v4310 = vpop.f32.mrf.mxu0
  %v4311 = vadd.f32 %v4102, %v4310
  %4312 = vmatmul.f32.gmra.mxu0 %v3870
  %v4313 = vpop.f32.mrf.mxu0
  %v4314 = vadd.f32 %v4105, %v4313
  %4315 = vmatmul.f32.gmra.mxu0 %v3874
  %v4316 = vpop.f32.mrf.mxu0
  %v4317 = vadd.f32 %v4108, %v4316
  %4318 = vmatmul.f32.gmra.mxu0 %v3878
  %v4319 = vpop.f32.mrf.mxu0
  %v4320 = vadd.f32 %v4111, %v4319
  %4321 = vmatmul.f32.gmra.mxu0 %v3882
  %v4322 = vpop.f32.mrf.mxu0
  %v4323 = vadd.f32 %v4114, %v4322
  %4324 = vmatmul.f32.gmra.mxu0 %v3886
  %v4325 = vpop.f32.mrf.mxu0
  %v4326 = vadd.f32 %v4117, %v4325
  %4327 = vmatmul.f32.gmra.mxu0 %v3890
  %v4328 = vpop.f32.mrf.mxu0
  %v4329 = vadd.f32 %v4120, %v4328
  %4330 = vmatmul.f32.gmra.mxu0 %v3894
  %v4331 = vpop.f32.mrf.mxu0
  %v4332 = vadd.f32 %v4123, %v4331
  %4333 = vmatmul.f32.gmra.mxu0 %v3898
  %v4334 = vpop.f32.mrf.mxu0
  %v4335 = vadd.f32 %v4126, %v4334
  %4336 = vmatmul.f32.gmra.mxu0 %v3902
  %v4337 = vpop.f32.mrf.mxu0
  %v4338 = vadd.f32 %v4129, %v4337
  %4339 = vmatmul.f32.gmra.mxu0 %v3906
  %v4340 = vpop.f32.mrf.mxu0
  %v4341 = vadd.f32 %v4132, %v4340
  %4342 = vmatmul.f32.gmra.mxu0 %v3910
  %v4343 = vpop.f32.mrf.mxu0
  %v4344 = vadd.f32 %v4135, %v4343
  %4345 = vmatmul.f32.gmra.mxu0 %v3914
  %v4346 = vpop.f32.mrf.mxu0
  %v4347 = vadd.f32 %v4138, %v4346
  %4348 = vmatmul.f32.gmra.mxu0 %v3918
  %v4349 = vpop.f32.mrf.mxu0
  %v4350 = vadd.f32 %v4141, %v4349
  %4351 = vmatmul.f32.gmra.mxu0 %v3922
  %v4352 = vpop.f32.mrf.mxu0
  %v4353 = vadd.f32 %v4144, %v4352
  %4354 = vmatmul.f32.gmra.mxu0 %v3926
  %v4355 = vpop.f32.mrf.mxu0
  %v4356 = vadd.f32 %v4147, %v4355
  %4357 = vmatmul.f32.gmra.mxu0 %v3930
  %v4358 = vpop.f32.mrf.mxu0
  %v4359 = vadd.f32 %v4150, %v4358
  %4360 = vmatmul.f32.gmra.mxu0 %v3934
  %v4361 = vpop.f32.mrf.mxu0
  %v4362 = vadd.f32 %v4153, %v4361
  %4363 = vmatmul.f32.gmra.mxu0 %v3938
  %v4364 = vpop.f32.mrf.mxu0
  %v4365 = vadd.f32 %v4156, %v4364
  %4366 = vmatmul.f32.gmra.mxu0 %v3942
  %v4367 = vpop.f32.mrf.mxu0
  %v4368 = vadd.f32 %v4159, %v4367
  %4369 = vmatmul.f32.gmra.mxu0 %v3946
  %v4370 = vpop.f32.mrf.mxu0
  %v4371 = vadd.f32 %v4162, %v4370
  %4372 = vmatmul.f32.gmra.mxu0 %v3950
  %v4373 = vpop.f32.mrf.mxu0
  %v4374 = vadd.f32 %v4165, %v4373
  %4375 = vmatmul.f32.gmra.mxu0 %v3954
  %v4376 = vpop.f32.mrf.mxu0
  %v4377 = vadd.f32 %v4168, %v4376
  %4378 = vmatmul.f32.gmra.mxu0 %v3958
  %v4379 = vpop.f32.mrf.mxu0
  %v4380 = vadd.f32 %v4171, %v4379
  %4381 = vmatmul.f32.gmra.mxu0 %v3962
  %v4382 = vpop.f32.mrf.mxu0
  %v4383 = vadd.f32 %v4174, %v4382
  %4384 = vmatmul.f32.gmra.mxu0 %v3966
  %v4385 = vpop.f32.mrf.mxu0
  %v4386 = vadd.f32 %v4177, %v4385
  %4387 = vmatmul.f32.gmra.mxu0 %v3970
  %v4388 = vpop.f32.mrf.mxu0
  %v4389 = vadd.f32 %v4180, %v4388
  %4390 = vdwg.mxu0
  %4391 = vmatpush.msra.mxu0 %v3635
  %4392 = vmatpush.msra.mxu0 %v3634
  %4393 = vmatpush.msra.mxu0 %v3633
  %4394 = vmatpush.msra.mxu0 %v3632
  %4395 = vmatpush.msra.mxu0 %v3631
  %4396 = vmatpush.msra.mxu0 %v3630
  %4397 = vmatpush.msra.mxu0 %v3629
  %4398 = vmatpush.msra.mxu0 %v3628
  %4399 = vmatpush.msra.mxu0 %v3627
  %4400 = vmatpush.msra.mxu0 %v3626
  %4401 = vmatpush.msra.mxu0 %v3625
  %4402 = vmatpush.msra.mxu0 %v3624
  %4403 = vmatpush.msra.mxu0 %v3623
  %4404 = vmatpush.msra.mxu0 %v3622
  %4405 = vmatpush.msra.mxu0 %v3621
  %4406 = vmatpush.msra.mxu0 %v3620
  %4407 = vmatmul.f32.gmra.mxu0 %v3719
  %v4408 = vpop.f32.mrf.mxu0
  %v4409 = vadd.f32 %v4200, %v4408
  %4410 = vmatmul.f32.gmra.mxu0 %v3723
  %v4411 = vpop.f32.mrf.mxu0
  %v4412 = vadd.f32 %v4203, %v4411
  %4413 = vmatmul.f32.gmra.mxu0 %v3727
  %v4414 = vpop.f32.mrf.mxu0
  %v4415 = vadd.f32 %v4206, %v4414
  %4416 = vmatmul.f32.gmra.mxu0 %v3731
  %v4417 = vpop.f32.mrf.mxu0
  %v4418 = vadd.f32 %v4209, %v4417
  %4419 = vmatmul.f32.gmra.mxu0 %v3735
  %v4420 = vpop.f32.mrf.mxu0
  %v4421 = vadd.f32 %v4212, %v4420
  %4422 = vmatmul.f32.gmra.mxu0 %v3739
  %v4423 = vpop.f32.mrf.mxu0
  %v4424 = vadd.f32 %v4215, %v4423
  %4425 = vmatmul.f32.gmra.mxu0 %v3743
  %v4426 = vpop.f32.mrf.mxu0
  %v4427 = vadd.f32 %v4218, %v4426
  %4428 = vmatmul.f32.gmra.mxu0 %v3747
  %v4429 = vpop.f32.mrf.mxu0
  %v4430 = vadd.f32 %v4221, %v4429
  %4431 = vmatmul.f32.gmra.mxu0 %v3751
  %v4432 = vpop.f32.mrf.mxu0
  %v4433 = vadd.f32 %v4224, %v4432
  %4434 = vmatmul.f32.gmra.mxu0 %v3755
  %v4435 = vpop.f32.mrf.mxu0
  %v4436 = vadd.f32 %v4227, %v4435
  %4437 = vmatmul.f32.gmra.mxu0 %v3759
  %v4438 = vpop.f32.mrf.mxu0
  %v4439 = vadd.f32 %v4230, %v4438
  %4440 = vmatmul.f32.gmra.mxu0 %v3763
  %v4441 = vpop.f32.mrf.mxu0
  %v4442 = vadd.f32 %v4233, %v4441
  %4443 = vmatmul.f32.gmra.mxu0 %v3767
  %v4444 = vpop.f32.mrf.mxu0
  %v4445 = vadd.f32 %v4236, %v4444
  %4446 = vmatmul.f32.gmra.mxu0 %v3771
  %v4447 = vpop.f32.mrf.mxu0
  %v4448 = vadd.f32 %v4239, %v4447
  %4449 = vmatmul.f32.gmra.mxu0 %v3775
  %v4450 = vpop.f32.mrf.mxu0
  %v4451 = vadd.f32 %v4242, %v4450
  %4452 = vmatmul.f32.gmra.mxu0 %v3779
  %v4453 = vpop.f32.mrf.mxu0
  %v4454 = vadd.f32 %v4245, %v4453
  %4455 = vmatmul.f32.gmra.mxu0 %v3783
  %v4456 = vpop.f32.mrf.mxu0
  %v4457 = vadd.f32 %v4248, %v4456
  %4458 = vmatmul.f32.gmra.mxu0 %v3787
  %v4459 = vpop.f32.mrf.mxu0
  %v4460 = vadd.f32 %v4251, %v4459
  %4461 = vmatmul.f32.gmra.mxu0 %v3791
  %v4462 = vpop.f32.mrf.mxu0
  %v4463 = vadd.f32 %v4254, %v4462
  %4464 = vmatmul.f32.gmra.mxu0 %v3795
  %v4465 = vpop.f32.mrf.mxu0
  %v4466 = vadd.f32 %v4257, %v4465
  %4467 = vmatmul.f32.gmra.mxu0 %v3799
  %v4468 = vpop.f32.mrf.mxu0
  %v4469 = vadd.f32 %v4260, %v4468
  %4470 = vmatmul.f32.gmra.mxu0 %v3803
  %v4471 = vpop.f32.mrf.mxu0
  %v4472 = vadd.f32 %v4263, %v4471
  %4473 = vmatmul.f32.gmra.mxu0 %v3807
  %v4474 = vpop.f32.mrf.mxu0
  %v4475 = vadd.f32 %v4266, %v4474
  %4476 = vmatmul.f32.gmra.mxu0 %v3811
  %v4477 = vpop.f32.mrf.mxu0
  %v4478 = vadd.f32 %v4269, %v4477
  %4479 = vmatmul.f32.gmra.mxu0 %v3815
  %v4480 = vpop.f32.mrf.mxu0
  %v4481 = vadd.f32 %v4272, %v4480
  %4482 = vmatmul.f32.gmra.mxu0 %v3819
  %v4483 = vpop.f32.mrf.mxu0
  %v4484 = vadd.f32 %v4275, %v4483
  %4485 = vmatmul.f32.gmra.mxu0 %v3823
  %v4486 = vpop.f32.mrf.mxu0
  %v4487 = vadd.f32 %v4278, %v4486
  %4488 = vmatmul.f32.gmra.mxu0 %v3827
  %v4489 = vpop.f32.mrf.mxu0
  %v4490 = vadd.f32 %v4281, %v4489
  %4491 = vmatmul.f32.gmra.mxu0 %v3831
  %v4492 = vpop.f32.mrf.mxu0
  %v4493 = vadd.f32 %v4284, %v4492
  %4494 = vmatmul.f32.gmra.mxu0 %v3835
  %v4495 = vpop.f32.mrf.mxu0
  %v4496 = vadd.f32 %v4287, %v4495
  %4497 = vmatmul.f32.gmra.mxu0 %v3839
  %v4498 = vpop.f32.mrf.mxu0
  %v4499 = vadd.f32 %v4290, %v4498
  %4500 = vmatmul.f32.gmra.mxu0 %v3843
  %v4501 = vpop.f32.mrf.mxu0
  %v4502 = vadd.f32 %v4293, %v4501
  %4503 = vmatmul.f32.gmra.mxu0 %v3847
  %v4504 = vpop.f32.mrf.mxu0
  %v4505 = vadd.f32 %v4296, %v4504
  %4506 = vmatmul.f32.gmra.mxu0 %v3851
  %v4507 = vpop.f32.mrf.mxu0
  %v4508 = vadd.f32 %v4299, %v4507
  %4509 = vmatmul.f32.gmra.mxu0 %v3855
  %v4510 = vpop.f32.mrf.mxu0
  %v4511 = vadd.f32 %v4302, %v4510
  %4512 = vmatmul.f32.gmra.mxu0 %v3859
  %v4513 = vpop.f32.mrf.mxu0
  %v4514 = vadd.f32 %v4305, %v4513
  %4515 = vmatmul.f32.gmra.mxu0 %v3863
  %v4516 = vpop.f32.mrf.mxu0
  %v4517 = vadd.f32 %v4308, %v4516
  %4518 = vmatmul.f32.gmra.mxu0 %v3867
  %v4519 = vpop.f32.mrf.mxu0
  %v4520 = vadd.f32 %v4311, %v4519
  %4521 = vmatmul.f32.gmra.mxu0 %v3871
  %v4522 = vpop.f32.mrf.mxu0
  %v4523 = vadd.f32 %v4314, %v4522
  %4524 = vmatmul.f32.gmra.mxu0 %v3875
  %v4525 = vpop.f32.mrf.mxu0
  %v4526 = vadd.f32 %v4317, %v4525
  %4527 = vmatmul.f32.gmra.mxu0 %v3879
  %v4528 = vpop.f32.mrf.mxu0
  %v4529 = vadd.f32 %v4320, %v4528
  %4530 = vmatmul.f32.gmra.mxu0 %v3883
  %v4531 = vpop.f32.mrf.mxu0
  %v4532 = vadd.f32 %v4323, %v4531
  %4533 = vmatmul.f32.gmra.mxu0 %v3887
  %v4534 = vpop.f32.mrf.mxu0
  %v4535 = vadd.f32 %v4326, %v4534
  %4536 = vmatmul.f32.gmra.mxu0 %v3891
  %v4537 = vpop.f32.mrf.mxu0
  %v4538 = vadd.f32 %v4329, %v4537
  %4539 = vmatmul.f32.gmra.mxu0 %v3895
  %v4540 = vpop.f32.mrf.mxu0
  %v4541 = vadd.f32 %v4332, %v4540
  %4542 = vmatmul.f32.gmra.mxu0 %v3899
  %v4543 = vpop.f32.mrf.mxu0
  %v4544 = vadd.f32 %v4335, %v4543
  %4545 = vmatmul.f32.gmra.mxu0 %v3903
  %v4546 = vpop.f32.mrf.mxu0
  %v4547 = vadd.f32 %v4338, %v4546
  %4548 = vmatmul.f32.gmra.mxu0 %v3907
  %v4549 = vpop.f32.mrf.mxu0
  %v4550 = vadd.f32 %v4341, %v4549
  %4551 = vmatmul.f32.gmra.mxu0 %v3911
  %v4552 = vpop.f32.mrf.mxu0
  %v4553 = vadd.f32 %v4344, %v4552
  %4554 = vmatmul.f32.gmra.mxu0 %v3915
  %v4555 = vpop.f32.mrf.mxu0
  %v4556 = vadd.f32 %v4347, %v4555
  %4557 = vmatmul.f32.gmra.mxu0 %v3919
  %v4558 = vpop.f32.mrf.mxu0
  %v4559 = vadd.f32 %v4350, %v4558
  %4560 = vmatmul.f32.gmra.mxu0 %v3923
  %v4561 = vpop.f32.mrf.mxu0
  %v4562 = vadd.f32 %v4353, %v4561
  %4563 = vmatmul.f32.gmra.mxu0 %v3927
  %v4564 = vpop.f32.mrf.mxu0
  %v4565 = vadd.f32 %v4356, %v4564
  %4566 = vmatmul.f32.gmra.mxu0 %v3931
  %v4567 = vpop.f32.mrf.mxu0
  %v4568 = vadd.f32 %v4359, %v4567
  %4569 = vmatmul.f32.gmra.mxu0 %v3935
  %v4570 = vpop.f32.mrf.mxu0
  %v4571 = vadd.f32 %v4362, %v4570
  %4572 = vmatmul.f32.gmra.mxu0 %v3939
  %v4573 = vpop.f32.mrf.mxu0
  %v4574 = vadd.f32 %v4365, %v4573
  %4575 = vmatmul.f32.gmra.mxu0 %v3943
  %v4576 = vpop.f32.mrf.mxu0
  %v4577 = vadd.f32 %v4368, %v4576
  %4578 = vmatmul.f32.gmra.mxu0 %v3947
  %v4579 = vpop.f32.mrf.mxu0
  %v4580 = vadd.f32 %v4371, %v4579
  %4581 = vmatmul.f32.gmra.mxu0 %v3951
  %v4582 = vpop.f32.mrf.mxu0
  %v4583 = vadd.f32 %v4374, %v4582
  %4584 = vmatmul.f32.gmra.mxu0 %v3955
  %v4585 = vpop.f32.mrf.mxu0
  %v4586 = vadd.f32 %v4377, %v4585
  %4587 = vmatmul.f32.gmra.mxu0 %v3959
  %v4588 = vpop.f32.mrf.mxu0
  %v4589 = vadd.f32 %v4380, %v4588
  %4590 = vmatmul.f32.gmra.mxu0 %v3963
  %v4591 = vpop.f32.mrf.mxu0
  %v4592 = vadd.f32 %v4383, %v4591
  %4593 = vmatmul.f32.gmra.mxu0 %v3967
  %v4594 = vpop.f32.mrf.mxu0
  %v4595 = vadd.f32 %v4386, %v4594
  %4596 = vmatmul.f32.gmra.mxu0 %v3971
  %v4597 = vpop.f32.mrf.mxu0
  %v4598 = vadd.f32 %v4389, %v4597
  %4599 = vdwg.mxu0
  %4600 = vmatpush.msra.mxu0 %v3651
  %4601 = vmatpush.msra.mxu0 %v3650
  %4602 = vmatpush.msra.mxu0 %v3649
  %4603 = vmatpush.msra.mxu0 %v3648
  %4604 = vmatpush.msra.mxu0 %v3647
  %4605 = vmatpush.msra.mxu0 %v3646
  %4606 = vmatpush.msra.mxu0 %v3645
  %4607 = vmatpush.msra.mxu0 %v3644
  %4608 = vmatpush.msra.mxu0 %v3643
  %4609 = vmatpush.msra.mxu0 %v3642
  %4610 = vmatpush.msra.mxu0 %v3641
  %4611 = vmatpush.msra.mxu0 %v3640
  %4612 = vmatpush.msra.mxu0 %v3639
  %4613 = vmatpush.msra.mxu0 %v3638
  %4614 = vmatpush.msra.mxu0 %v3637
  %4615 = vmatpush.msra.mxu0 %v3636
  %4616 = vmatmul.f32.gmra.mxu0 %v3720
  %v4617 = vpop.f32.mrf.mxu0
  %v4618 = vadd.f32 %v4409, %v4617
  %4619 = vmatmul.f32.gmra.mxu0 %v3724
  %v4620 = vpop.f32.mrf.mxu0
  %v4621 = vadd.f32 %v4412, %v4620
  %4622 = vmatmul.f32.gmra.mxu0 %v3728
  %v4623 = vpop.f32.mrf.mxu0
  %v4624 = vadd.f32 %v4415, %v4623
  %4625 = vmatmul.f32.gmra.mxu0 %v3732
  %v4626 = vpop.f32.mrf.mxu0
  %v4627 = vadd.f32 %v4418, %v4626
  %4628 = vmatmul.f32.gmra.mxu0 %v3736
  %v4629 = vpop.f32.mrf.mxu0
  %v4630 = vadd.f32 %v4421, %v4629
  %4631 = vmatmul.f32.gmra.mxu0 %v3740
  %v4632 = vpop.f32.mrf.mxu0
  %v4633 = vadd.f32 %v4424, %v4632
  %4634 = vmatmul.f32.gmra.mxu0 %v3744
  %v4635 = vpop.f32.mrf.mxu0
  %v4636 = vadd.f32 %v4427, %v4635
  %4637 = vmatmul.f32.gmra.mxu0 %v3748
  %v4638 = vpop.f32.mrf.mxu0
  %v4639 = vadd.f32 %v4430, %v4638
  %4640 = vmatmul.f32.gmra.mxu0 %v3752
  %v4641 = vpop.f32.mrf.mxu0
  %v4642 = vadd.f32 %v4433, %v4641
  %4643 = vmatmul.f32.gmra.mxu0 %v3756
  %v4644 = vpop.f32.mrf.mxu0
  %v4645 = vadd.f32 %v4436, %v4644
  %4646 = vmatmul.f32.gmra.mxu0 %v3760
  %v4647 = vpop.f32.mrf.mxu0
  %v4648 = vadd.f32 %v4439, %v4647
  %4649 = vmatmul.f32.gmra.mxu0 %v3764
  %v4650 = vpop.f32.mrf.mxu0
  %v4651 = vadd.f32 %v4442, %v4650
  %4652 = vmatmul.f32.gmra.mxu0 %v3768
  %v4653 = vpop.f32.mrf.mxu0
  %v4654 = vadd.f32 %v4445, %v4653
  %4655 = vmatmul.f32.gmra.mxu0 %v3772
  %v4656 = vpop.f32.mrf.mxu0
  %v4657 = vadd.f32 %v4448, %v4656
  %4658 = vmatmul.f32.gmra.mxu0 %v3776
  %v4659 = vpop.f32.mrf.mxu0
  %v4660 = vadd.f32 %v4451, %v4659
  %4661 = vmatmul.f32.gmra.mxu0 %v3780
  %v4662 = vpop.f32.mrf.mxu0
  %v4663 = vadd.f32 %v4454, %v4662
  %4664 = vmatmul.f32.gmra.mxu0 %v3784
  %v4665 = vpop.f32.mrf.mxu0
  %v4666 = vadd.f32 %v4457, %v4665
  %4667 = vmatmul.f32.gmra.mxu0 %v3788
  %v4668 = vpop.f32.mrf.mxu0
  %v4669 = vadd.f32 %v4460, %v4668
  %4670 = vmatmul.f32.gmra.mxu0 %v3792
  %v4671 = vpop.f32.mrf.mxu0
  %v4672 = vadd.f32 %v4463, %v4671
  %4673 = vmatmul.f32.gmra.mxu0 %v3796
  %v4674 = vpop.f32.mrf.mxu0
  %v4675 = vadd.f32 %v4466, %v4674
  %4676 = vmatmul.f32.gmra.mxu0 %v3800
  %v4677 = vpop.f32.mrf.mxu0
  %v4678 = vadd.f32 %v4469, %v4677
  %4679 = vmatmul.f32.gmra.mxu0 %v3804
  %v4680 = vpop.f32.mrf.mxu0
  %v4681 = vadd.f32 %v4472, %v4680
  %4682 = vmatmul.f32.gmra.mxu0 %v3808
  %v4683 = vpop.f32.mrf.mxu0
  %v4684 = vadd.f32 %v4475, %v4683
  %4685 = vmatmul.f32.gmra.mxu0 %v3812
  %v4686 = vpop.f32.mrf.mxu0
  %v4687 = vadd.f32 %v4478, %v4686
  %4688 = vmatmul.f32.gmra.mxu0 %v3816
  %v4689 = vpop.f32.mrf.mxu0
  %v4690 = vadd.f32 %v4481, %v4689
  %4691 = vmatmul.f32.gmra.mxu0 %v3820
  %v4692 = vpop.f32.mrf.mxu0
  %v4693 = vadd.f32 %v4484, %v4692
  %4694 = vmatmul.f32.gmra.mxu0 %v3824
  %v4695 = vpop.f32.mrf.mxu0
  %v4696 = vadd.f32 %v4487, %v4695
  %4697 = vmatmul.f32.gmra.mxu0 %v3828
  %v4698 = vpop.f32.mrf.mxu0
  %v4699 = vadd.f32 %v4490, %v4698
  %4700 = vmatmul.f32.gmra.mxu0 %v3832
  %v4701 = vpop.f32.mrf.mxu0
  %v4702 = vadd.f32 %v4493, %v4701
  %4703 = vmatmul.f32.gmra.mxu0 %v3836
  %v4704 = vpop.f32.mrf.mxu0
  %v4705 = vadd.f32 %v4496, %v4704
  %4706 = vmatmul.f32.gmra.mxu0 %v3840
  %v4707 = vpop.f32.mrf.mxu0
  %v4708 = vadd.f32 %v4499, %v4707
  %4709 = vmatmul.f32.gmra.mxu0 %v3844
  %v4710 = vpop.f32.mrf.mxu0
  %v4711 = vadd.f32 %v4502, %v4710
  %4712 = vmatmul.f32.gmra.mxu0 %v3848
  %v4713 = vpop.f32.mrf.mxu0
  %v4714 = vadd.f32 %v4505, %v4713
  %4715 = vmatmul.f32.gmra.mxu0 %v3852
  %v4716 = vpop.f32.mrf.mxu0
  %v4717 = vadd.f32 %v4508, %v4716
  %4718 = vmatmul.f32.gmra.mxu0 %v3856
  %v4719 = vpop.f32.mrf.mxu0
  %v4720 = vadd.f32 %v4511, %v4719
  %4721 = vmatmul.f32.gmra.mxu0 %v3860
  %v4722 = vpop.f32.mrf.mxu0
  %v4723 = vadd.f32 %v4514, %v4722
  %4724 = vmatmul.f32.gmra.mxu0 %v3864
  %v4725 = vpop.f32.mrf.mxu0
  %v4726 = vadd.f32 %v4517, %v4725
  %4727 = vmatmul.f32.gmra.mxu0 %v3868
  %v4728 = vpop.f32.mrf.mxu0
  %v4729 = vadd.f32 %v4520, %v4728
  %4730 = vmatmul.f32.gmra.mxu0 %v3872
  %v4731 = vpop.f32.mrf.mxu0
  %v4732 = vadd.f32 %v4523, %v4731
  %4733 = vmatmul.f32.gmra.mxu0 %v3876
  %v4734 = vpop.f32.mrf.mxu0
  %v4735 = vadd.f32 %v4526, %v4734
  %4736 = vmatmul.f32.gmra.mxu0 %v3880
  %v4737 = vpop.f32.mrf.mxu0
  %v4738 = vadd.f32 %v4529, %v4737
  %4739 = vmatmul.f32.gmra.mxu0 %v3884
  %v4740 = vpop.f32.mrf.mxu0
  %v4741 = vadd.f32 %v4532, %v4740
  %4742 = vmatmul.f32.gmra.mxu0 %v3888
  %v4743 = vpop.f32.mrf.mxu0
  %v4744 = vadd.f32 %v4535, %v4743
  %4745 = vmatmul.f32.gmra.mxu0 %v3892
  %v4746 = vpop.f32.mrf.mxu0
  %v4747 = vadd.f32 %v4538, %v4746
  %4748 = vmatmul.f32.gmra.mxu0 %v3896
  %v4749 = vpop.f32.mrf.mxu0
  %v4750 = vadd.f32 %v4541, %v4749
  %4751 = vmatmul.f32.gmra.mxu0 %v3900
  %v4752 = vpop.f32.mrf.mxu0
  %v4753 = vadd.f32 %v4544, %v4752
  %4754 = vmatmul.f32.gmra.mxu0 %v3904
  %v4755 = vpop.f32.mrf.mxu0
  %v4756 = vadd.f32 %v4547, %v4755
  %4757 = vmatmul.f32.gmra.mxu0 %v3908
  %v4758 = vpop.f32.mrf.mxu0
  %v4759 = vadd.f32 %v4550, %v4758
  %4760 = vmatmul.f32.gmra.mxu0 %v3912
  %v4761 = vpop.f32.mrf.mxu0
  %v4762 = vadd.f32 %v4553, %v4761
  %4763 = vmatmul.f32.gmra.mxu0 %v3916
  %v4764 = vpop.f32.mrf.mxu0
  %v4765 = vadd.f32 %v4556, %v4764
  %4766 = vmatmul.f32.gmra.mxu0 %v3920
  %v4767 = vpop.f32.mrf.mxu0
  %v4768 = vadd.f32 %v4559, %v4767
  %4769 = vmatmul.f32.gmra.mxu0 %v3924
  %v4770 = vpop.f32.mrf.mxu0
  %v4771 = vadd.f32 %v4562, %v4770
  %4772 = vmatmul.f32.gmra.mxu0 %v3928
  %v4773 = vpop.f32.mrf.mxu0
  %v4774 = vadd.f32 %v4565, %v4773
  %4775 = vmatmul.f32.gmra.mxu0 %v3932
  %v4776 = vpop.f32.mrf.mxu0
  %v4777 = vadd.f32 %v4568, %v4776
  %4778 = vmatmul.f32.gmra.mxu0 %v3936
  %v4779 = vpop.f32.mrf.mxu0
  %v4780 = vadd.f32 %v4571, %v4779
  %4781 = vmatmul.f32.gmra.mxu0 %v3940
  %v4782 = vpop.f32.mrf.mxu0
  %v4783 = vadd.f32 %v4574, %v4782
  %4784 = vmatmul.f32.gmra.mxu0 %v3944
  %v4785 = vpop.f32.mrf.mxu0
  %v4786 = vadd.f32 %v4577, %v4785
  %4787 = vmatmul.f32.gmra.mxu0 %v3948
  %v4788 = vpop.f32.mrf.mxu0
  %v4789 = vadd.f32 %v4580, %v4788
  %4790 = vmatmul.f32.gmra.mxu0 %v3952
  %v4791 = vpop.f32.mrf.mxu0
  %v4792 = vadd.f32 %v4583, %v4791
  %4793 = vmatmul.f32.gmra.mxu0 %v3956
  %v4794 = vpop.f32.mrf.mxu0
  %v4795 = vadd.f32 %v4586, %v4794
  %4796 = vmatmul.f32.gmra.mxu0 %v3960
  %v4797 = vpop.f32.mrf.mxu0
  %v4798 = vadd.f32 %v4589, %v4797
  %4799 = vmatmul.f32.gmra.mxu0 %v3964
  %v4800 = vpop.f32.mrf.mxu0
  %v4801 = vadd.f32 %v4592, %v4800
  %4802 = vmatmul.f32.gmra.mxu0 %v3968
  %v4803 = vpop.f32.mrf.mxu0
  %v4804 = vadd.f32 %v4595, %v4803
  %4805 = vmatmul.f32.gmra.mxu0 %v3972
  %v4806 = vpop.f32.mrf.mxu0
  %v4807 = vadd.f32 %v4598, %v4806
  %4808 = vdwg.mxu0
  %4873 = vrot.lane.b32.xlu0 %v4618, 32
  %v4874 = vpop.permute.xlu0 %4873
  %4875 = vrot.lane.b32.xlu0 %v4621, 32
  %v4876 = vpop.permute.xlu0 %4875
  %4877 = vrot.lane.b32.xlu0 %v4624, 32
  %v4878 = vpop.permute.xlu0 %4877
  %4879 = vrot.lane.b32.xlu0 %v4627, 32
  %v4880 = vpop.permute.xlu0 %4879
  %4881 = vrot.lane.b32.xlu0 %v4630, 32
  %v4882 = vpop.permute.xlu0 %4881
  %4883 = vrot.lane.b32.xlu0 %v4633, 32
  %v4884 = vpop.permute.xlu0 %4883
  %4885 = vrot.lane.b32.xlu0 %v4636, 32
  %v4886 = vpop.permute.xlu0 %4885
  %4887 = vrot.lane.b32.xlu0 %v4639, 32
  %v4888 = vpop.permute.xlu0 %4887
  %4889 = vrot.lane.b32.xlu0 %v4642, 32
  %v4890 = vpop.permute.xlu0 %4889
  %4891 = vrot.lane.b32.xlu0 %v4645, 32
  %v4892 = vpop.permute.xlu0 %4891
  %4893 = vrot.lane.b32.xlu0 %v4648, 32
  %v4894 = vpop.permute.xlu0 %4893
  %4895 = vrot.lane.b32.xlu0 %v4651, 32
  %v4896 = vpop.permute.xlu0 %4895
  %4897 = vrot.lane.b32.xlu0 %v4654, 32
  %v4898 = vpop.permute.xlu0 %4897
  %4899 = vrot.lane.b32.xlu0 %v4657, 32
  %v4900 = vpop.permute.xlu0 %4899
  %4901 = vrot.lane.b32.xlu0 %v4660, 32
  %v4902 = vpop.permute.xlu0 %4901
  %4903 = vrot.lane.b32.xlu0 %v4663, 32
  %v4904 = vpop.permute.xlu0 %4903
  %4905 = vrot.lane.b32.xlu0 %v4666, 32
  %v4906 = vpop.permute.xlu0 %4905
  %4907 = vrot.lane.b32.xlu0 %v4669, 32
  %v4908 = vpop.permute.xlu0 %4907
  %4909 = vrot.lane.b32.xlu0 %v4672, 32
  %v4910 = vpop.permute.xlu0 %4909
  %4911 = vrot.lane.b32.xlu0 %v4675, 32
  %v4912 = vpop.permute.xlu0 %4911
  %4913 = vrot.lane.b32.xlu0 %v4678, 32
  %v4914 = vpop.permute.xlu0 %4913
  %4915 = vrot.lane.b32.xlu0 %v4681, 32
  %v4916 = vpop.permute.xlu0 %4915
  %4917 = vrot.lane.b32.xlu0 %v4684, 32
  %v4918 = vpop.permute.xlu0 %4917
  %4919 = vrot.lane.b32.xlu0 %v4687, 32
  %v4920 = vpop.permute.xlu0 %4919
  %4921 = vrot.lane.b32.xlu0 %v4690, 32
  %v4922 = vpop.permute.xlu0 %4921
  %4923 = vrot.lane.b32.xlu0 %v4693, 32
  %v4924 = vpop.permute.xlu0 %4923
  %4925 = vrot.lane.b32.xlu0 %v4696, 32
  %v4926 = vpop.permute.xlu0 %4925
  %4927 = vrot.lane.b32.xlu0 %v4699, 32
  %v4928 = vpop.permute.xlu0 %4927
  %4929 = vrot.lane.b32.xlu0 %v4702, 32
  %v4930 = vpop.permute.xlu0 %4929
  %4931 = vrot.lane.b32.xlu0 %v4705, 32
  %v4932 = vpop.permute.xlu0 %4931
  %4933 = vrot.lane.b32.xlu0 %v4708, 32
  %v4934 = vpop.permute.xlu0 %4933
  %4935 = vrot.lane.b32.xlu0 %v4711, 32
  %v4936 = vpop.permute.xlu0 %4935
  %4937 = vrot.lane.b32.xlu0 %v4714, 32
  %v4938 = vpop.permute.xlu0 %4937
  %4939 = vrot.lane.b32.xlu0 %v4717, 32
  %v4940 = vpop.permute.xlu0 %4939
  %4941 = vrot.lane.b32.xlu0 %v4720, 32
  %v4942 = vpop.permute.xlu0 %4941
  %4943 = vrot.lane.b32.xlu0 %v4723, 32
  %v4944 = vpop.permute.xlu0 %4943
  %4945 = vrot.lane.b32.xlu0 %v4726, 32
  %v4946 = vpop.permute.xlu0 %4945
  %4947 = vrot.lane.b32.xlu0 %v4729, 32
  %v4948 = vpop.permute.xlu0 %4947
  %4949 = vrot.lane.b32.xlu0 %v4732, 32
  %v4950 = vpop.permute.xlu0 %4949
  %4951 = vrot.lane.b32.xlu0 %v4735, 32
  %v4952 = vpop.permute.xlu0 %4951
  %4953 = vrot.lane.b32.xlu0 %v4738, 32
  %v4954 = vpop.permute.xlu0 %4953
  %4955 = vrot.lane.b32.xlu0 %v4741, 32
  %v4956 = vpop.permute.xlu0 %4955
  %4957 = vrot.lane.b32.xlu0 %v4744, 32
  %v4958 = vpop.permute.xlu0 %4957
  %4959 = vrot.lane.b32.xlu0 %v4747, 32
  %v4960 = vpop.permute.xlu0 %4959
  %4961 = vrot.lane.b32.xlu0 %v4750, 32
  %v4962 = vpop.permute.xlu0 %4961
  %4963 = vrot.lane.b32.xlu0 %v4753, 32
  %v4964 = vpop.permute.xlu0 %4963
  %4965 = vrot.lane.b32.xlu0 %v4756, 32
  %v4966 = vpop.permute.xlu0 %4965
  %4967 = vrot.lane.b32.xlu0 %v4759, 32
  %v4968 = vpop.permute.xlu0 %4967
  %4969 = vrot.lane.b32.xlu0 %v4762, 32
  %v4970 = vpop.permute.xlu0 %4969
  %4971 = vrot.lane.b32.xlu0 %v4765, 32
  %v4972 = vpop.permute.xlu0 %4971
  %4973 = vrot.lane.b32.xlu0 %v4768, 32
  %v4974 = vpop.permute.xlu0 %4973
  %4975 = vrot.lane.b32.xlu0 %v4771, 32
  %v4976 = vpop.permute.xlu0 %4975
  %4977 = vrot.lane.b32.xlu0 %v4774, 32
  %v4978 = vpop.permute.xlu0 %4977
  %4979 = vrot.lane.b32.xlu0 %v4777, 32
  %v4980 = vpop.permute.xlu0 %4979
  %4981 = vrot.lane.b32.xlu0 %v4780, 32
  %v4982 = vpop.permute.xlu0 %4981
  %4983 = vrot.lane.b32.xlu0 %v4783, 32
  %v4984 = vpop.permute.xlu0 %4983
  %4985 = vrot.lane.b32.xlu0 %v4786, 32
  %v4986 = vpop.permute.xlu0 %4985
  %4987 = vrot.lane.b32.xlu0 %v4789, 32
  %v4988 = vpop.permute.xlu0 %4987
  %4989 = vrot.lane.b32.xlu0 %v4792, 32
  %v4990 = vpop.permute.xlu0 %4989
  %4991 = vrot.lane.b32.xlu0 %v4795, 32
  %v4992 = vpop.permute.xlu0 %4991
  %4993 = vrot.lane.b32.xlu0 %v4798, 32
  %v4994 = vpop.permute.xlu0 %4993
  %4995 = vrot.lane.b32.xlu0 %v4801, 32
  %v4996 = vpop.permute.xlu0 %4995
  %4997 = vrot.lane.b32.xlu0 %v4804, 32
  %v4998 = vpop.permute.xlu0 %4997
  %4999 = vrot.lane.b32.xlu0 %v4807, 32
  %v5000 = vpop.permute.xlu0 %4999
  %vm5065 = vcmask 523520
  %5066 = vst.msk [vmem:[#allocation2] sm:$0xff] %vm5065, %v4874
  %5067 = vst.msk [vmem:[#allocation2 + $0x8] sm:$0xff] %vm5065, %v4876
  %5068 = vst.msk [vmem:[#allocation2 + $0x10] sm:$0xff] %vm5065, %v4878
  %5069 = vst.msk [vmem:[#allocation2 + $0x18] sm:$0xff] %vm5065, %v4880
  %5070 = vst.msk [vmem:[#allocation2 + $0x20] sm:$0xff] %vm5065, %v4882
  %5071 = vst.msk [vmem:[#allocation2 + $0x28] sm:$0xff] %vm5065, %v4884
  %5072 = vst.msk [vmem:[#allocation2 + $0x30] sm:$0xff] %vm5065, %v4886
  %5073 = vst.msk [vmem:[#allocation2 + $0x38] sm:$0xff] %vm5065, %v4888
  %5074 = vst.msk [vmem:[#allocation2 + $0x40] sm:$0xff] %vm5065, %v4890
  %5075 = vst.msk [vmem:[#allocation2 + $0x48] sm:$0xff] %vm5065, %v4892
  %5076 = vst.msk [vmem:[#allocation2 + $0x50] sm:$0xff] %vm5065, %v4894
  %5077 = vst.msk [vmem:[#allocation2 + $0x58] sm:$0xff] %vm5065, %v4896
  %5078 = vst.msk [vmem:[#allocation2 + $0x60] sm:$0xff] %vm5065, %v4898
  %5079 = vst.msk [vmem:[#allocation2 + $0x68] sm:$0xff] %vm5065, %v4900
  %5080 = vst.msk [vmem:[#allocation2 + $0x70] sm:$0xff] %vm5065, %v4902
  %5081 = vst.msk [vmem:[#allocation2 + $0x78] sm:$0xff] %vm5065, %v4904
  %5082 = vst.msk [vmem:[#allocation2 + $0x80] sm:$0xff] %vm5065, %v4906
  %5083 = vst.msk [vmem:[#allocation2 + $0x88] sm:$0xff] %vm5065, %v4908
  %5084 = vst.msk [vmem:[#allocation2 + $0x90] sm:$0xff] %vm5065, %v4910
  %5085 = vst.msk [vmem:[#allocation2 + $0x98] sm:$0xff] %vm5065, %v4912
  %5086 = vst.msk [vmem:[#allocation2 + $0xa0] sm:$0xff] %vm5065, %v4914
  %5087 = vst.msk [vmem:[#allocation2 + $0xa8] sm:$0xff] %vm5065, %v4916
  %5088 = vst.msk [vmem:[#allocation2 + $0xb0] sm:$0xff] %vm5065, %v4918
  %5089 = vst.msk [vmem:[#allocation2 + $0xb8] sm:$0xff] %vm5065, %v4920
  %5090 = vst.msk [vmem:[#allocation2 + $0xc0] sm:$0xff] %vm5065, %v4922
  %5091 = vst.msk [vmem:[#allocation2 + $0xc8] sm:$0xff] %vm5065, %v4924
  %5092 = vst.msk [vmem:[#allocation2 + $0xd0] sm:$0xff] %vm5065, %v4926
  %5093 = vst.msk [vmem:[#allocation2 + $0xd8] sm:$0xff] %vm5065, %v4928
  %5094 = vst.msk [vmem:[#allocation2 + $0xe0] sm:$0xff] %vm5065, %v4930
  %5095 = vst.msk [vmem:[#allocation2 + $0xe8] sm:$0xff] %vm5065, %v4932
  %5096 = vst.msk [vmem:[#allocation2 + $0xf0] sm:$0xff] %vm5065, %v4934
  %5097 = vst.msk [vmem:[#allocation2 + $0xf8] sm:$0xff] %vm5065, %v4936
  %5098 = vst.msk [vmem:[#allocation2 + $0x100] sm:$0xff] %vm5065, %v4938
  %5099 = vst.msk [vmem:[#allocation2 + $0x108] sm:$0xff] %vm5065, %v4940
  %5100 = vst.msk [vmem:[#allocation2 + $0x110] sm:$0xff] %vm5065, %v4942
  %5101 = vst.msk [vmem:[#allocation2 + $0x118] sm:$0xff] %vm5065, %v4944
  %5102 = vst.msk [vmem:[#allocation2 + $0x120] sm:$0xff] %vm5065, %v4946
  %5103 = vst.msk [vmem:[#allocation2 + $0x128] sm:$0xff] %vm5065, %v4948
  %5104 = vst.msk [vmem:[#allocation2 + $0x130] sm:$0xff] %vm5065, %v4950
  %5105 = vst.msk [vmem:[#allocation2 + $0x138] sm:$0xff] %vm5065, %v4952
  %5106 = vst.msk [vmem:[#allocation2 + $0x140] sm:$0xff] %vm5065, %v4954
  %5107 = vst.msk [vmem:[#allocation2 + $0x148] sm:$0xff] %vm5065, %v4956
  %5108 = vst.msk [vmem:[#allocation2 + $0x150] sm:$0xff] %vm5065, %v4958
  %5109 = vst.msk [vmem:[#allocation2 + $0x158] sm:$0xff] %vm5065, %v4960
  %5110 = vst.msk [vmem:[#allocation2 + $0x160] sm:$0xff] %vm5065, %v4962
  %5111 = vst.msk [vmem:[#allocation2 + $0x168] sm:$0xff] %vm5065, %v4964
  %5112 = vst.msk [vmem:[#allocation2 + $0x170] sm:$0xff] %vm5065, %v4966
  %5113 = vst.msk [vmem:[#allocation2 + $0x178] sm:$0xff] %vm5065, %v4968
  %5114 = vst.msk [vmem:[#allocation2 + $0x180] sm:$0xff] %vm5065, %v4970
  %5115 = vst.msk [vmem:[#allocation2 + $0x188] sm:$0xff] %vm5065, %v4972
  %5116 = vst.msk [vmem:[#allocation2 + $0x190] sm:$0xff] %vm5065, %v4974
  %5117 = vst.msk [vmem:[#allocation2 + $0x198] sm:$0xff] %vm5065, %v4976
  %5118 = vst.msk [vmem:[#allocation2 + $0x1a0] sm:$0xff] %vm5065, %v4978
  %5119 = vst.msk [vmem:[#allocation2 + $0x1a8] sm:$0xff] %vm5065, %v4980
  %5120 = vst.msk [vmem:[#allocation2 + $0x1b0] sm:$0xff] %vm5065, %v4982
  %5121 = vst.msk [vmem:[#allocation2 + $0x1b8] sm:$0xff] %vm5065, %v4984
  %5122 = vst.msk [vmem:[#allocation2 + $0x1c0] sm:$0xff] %vm5065, %v4986
  %5123 = vst.msk [vmem:[#allocation2 + $0x1c8] sm:$0xff] %vm5065, %v4988
  %5124 = vst.msk [vmem:[#allocation2 + $0x1d0] sm:$0xff] %vm5065, %v4990
  %5125 = vst.msk [vmem:[#allocation2 + $0x1d8] sm:$0xff] %vm5065, %v4992
  %5126 = vst.msk [vmem:[#allocation2 + $0x1e0] sm:$0xff] %vm5065, %v4994
  %5127 = vst.msk [vmem:[#allocation2 + $0x1e8] sm:$0xff] %vm5065, %v4996
  %5128 = vst.msk [vmem:[#allocation2 + $0x1f0] sm:$0xff] %vm5065, %v4998
  %5129 = vst.msk [vmem:[#allocation2 + $0x1f8] sm:$0xff] %vm5065, %v5000
  %v5130 = vld [vmem:[%s0] sm:$0xff]
  %v5131 = vld [vmem:[%s0 + $0x8] sm:$0xff]
  %v5132 = vld [vmem:[%s0 + $0x10] sm:$0xff]
  %v5133 = vld [vmem:[%s0 + $0x18] sm:$0xff]
  %v5134 = vld [vmem:[%s0 + $0x20] sm:$0xff]
  %v5135 = vld [vmem:[%s0 + $0x28] sm:$0xff]
  %v5136 = vld [vmem:[%s0 + $0x30] sm:$0xff]
  %v5137 = vld [vmem:[%s0 + $0x38] sm:$0xff]
  %v5138 = vld [vmem:[%s0 + $0x40] sm:$0xff]
  %v5139 = vld [vmem:[%s0 + $0x48] sm:$0xff]
  %v5140 = vld [vmem:[%s0 + $0x50] sm:$0xff]
  %v5141 = vld [vmem:[%s0 + $0x58] sm:$0xff]
  %v5142 = vld [vmem:[%s0 + $0x60] sm:$0xff]
  %v5143 = vld [vmem:[%s0 + $0x68] sm:$0xff]
  %v5144 = vld [vmem:[%s0 + $0x70] sm:$0xff]
  %v5145 = vld [vmem:[%s0 + $0x78] sm:$0xff]
  %v5146 = vld [vmem:[%s0 + $0x80] sm:$0xff]
  %v5147 = vld [vmem:[%s0 + $0x88] sm:$0xff]
  %v5148 = vld [vmem:[%s0 + $0x90] sm:$0xff]
  %v5149 = vld [vmem:[%s0 + $0x98] sm:$0xff]
  %v5150 = vld [vmem:[%s0 + $0xa0] sm:$0xff]
  %v5151 = vld [vmem:[%s0 + $0xa8] sm:$0xff]
  %v5152 = vld [vmem:[%s0 + $0xb0] sm:$0xff]
  %v5153 = vld [vmem:[%s0 + $0xb8] sm:$0xff]
  %v5154 = vld [vmem:[%s0 + $0xc0] sm:$0xff]
  %v5155 = vld [vmem:[%s0 + $0xc8] sm:$0xff]
  %v5156 = vld [vmem:[%s0 + $0xd0] sm:$0xff]
  %v5157 = vld [vmem:[%s0 + $0xd8] sm:$0xff]
  %v5158 = vld [vmem:[%s0 + $0xe0] sm:$0xff]
  %v5159 = vld [vmem:[%s0 + $0xe8] sm:$0xff]
  %v5160 = vld [vmem:[%s0 + $0xf0] sm:$0xff]
  %v5161 = vld [vmem:[%s0 + $0xf8] sm:$0xff]
  %v5162 = vld [vmem:[%s0 + $0x100] sm:$0xff]
  %v5163 = vld [vmem:[%s0 + $0x108] sm:$0xff]
  %v5164 = vld [vmem:[%s0 + $0x110] sm:$0xff]
  %v5165 = vld [vmem:[%s0 + $0x118] sm:$0xff]
  %v5166 = vld [vmem:[%s0 + $0x120] sm:$0xff]
  %v5167 = vld [vmem:[%s0 + $0x128] sm:$0xff]
  %v5168 = vld [vmem:[%s0 + $0x130] sm:$0xff]
  %v5169 = vld [vmem:[%s0 + $0x138] sm:$0xff]
  %v5170 = vld [vmem:[%s0 + $0x140] sm:$0xff]
  %v5171 = vld [vmem:[%s0 + $0x148] sm:$0xff]
  %v5172 = vld [vmem:[%s0 + $0x150] sm:$0xff]
  %v5173 = vld [vmem:[%s0 + $0x158] sm:$0xff]
  %v5174 = vld [vmem:[%s0 + $0x160] sm:$0xff]
  %v5175 = vld [vmem:[%s0 + $0x168] sm:$0xff]
  %v5176 = vld [vmem:[%s0 + $0x170] sm:$0xff]
  %v5177 = vld [vmem:[%s0 + $0x178] sm:$0xff]
  %v5178 = vld [vmem:[%s0 + $0x180] sm:$0xff]
  %v5179 = vld [vmem:[%s0 + $0x188] sm:$0xff]
  %v5180 = vld [vmem:[%s0 + $0x190] sm:$0xff]
  %v5181 = vld [vmem:[%s0 + $0x198] sm:$0xff]
  %v5182 = vld [vmem:[%s0 + $0x1a0] sm:$0xff]
  %v5183 = vld [vmem:[%s0 + $0x1a8] sm:$0xff]
  %v5184 = vld [vmem:[%s0 + $0x1b0] sm:$0xff]
  %v5185 = vld [vmem:[%s0 + $0x1b8] sm:$0xff]
  %v5186 = vld [vmem:[%s0 + $0x1c0] sm:$0xff]
  %v5187 = vld [vmem:[%s0 + $0x1c8] sm:$0xff]
  %v5188 = vld [vmem:[%s0 + $0x1d0] sm:$0xff]
  %v5189 = vld [vmem:[%s0 + $0x1d8] sm:$0xff]
  %v5190 = vld [vmem:[%s0 + $0x1e0] sm:$0xff]
  %v5191 = vld [vmem:[%s0 + $0x1e8] sm:$0xff]
  %v5192 = vld [vmem:[%s0 + $0x1f0] sm:$0xff]
  %v5193 = vld [vmem:[%s0 + $0x1f8] sm:$0xff]
  %v5194 = vld [vmem:[%s0 + $0x200] sm:$0xff]
  %v5195 = vld [vmem:[%s0 + $0x208] sm:$0xff]
  %v5196 = vld [vmem:[%s0 + $0x210] sm:$0xff]
  %v5197 = vld [vmem:[%s0 + $0x218] sm:$0xff]
  %v5198 = vld [vmem:[%s0 + $0x220] sm:$0xff]
  %v5199 = vld [vmem:[%s0 + $0x228] sm:$0xff]
  %v5200 = vld [vmem:[%s0 + $0x230] sm:$0xff]
  %v5201 = vld [vmem:[%s0 + $0x238] sm:$0xff]
  %v5202 = vld [vmem:[%s0 + $0x240] sm:$0xff]
  %v5203 = vld [vmem:[%s0 + $0x248] sm:$0xff]
  %v5204 = vld [vmem:[%s0 + $0x250] sm:$0xff]
  %v5205 = vld [vmem:[%s0 + $0x258] sm:$0xff]
  %v5206 = vld [vmem:[%s0 + $0x260] sm:$0xff]
  %v5207 = vld [vmem:[%s0 + $0x268] sm:$0xff]
  %v5208 = vld [vmem:[%s0 + $0x270] sm:$0xff]
  %v5209 = vld [vmem:[%s0 + $0x278] sm:$0xff]
  %v5210 = vld [vmem:[%s0 + $0x280] sm:$0xff]
  %v5211 = vld [vmem:[%s0 + $0x288] sm:$0xff]
  %v5212 = vld [vmem:[%s0 + $0x290] sm:$0xff]
  %v5213 = vld [vmem:[%s0 + $0x298] sm:$0xff]
  %v5214 = vld [vmem:[%s0 + $0x2a0] sm:$0xff]
  %v5215 = vld [vmem:[%s0 + $0x2a8] sm:$0xff]
  %v5216 = vld [vmem:[%s0 + $0x2b0] sm:$0xff]
  %v5217 = vld [vmem:[%s0 + $0x2b8] sm:$0xff]
  %v5218 = vld [vmem:[%s0 + $0x2c0] sm:$0xff]
  %v5219 = vld [vmem:[%s0 + $0x2c8] sm:$0xff]
  %v5220 = vld [vmem:[%s0 + $0x2d0] sm:$0xff]
  %v5221 = vld [vmem:[%s0 + $0x2d8] sm:$0xff]
  %v5222 = vld [vmem:[%s0 + $0x2e0] sm:$0xff]
  %v5223 = vld [vmem:[%s0 + $0x2e8] sm:$0xff]
  %v5224 = vld [vmem:[%s0 + $0x2f0] sm:$0xff]
  %v5225 = vld [vmem:[%s0 + $0x2f8] sm:$0xff]
  %v5226 = vld [vmem:[%s0 + $0x300] sm:$0xff]
  %v5227 = vld [vmem:[%s0 + $0x308] sm:$0xff]
  %v5228 = vld [vmem:[%s0 + $0x310] sm:$0xff]
  %v5229 = vld [vmem:[%s0 + $0x318] sm:$0xff]
  %v5230 = vld [vmem:[%s0 + $0x320] sm:$0xff]
  %v5231 = vld [vmem:[%s0 + $0x328] sm:$0xff]
  %v5232 = vld [vmem:[%s0 + $0x330] sm:$0xff]
  %v5233 = vld [vmem:[%s0 + $0x338] sm:$0xff]
  %v5234 = vld [vmem:[%s0 + $0x340] sm:$0xff]
  %v5235 = vld [vmem:[%s0 + $0x348] sm:$0xff]
  %v5236 = vld [vmem:[%s0 + $0x350] sm:$0xff]
  %v5237 = vld [vmem:[%s0 + $0x358] sm:$0xff]
  %v5238 = vld [vmem:[%s0 + $0x360] sm:$0xff]
  %v5239 = vld [vmem:[%s0 + $0x368] sm:$0xff]
  %v5240 = vld [vmem:[%s0 + $0x370] sm:$0xff]
  %v5241 = vld [vmem:[%s0 + $0x378] sm:$0xff]
  %v5242 = vld [vmem:[%s0 + $0x380] sm:$0xff]
  %v5243 = vld [vmem:[%s0 + $0x388] sm:$0xff]
  %v5244 = vld [vmem:[%s0 + $0x390] sm:$0xff]
  %v5245 = vld [vmem:[%s0 + $0x398] sm:$0xff]
  %v5246 = vld [vmem:[%s0 + $0x3a0] sm:$0xff]
  %v5247 = vld [vmem:[%s0 + $0x3a8] sm:$0xff]
  %v5248 = vld [vmem:[%s0 + $0x3b0] sm:$0xff]
  %v5249 = vld [vmem:[%s0 + $0x3b8] sm:$0xff]
  %v5250 = vld [vmem:[%s0 + $0x3c0] sm:$0xff]
  %v5251 = vld [vmem:[%s0 + $0x3c8] sm:$0xff]
  %v5252 = vld [vmem:[%s0 + $0x3d0] sm:$0xff]
  %v5253 = vld [vmem:[%s0 + $0x3d8] sm:$0xff]
  %v5254 = vld [vmem:[%s0 + $0x3e0] sm:$0xff]
  %v5255 = vld [vmem:[%s0 + $0x3e8] sm:$0xff]
  %v5256 = vld [vmem:[%s0 + $0x3f0] sm:$0xff]
  %v5257 = vld [vmem:[%s0 + $0x3f8] sm:$0xff]
  %v5258 = vld [vmem:[%s0 + $0x400] sm:$0xff]
  %v5259 = vld [vmem:[%s0 + $0x408] sm:$0xff]
  %v5260 = vld [vmem:[%s0 + $0x410] sm:$0xff]
  %v5261 = vld [vmem:[%s0 + $0x418] sm:$0xff]
  %v5262 = vld [vmem:[%s0 + $0x420] sm:$0xff]
  %v5263 = vld [vmem:[%s0 + $0x428] sm:$0xff]
  %v5264 = vld [vmem:[%s0 + $0x430] sm:$0xff]
  %v5265 = vld [vmem:[%s0 + $0x438] sm:$0xff]
  %v5266 = vld [vmem:[%s0 + $0x440] sm:$0xff]
  %v5267 = vld [vmem:[%s0 + $0x448] sm:$0xff]
  %v5268 = vld [vmem:[%s0 + $0x450] sm:$0xff]
  %v5269 = vld [vmem:[%s0 + $0x458] sm:$0xff]
  %v5270 = vld [vmem:[%s0 + $0x460] sm:$0xff]
  %v5271 = vld [vmem:[%s0 + $0x468] sm:$0xff]
  %v5272 = vld [vmem:[%s0 + $0x470] sm:$0xff]
  %v5273 = vld [vmem:[%s0 + $0x478] sm:$0xff]
  %v5274 = vld [vmem:[%s0 + $0x480] sm:$0xff]
  %v5275 = vld [vmem:[%s0 + $0x488] sm:$0xff]
  %v5276 = vld [vmem:[%s0 + $0x490] sm:$0xff]
  %v5277 = vld [vmem:[%s0 + $0x498] sm:$0xff]
  %v5278 = vld [vmem:[%s0 + $0x4a0] sm:$0xff]
  %v5279 = vld [vmem:[%s0 + $0x4a8] sm:$0xff]
  %v5280 = vld [vmem:[%s0 + $0x4b0] sm:$0xff]
  %v5281 = vld [vmem:[%s0 + $0x4b8] sm:$0xff]
  %v5282 = vld [vmem:[%s0 + $0x4c0] sm:$0xff]
  %v5283 = vld [vmem:[%s0 + $0x4c8] sm:$0xff]
  %v5284 = vld [vmem:[%s0 + $0x4d0] sm:$0xff]
  %v5285 = vld [vmem:[%s0 + $0x4d8] sm:$0xff]
  %v5286 = vld [vmem:[%s0 + $0x4e0] sm:$0xff]
  %v5287 = vld [vmem:[%s0 + $0x4e8] sm:$0xff]
  %v5288 = vld [vmem:[%s0 + $0x4f0] sm:$0xff]
  %v5289 = vld [vmem:[%s0 + $0x4f8] sm:$0xff]
  %v5290 = vld [vmem:[%s0 + $0x500] sm:$0xff]
  %v5291 = vld [vmem:[%s0 + $0x508] sm:$0xff]
  %v5292 = vld [vmem:[%s0 + $0x510] sm:$0xff]
  %v5293 = vld [vmem:[%s0 + $0x518] sm:$0xff]
  %v5294 = vld [vmem:[%s0 + $0x520] sm:$0xff]
  %v5295 = vld [vmem:[%s0 + $0x528] sm:$0xff]
  %v5296 = vld [vmem:[%s0 + $0x530] sm:$0xff]
  %v5297 = vld [vmem:[%s0 + $0x538] sm:$0xff]
  %v5298 = vld [vmem:[%s0 + $0x540] sm:$0xff]
  %v5299 = vld [vmem:[%s0 + $0x548] sm:$0xff]
  %v5300 = vld [vmem:[%s0 + $0x550] sm:$0xff]
  %v5301 = vld [vmem:[%s0 + $0x558] sm:$0xff]
  %v5302 = vld [vmem:[%s0 + $0x560] sm:$0xff]
  %v5303 = vld [vmem:[%s0 + $0x568] sm:$0xff]
  %v5304 = vld [vmem:[%s0 + $0x570] sm:$0xff]
  %v5305 = vld [vmem:[%s0 + $0x578] sm:$0xff]
  %v5306 = vld [vmem:[%s0 + $0x580] sm:$0xff]
  %v5307 = vld [vmem:[%s0 + $0x588] sm:$0xff]
  %v5308 = vld [vmem:[%s0 + $0x590] sm:$0xff]
  %v5309 = vld [vmem:[%s0 + $0x598] sm:$0xff]
  %v5310 = vld [vmem:[%s0 + $0x5a0] sm:$0xff]
  %v5311 = vld [vmem:[%s0 + $0x5a8] sm:$0xff]
  %v5312 = vld [vmem:[%s0 + $0x5b0] sm:$0xff]
  %v5313 = vld [vmem:[%s0 + $0x5b8] sm:$0xff]
  %v5314 = vld [vmem:[%s0 + $0x5c0] sm:$0xff]
  %v5315 = vld [vmem:[%s0 + $0x5c8] sm:$0xff]
  %v5316 = vld [vmem:[%s0 + $0x5d0] sm:$0xff]
  %v5317 = vld [vmem:[%s0 + $0x5d8] sm:$0xff]
  %v5318 = vld [vmem:[%s0 + $0x5e0] sm:$0xff]
  %v5319 = vld [vmem:[%s0 + $0x5e8] sm:$0xff]
  %v5320 = vld [vmem:[%s0 + $0x5f0] sm:$0xff]
  %v5321 = vld [vmem:[%s0 + $0x5f8] sm:$0xff]
  %v5322 = vld [vmem:[%s0 + $0x600] sm:$0xff]
  %v5323 = vld [vmem:[%s0 + $0x608] sm:$0xff]
  %v5324 = vld [vmem:[%s0 + $0x610] sm:$0xff]
  %v5325 = vld [vmem:[%s0 + $0x618] sm:$0xff]
  %v5326 = vld [vmem:[%s0 + $0x620] sm:$0xff]
  %v5327 = vld [vmem:[%s0 + $0x628] sm:$0xff]
  %v5328 = vld [vmem:[%s0 + $0x630] sm:$0xff]
  %v5329 = vld [vmem:[%s0 + $0x638] sm:$0xff]
  %v5330 = vld [vmem:[%s0 + $0x640] sm:$0xff]
  %v5331 = vld [vmem:[%s0 + $0x648] sm:$0xff]
  %v5332 = vld [vmem:[%s0 + $0x650] sm:$0xff]
  %v5333 = vld [vmem:[%s0 + $0x658] sm:$0xff]
  %v5334 = vld [vmem:[%s0 + $0x660] sm:$0xff]
  %v5335 = vld [vmem:[%s0 + $0x668] sm:$0xff]
  %v5336 = vld [vmem:[%s0 + $0x670] sm:$0xff]
  %v5337 = vld [vmem:[%s0 + $0x678] sm:$0xff]
  %v5338 = vld [vmem:[%s0 + $0x680] sm:$0xff]
  %v5339 = vld [vmem:[%s0 + $0x688] sm:$0xff]
  %v5340 = vld [vmem:[%s0 + $0x690] sm:$0xff]
  %v5341 = vld [vmem:[%s0 + $0x698] sm:$0xff]
  %v5342 = vld [vmem:[%s0 + $0x6a0] sm:$0xff]
  %v5343 = vld [vmem:[%s0 + $0x6a8] sm:$0xff]
  %v5344 = vld [vmem:[%s0 + $0x6b0] sm:$0xff]
  %v5345 = vld [vmem:[%s0 + $0x6b8] sm:$0xff]
  %v5346 = vld [vmem:[%s0 + $0x6c0] sm:$0xff]
  %v5347 = vld [vmem:[%s0 + $0x6c8] sm:$0xff]
  %v5348 = vld [vmem:[%s0 + $0x6d0] sm:$0xff]
  %v5349 = vld [vmem:[%s0 + $0x6d8] sm:$0xff]
  %v5350 = vld [vmem:[%s0 + $0x6e0] sm:$0xff]
  %v5351 = vld [vmem:[%s0 + $0x6e8] sm:$0xff]
  %v5352 = vld [vmem:[%s0 + $0x6f0] sm:$0xff]
  %v5353 = vld [vmem:[%s0 + $0x6f8] sm:$0xff]
  %v5354 = vld [vmem:[%s0 + $0x700] sm:$0xff]
  %v5355 = vld [vmem:[%s0 + $0x708] sm:$0xff]
  %v5356 = vld [vmem:[%s0 + $0x710] sm:$0xff]
  %v5357 = vld [vmem:[%s0 + $0x718] sm:$0xff]
  %v5358 = vld [vmem:[%s0 + $0x720] sm:$0xff]
  %v5359 = vld [vmem:[%s0 + $0x728] sm:$0xff]
  %v5360 = vld [vmem:[%s0 + $0x730] sm:$0xff]
  %v5361 = vld [vmem:[%s0 + $0x738] sm:$0xff]
  %v5362 = vld [vmem:[%s0 + $0x740] sm:$0xff]
  %v5363 = vld [vmem:[%s0 + $0x748] sm:$0xff]
  %v5364 = vld [vmem:[%s0 + $0x750] sm:$0xff]
  %v5365 = vld [vmem:[%s0 + $0x758] sm:$0xff]
  %v5366 = vld [vmem:[%s0 + $0x760] sm:$0xff]
  %v5367 = vld [vmem:[%s0 + $0x768] sm:$0xff]
  %v5368 = vld [vmem:[%s0 + $0x770] sm:$0xff]
  %v5369 = vld [vmem:[%s0 + $0x778] sm:$0xff]
  %v5370 = vld [vmem:[%s0 + $0x780] sm:$0xff]
  %v5371 = vld [vmem:[%s0 + $0x788] sm:$0xff]
  %v5372 = vld [vmem:[%s0 + $0x790] sm:$0xff]
  %v5373 = vld [vmem:[%s0 + $0x798] sm:$0xff]
  %v5374 = vld [vmem:[%s0 + $0x7a0] sm:$0xff]
  %v5375 = vld [vmem:[%s0 + $0x7a8] sm:$0xff]
  %v5376 = vld [vmem:[%s0 + $0x7b0] sm:$0xff]
  %v5377 = vld [vmem:[%s0 + $0x7b8] sm:$0xff]
  %v5378 = vld [vmem:[%s0 + $0x7c0] sm:$0xff]
  %v5379 = vld [vmem:[%s0 + $0x7c8] sm:$0xff]
  %v5380 = vld [vmem:[%s0 + $0x7d0] sm:$0xff]
  %v5381 = vld [vmem:[%s0 + $0x7d8] sm:$0xff]
  %v5382 = vld [vmem:[%s0 + $0x7e0] sm:$0xff]
  %v5383 = vld [vmem:[%s0 + $0x7e8] sm:$0xff]
  %v5384 = vld [vmem:[%s0 + $0x7f0] sm:$0xff]
  %v5385 = vld [vmem:[%s0 + $0x7f8] sm:$0xff]
  %v5386 = vadd.f32 %v4618, %v4618
  %v5387 = vadd.f32 %v4621, %v4621
  %v5388 = vadd.f32 %v4624, %v4624
  %v5389 = vadd.f32 %v4627, %v4627
  %v5390 = vadd.f32 %v4630, %v4630
  %v5391 = vadd.f32 %v4633, %v4633
  %v5392 = vadd.f32 %v4636, %v4636
  %v5393 = vadd.f32 %v4639, %v4639
  %v5394 = vadd.f32 %v4642, %v4642
  %v5395 = vadd.f32 %v4645, %v4645
  %v5396 = vadd.f32 %v4648, %v4648
  %v5397 = vadd.f32 %v4651, %v4651
  %v5398 = vadd.f32 %v4654, %v4654
  %v5399 = vadd.f32 %v4657, %v4657
  %v5400 = vadd.f32 %v4660, %v4660
  %v5401 = vadd.f32 %v4663, %v4663
  %v5402 = vadd.f32 %v4666, %v4666
  %v5403 = vadd.f32 %v4669, %v4669
  %v5404 = vadd.f32 %v4672, %v4672
  %v5405 = vadd.f32 %v4675, %v4675
  %v5406 = vadd.f32 %v4678, %v4678
  %v5407 = vadd.f32 %v4681, %v4681
  %v5408 = vadd.f32 %v4684, %v4684
  %v5409 = vadd.f32 %v4687, %v4687
  %v5410 = vadd.f32 %v4690, %v4690
  %v5411 = vadd.f32 %v4693, %v4693
  %v5412 = vadd.f32 %v4696, %v4696
  %v5413 = vadd.f32 %v4699, %v4699
  %v5414 = vadd.f32 %v4702, %v4702
  %v5415 = vadd.f32 %v4705, %v4705
  %v5416 = vadd.f32 %v4708, %v4708
  %v5417 = vadd.f32 %v4711, %v4711
  %v5418 = vadd.f32 %v4714, %v4714
  %v5419 = vadd.f32 %v4717, %v4717
  %v5420 = vadd.f32 %v4720, %v4720
  %v5421 = vadd.f32 %v4723, %v4723
  %v5422 = vadd.f32 %v4726, %v4726
  %v5423 = vadd.f32 %v4729, %v4729
  %v5424 = vadd.f32 %v4732, %v4732
  %v5425 = vadd.f32 %v4735, %v4735
  %v5426 = vadd.f32 %v4738, %v4738
  %v5427 = vadd.f32 %v4741, %v4741
  %v5428 = vadd.f32 %v4744, %v4744
  %v5429 = vadd.f32 %v4747, %v4747
  %v5430 = vadd.f32 %v4750, %v4750
  %v5431 = vadd.f32 %v4753, %v4753
  %v5432 = vadd.f32 %v4756, %v4756
  %v5433 = vadd.f32 %v4759, %v4759
  %v5434 = vadd.f32 %v4762, %v4762
  %v5435 = vadd.f32 %v4765, %v4765
  %v5436 = vadd.f32 %v4768, %v4768
  %v5437 = vadd.f32 %v4771, %v4771
  %v5438 = vadd.f32 %v4774, %v4774
  %v5439 = vadd.f32 %v4777, %v4777
  %v5440 = vadd.f32 %v4780, %v4780
  %v5441 = vadd.f32 %v4783, %v4783
  %v5442 = vadd.f32 %v4786, %v4786
  %v5443 = vadd.f32 %v4789, %v4789
  %v5444 = vadd.f32 %v4792, %v4792
  %v5445 = vadd.f32 %v4795, %v4795
  %v5446 = vadd.f32 %v4798, %v4798
  %v5447 = vadd.f32 %v4801, %v4801
  %v5448 = vadd.f32 %v4804, %v4804
  %v5449 = vadd.f32 %v4807, %v4807
  %5450 = vmatpush.msra.mxu0 %v5401
  %5451 = vmatpush.msra.mxu0 %v5400
  %5452 = vmatpush.msra.mxu0 %v5399
  %5453 = vmatpush.msra.mxu0 %v5398
  %5454 = vmatpush.msra.mxu0 %v5397
  %5455 = vmatpush.msra.mxu0 %v5396
  %5456 = vmatpush.msra.mxu0 %v5395
  %5457 = vmatpush.msra.mxu0 %v5394
  %5458 = vmatpush.msra.mxu0 %v5393
  %5459 = vmatpush.msra.mxu0 %v5392
  %5460 = vmatpush.msra.mxu0 %v5391
  %5461 = vmatpush.msra.mxu0 %v5390
  %5462 = vmatpush.msra.mxu0 %v5389
  %5463 = vmatpush.msra.mxu0 %v5388
  %5464 = vmatpush.msra.mxu0 %v5387
  %5465 = vmatpush.msra.mxu0 %v5386
  %5466 = vmatmul.f32.gmra.mxu0 %v5130
  %v5467 = vpop.f32.mrf.mxu0
  %v5468 = vadd.f32 0.0, %v5467
  %5469 = vmatmul.f32.gmra.mxu0 %v5134
  %v5470 = vpop.f32.mrf.mxu0
  %v5471 = vadd.f32 0.0, %v5470
  %5472 = vmatmul.f32.gmra.mxu0 %v5138
  %v5473 = vpop.f32.mrf.mxu0
  %v5474 = vadd.f32 0.0, %v5473
  %5475 = vmatmul.f32.gmra.mxu0 %v5142
  %v5476 = vpop.f32.mrf.mxu0
  %v5477 = vadd.f32 0.0, %v5476
  %5478 = vmatmul.f32.gmra.mxu0 %v5146
  %v5479 = vpop.f32.mrf.mxu0
  %v5480 = vadd.f32 0.0, %v5479
  %5481 = vmatmul.f32.gmra.mxu0 %v5150
  %v5482 = vpop.f32.mrf.mxu0
  %v5483 = vadd.f32 0.0, %v5482
  %5484 = vmatmul.f32.gmra.mxu0 %v5154
  %v5485 = vpop.f32.mrf.mxu0
  %v5486 = vadd.f32 0.0, %v5485
  %5487 = vmatmul.f32.gmra.mxu0 %v5158
  %v5488 = vpop.f32.mrf.mxu0
  %v5489 = vadd.f32 0.0, %v5488
  %5490 = vmatmul.f32.gmra.mxu0 %v5162
  %v5491 = vpop.f32.mrf.mxu0
  %v5492 = vadd.f32 0.0, %v5491
  %5493 = vmatmul.f32.gmra.mxu0 %v5166
  %v5494 = vpop.f32.mrf.mxu0
  %v5495 = vadd.f32 0.0, %v5494
  %5496 = vmatmul.f32.gmra.mxu0 %v5170
  %v5497 = vpop.f32.mrf.mxu0
  %v5498 = vadd.f32 0.0, %v5497
  %5499 = vmatmul.f32.gmra.mxu0 %v5174
  %v5500 = vpop.f32.mrf.mxu0
  %v5501 = vadd.f32 0.0, %v5500
  %5502 = vmatmul.f32.gmra.mxu0 %v5178
  %v5503 = vpop.f32.mrf.mxu0
  %v5504 = vadd.f32 0.0, %v5503
  %5505 = vmatmul.f32.gmra.mxu0 %v5182
  %v5506 = vpop.f32.mrf.mxu0
  %v5507 = vadd.f32 0.0, %v5506
  %5508 = vmatmul.f32.gmra.mxu0 %v5186
  %v5509 = vpop.f32.mrf.mxu0
  %v5510 = vadd.f32 0.0, %v5509
  %5511 = vmatmul.f32.gmra.mxu0 %v5190
  %v5512 = vpop.f32.mrf.mxu0
  %v5513 = vadd.f32 0.0, %v5512
  %5514 = vmatmul.f32.gmra.mxu0 %v5194
  %v5515 = vpop.f32.mrf.mxu0
  %v5516 = vadd.f32 0.0, %v5515
  %5517 = vmatmul.f32.gmra.mxu0 %v5198
  %v5518 = vpop.f32.mrf.mxu0
  %v5519 = vadd.f32 0.0, %v5518
  %5520 = vmatmul.f32.gmra.mxu0 %v5202
  %v5521 = vpop.f32.mrf.mxu0
  %v5522 = vadd.f32 0.0, %v5521
  %5523 = vmatmul.f32.gmra.mxu0 %v5206
  %v5524 = vpop.f32.mrf.mxu0
  %v5525 = vadd.f32 0.0, %v5524
  %5526 = vmatmul.f32.gmra.mxu0 %v5210
  %v5527 = vpop.f32.mrf.mxu0
  %v5528 = vadd.f32 0.0, %v5527
  %5529 = vmatmul.f32.gmra.mxu0 %v5214
  %v5530 = vpop.f32.mrf.mxu0
  %v5531 = vadd.f32 0.0, %v5530
  %5532 = vmatmul.f32.gmra.mxu0 %v5218
  %v5533 = vpop.f32.mrf.mxu0
  %v5534 = vadd.f32 0.0, %v5533
  %5535 = vmatmul.f32.gmra.mxu0 %v5222
  %v5536 = vpop.f32.mrf.mxu0
  %v5537 = vadd.f32 0.0, %v5536
  %5538 = vmatmul.f32.gmra.mxu0 %v5226
  %v5539 = vpop.f32.mrf.mxu0
  %v5540 = vadd.f32 0.0, %v5539
  %5541 = vmatmul.f32.gmra.mxu0 %v5230
  %v5542 = vpop.f32.mrf.mxu0
  %v5543 = vadd.f32 0.0, %v5542
  %5544 = vmatmul.f32.gmra.mxu0 %v5234
  %v5545 = vpop.f32.mrf.mxu0
  %v5546 = vadd.f32 0.0, %v5545
  %5547 = vmatmul.f32.gmra.mxu0 %v5238
  %v5548 = vpop.f32.mrf.mxu0
  %v5549 = vadd.f32 0.0, %v5548
  %5550 = vmatmul.f32.gmra.mxu0 %v5242
  %v5551 = vpop.f32.mrf.mxu0
  %v5552 = vadd.f32 0.0, %v5551
  %5553 = vmatmul.f32.gmra.mxu0 %v5246
  %v5554 = vpop.f32.mrf.mxu0
  %v5555 = vadd.f32 0.0, %v5554
  %5556 = vmatmul.f32.gmra.mxu0 %v5250
  %v5557 = vpop.f32.mrf.mxu0
  %v5558 = vadd.f32 0.0, %v5557
  %5559 = vmatmul.f32.gmra.mxu0 %v5254
  %v5560 = vpop.f32.mrf.mxu0
  %v5561 = vadd.f32 0.0, %v5560
  %5562 = vmatmul.f32.gmra.mxu0 %v5258
  %v5563 = vpop.f32.mrf.mxu0
  %v5564 = vadd.f32 0.0, %v5563
  %5565 = vmatmul.f32.gmra.mxu0 %v5262
  %v5566 = vpop.f32.mrf.mxu0
  %v5567 = vadd.f32 0.0, %v5566
  %5568 = vmatmul.f32.gmra.mxu0 %v5266
  %v5569 = vpop.f32.mrf.mxu0
  %v5570 = vadd.f32 0.0, %v5569
  %5571 = vmatmul.f32.gmra.mxu0 %v5270
  %v5572 = vpop.f32.mrf.mxu0
  %v5573 = vadd.f32 0.0, %v5572
  %5574 = vmatmul.f32.gmra.mxu0 %v5274
  %v5575 = vpop.f32.mrf.mxu0
  %v5576 = vadd.f32 0.0, %v5575
  %5577 = vmatmul.f32.gmra.mxu0 %v5278
  %v5578 = vpop.f32.mrf.mxu0
  %v5579 = vadd.f32 0.0, %v5578
  %5580 = vmatmul.f32.gmra.mxu0 %v5282
  %v5581 = vpop.f32.mrf.mxu0
  %v5582 = vadd.f32 0.0, %v5581
  %5583 = vmatmul.f32.gmra.mxu0 %v5286
  %v5584 = vpop.f32.mrf.mxu0
  %v5585 = vadd.f32 0.0, %v5584
  %5586 = vmatmul.f32.gmra.mxu0 %v5290
  %v5587 = vpop.f32.mrf.mxu0
  %v5588 = vadd.f32 0.0, %v5587
  %5589 = vmatmul.f32.gmra.mxu0 %v5294
  %v5590 = vpop.f32.mrf.mxu0
  %v5591 = vadd.f32 0.0, %v5590
  %5592 = vmatmul.f32.gmra.mxu0 %v5298
  %v5593 = vpop.f32.mrf.mxu0
  %v5594 = vadd.f32 0.0, %v5593
  %5595 = vmatmul.f32.gmra.mxu0 %v5302
  %v5596 = vpop.f32.mrf.mxu0
  %v5597 = vadd.f32 0.0, %v5596
  %5598 = vmatmul.f32.gmra.mxu0 %v5306
  %v5599 = vpop.f32.mrf.mxu0
  %v5600 = vadd.f32 0.0, %v5599
  %5601 = vmatmul.f32.gmra.mxu0 %v5310
  %v5602 = vpop.f32.mrf.mxu0
  %v5603 = vadd.f32 0.0, %v5602
  %5604 = vmatmul.f32.gmra.mxu0 %v5314
  %v5605 = vpop.f32.mrf.mxu0
  %v5606 = vadd.f32 0.0, %v5605
  %5607 = vmatmul.f32.gmra.mxu0 %v5318
  %v5608 = vpop.f32.mrf.mxu0
  %v5609 = vadd.f32 0.0, %v5608
  %5610 = vmatmul.f32.gmra.mxu0 %v5322
  %v5611 = vpop.f32.mrf.mxu0
  %v5612 = vadd.f32 0.0, %v5611
  %5613 = vmatmul.f32.gmra.mxu0 %v5326
  %v5614 = vpop.f32.mrf.mxu0
  %v5615 = vadd.f32 0.0, %v5614
  %5616 = vmatmul.f32.gmra.mxu0 %v5330
  %v5617 = vpop.f32.mrf.mxu0
  %v5618 = vadd.f32 0.0, %v5617
  %5619 = vmatmul.f32.gmra.mxu0 %v5334
  %v5620 = vpop.f32.mrf.mxu0
  %v5621 = vadd.f32 0.0, %v5620
  %5622 = vmatmul.f32.gmra.mxu0 %v5338
  %v5623 = vpop.f32.mrf.mxu0
  %v5624 = vadd.f32 0.0, %v5623
  %5625 = vmatmul.f32.gmra.mxu0 %v5342
  %v5626 = vpop.f32.mrf.mxu0
  %v5627 = vadd.f32 0.0, %v5626
  %5628 = vmatmul.f32.gmra.mxu0 %v5346
  %v5629 = vpop.f32.mrf.mxu0
  %v5630 = vadd.f32 0.0, %v5629
  %5631 = vmatmul.f32.gmra.mxu0 %v5350
  %v5632 = vpop.f32.mrf.mxu0
  %v5633 = vadd.f32 0.0, %v5632
  %5634 = vmatmul.f32.gmra.mxu0 %v5354
  %v5635 = vpop.f32.mrf.mxu0
  %v5636 = vadd.f32 0.0, %v5635
  %5637 = vmatmul.f32.gmra.mxu0 %v5358
  %v5638 = vpop.f32.mrf.mxu0
  %v5639 = vadd.f32 0.0, %v5638
  %5640 = vmatmul.f32.gmra.mxu0 %v5362
  %v5641 = vpop.f32.mrf.mxu0
  %v5642 = vadd.f32 0.0, %v5641
  %5643 = vmatmul.f32.gmra.mxu0 %v5366
  %v5644 = vpop.f32.mrf.mxu0
  %v5645 = vadd.f32 0.0, %v5644
  %5646 = vmatmul.f32.gmra.mxu0 %v5370
  %v5647 = vpop.f32.mrf.mxu0
  %v5648 = vadd.f32 0.0, %v5647
  %5649 = vmatmul.f32.gmra.mxu0 %v5374
  %v5650 = vpop.f32.mrf.mxu0
  %v5651 = vadd.f32 0.0, %v5650
  %5652 = vmatmul.f32.gmra.mxu0 %v5378
  %v5653 = vpop.f32.mrf.mxu0
  %v5654 = vadd.f32 0.0, %v5653
  %5655 = vmatmul.f32.gmra.mxu0 %v5382
  %v5656 = vpop.f32.mrf.mxu0
  %v5657 = vadd.f32 0.0, %v5656
  %5658 = vdwg.mxu0
  %5659 = vmatpush.msra.mxu0 %v5417
  %5660 = vmatpush.msra.mxu0 %v5416
  %5661 = vmatpush.msra.mxu0 %v5415
  %5662 = vmatpush.msra.mxu0 %v5414
  %5663 = vmatpush.msra.mxu0 %v5413
  %5664 = vmatpush.msra.mxu0 %v5412
  %5665 = vmatpush.msra.mxu0 %v5411
  %5666 = vmatpush.msra.mxu0 %v5410
  %5667 = vmatpush.msra.mxu0 %v5409
  %5668 = vmatpush.msra.mxu0 %v5408
  %5669 = vmatpush.msra.mxu0 %v5407
  %5670 = vmatpush.msra.mxu0 %v5406
  %5671 = vmatpush.msra.mxu0 %v5405
  %5672 = vmatpush.msra.mxu0 %v5404
  %5673 = vmatpush.msra.mxu0 %v5403
  %5674 = vmatpush.msra.mxu0 %v5402
  %5675 = vmatmul.f32.gmra.mxu0 %v5131
  %v5676 = vpop.f32.mrf.mxu0
  %v5677 = vadd.f32 %v5468, %v5676
  %5678 = vmatmul.f32.gmra.mxu0 %v5135
  %v5679 = vpop.f32.mrf.mxu0
  %v5680 = vadd.f32 %v5471, %v5679
  %5681 = vmatmul.f32.gmra.mxu0 %v5139
  %v5682 = vpop.f32.mrf.mxu0
  %v5683 = vadd.f32 %v5474, %v5682
  %5684 = vmatmul.f32.gmra.mxu0 %v5143
  %v5685 = vpop.f32.mrf.mxu0
  %v5686 = vadd.f32 %v5477, %v5685
  %5687 = vmatmul.f32.gmra.mxu0 %v5147
  %v5688 = vpop.f32.mrf.mxu0
  %v5689 = vadd.f32 %v5480, %v5688
  %5690 = vmatmul.f32.gmra.mxu0 %v5151
  %v5691 = vpop.f32.mrf.mxu0
  %v5692 = vadd.f32 %v5483, %v5691
  %5693 = vmatmul.f32.gmra.mxu0 %v5155
  %v5694 = vpop.f32.mrf.mxu0
  %v5695 = vadd.f32 %v5486, %v5694
  %5696 = vmatmul.f32.gmra.mxu0 %v5159
  %v5697 = vpop.f32.mrf.mxu0
  %v5698 = vadd.f32 %v5489, %v5697
  %5699 = vmatmul.f32.gmra.mxu0 %v5163
  %v5700 = vpop.f32.mrf.mxu0
  %v5701 = vadd.f32 %v5492, %v5700
  %5702 = vmatmul.f32.gmra.mxu0 %v5167
  %v5703 = vpop.f32.mrf.mxu0
  %v5704 = vadd.f32 %v5495, %v5703
  %5705 = vmatmul.f32.gmra.mxu0 %v5171
  %v5706 = vpop.f32.mrf.mxu0
  %v5707 = vadd.f32 %v5498, %v5706
  %5708 = vmatmul.f32.gmra.mxu0 %v5175
  %v5709 = vpop.f32.mrf.mxu0
  %v5710 = vadd.f32 %v5501, %v5709
  %5711 = vmatmul.f32.gmra.mxu0 %v5179
  %v5712 = vpop.f32.mrf.mxu0
  %v5713 = vadd.f32 %v5504, %v5712
  %5714 = vmatmul.f32.gmra.mxu0 %v5183
  %v5715 = vpop.f32.mrf.mxu0
  %v5716 = vadd.f32 %v5507, %v5715
  %5717 = vmatmul.f32.gmra.mxu0 %v5187
  %v5718 = vpop.f32.mrf.mxu0
  %v5719 = vadd.f32 %v5510, %v5718
  %5720 = vmatmul.f32.gmra.mxu0 %v5191
  %v5721 = vpop.f32.mrf.mxu0
  %v5722 = vadd.f32 %v5513, %v5721
  %5723 = vmatmul.f32.gmra.mxu0 %v5195
  %v5724 = vpop.f32.mrf.mxu0
  %v5725 = vadd.f32 %v5516, %v5724
  %5726 = vmatmul.f32.gmra.mxu0 %v5199
  %v5727 = vpop.f32.mrf.mxu0
  %v5728 = vadd.f32 %v5519, %v5727
  %5729 = vmatmul.f32.gmra.mxu0 %v5203
  %v5730 = vpop.f32.mrf.mxu0
  %v5731 = vadd.f32 %v5522, %v5730
  %5732 = vmatmul.f32.gmra.mxu0 %v5207
  %v5733 = vpop.f32.mrf.mxu0
  %v5734 = vadd.f32 %v5525, %v5733
  %5735 = vmatmul.f32.gmra.mxu0 %v5211
  %v5736 = vpop.f32.mrf.mxu0
  %v5737 = vadd.f32 %v5528, %v5736
  %5738 = vmatmul.f32.gmra.mxu0 %v5215
  %v5739 = vpop.f32.mrf.mxu0
  %v5740 = vadd.f32 %v5531, %v5739
  %5741 = vmatmul.f32.gmra.mxu0 %v5219
  %v5742 = vpop.f32.mrf.mxu0
  %v5743 = vadd.f32 %v5534, %v5742
  %5744 = vmatmul.f32.gmra.mxu0 %v5223
  %v5745 = vpop.f32.mrf.mxu0
  %v5746 = vadd.f32 %v5537, %v5745
  %5747 = vmatmul.f32.gmra.mxu0 %v5227
  %v5748 = vpop.f32.mrf.mxu0
  %v5749 = vadd.f32 %v5540, %v5748
  %5750 = vmatmul.f32.gmra.mxu0 %v5231
  %v5751 = vpop.f32.mrf.mxu0
  %v5752 = vadd.f32 %v5543, %v5751
  %5753 = vmatmul.f32.gmra.mxu0 %v5235
  %v5754 = vpop.f32.mrf.mxu0
  %v5755 = vadd.f32 %v5546, %v5754
  %5756 = vmatmul.f32.gmra.mxu0 %v5239
  %v5757 = vpop.f32.mrf.mxu0
  %v5758 = vadd.f32 %v5549, %v5757
  %5759 = vmatmul.f32.gmra.mxu0 %v5243
  %v5760 = vpop.f32.mrf.mxu0
  %v5761 = vadd.f32 %v5552, %v5760
  %5762 = vmatmul.f32.gmra.mxu0 %v5247
  %v5763 = vpop.f32.mrf.mxu0
  %v5764 = vadd.f32 %v5555, %v5763
  %5765 = vmatmul.f32.gmra.mxu0 %v5251
  %v5766 = vpop.f32.mrf.mxu0
  %v5767 = vadd.f32 %v5558, %v5766
  %5768 = vmatmul.f32.gmra.mxu0 %v5255
  %v5769 = vpop.f32.mrf.mxu0
  %v5770 = vadd.f32 %v5561, %v5769
  %5771 = vmatmul.f32.gmra.mxu0 %v5259
  %v5772 = vpop.f32.mrf.mxu0
  %v5773 = vadd.f32 %v5564, %v5772
  %5774 = vmatmul.f32.gmra.mxu0 %v5263
  %v5775 = vpop.f32.mrf.mxu0
  %v5776 = vadd.f32 %v5567, %v5775
  %5777 = vmatmul.f32.gmra.mxu0 %v5267
  %v5778 = vpop.f32.mrf.mxu0
  %v5779 = vadd.f32 %v5570, %v5778
  %5780 = vmatmul.f32.gmra.mxu0 %v5271
  %v5781 = vpop.f32.mrf.mxu0
  %v5782 = vadd.f32 %v5573, %v5781
  %5783 = vmatmul.f32.gmra.mxu0 %v5275
  %v5784 = vpop.f32.mrf.mxu0
  %v5785 = vadd.f32 %v5576, %v5784
  %5786 = vmatmul.f32.gmra.mxu0 %v5279
  %v5787 = vpop.f32.mrf.mxu0
  %v5788 = vadd.f32 %v5579, %v5787
  %5789 = vmatmul.f32.gmra.mxu0 %v5283
  %v5790 = vpop.f32.mrf.mxu0
  %v5791 = vadd.f32 %v5582, %v5790
  %5792 = vmatmul.f32.gmra.mxu0 %v5287
  %v5793 = vpop.f32.mrf.mxu0
  %v5794 = vadd.f32 %v5585, %v5793
  %5795 = vmatmul.f32.gmra.mxu0 %v5291
  %v5796 = vpop.f32.mrf.mxu0
  %v5797 = vadd.f32 %v5588, %v5796
  %5798 = vmatmul.f32.gmra.mxu0 %v5295
  %v5799 = vpop.f32.mrf.mxu0
  %v5800 = vadd.f32 %v5591, %v5799
  %5801 = vmatmul.f32.gmra.mxu0 %v5299
  %v5802 = vpop.f32.mrf.mxu0
  %v5803 = vadd.f32 %v5594, %v5802
  %5804 = vmatmul.f32.gmra.mxu0 %v5303
  %v5805 = vpop.f32.mrf.mxu0
  %v5806 = vadd.f32 %v5597, %v5805
  %5807 = vmatmul.f32.gmra.mxu0 %v5307
  %v5808 = vpop.f32.mrf.mxu0
  %v5809 = vadd.f32 %v5600, %v5808
  %5810 = vmatmul.f32.gmra.mxu0 %v5311
  %v5811 = vpop.f32.mrf.mxu0
  %v5812 = vadd.f32 %v5603, %v5811
  %5813 = vmatmul.f32.gmra.mxu0 %v5315
  %v5814 = vpop.f32.mrf.mxu0
  %v5815 = vadd.f32 %v5606, %v5814
  %5816 = vmatmul.f32.gmra.mxu0 %v5319
  %v5817 = vpop.f32.mrf.mxu0
  %v5818 = vadd.f32 %v5609, %v5817
  %5819 = vmatmul.f32.gmra.mxu0 %v5323
  %v5820 = vpop.f32.mrf.mxu0
  %v5821 = vadd.f32 %v5612, %v5820
  %5822 = vmatmul.f32.gmra.mxu0 %v5327
  %v5823 = vpop.f32.mrf.mxu0
  %v5824 = vadd.f32 %v5615, %v5823
  %5825 = vmatmul.f32.gmra.mxu0 %v5331
  %v5826 = vpop.f32.mrf.mxu0
  %v5827 = vadd.f32 %v5618, %v5826
  %5828 = vmatmul.f32.gmra.mxu0 %v5335
  %v5829 = vpop.f32.mrf.mxu0
  %v5830 = vadd.f32 %v5621, %v5829
  %5831 = vmatmul.f32.gmra.mxu0 %v5339
  %v5832 = vpop.f32.mrf.mxu0
  %v5833 = vadd.f32 %v5624, %v5832
  %5834 = vmatmul.f32.gmra.mxu0 %v5343
  %v5835 = vpop.f32.mrf.mxu0
  %v5836 = vadd.f32 %v5627, %v5835
  %5837 = vmatmul.f32.gmra.mxu0 %v5347
  %v5838 = vpop.f32.mrf.mxu0
  %v5839 = vadd.f32 %v5630, %v5838
  %5840 = vmatmul.f32.gmra.mxu0 %v5351
  %v5841 = vpop.f32.mrf.mxu0
  %v5842 = vadd.f32 %v5633, %v5841
  %5843 = vmatmul.f32.gmra.mxu0 %v5355
  %v5844 = vpop.f32.mrf.mxu0
  %v5845 = vadd.f32 %v5636, %v5844
  %5846 = vmatmul.f32.gmra.mxu0 %v5359
  %v5847 = vpop.f32.mrf.mxu0
  %v5848 = vadd.f32 %v5639, %v5847
  %5849 = vmatmul.f32.gmra.mxu0 %v5363
  %v5850 = vpop.f32.mrf.mxu0
  %v5851 = vadd.f32 %v5642, %v5850
  %5852 = vmatmul.f32.gmra.mxu0 %v5367
  %v5853 = vpop.f32.mrf.mxu0
  %v5854 = vadd.f32 %v5645, %v5853
  %5855 = vmatmul.f32.gmra.mxu0 %v5371
  %v5856 = vpop.f32.mrf.mxu0
  %v5857 = vadd.f32 %v5648, %v5856
  %5858 = vmatmul.f32.gmra.mxu0 %v5375
  %v5859 = vpop.f32.mrf.mxu0
  %v5860 = vadd.f32 %v5651, %v5859
  %5861 = vmatmul.f32.gmra.mxu0 %v5379
  %v5862 = vpop.f32.mrf.mxu0
  %v5863 = vadd.f32 %v5654, %v5862
  %5864 = vmatmul.f32.gmra.mxu0 %v5383
  %v5865 = vpop.f32.mrf.mxu0
  %v5866 = vadd.f32 %v5657, %v5865
  %5867 = vdwg.mxu0
  %5868 = vmatpush.msra.mxu0 %v5433
  %5869 = vmatpush.msra.mxu0 %v5432
  %5870 = vmatpush.msra.mxu0 %v5431
  %5871 = vmatpush.msra.mxu0 %v5430
  %5872 = vmatpush.msra.mxu0 %v5429
  %5873 = vmatpush.msra.mxu0 %v5428
  %5874 = vmatpush.msra.mxu0 %v5427
  %5875 = vmatpush.msra.mxu0 %v5426
  %5876 = vmatpush.msra.mxu0 %v5425
  %5877 = vmatpush.msra.mxu0 %v5424
  %5878 = vmatpush.msra.mxu0 %v5423
  %5879 = vmatpush.msra.mxu0 %v5422
  %5880 = vmatpush.msra.mxu0 %v5421
  %5881 = vmatpush.msra.mxu0 %v5420
  %5882 = vmatpush.msra.mxu0 %v5419
  %5883 = vmatpush.msra.mxu0 %v5418
  %5884 = vmatmul.f32.gmra.mxu0 %v5132
  %v5885 = vpop.f32.mrf.mxu0
  %v5886 = vadd.f32 %v5677, %v5885
  %5887 = vmatmul.f32.gmra.mxu0 %v5136
  %v5888 = vpop.f32.mrf.mxu0
  %v5889 = vadd.f32 %v5680, %v5888
  %5890 = vmatmul.f32.gmra.mxu0 %v5140
  %v5891 = vpop.f32.mrf.mxu0
  %v5892 = vadd.f32 %v5683, %v5891
  %5893 = vmatmul.f32.gmra.mxu0 %v5144
  %v5894 = vpop.f32.mrf.mxu0
  %v5895 = vadd.f32 %v5686, %v5894
  %5896 = vmatmul.f32.gmra.mxu0 %v5148
  %v5897 = vpop.f32.mrf.mxu0
  %v5898 = vadd.f32 %v5689, %v5897
  %5899 = vmatmul.f32.gmra.mxu0 %v5152
  %v5900 = vpop.f32.mrf.mxu0
  %v5901 = vadd.f32 %v5692, %v5900
  %5902 = vmatmul.f32.gmra.mxu0 %v5156
  %v5903 = vpop.f32.mrf.mxu0
  %v5904 = vadd.f32 %v5695, %v5903
  %5905 = vmatmul.f32.gmra.mxu0 %v5160
  %v5906 = vpop.f32.mrf.mxu0
  %v5907 = vadd.f32 %v5698, %v5906
  %5908 = vmatmul.f32.gmra.mxu0 %v5164
  %v5909 = vpop.f32.mrf.mxu0
  %v5910 = vadd.f32 %v5701, %v5909
  %5911 = vmatmul.f32.gmra.mxu0 %v5168
  %v5912 = vpop.f32.mrf.mxu0
  %v5913 = vadd.f32 %v5704, %v5912
  %5914 = vmatmul.f32.gmra.mxu0 %v5172
  %v5915 = vpop.f32.mrf.mxu0
  %v5916 = vadd.f32 %v5707, %v5915
  %5917 = vmatmul.f32.gmra.mxu0 %v5176
  %v5918 = vpop.f32.mrf.mxu0
  %v5919 = vadd.f32 %v5710, %v5918
  %5920 = vmatmul.f32.gmra.mxu0 %v5180
  %v5921 = vpop.f32.mrf.mxu0
  %v5922 = vadd.f32 %v5713, %v5921
  %5923 = vmatmul.f32.gmra.mxu0 %v5184
  %v5924 = vpop.f32.mrf.mxu0
  %v5925 = vadd.f32 %v5716, %v5924
  %5926 = vmatmul.f32.gmra.mxu0 %v5188
  %v5927 = vpop.f32.mrf.mxu0
  %v5928 = vadd.f32 %v5719, %v5927
  %5929 = vmatmul.f32.gmra.mxu0 %v5192
  %v5930 = vpop.f32.mrf.mxu0
  %v5931 = vadd.f32 %v5722, %v5930
  %5932 = vmatmul.f32.gmra.mxu0 %v5196
  %v5933 = vpop.f32.mrf.mxu0
  %v5934 = vadd.f32 %v5725, %v5933
  %5935 = vmatmul.f32.gmra.mxu0 %v5200
  %v5936 = vpop.f32.mrf.mxu0
  %v5937 = vadd.f32 %v5728, %v5936
  %5938 = vmatmul.f32.gmra.mxu0 %v5204
  %v5939 = vpop.f32.mrf.mxu0
  %v5940 = vadd.f32 %v5731, %v5939
  %5941 = vmatmul.f32.gmra.mxu0 %v5208
  %v5942 = vpop.f32.mrf.mxu0
  %v5943 = vadd.f32 %v5734, %v5942
  %5944 = vmatmul.f32.gmra.mxu0 %v5212
  %v5945 = vpop.f32.mrf.mxu0
  %v5946 = vadd.f32 %v5737, %v5945
  %5947 = vmatmul.f32.gmra.mxu0 %v5216
  %v5948 = vpop.f32.mrf.mxu0
  %v5949 = vadd.f32 %v5740, %v5948
  %5950 = vmatmul.f32.gmra.mxu0 %v5220
  %v5951 = vpop.f32.mrf.mxu0
  %v5952 = vadd.f32 %v5743, %v5951
  %5953 = vmatmul.f32.gmra.mxu0 %v5224
  %v5954 = vpop.f32.mrf.mxu0
  %v5955 = vadd.f32 %v5746, %v5954
  %5956 = vmatmul.f32.gmra.mxu0 %v5228
  %v5957 = vpop.f32.mrf.mxu0
  %v5958 = vadd.f32 %v5749, %v5957
  %5959 = vmatmul.f32.gmra.mxu0 %v5232
  %v5960 = vpop.f32.mrf.mxu0
  %v5961 = vadd.f32 %v5752, %v5960
  %5962 = vmatmul.f32.gmra.mxu0 %v5236
  %v5963 = vpop.f32.mrf.mxu0
  %v5964 = vadd.f32 %v5755, %v5963
  %5965 = vmatmul.f32.gmra.mxu0 %v5240
  %v5966 = vpop.f32.mrf.mxu0
  %v5967 = vadd.f32 %v5758, %v5966
  %5968 = vmatmul.f32.gmra.mxu0 %v5244
  %v5969 = vpop.f32.mrf.mxu0
  %v5970 = vadd.f32 %v5761, %v5969
  %5971 = vmatmul.f32.gmra.mxu0 %v5248
  %v5972 = vpop.f32.mrf.mxu0
  %v5973 = vadd.f32 %v5764, %v5972
  %5974 = vmatmul.f32.gmra.mxu0 %v5252
  %v5975 = vpop.f32.mrf.mxu0
  %v5976 = vadd.f32 %v5767, %v5975
  %5977 = vmatmul.f32.gmra.mxu0 %v5256
  %v5978 = vpop.f32.mrf.mxu0
  %v5979 = vadd.f32 %v5770, %v5978
  %5980 = vmatmul.f32.gmra.mxu0 %v5260
  %v5981 = vpop.f32.mrf.mxu0
  %v5982 = vadd.f32 %v5773, %v5981
  %5983 = vmatmul.f32.gmra.mxu0 %v5264
  %v5984 = vpop.f32.mrf.mxu0
  %v5985 = vadd.f32 %v5776, %v5984
  %5986 = vmatmul.f32.gmra.mxu0 %v5268
  %v5987 = vpop.f32.mrf.mxu0
  %v5988 = vadd.f32 %v5779, %v5987
  %5989 = vmatmul.f32.gmra.mxu0 %v5272
  %v5990 = vpop.f32.mrf.mxu0
  %v5991 = vadd.f32 %v5782, %v5990
  %5992 = vmatmul.f32.gmra.mxu0 %v5276
  %v5993 = vpop.f32.mrf.mxu0
  %v5994 = vadd.f32 %v5785, %v5993
  %5995 = vmatmul.f32.gmra.mxu0 %v5280
  %v5996 = vpop.f32.mrf.mxu0
  %v5997 = vadd.f32 %v5788, %v5996
  %5998 = vmatmul.f32.gmra.mxu0 %v5284
  %v5999 = vpop.f32.mrf.mxu0
  %v6000 = vadd.f32 %v5791, %v5999
  %6001 = vmatmul.f32.gmra.mxu0 %v5288
  %v6002 = vpop.f32.mrf.mxu0
  %v6003 = vadd.f32 %v5794, %v6002
  %6004 = vmatmul.f32.gmra.mxu0 %v5292
  %v6005 = vpop.f32.mrf.mxu0
  %v6006 = vadd.f32 %v5797, %v6005
  %6007 = vmatmul.f32.gmra.mxu0 %v5296
  %v6008 = vpop.f32.mrf.mxu0
  %v6009 = vadd.f32 %v5800, %v6008
  %6010 = vmatmul.f32.gmra.mxu0 %v5300
  %v6011 = vpop.f32.mrf.mxu0
  %v6012 = vadd.f32 %v5803, %v6011
  %6013 = vmatmul.f32.gmra.mxu0 %v5304
  %v6014 = vpop.f32.mrf.mxu0
  %v6015 = vadd.f32 %v5806, %v6014
  %6016 = vmatmul.f32.gmra.mxu0 %v5308
  %v6017 = vpop.f32.mrf.mxu0
  %v6018 = vadd.f32 %v5809, %v6017
  %6019 = vmatmul.f32.gmra.mxu0 %v5312
  %v6020 = vpop.f32.mrf.mxu0
  %v6021 = vadd.f32 %v5812, %v6020
  %6022 = vmatmul.f32.gmra.mxu0 %v5316
  %v6023 = vpop.f32.mrf.mxu0
  %v6024 = vadd.f32 %v5815, %v6023
  %6025 = vmatmul.f32.gmra.mxu0 %v5320
  %v6026 = vpop.f32.mrf.mxu0
  %v6027 = vadd.f32 %v5818, %v6026
  %6028 = vmatmul.f32.gmra.mxu0 %v5324
  %v6029 = vpop.f32.mrf.mxu0
  %v6030 = vadd.f32 %v5821, %v6029
  %6031 = vmatmul.f32.gmra.mxu0 %v5328
  %v6032 = vpop.f32.mrf.mxu0
  %v6033 = vadd.f32 %v5824, %v6032
  %6034 = vmatmul.f32.gmra.mxu0 %v5332
  %v6035 = vpop.f32.mrf.mxu0
  %v6036 = vadd.f32 %v5827, %v6035
  %6037 = vmatmul.f32.gmra.mxu0 %v5336
  %v6038 = vpop.f32.mrf.mxu0
  %v6039 = vadd.f32 %v5830, %v6038
  %6040 = vmatmul.f32.gmra.mxu0 %v5340
  %v6041 = vpop.f32.mrf.mxu0
  %v6042 = vadd.f32 %v5833, %v6041
  %6043 = vmatmul.f32.gmra.mxu0 %v5344
  %v6044 = vpop.f32.mrf.mxu0
  %v6045 = vadd.f32 %v5836, %v6044
  %6046 = vmatmul.f32.gmra.mxu0 %v5348
  %v6047 = vpop.f32.mrf.mxu0
  %v6048 = vadd.f32 %v5839, %v6047
  %6049 = vmatmul.f32.gmra.mxu0 %v5352
  %v6050 = vpop.f32.mrf.mxu0
  %v6051 = vadd.f32 %v5842, %v6050
  %6052 = vmatmul.f32.gmra.mxu0 %v5356
  %v6053 = vpop.f32.mrf.mxu0
  %v6054 = vadd.f32 %v5845, %v6053
  %6055 = vmatmul.f32.gmra.mxu0 %v5360
  %v6056 = vpop.f32.mrf.mxu0
  %v6057 = vadd.f32 %v5848, %v6056
  %6058 = vmatmul.f32.gmra.mxu0 %v5364
  %v6059 = vpop.f32.mrf.mxu0
  %v6060 = vadd.f32 %v5851, %v6059
  %6061 = vmatmul.f32.gmra.mxu0 %v5368
  %v6062 = vpop.f32.mrf.mxu0
  %v6063 = vadd.f32 %v5854, %v6062
  %6064 = vmatmul.f32.gmra.mxu0 %v5372
  %v6065 = vpop.f32.mrf.mxu0
  %v6066 = vadd.f32 %v5857, %v6065
  %6067 = vmatmul.f32.gmra.mxu0 %v5376
  %v6068 = vpop.f32.mrf.mxu0
  %v6069 = vadd.f32 %v5860, %v6068
  %6070 = vmatmul.f32.gmra.mxu0 %v5380
  %v6071 = vpop.f32.mrf.mxu0
  %v6072 = vadd.f32 %v5863, %v6071
  %6073 = vmatmul.f32.gmra.mxu0 %v5384
  %v6074 = vpop.f32.mrf.mxu0
  %v6075 = vadd.f32 %v5866, %v6074
  %6076 = vdwg.mxu0
  %6077 = vmatpush.msra.mxu0 %v5449
  %6078 = vmatpush.msra.mxu0 %v5448
  %6079 = vmatpush.msra.mxu0 %v5447
  %6080 = vmatpush.msra.mxu0 %v5446
  %6081 = vmatpush.msra.mxu0 %v5445
  %6082 = vmatpush.msra.mxu0 %v5444
  %6083 = vmatpush.msra.mxu0 %v5443
  %6084 = vmatpush.msra.mxu0 %v5442
  %6085 = vmatpush.msra.mxu0 %v5441
  %6086 = vmatpush.msra.mxu0 %v5440
  %6087 = vmatpush.msra.mxu0 %v5439
  %6088 = vmatpush.msra.mxu0 %v5438
  %6089 = vmatpush.msra.mxu0 %v5437
  %6090 = vmatpush.msra.mxu0 %v5436
  %6091 = vmatpush.msra.mxu0 %v5435
  %6092 = vmatpush.msra.mxu0 %v5434
  %6093 = vmatmul.f32.gmra.mxu0 %v5133
  %v6094 = vpop.f32.mrf.mxu0
  %v6095 = vadd.f32 %v5886, %v6094
  %6096 = vmatmul.f32.gmra.mxu0 %v5137
  %v6097 = vpop.f32.mrf.mxu0
  %v6098 = vadd.f32 %v5889, %v6097
  %6099 = vmatmul.f32.gmra.mxu0 %v5141
  %v6100 = vpop.f32.mrf.mxu0
  %v6101 = vadd.f32 %v5892, %v6100
  %6102 = vmatmul.f32.gmra.mxu0 %v5145
  %v6103 = vpop.f32.mrf.mxu0
  %v6104 = vadd.f32 %v5895, %v6103
  %6105 = vmatmul.f32.gmra.mxu0 %v5149
  %v6106 = vpop.f32.mrf.mxu0
  %v6107 = vadd.f32 %v5898, %v6106
  %6108 = vmatmul.f32.gmra.mxu0 %v5153
  %v6109 = vpop.f32.mrf.mxu0
  %v6110 = vadd.f32 %v5901, %v6109
  %6111 = vmatmul.f32.gmra.mxu0 %v5157
  %v6112 = vpop.f32.mrf.mxu0
  %v6113 = vadd.f32 %v5904, %v6112
  %6114 = vmatmul.f32.gmra.mxu0 %v5161
  %v6115 = vpop.f32.mrf.mxu0
  %v6116 = vadd.f32 %v5907, %v6115
  %6117 = vmatmul.f32.gmra.mxu0 %v5165
  %v6118 = vpop.f32.mrf.mxu0
  %v6119 = vadd.f32 %v5910, %v6118
  %6120 = vmatmul.f32.gmra.mxu0 %v5169
  %v6121 = vpop.f32.mrf.mxu0
  %v6122 = vadd.f32 %v5913, %v6121
  %6123 = vmatmul.f32.gmra.mxu0 %v5173
  %v6124 = vpop.f32.mrf.mxu0
  %v6125 = vadd.f32 %v5916, %v6124
  %6126 = vmatmul.f32.gmra.mxu0 %v5177
  %v6127 = vpop.f32.mrf.mxu0
  %v6128 = vadd.f32 %v5919, %v6127
  %6129 = vmatmul.f32.gmra.mxu0 %v5181
  %v6130 = vpop.f32.mrf.mxu0
  %v6131 = vadd.f32 %v5922, %v6130
  %6132 = vmatmul.f32.gmra.mxu0 %v5185
  %v6133 = vpop.f32.mrf.mxu0
  %v6134 = vadd.f32 %v5925, %v6133
  %6135 = vmatmul.f32.gmra.mxu0 %v5189
  %v6136 = vpop.f32.mrf.mxu0
  %v6137 = vadd.f32 %v5928, %v6136
  %6138 = vmatmul.f32.gmra.mxu0 %v5193
  %v6139 = vpop.f32.mrf.mxu0
  %v6140 = vadd.f32 %v5931, %v6139
  %6141 = vmatmul.f32.gmra.mxu0 %v5197
  %v6142 = vpop.f32.mrf.mxu0
  %v6143 = vadd.f32 %v5934, %v6142
  %6144 = vmatmul.f32.gmra.mxu0 %v5201
  %v6145 = vpop.f32.mrf.mxu0
  %v6146 = vadd.f32 %v5937, %v6145
  %6147 = vmatmul.f32.gmra.mxu0 %v5205
  %v6148 = vpop.f32.mrf.mxu0
  %v6149 = vadd.f32 %v5940, %v6148
  %6150 = vmatmul.f32.gmra.mxu0 %v5209
  %v6151 = vpop.f32.mrf.mxu0
  %v6152 = vadd.f32 %v5943, %v6151
  %6153 = vmatmul.f32.gmra.mxu0 %v5213
  %v6154 = vpop.f32.mrf.mxu0
  %v6155 = vadd.f32 %v5946, %v6154
  %6156 = vmatmul.f32.gmra.mxu0 %v5217
  %v6157 = vpop.f32.mrf.mxu0
  %v6158 = vadd.f32 %v5949, %v6157
  %6159 = vmatmul.f32.gmra.mxu0 %v5221
  %v6160 = vpop.f32.mrf.mxu0
  %v6161 = vadd.f32 %v5952, %v6160
  %6162 = vmatmul.f32.gmra.mxu0 %v5225
  %v6163 = vpop.f32.mrf.mxu0
  %v6164 = vadd.f32 %v5955, %v6163
  %6165 = vmatmul.f32.gmra.mxu0 %v5229
  %v6166 = vpop.f32.mrf.mxu0
  %v6167 = vadd.f32 %v5958, %v6166
  %6168 = vmatmul.f32.gmra.mxu0 %v5233
  %v6169 = vpop.f32.mrf.mxu0
  %v6170 = vadd.f32 %v5961, %v6169
  %6171 = vmatmul.f32.gmra.mxu0 %v5237
  %v6172 = vpop.f32.mrf.mxu0
  %v6173 = vadd.f32 %v5964, %v6172
  %6174 = vmatmul.f32.gmra.mxu0 %v5241
  %v6175 = vpop.f32.mrf.mxu0
  %v6176 = vadd.f32 %v5967, %v6175
  %6177 = vmatmul.f32.gmra.mxu0 %v5245
  %v6178 = vpop.f32.mrf.mxu0
  %v6179 = vadd.f32 %v5970, %v6178
  %6180 = vmatmul.f32.gmra.mxu0 %v5249
  %v6181 = vpop.f32.mrf.mxu0
  %v6182 = vadd.f32 %v5973, %v6181
  %6183 = vmatmul.f32.gmra.mxu0 %v5253
  %v6184 = vpop.f32.mrf.mxu0
  %v6185 = vadd.f32 %v5976, %v6184
  %6186 = vmatmul.f32.gmra.mxu0 %v5257
  %v6187 = vpop.f32.mrf.mxu0
  %v6188 = vadd.f32 %v5979, %v6187
  %6189 = vmatmul.f32.gmra.mxu0 %v5261
  %v6190 = vpop.f32.mrf.mxu0
  %v6191 = vadd.f32 %v5982, %v6190
  %6192 = vmatmul.f32.gmra.mxu0 %v5265
  %v6193 = vpop.f32.mrf.mxu0
  %v6194 = vadd.f32 %v5985, %v6193
  %6195 = vmatmul.f32.gmra.mxu0 %v5269
  %v6196 = vpop.f32.mrf.mxu0
  %v6197 = vadd.f32 %v5988, %v6196
  %6198 = vmatmul.f32.gmra.mxu0 %v5273
  %v6199 = vpop.f32.mrf.mxu0
  %v6200 = vadd.f32 %v5991, %v6199
  %6201 = vmatmul.f32.gmra.mxu0 %v5277
  %v6202 = vpop.f32.mrf.mxu0
  %v6203 = vadd.f32 %v5994, %v6202
  %6204 = vmatmul.f32.gmra.mxu0 %v5281
  %v6205 = vpop.f32.mrf.mxu0
  %v6206 = vadd.f32 %v5997, %v6205
  %6207 = vmatmul.f32.gmra.mxu0 %v5285
  %v6208 = vpop.f32.mrf.mxu0
  %v6209 = vadd.f32 %v6000, %v6208
  %6210 = vmatmul.f32.gmra.mxu0 %v5289
  %v6211 = vpop.f32.mrf.mxu0
  %v6212 = vadd.f32 %v6003, %v6211
  %6213 = vmatmul.f32.gmra.mxu0 %v5293
  %v6214 = vpop.f32.mrf.mxu0
  %v6215 = vadd.f32 %v6006, %v6214
  %6216 = vmatmul.f32.gmra.mxu0 %v5297
  %v6217 = vpop.f32.mrf.mxu0
  %v6218 = vadd.f32 %v6009, %v6217
  %6219 = vmatmul.f32.gmra.mxu0 %v5301
  %v6220 = vpop.f32.mrf.mxu0
  %v6221 = vadd.f32 %v6012, %v6220
  %6222 = vmatmul.f32.gmra.mxu0 %v5305
  %v6223 = vpop.f32.mrf.mxu0
  %v6224 = vadd.f32 %v6015, %v6223
  %6225 = vmatmul.f32.gmra.mxu0 %v5309
  %v6226 = vpop.f32.mrf.mxu0
  %v6227 = vadd.f32 %v6018, %v6226
  %6228 = vmatmul.f32.gmra.mxu0 %v5313
  %v6229 = vpop.f32.mrf.mxu0
  %v6230 = vadd.f32 %v6021, %v6229
  %6231 = vmatmul.f32.gmra.mxu0 %v5317
  %v6232 = vpop.f32.mrf.mxu0
  %v6233 = vadd.f32 %v6024, %v6232
  %6234 = vmatmul.f32.gmra.mxu0 %v5321
  %v6235 = vpop.f32.mrf.mxu0
  %v6236 = vadd.f32 %v6027, %v6235
  %6237 = vmatmul.f32.gmra.mxu0 %v5325
  %v6238 = vpop.f32.mrf.mxu0
  %v6239 = vadd.f32 %v6030, %v6238
  %6240 = vmatmul.f32.gmra.mxu0 %v5329
  %v6241 = vpop.f32.mrf.mxu0
  %v6242 = vadd.f32 %v6033, %v6241
  %6243 = vmatmul.f32.gmra.mxu0 %v5333
  %v6244 = vpop.f32.mrf.mxu0
  %v6245 = vadd.f32 %v6036, %v6244
  %6246 = vmatmul.f32.gmra.mxu0 %v5337
  %v6247 = vpop.f32.mrf.mxu0
  %v6248 = vadd.f32 %v6039, %v6247
  %6249 = vmatmul.f32.gmra.mxu0 %v5341
  %v6250 = vpop.f32.mrf.mxu0
  %v6251 = vadd.f32 %v6042, %v6250
  %6252 = vmatmul.f32.gmra.mxu0 %v5345
  %v6253 = vpop.f32.mrf.mxu0
  %v6254 = vadd.f32 %v6045, %v6253
  %6255 = vmatmul.f32.gmra.mxu0 %v5349
  %v6256 = vpop.f32.mrf.mxu0
  %v6257 = vadd.f32 %v6048, %v6256
  %6258 = vmatmul.f32.gmra.mxu0 %v5353
  %v6259 = vpop.f32.mrf.mxu0
  %v6260 = vadd.f32 %v6051, %v6259
  %6261 = vmatmul.f32.gmra.mxu0 %v5357
  %v6262 = vpop.f32.mrf.mxu0
  %v6263 = vadd.f32 %v6054, %v6262
  %6264 = vmatmul.f32.gmra.mxu0 %v5361
  %v6265 = vpop.f32.mrf.mxu0
  %v6266 = vadd.f32 %v6057, %v6265
  %6267 = vmatmul.f32.gmra.mxu0 %v5365
  %v6268 = vpop.f32.mrf.mxu0
  %v6269 = vadd.f32 %v6060, %v6268
  %6270 = vmatmul.f32.gmra.mxu0 %v5369
  %v6271 = vpop.f32.mrf.mxu0
  %v6272 = vadd.f32 %v6063, %v6271
  %6273 = vmatmul.f32.gmra.mxu0 %v5373
  %v6274 = vpop.f32.mrf.mxu0
  %v6275 = vadd.f32 %v6066, %v6274
  %6276 = vmatmul.f32.gmra.mxu0 %v5377
  %v6277 = vpop.f32.mrf.mxu0
  %v6278 = vadd.f32 %v6069, %v6277
  %6279 = vmatmul.f32.gmra.mxu0 %v5381
  %v6280 = vpop.f32.mrf.mxu0
  %v6281 = vadd.f32 %v6072, %v6280
  %6282 = vmatmul.f32.gmra.mxu0 %v5385
  %v6283 = vpop.f32.mrf.mxu0
  %v6284 = vadd.f32 %v6075, %v6283
  %6285 = vdwg.mxu0
  %v6286 = vsub.f32 %v6095, %v3588
  %v6287 = vsub.f32 %v6098, %v3589
  %v6288 = vsub.f32 %v6101, %v3590
  %v6289 = vsub.f32 %v6104, %v3591
  %v6290 = vsub.f32 %v6107, %v3592
  %v6291 = vsub.f32 %v6110, %v3593
  %v6292 = vsub.f32 %v6113, %v3594
  %v6293 = vsub.f32 %v6116, %v3595
  %v6294 = vsub.f32 %v6119, %v3596
  %v6295 = vsub.f32 %v6122, %v3597
  %v6296 = vsub.f32 %v6125, %v3598
  %v6297 = vsub.f32 %v6128, %v3599
  %v6298 = vsub.f32 %v6131, %v3600
  %v6299 = vsub.f32 %v6134, %v3601
  %v6300 = vsub.f32 %v6137, %v3602
  %v6301 = vsub.f32 %v6140, %v3603
  %v6302 = vsub.f32 %v6143, %v3604
  %v6303 = vsub.f32 %v6146, %v3605
  %v6304 = vsub.f32 %v6149, %v3606
  %v6305 = vsub.f32 %v6152, %v3607
  %v6306 = vsub.f32 %v6155, %v3608
  %v6307 = vsub.f32 %v6158, %v3609
  %v6308 = vsub.f32 %v6161, %v3610
  %v6309 = vsub.f32 %v6164, %v3611
  %v6310 = vsub.f32 %v6167, %v3612
  %v6311 = vsub.f32 %v6170, %v3613
  %v6312 = vsub.f32 %v6173, %v3614
  %v6313 = vsub.f32 %v6176, %v3615
  %v6314 = vsub.f32 %v6179, %v3616
  %v6315 = vsub.f32 %v6182, %v3617
  %v6316 = vsub.f32 %v6185, %v3618
  %v6317 = vsub.f32 %v6188, %v3619
  %v6318 = vsub.f32 %v6191, %v3620
  %v6319 = vsub.f32 %v6194, %v3621
  %v6320 = vsub.f32 %v6197, %v3622
  %v6321 = vsub.f32 %v6200, %v3623
  %v6322 = vsub.f32 %v6203, %v3624
  %v6323 = vsub.f32 %v6206, %v3625
  %v6324 = vsub.f32 %v6209, %v3626
  %v6325 = vsub.f32 %v6212, %v3627
  %v6326 = vsub.f32 %v6215, %v3628
  %v6327 = vsub.f32 %v6218, %v3629
  %v6328 = vsub.f32 %v6221, %v3630
  %v6329 = vsub.f32 %v6224, %v3631
  %v6330 = vsub.f32 %v6227, %v3632
  %v6331 = vsub.f32 %v6230, %v3633
  %v6332 = vsub.f32 %v6233, %v3634
  %v6333 = vsub.f32 %v6236, %v3635
  %v6334 = vsub.f32 %v6239, %v3636
  %v6335 = vsub.f32 %v6242, %v3637
  %v6336 = vsub.f32 %v6245, %v3638
  %v6337 = vsub.f32 %v6248, %v3639
  %v6338 = vsub.f32 %v6251, %v3640
  %v6339 = vsub.f32 %v6254, %v3641
  %v6340 = vsub.f32 %v6257, %v3642
  %v6341 = vsub.f32 %v6260, %v3643
  %v6342 = vsub.f32 %v6263, %v3644
  %v6343 = vsub.f32 %v6266, %v3645
  %v6344 = vsub.f32 %v6269, %v3646
  %v6345 = vsub.f32 %v6272, %v3647
  %v6346 = vsub.f32 %v6275, %v3648
  %v6347 = vsub.f32 %v6278, %v3649
  %v6348 = vsub.f32 %v6281, %v3650
  %v6349 = vsub.f32 %v6284, %v3651
  %6414 = vrot.lane.b32.xlu0 %v6286, 64
  %v6415 = vpop.permute.xlu0 %6414
  %6416 = vrot.lane.b32.xlu0 %v6287, 64
  %v6417 = vpop.permute.xlu0 %6416
  %6418 = vrot.lane.b32.xlu0 %v6288, 64
  %v6419 = vpop.permute.xlu0 %6418
  %6420 = vrot.lane.b32.xlu0 %v6289, 64
  %v6421 = vpop.permute.xlu0 %6420
  %6422 = vrot.lane.b32.xlu0 %v6290, 64
  %v6423 = vpop.permute.xlu0 %6422
  %6424 = vrot.lane.b32.xlu0 %v6291, 64
  %v6425 = vpop.permute.xlu0 %6424
  %6426 = vrot.lane.b32.xlu0 %v6292, 64
  %v6427 = vpop.permute.xlu0 %6426
  %6428 = vrot.lane.b32.xlu0 %v6293, 64
  %v6429 = vpop.permute.xlu0 %6428
  %6430 = vrot.lane.b32.xlu0 %v6294, 64
  %v6431 = vpop.permute.xlu0 %6430
  %6432 = vrot.lane.b32.xlu0 %v6295, 64
  %v6433 = vpop.permute.xlu0 %6432
  %6434 = vrot.lane.b32.xlu0 %v6296, 64
  %v6435 = vpop.permute.xlu0 %6434
  %6436 = vrot.lane.b32.xlu0 %v6297, 64
  %v6437 = vpop.permute.xlu0 %6436
  %6438 = vrot.lane.b32.xlu0 %v6298, 64
  %v6439 = vpop.permute.xlu0 %6438
  %6440 = vrot.lane.b32.xlu0 %v6299, 64
  %v6441 = vpop.permute.xlu0 %6440
  %6442 = vrot.lane.b32.xlu0 %v6300, 64
  %v6443 = vpop.permute.xlu0 %6442
  %6444 = vrot.lane.b32.xlu0 %v6301, 64
  %v6445 = vpop.permute.xlu0 %6444
  %6446 = vrot.lane.b32.xlu0 %v6302, 64
  %v6447 = vpop.permute.xlu0 %6446
  %6448 = vrot.lane.b32.xlu0 %v6303, 64
  %v6449 = vpop.permute.xlu0 %6448
  %6450 = vrot.lane.b32.xlu0 %v6304, 64
  %v6451 = vpop.permute.xlu0 %6450
  %6452 = vrot.lane.b32.xlu0 %v6305, 64
  %v6453 = vpop.permute.xlu0 %6452
  %6454 = vrot.lane.b32.xlu0 %v6306, 64
  %v6455 = vpop.permute.xlu0 %6454
  %6456 = vrot.lane.b32.xlu0 %v6307, 64
  %v6457 = vpop.permute.xlu0 %6456
  %6458 = vrot.lane.b32.xlu0 %v6308, 64
  %v6459 = vpop.permute.xlu0 %6458
  %6460 = vrot.lane.b32.xlu0 %v6309, 64
  %v6461 = vpop.permute.xlu0 %6460
  %6462 = vrot.lane.b32.xlu0 %v6310, 64
  %v6463 = vpop.permute.xlu0 %6462
  %6464 = vrot.lane.b32.xlu0 %v6311, 64
  %v6465 = vpop.permute.xlu0 %6464
  %6466 = vrot.lane.b32.xlu0 %v6312, 64
  %v6467 = vpop.permute.xlu0 %6466
  %6468 = vrot.lane.b32.xlu0 %v6313, 64
  %v6469 = vpop.permute.xlu0 %6468
  %6470 = vrot.lane.b32.xlu0 %v6314, 64
  %v6471 = vpop.permute.xlu0 %6470
  %6472 = vrot.lane.b32.xlu0 %v6315, 64
  %v6473 = vpop.permute.xlu0 %6472
  %6474 = vrot.lane.b32.xlu0 %v6316, 64
  %v6475 = vpop.permute.xlu0 %6474
  %6476 = vrot.lane.b32.xlu0 %v6317, 64
  %v6477 = vpop.permute.xlu0 %6476
  %6478 = vrot.lane.b32.xlu0 %v6318, 64
  %v6479 = vpop.permute.xlu0 %6478
  %6480 = vrot.lane.b32.xlu0 %v6319, 64
  %v6481 = vpop.permute.xlu0 %6480
  %6482 = vrot.lane.b32.xlu0 %v6320, 64
  %v6483 = vpop.permute.xlu0 %6482
  %6484 = vrot.lane.b32.xlu0 %v6321, 64
  %v6485 = vpop.permute.xlu0 %6484
  %6486 = vrot.lane.b32.xlu0 %v6322, 64
  %v6487 = vpop.permute.xlu0 %6486
  %6488 = vrot.lane.b32.xlu0 %v6323, 64
  %v6489 = vpop.permute.xlu0 %6488
  %6490 = vrot.lane.b32.xlu0 %v6324, 64
  %v6491 = vpop.permute.xlu0 %6490
  %6492 = vrot.lane.b32.xlu0 %v6325, 64
  %v6493 = vpop.permute.xlu0 %6492
  %6494 = vrot.lane.b32.xlu0 %v6326, 64
  %v6495 = vpop.permute.xlu0 %6494
  %6496 = vrot.lane.b32.xlu0 %v6327, 64
  %v6497 = vpop.permute.xlu0 %6496
  %6498 = vrot.lane.b32.xlu0 %v6328, 64
  %v6499 = vpop.permute.xlu0 %6498
  %6500 = vrot.lane.b32.xlu0 %v6329, 64
  %v6501 = vpop.permute.xlu0 %6500
  %6502 = vrot.lane.b32.xlu0 %v6330, 64
  %v6503 = vpop.permute.xlu0 %6502
  %6504 = vrot.lane.b32.xlu0 %v6331, 64
  %v6505 = vpop.permute.xlu0 %6504
  %6506 = vrot.lane.b32.xlu0 %v6332, 64
  %v6507 = vpop.permute.xlu0 %6506
  %6508 = vrot.lane.b32.xlu0 %v6333, 64
  %v6509 = vpop.permute.xlu0 %6508
  %6510 = vrot.lane.b32.xlu0 %v6334, 64
  %v6511 = vpop.permute.xlu0 %6510
  %6512 = vrot.lane.b32.xlu0 %v6335, 64
  %v6513 = vpop.permute.xlu0 %6512
  %6514 = vrot.lane.b32.xlu0 %v6336, 64
  %v6515 = vpop.permute.xlu0 %6514
  %6516 = vrot.lane.b32.xlu0 %v6337, 64
  %v6517 = vpop.permute.xlu0 %6516
  %6518 = vrot.lane.b32.xlu0 %v6338, 64
  %v6519 = vpop.permute.xlu0 %6518
  %6520 = vrot.lane.b32.xlu0 %v6339, 64
  %v6521 = vpop.permute.xlu0 %6520
  %6522 = vrot.lane.b32.xlu0 %v6340, 64
  %v6523 = vpop.permute.xlu0 %6522
  %6524 = vrot.lane.b32.xlu0 %v6341, 64
  %v6525 = vpop.permute.xlu0 %6524
  %6526 = vrot.lane.b32.xlu0 %v6342, 64
  %v6527 = vpop.permute.xlu0 %6526
  %6528 = vrot.lane.b32.xlu0 %v6343, 64
  %v6529 = vpop.permute.xlu0 %6528
  %6530 = vrot.lane.b32.xlu0 %v6344, 64
  %v6531 = vpop.permute.xlu0 %6530
  %6532 = vrot.lane.b32.xlu0 %v6345, 64
  %v6533 = vpop.permute.xlu0 %6532
  %6534 = vrot.lane.b32.xlu0 %v6346, 64
  %v6535 = vpop.permute.xlu0 %6534
  %6536 = vrot.lane.b32.xlu0 %v6347, 64
  %v6537 = vpop.permute.xlu0 %6536
  %6538 = vrot.lane.b32.xlu0 %v6348, 64
  %v6539 = vpop.permute.xlu0 %6538
  %6540 = vrot.lane.b32.xlu0 %v6349, 64
  %v6541 = vpop.permute.xlu0 %6540
  %vm6606 = vcmask 785920
  %6607 = vst.msk [vmem:[#allocation2] sm:$0xff] %vm6606, %v6415
  %6608 = vst.msk [vmem:[#allocation2 + $0x8] sm:$0xff] %vm6606, %v6417
  %6609 = vst.msk [vmem:[#allocation2 + $0x10] sm:$0xff] %vm6606, %v6419
  %6610 = vst.msk [vmem:[#allocation2 + $0x18] sm:$0xff] %vm6606, %v6421
  %6611 = vst.msk [vmem:[#allocation2 + $0x20] sm:$0xff] %vm6606, %v6423
  %6612 = vst.msk [vmem:[#allocation2 + $0x28] sm:$0xff] %vm6606, %v6425
  %6613 = vst.msk [vmem:[#allocation2 + $0x30] sm:$0xff] %vm6606, %v6427
  %6614 = vst.msk [vmem:[#allocation2 + $0x38] sm:$0xff] %vm6606, %v6429
  %6615 = vst.msk [vmem:[#allocation2 + $0x40] sm:$0xff] %vm6606, %v6431
  %6616 = vst.msk [vmem:[#allocation2 + $0x48] sm:$0xff] %vm6606, %v6433
  %6617 = vst.msk [vmem:[#allocation2 + $0x50] sm:$0xff] %vm6606, %v6435
  %6618 = vst.msk [vmem:[#allocation2 + $0x58] sm:$0xff] %vm6606, %v6437
  %6619 = vst.msk [vmem:[#allocation2 + $0x60] sm:$0xff] %vm6606, %v6439
  %6620 = vst.msk [vmem:[#allocation2 + $0x68] sm:$0xff] %vm6606, %v6441
  %6621 = vst.msk [vmem:[#allocation2 + $0x70] sm:$0xff] %vm6606, %v6443
  %6622 = vst.msk [vmem:[#allocation2 + $0x78] sm:$0xff] %vm6606, %v6445
  %6623 = vst.msk [vmem:[#allocation2 + $0x80] sm:$0xff] %vm6606, %v6447
  %6624 = vst.msk [vmem:[#allocation2 + $0x88] sm:$0xff] %vm6606, %v6449
  %6625 = vst.msk [vmem:[#allocation2 + $0x90] sm:$0xff] %vm6606, %v6451
  %6626 = vst.msk [vmem:[#allocation2 + $0x98] sm:$0xff] %vm6606, %v6453
  %6627 = vst.msk [vmem:[#allocation2 + $0xa0] sm:$0xff] %vm6606, %v6455
  %6628 = vst.msk [vmem:[#allocation2 + $0xa8] sm:$0xff] %vm6606, %v6457
  %6629 = vst.msk [vmem:[#allocation2 + $0xb0] sm:$0xff] %vm6606, %v6459
  %6630 = vst.msk [vmem:[#allocation2 + $0xb8] sm:$0xff] %vm6606, %v6461
  %6631 = vst.msk [vmem:[#allocation2 + $0xc0] sm:$0xff] %vm6606, %v6463
  %6632 = vst.msk [vmem:[#allocation2 + $0xc8] sm:$0xff] %vm6606, %v6465
  %6633 = vst.msk [vmem:[#allocation2 + $0xd0] sm:$0xff] %vm6606, %v6467
  %6634 = vst.msk [vmem:[#allocation2 + $0xd8] sm:$0xff] %vm6606, %v6469
  %6635 = vst.msk [vmem:[#allocation2 + $0xe0] sm:$0xff] %vm6606, %v6471
  %6636 = vst.msk [vmem:[#allocation2 + $0xe8] sm:$0xff] %vm6606, %v6473
  %6637 = vst.msk [vmem:[#allocation2 + $0xf0] sm:$0xff] %vm6606, %v6475
  %6638 = vst.msk [vmem:[#allocation2 + $0xf8] sm:$0xff] %vm6606, %v6477
  %6639 = vst.msk [vmem:[#allocation2 + $0x100] sm:$0xff] %vm6606, %v6479
  %6640 = vst.msk [vmem:[#allocation2 + $0x108] sm:$0xff] %vm6606, %v6481
  %6641 = vst.msk [vmem:[#allocation2 + $0x110] sm:$0xff] %vm6606, %v6483
  %6642 = vst.msk [vmem:[#allocation2 + $0x118] sm:$0xff] %vm6606, %v6485
  %6643 = vst.msk [vmem:[#allocation2 + $0x120] sm:$0xff] %vm6606, %v6487
  %6644 = vst.msk [vmem:[#allocation2 + $0x128] sm:$0xff] %vm6606, %v6489
  %6645 = vst.msk [vmem:[#allocation2 + $0x130] sm:$0xff] %vm6606, %v6491
  %6646 = vst.msk [vmem:[#allocation2 + $0x138] sm:$0xff] %vm6606, %v6493
  %6647 = vst.msk [vmem:[#allocation2 + $0x140] sm:$0xff] %vm6606, %v6495
  %6648 = vst.msk [vmem:[#allocation2 + $0x148] sm:$0xff] %vm6606, %v6497
  %6649 = vst.msk [vmem:[#allocation2 + $0x150] sm:$0xff] %vm6606, %v6499
  %6650 = vst.msk [vmem:[#allocation2 + $0x158] sm:$0xff] %vm6606, %v6501
  %6651 = vst.msk [vmem:[#allocation2 + $0x160] sm:$0xff] %vm6606, %v6503
  %6652 = vst.msk [vmem:[#allocation2 + $0x168] sm:$0xff] %vm6606, %v6505
  %6653 = vst.msk [vmem:[#allocation2 + $0x170] sm:$0xff] %vm6606, %v6507
  %6654 = vst.msk [vmem:[#allocation2 + $0x178] sm:$0xff] %vm6606, %v6509
  %6655 = vst.msk [vmem:[#allocation2 + $0x180] sm:$0xff] %vm6606, %v6511
  %6656 = vst.msk [vmem:[#allocation2 + $0x188] sm:$0xff] %vm6606, %v6513
  %6657 = vst.msk [vmem:[#allocation2 + $0x190] sm:$0xff] %vm6606, %v6515
  %6658 = vst.msk [vmem:[#allocation2 + $0x198] sm:$0xff] %vm6606, %v6517
  %6659 = vst.msk [vmem:[#allocation2 + $0x1a0] sm:$0xff] %vm6606, %v6519
  %6660 = vst.msk [vmem:[#allocation2 + $0x1a8] sm:$0xff] %vm6606, %v6521
  %6661 = vst.msk [vmem:[#allocation2 + $0x1b0] sm:$0xff] %vm6606, %v6523
  %6662 = vst.msk [vmem:[#allocation2 + $0x1b8] sm:$0xff] %vm6606, %v6525
  %6663 = vst.msk [vmem:[#allocation2 + $0x1c0] sm:$0xff] %vm6606, %v6527
  %6664 = vst.msk [vmem:[#allocation2 + $0x1c8] sm:$0xff] %vm6606, %v6529
  %6665 = vst.msk [vmem:[#allocation2 + $0x1d0] sm:$0xff] %vm6606, %v6531
  %6666 = vst.msk [vmem:[#allocation2 + $0x1d8] sm:$0xff] %vm6606, %v6533
  %6667 = vst.msk [vmem:[#allocation2 + $0x1e0] sm:$0xff] %vm6606, %v6535
  %6668 = vst.msk [vmem:[#allocation2 + $0x1e8] sm:$0xff] %vm6606, %v6537
  %6669 = vst.msk [vmem:[#allocation2 + $0x1f0] sm:$0xff] %vm6606, %v6539
  %6670 = vst.msk [vmem:[#allocation2 + $0x1f8] sm:$0xff] %vm6606, %v6541
  %v6671 = vld [vmem:[#allocation2] sm:$0xff]
  %v6672 = vld [vmem:[#allocation2 + $0x8] sm:$0xff]
  %v6673 = vld [vmem:[#allocation2 + $0x10] sm:$0xff]
  %v6674 = vld [vmem:[#allocation2 + $0x18] sm:$0xff]
  %v6675 = vld [vmem:[#allocation2 + $0x20] sm:$0xff]
  %v6676 = vld [vmem:[#allocation2 + $0x28] sm:$0xff]
  %v6677 = vld [vmem:[#allocation2 + $0x30] sm:$0xff]
  %v6678 = vld [vmem:[#allocation2 + $0x38] sm:$0xff]
  %v6679 = vld [vmem:[#allocation2 + $0x40] sm:$0xff]
  %v6680 = vld [vmem:[#allocation2 + $0x48] sm:$0xff]
  %v6681 = vld [vmem:[#allocation2 + $0x50] sm:$0xff]
  %v6682 = vld [vmem:[#allocation2 + $0x58] sm:$0xff]
  %v6683 = vld [vmem:[#allocation2 + $0x60] sm:$0xff]
  %v6684 = vld [vmem:[#allocation2 + $0x68] sm:$0xff]
  %v6685 = vld [vmem:[#allocation2 + $0x70] sm:$0xff]
  %v6686 = vld [vmem:[#allocation2 + $0x78] sm:$0xff]
  %v6687 = vld [vmem:[#allocation2 + $0x80] sm:$0xff]
  %v6688 = vld [vmem:[#allocation2 + $0x88] sm:$0xff]
  %v6689 = vld [vmem:[#allocation2 + $0x90] sm:$0xff]
  %v6690 = vld [vmem:[#allocation2 + $0x98] sm:$0xff]
  %v6691 = vld [vmem:[#allocation2 + $0xa0] sm:$0xff]
  %v6692 = vld [vmem:[#allocation2 + $0xa8] sm:$0xff]
  %v6693 = vld [vmem:[#allocation2 + $0xb0] sm:$0xff]
  %v6694 = vld [vmem:[#allocation2 + $0xb8] sm:$0xff]
  %v6695 = vld [vmem:[#allocation2 + $0xc0] sm:$0xff]
  %v6696 = vld [vmem:[#allocation2 + $0xc8] sm:$0xff]
  %v6697 = vld [vmem:[#allocation2 + $0xd0] sm:$0xff]
  %v6698 = vld [vmem:[#allocation2 + $0xd8] sm:$0xff]
  %v6699 = vld [vmem:[#allocation2 + $0xe0] sm:$0xff]
  %v6700 = vld [vmem:[#allocation2 + $0xe8] sm:$0xff]
  %v6701 = vld [vmem:[#allocation2 + $0xf0] sm:$0xff]
  %v6702 = vld [vmem:[#allocation2 + $0xf8] sm:$0xff]
  %v6703 = vld [vmem:[#allocation2 + $0x100] sm:$0xff]
  %v6704 = vld [vmem:[#allocation2 + $0x108] sm:$0xff]
  %v6705 = vld [vmem:[#allocation2 + $0x110] sm:$0xff]
  %v6706 = vld [vmem:[#allocation2 + $0x118] sm:$0xff]
  %v6707 = vld [vmem:[#allocation2 + $0x120] sm:$0xff]
  %v6708 = vld [vmem:[#allocation2 + $0x128] sm:$0xff]
  %v6709 = vld [vmem:[#allocation2 + $0x130] sm:$0xff]
  %v6710 = vld [vmem:[#allocation2 + $0x138] sm:$0xff]
  %v6711 = vld [vmem:[#allocation2 + $0x140] sm:$0xff]
  %v6712 = vld [vmem:[#allocation2 + $0x148] sm:$0xff]
  %v6713 = vld [vmem:[#allocation2 + $0x150] sm:$0xff]
  %v6714 = vld [vmem:[#allocation2 + $0x158] sm:$0xff]
  %v6715 = vld [vmem:[#allocation2 + $0x160] sm:$0xff]
  %v6716 = vld [vmem:[#allocation2 + $0x168] sm:$0xff]
  %v6717 = vld [vmem:[#allocation2 + $0x170] sm:$0xff]
  %v6718 = vld [vmem:[#allocation2 + $0x178] sm:$0xff]
  %v6719 = vld [vmem:[#allocation2 + $0x180] sm:$0xff]
  %v6720 = vld [vmem:[#allocation2 + $0x188] sm:$0xff]
  %v6721 = vld [vmem:[#allocation2 + $0x190] sm:$0xff]
  %v6722 = vld [vmem:[#allocation2 + $0x198] sm:$0xff]
  %v6723 = vld [vmem:[#allocation2 + $0x1a0] sm:$0xff]
  %v6724 = vld [vmem:[#allocation2 + $0x1a8] sm:$0xff]
  %v6725 = vld [vmem:[#allocation2 + $0x1b0] sm:$0xff]
  %v6726 = vld [vmem:[#allocation2 + $0x1b8] sm:$0xff]
  %v6727 = vld [vmem:[#allocation2 + $0x1c0] sm:$0xff]
  %v6728 = vld [vmem:[#allocation2 + $0x1c8] sm:$0xff]
  %v6729 = vld [vmem:[#allocation2 + $0x1d0] sm:$0xff]
  %v6730 = vld [vmem:[#allocation2 + $0x1d8] sm:$0xff]
  %v6731 = vld [vmem:[#allocation2 + $0x1e0] sm:$0xff]
  %v6732 = vld [vmem:[#allocation2 + $0x1e8] sm:$0xff]
  %v6733 = vld [vmem:[#allocation2 + $0x1f0] sm:$0xff]
  %v6734 = vld [vmem:[#allocation2 + $0x1f8] sm:$0xff]
  %v6735 = vld [vmem:[%s4] sm:$0xff]
  %v6736 = vld [vmem:[%s4 + $0x8] sm:$0xff]
  %v6737 = vld [vmem:[%s4 + $0x10] sm:$0xff]
  %v6738 = vld [vmem:[%s4 + $0x18] sm:$0xff]
  %v6739 = vld [vmem:[%s4 + $0x20] sm:$0xff]
  %v6740 = vld [vmem:[%s4 + $0x28] sm:$0xff]
  %v6741 = vld [vmem:[%s4 + $0x30] sm:$0xff]
  %v6742 = vld [vmem:[%s4 + $0x38] sm:$0xff]
  %v6743 = vld [vmem:[%s4 + $0x40] sm:$0xff]
  %v6744 = vld [vmem:[%s4 + $0x48] sm:$0xff]
  %v6745 = vld [vmem:[%s4 + $0x50] sm:$0xff]
  %v6746 = vld [vmem:[%s4 + $0x58] sm:$0xff]
  %v6747 = vld [vmem:[%s5] sm:$0x1]
  %v6749 = vperm.slane %v6747, 0
  %vm6751 = vcmask 785408
  %v6753 = vsel %vm6751, %v6671, 0
  %v6756 = vsel %vm6751, %v6672, 0
  %v6759 = vsel %vm6751, %v6673, 0
  %v6762 = vsel %vm6751, %v6674, 0
  %v6765 = vsel %vm6751, %v6675, 0
  %v6768 = vsel %vm6751, %v6676, 0
  %v6771 = vsel %vm6751, %v6677, 0
  %v6774 = vsel %vm6751, %v6678, 0
  %v6777 = vsel %vm6751, %v6679, 0
  %v6780 = vsel %vm6751, %v6680, 0
  %v6783 = vsel %vm6751, %v6681, 0
  %v6786 = vsel %vm6751, %v6682, 0
  %v6789 = vsel %vm6751, %v6683, 0
  %v6792 = vsel %vm6751, %v6684, 0
  %v6795 = vsel %vm6751, %v6685, 0
  %v6798 = vsel %vm6751, %v6686, 0
  %v6801 = vsel %vm6751, %v6687, 0
  %v6804 = vsel %vm6751, %v6688, 0
  %v6807 = vsel %vm6751, %v6689, 0
  %v6810 = vsel %vm6751, %v6690, 0
  %v6813 = vsel %vm6751, %v6691, 0
  %v6816 = vsel %vm6751, %v6692, 0
  %v6819 = vsel %vm6751, %v6693, 0
  %v6822 = vsel %vm6751, %v6694, 0
  %v6825 = vsel %vm6751, %v6695, 0
  %v6828 = vsel %vm6751, %v6696, 0
  %v6831 = vsel %vm6751, %v6697, 0
  %v6834 = vsel %vm6751, %v6698, 0
  %v6837 = vsel %vm6751, %v6699, 0
  %v6840 = vsel %vm6751, %v6700, 0
  %v6843 = vsel %vm6751, %v6701, 0
  %v6846 = vsel %vm6751, %v6702, 0
  %v6849 = vsel %vm6751, %v6703, 0
  %v6852 = vsel %vm6751, %v6704, 0
  %v6855 = vsel %vm6751, %v6705, 0
  %v6858 = vsel %vm6751, %v6706, 0
  %v6861 = vsel %vm6751, %v6707, 0
  %v6864 = vsel %vm6751, %v6708, 0
  %v6867 = vsel %vm6751, %v6709, 0
  %v6870 = vsel %vm6751, %v6710, 0
  %v6873 = vsel %vm6751, %v6711, 0
  %v6876 = vsel %vm6751, %v6712, 0
  %v6879 = vsel %vm6751, %v6713, 0
  %v6882 = vsel %vm6751, %v6714, 0
  %v6885 = vsel %vm6751, %v6715, 0
  %v6888 = vsel %vm6751, %v6716, 0
  %v6891 = vsel %vm6751, %v6717, 0
  %v6894 = vsel %vm6751, %v6718, 0
  %v6897 = vsel %vm6751, %v6719, 0
  %v6900 = vsel %vm6751, %v6720, 0
  %v6903 = vsel %vm6751, %v6721, 0
  %v6906 = vsel %vm6751, %v6722, 0
  %v6909 = vsel %vm6751, %v6723, 0
  %v6912 = vsel %vm6751, %v6724, 0
  %v6915 = vsel %vm6751, %v6725, 0
  %v6918 = vsel %vm6751, %v6726, 0
  %v6921 = vsel %vm6751, %v6727, 0
  %v6924 = vsel %vm6751, %v6728, 0
  %v6927 = vsel %vm6751, %v6729, 0
  %v6930 = vsel %vm6751, %v6730, 0
  %v6933 = vsel %vm6751, %v6731, 0
  %v6936 = vsel %vm6751, %v6732, 0
  %v6939 = vsel %vm6751, %v6733, 0
  %v6942 = vsel %vm6751, %v6734, 0
  %6944 = vmatpush.msra.mxu0 0.0
  %6945 = vmatpush.msra.mxu0 0.0
  %6946 = vmatpush.msra.mxu0 0.0
  %6947 = vmatpush.msra.mxu0 0.0
  %6948 = vmatpush.msra.mxu0 %v6746
  %6949 = vmatpush.msra.mxu0 %v6745
  %6950 = vmatpush.msra.mxu0 %v6744
  %6951 = vmatpush.msra.mxu0 %v6743
  %6952 = vmatpush.msra.mxu0 %v6742
  %6953 = vmatpush.msra.mxu0 %v6741
  %6954 = vmatpush.msra.mxu0 %v6740
  %6955 = vmatpush.msra.mxu0 %v6739
  %6956 = vmatpush.msra.mxu0 %v6738
  %6957 = vmatpush.msra.mxu0 %v6737
  %6958 = vmatpush.msra.mxu0 %v6736
  %6959 = vmatpush.msra.mxu0 %v6735
  %6960 = vmatmul.f32.gmra.mxu0 %v6753
  %v6961 = vpop.f32.mrf.mxu0
  %v6962 = vadd.f32 %v6749, %v6961
  %6963 = vmatmul.f32.gmra.mxu0 %v6756
  %v6964 = vpop.f32.mrf.mxu0
  %v6965 = vadd.f32 %v6749, %v6964
  %6966 = vmatmul.f32.gmra.mxu0 %v6759
  %v6967 = vpop.f32.mrf.mxu0
  %v6968 = vadd.f32 %v6749, %v6967
  %6969 = vmatmul.f32.gmra.mxu0 %v6762
  %v6970 = vpop.f32.mrf.mxu0
  %v6971 = vadd.f32 %v6749, %v6970
  %6972 = vmatmul.f32.gmra.mxu0 %v6765
  %v6973 = vpop.f32.mrf.mxu0
  %v6974 = vadd.f32 %v6749, %v6973
  %6975 = vmatmul.f32.gmra.mxu0 %v6768
  %v6976 = vpop.f32.mrf.mxu0
  %v6977 = vadd.f32 %v6749, %v6976
  %6978 = vmatmul.f32.gmra.mxu0 %v6771
  %v6979 = vpop.f32.mrf.mxu0
  %v6980 = vadd.f32 %v6749, %v6979
  %6981 = vmatmul.f32.gmra.mxu0 %v6774
  %v6982 = vpop.f32.mrf.mxu0
  %v6983 = vadd.f32 %v6749, %v6982
  %6984 = vmatmul.f32.gmra.mxu0 %v6777
  %v6985 = vpop.f32.mrf.mxu0
  %v6986 = vadd.f32 %v6749, %v6985
  %6987 = vmatmul.f32.gmra.mxu0 %v6780
  %v6988 = vpop.f32.mrf.mxu0
  %v6989 = vadd.f32 %v6749, %v6988
  %6990 = vmatmul.f32.gmra.mxu0 %v6783
  %v6991 = vpop.f32.mrf.mxu0
  %v6992 = vadd.f32 %v6749, %v6991
  %6993 = vmatmul.f32.gmra.mxu0 %v6786
  %v6994 = vpop.f32.mrf.mxu0
  %v6995 = vadd.f32 %v6749, %v6994
  %6996 = vmatmul.f32.gmra.mxu0 %v6789
  %v6997 = vpop.f32.mrf.mxu0
  %v6998 = vadd.f32 %v6749, %v6997
  %6999 = vmatmul.f32.gmra.mxu0 %v6792
  %v7000 = vpop.f32.mrf.mxu0
  %v7001 = vadd.f32 %v6749, %v7000
  %7002 = vmatmul.f32.gmra.mxu0 %v6795
  %v7003 = vpop.f32.mrf.mxu0
  %v7004 = vadd.f32 %v6749, %v7003
  %7005 = vmatmul.f32.gmra.mxu0 %v6798
  %v7006 = vpop.f32.mrf.mxu0
  %v7007 = vadd.f32 %v6749, %v7006
  %7008 = vmatmul.f32.gmra.mxu0 %v6801
  %v7009 = vpop.f32.mrf.mxu0
  %v7010 = vadd.f32 %v6749, %v7009
  %7011 = vmatmul.f32.gmra.mxu0 %v6804
  %v7012 = vpop.f32.mrf.mxu0
  %v7013 = vadd.f32 %v6749, %v7012
  %7014 = vmatmul.f32.gmra.mxu0 %v6807
  %v7015 = vpop.f32.mrf.mxu0
  %v7016 = vadd.f32 %v6749, %v7015
  %7017 = vmatmul.f32.gmra.mxu0 %v6810
  %v7018 = vpop.f32.mrf.mxu0
  %v7019 = vadd.f32 %v6749, %v7018
  %7020 = vmatmul.f32.gmra.mxu0 %v6813
  %v7021 = vpop.f32.mrf.mxu0
  %v7022 = vadd.f32 %v6749, %v7021
  %7023 = vmatmul.f32.gmra.mxu0 %v6816
  %v7024 = vpop.f32.mrf.mxu0
  %v7025 = vadd.f32 %v6749, %v7024
  %7026 = vmatmul.f32.gmra.mxu0 %v6819
  %v7027 = vpop.f32.mrf.mxu0
  %v7028 = vadd.f32 %v6749, %v7027
  %7029 = vmatmul.f32.gmra.mxu0 %v6822
  %v7030 = vpop.f32.mrf.mxu0
  %v7031 = vadd.f32 %v6749, %v7030
  %7032 = vmatmul.f32.gmra.mxu0 %v6825
  %v7033 = vpop.f32.mrf.mxu0
  %v7034 = vadd.f32 %v6749, %v7033
  %7035 = vmatmul.f32.gmra.mxu0 %v6828
  %v7036 = vpop.f32.mrf.mxu0
  %v7037 = vadd.f32 %v6749, %v7036
  %7038 = vmatmul.f32.gmra.mxu0 %v6831
  %v7039 = vpop.f32.mrf.mxu0
  %v7040 = vadd.f32 %v6749, %v7039
  %7041 = vmatmul.f32.gmra.mxu0 %v6834
  %v7042 = vpop.f32.mrf.mxu0
  %v7043 = vadd.f32 %v6749, %v7042
  %7044 = vmatmul.f32.gmra.mxu0 %v6837
  %v7045 = vpop.f32.mrf.mxu0
  %v7046 = vadd.f32 %v6749, %v7045
  %7047 = vmatmul.f32.gmra.mxu0 %v6840
  %v7048 = vpop.f32.mrf.mxu0
  %v7049 = vadd.f32 %v6749, %v7048
  %7050 = vmatmul.f32.gmra.mxu0 %v6843
  %v7051 = vpop.f32.mrf.mxu0
  %v7052 = vadd.f32 %v6749, %v7051
  %7053 = vmatmul.f32.gmra.mxu0 %v6846
  %v7054 = vpop.f32.mrf.mxu0
  %v7055 = vadd.f32 %v6749, %v7054
  %7056 = vmatmul.f32.gmra.mxu0 %v6849
  %v7057 = vpop.f32.mrf.mxu0
  %v7058 = vadd.f32 %v6749, %v7057
  %7059 = vmatmul.f32.gmra.mxu0 %v6852
  %v7060 = vpop.f32.mrf.mxu0
  %v7061 = vadd.f32 %v6749, %v7060
  %7062 = vmatmul.f32.gmra.mxu0 %v6855
  %v7063 = vpop.f32.mrf.mxu0
  %v7064 = vadd.f32 %v6749, %v7063
  %7065 = vmatmul.f32.gmra.mxu0 %v6858
  %v7066 = vpop.f32.mrf.mxu0
  %v7067 = vadd.f32 %v6749, %v7066
  %7068 = vmatmul.f32.gmra.mxu0 %v6861
  %v7069 = vpop.f32.mrf.mxu0
  %v7070 = vadd.f32 %v6749, %v7069
  %7071 = vmatmul.f32.gmra.mxu0 %v6864
  %v7072 = vpop.f32.mrf.mxu0
  %v7073 = vadd.f32 %v6749, %v7072
  %7074 = vmatmul.f32.gmra.mxu0 %v6867
  %v7075 = vpop.f32.mrf.mxu0
  %v7076 = vadd.f32 %v6749, %v7075
  %7077 = vmatmul.f32.gmra.mxu0 %v6870
  %v7078 = vpop.f32.mrf.mxu0
  %v7079 = vadd.f32 %v6749, %v7078
  %7080 = vmatmul.f32.gmra.mxu0 %v6873
  %v7081 = vpop.f32.mrf.mxu0
  %v7082 = vadd.f32 %v6749, %v7081
  %7083 = vmatmul.f32.gmra.mxu0 %v6876
  %v7084 = vpop.f32.mrf.mxu0
  %v7085 = vadd.f32 %v6749, %v7084
  %7086 = vmatmul.f32.gmra.mxu0 %v6879
  %v7087 = vpop.f32.mrf.mxu0
  %v7088 = vadd.f32 %v6749, %v7087
  %7089 = vmatmul.f32.gmra.mxu0 %v6882
  %v7090 = vpop.f32.mrf.mxu0
  %v7091 = vadd.f32 %v6749, %v7090
  %7092 = vmatmul.f32.gmra.mxu0 %v6885
  %v7093 = vpop.f32.mrf.mxu0
  %v7094 = vadd.f32 %v6749, %v7093
  %7095 = vmatmul.f32.gmra.mxu0 %v6888
  %v7096 = vpop.f32.mrf.mxu0
  %v7097 = vadd.f32 %v6749, %v7096
  %7098 = vmatmul.f32.gmra.mxu0 %v6891
  %v7099 = vpop.f32.mrf.mxu0
  %v7100 = vadd.f32 %v6749, %v7099
  %7101 = vmatmul.f32.gmra.mxu0 %v6894
  %v7102 = vpop.f32.mrf.mxu0
  %v7103 = vadd.f32 %v6749, %v7102
  %7104 = vmatmul.f32.gmra.mxu0 %v6897
  %v7105 = vpop.f32.mrf.mxu0
  %v7106 = vadd.f32 %v6749, %v7105
  %7107 = vmatmul.f32.gmra.mxu0 %v6900
  %v7108 = vpop.f32.mrf.mxu0
  %v7109 = vadd.f32 %v6749, %v7108
  %7110 = vmatmul.f32.gmra.mxu0 %v6903
  %v7111 = vpop.f32.mrf.mxu0
  %v7112 = vadd.f32 %v6749, %v7111
  %7113 = vmatmul.f32.gmra.mxu0 %v6906
  %v7114 = vpop.f32.mrf.mxu0
  %v7115 = vadd.f32 %v6749, %v7114
  %7116 = vmatmul.f32.gmra.mxu0 %v6909
  %v7117 = vpop.f32.mrf.mxu0
  %v7118 = vadd.f32 %v6749, %v7117
  %7119 = vmatmul.f32.gmra.mxu0 %v6912
  %v7120 = vpop.f32.mrf.mxu0
  %v7121 = vadd.f32 %v6749, %v7120
  %7122 = vmatmul.f32.gmra.mxu0 %v6915
  %v7123 = vpop.f32.mrf.mxu0
  %v7124 = vadd.f32 %v6749, %v7123
  %7125 = vmatmul.f32.gmra.mxu0 %v6918
  %v7126 = vpop.f32.mrf.mxu0
  %v7127 = vadd.f32 %v6749, %v7126
  %7128 = vmatmul.f32.gmra.mxu0 %v6921
  %v7129 = vpop.f32.mrf.mxu0
  %v7130 = vadd.f32 %v6749, %v7129
  %7131 = vmatmul.f32.gmra.mxu0 %v6924
  %v7132 = vpop.f32.mrf.mxu0
  %v7133 = vadd.f32 %v6749, %v7132
  %7134 = vmatmul.f32.gmra.mxu0 %v6927
  %v7135 = vpop.f32.mrf.mxu0
  %v7136 = vadd.f32 %v6749, %v7135
  %7137 = vmatmul.f32.gmra.mxu0 %v6930
  %v7138 = vpop.f32.mrf.mxu0
  %v7139 = vadd.f32 %v6749, %v7138
  %7140 = vmatmul.f32.gmra.mxu0 %v6933
  %v7141 = vpop.f32.mrf.mxu0
  %v7142 = vadd.f32 %v6749, %v7141
  %7143 = vmatmul.f32.gmra.mxu0 %v6936
  %v7144 = vpop.f32.mrf.mxu0
  %v7145 = vadd.f32 %v6749, %v7144
  %7146 = vmatmul.f32.gmra.mxu0 %v6939
  %v7147 = vpop.f32.mrf.mxu0
  %v7148 = vadd.f32 %v6749, %v7147
  %7149 = vmatmul.f32.gmra.mxu0 %v6942
  %v7150 = vpop.f32.mrf.mxu0
  %v7151 = vadd.f32 %v6749, %v7150
  %7152 = vdwg.mxu0
  %v7153 = vsel %vm3652, %v6962, 0.0
  %v7154 = vsel %vm3652, %v6965, 0.0
  %v7155 = vadd.f32 %v7153, %v7154
  %v7156 = vrot.slane %v7155, 4
  %v7157 = vadd.f32 %v7155, %v7156
  %v7158 = vrot.slane %v7157, 2
  %v7159 = vadd.f32 %v7157, %v7158
  %v7160 = vrot.slane %v7159, 1
  %v7161 = vadd.f32 %v7159, %v7160
  %v7162 = vsel %vm3652, %v6968, 0.0
  %v7163 = vsel %vm3652, %v6971, 0.0
  %v7164 = vadd.f32 %v7162, %v7163
  %v7165 = vrot.slane %v7164, 4
  %v7166 = vadd.f32 %v7164, %v7165
  %v7167 = vrot.slane %v7166, 2
  %v7168 = vadd.f32 %v7166, %v7167
  %v7169 = vrot.slane %v7168, 1
  %v7170 = vadd.f32 %v7168, %v7169
  %v7171 = vsel %vm3652, %v6974, 0.0
  %v7172 = vsel %vm3652, %v6977, 0.0
  %v7173 = vadd.f32 %v7171, %v7172
  %v7174 = vrot.slane %v7173, 4
  %v7175 = vadd.f32 %v7173, %v7174
  %v7176 = vrot.slane %v7175, 2
  %v7177 = vadd.f32 %v7175, %v7176
  %v7178 = vrot.slane %v7177, 1
  %v7179 = vadd.f32 %v7177, %v7178
  %v7180 = vsel %vm3652, %v6980, 0.0
  %v7181 = vsel %vm3652, %v6983, 0.0
  %v7182 = vadd.f32 %v7180, %v7181
  %v7183 = vrot.slane %v7182, 4
  %v7184 = vadd.f32 %v7182, %v7183
  %v7185 = vrot.slane %v7184, 2
  %v7186 = vadd.f32 %v7184, %v7185
  %v7187 = vrot.slane %v7186, 1
  %v7188 = vadd.f32 %v7186, %v7187
  %v7189 = vsel %vm3652, %v6986, 0.0
  %v7190 = vsel %vm3652, %v6989, 0.0
  %v7191 = vadd.f32 %v7189, %v7190
  %v7192 = vrot.slane %v7191, 4
  %v7193 = vadd.f32 %v7191, %v7192
  %v7194 = vrot.slane %v7193, 2
  %v7195 = vadd.f32 %v7193, %v7194
  %v7196 = vrot.slane %v7195, 1
  %v7197 = vadd.f32 %v7195, %v7196
  %v7198 = vsel %vm3652, %v6992, 0.0
  %v7199 = vsel %vm3652, %v6995, 0.0
  %v7200 = vadd.f32 %v7198, %v7199
  %v7201 = vrot.slane %v7200, 4
  %v7202 = vadd.f32 %v7200, %v7201
  %v7203 = vrot.slane %v7202, 2
  %v7204 = vadd.f32 %v7202, %v7203
  %v7205 = vrot.slane %v7204, 1
  %v7206 = vadd.f32 %v7204, %v7205
  %v7207 = vsel %vm3652, %v6998, 0.0
  %v7208 = vsel %vm3652, %v7001, 0.0
  %v7209 = vadd.f32 %v7207, %v7208
  %v7210 = vrot.slane %v7209, 4
  %v7211 = vadd.f32 %v7209, %v7210
  %v7212 = vrot.slane %v7211, 2
  %v7213 = vadd.f32 %v7211, %v7212
  %v7214 = vrot.slane %v7213, 1
  %v7215 = vadd.f32 %v7213, %v7214
  %v7216 = vsel %vm3652, %v7004, 0.0
  %v7217 = vsel %vm3652, %v7007, 0.0
  %v7218 = vadd.f32 %v7216, %v7217
  %v7219 = vrot.slane %v7218, 4
  %v7220 = vadd.f32 %v7218, %v7219
  %v7221 = vrot.slane %v7220, 2
  %v7222 = vadd.f32 %v7220, %v7221
  %v7223 = vrot.slane %v7222, 1
  %v7224 = vadd.f32 %v7222, %v7223
  %v7225 = vsel %vm3652, %v7010, 0.0
  %v7226 = vsel %vm3652, %v7013, 0.0
  %v7227 = vadd.f32 %v7225, %v7226
  %v7228 = vrot.slane %v7227, 4
  %v7229 = vadd.f32 %v7227, %v7228
  %v7230 = vrot.slane %v7229, 2
  %v7231 = vadd.f32 %v7229, %v7230
  %v7232 = vrot.slane %v7231, 1
  %v7233 = vadd.f32 %v7231, %v7232
  %v7234 = vsel %vm3652, %v7016, 0.0
  %v7235 = vsel %vm3652, %v7019, 0.0
  %v7236 = vadd.f32 %v7234, %v7235
  %v7237 = vrot.slane %v7236, 4
  %v7238 = vadd.f32 %v7236, %v7237
  %v7239 = vrot.slane %v7238, 2
  %v7240 = vadd.f32 %v7238, %v7239
  %v7241 = vrot.slane %v7240, 1
  %v7242 = vadd.f32 %v7240, %v7241
  %v7243 = vsel %vm3652, %v7022, 0.0
  %v7244 = vsel %vm3652, %v7025, 0.0
  %v7245 = vadd.f32 %v7243, %v7244
  %v7246 = vrot.slane %v7245, 4
  %v7247 = vadd.f32 %v7245, %v7246
  %v7248 = vrot.slane %v7247, 2
  %v7249 = vadd.f32 %v7247, %v7248
  %v7250 = vrot.slane %v7249, 1
  %v7251 = vadd.f32 %v7249, %v7250
  %v7252 = vsel %vm3652, %v7028, 0.0
  %v7253 = vsel %vm3652, %v7031, 0.0
  %v7254 = vadd.f32 %v7252, %v7253
  %v7255 = vrot.slane %v7254, 4
  %v7256 = vadd.f32 %v7254, %v7255
  %v7257 = vrot.slane %v7256, 2
  %v7258 = vadd.f32 %v7256, %v7257
  %v7259 = vrot.slane %v7258, 1
  %v7260 = vadd.f32 %v7258, %v7259
  %v7261 = vsel %vm3652, %v7034, 0.0
  %v7262 = vsel %vm3652, %v7037, 0.0
  %v7263 = vadd.f32 %v7261, %v7262
  %v7264 = vrot.slane %v7263, 4
  %v7265 = vadd.f32 %v7263, %v7264
  %v7266 = vrot.slane %v7265, 2
  %v7267 = vadd.f32 %v7265, %v7266
  %v7268 = vrot.slane %v7267, 1
  %v7269 = vadd.f32 %v7267, %v7268
  %v7270 = vsel %vm3652, %v7040, 0.0
  %v7271 = vsel %vm3652, %v7043, 0.0
  %v7272 = vadd.f32 %v7270, %v7271
  %v7273 = vrot.slane %v7272, 4
  %v7274 = vadd.f32 %v7272, %v7273
  %v7275 = vrot.slane %v7274, 2
  %v7276 = vadd.f32 %v7274, %v7275
  %v7277 = vrot.slane %v7276, 1
  %v7278 = vadd.f32 %v7276, %v7277
  %v7279 = vsel %vm3652, %v7046, 0.0
  %v7280 = vsel %vm3652, %v7049, 0.0
  %v7281 = vadd.f32 %v7279, %v7280
  %v7282 = vrot.slane %v7281, 4
  %v7283 = vadd.f32 %v7281, %v7282
  %v7284 = vrot.slane %v7283, 2
  %v7285 = vadd.f32 %v7283, %v7284
  %v7286 = vrot.slane %v7285, 1
  %v7287 = vadd.f32 %v7285, %v7286
  %v7288 = vsel %vm3652, %v7052, 0.0
  %v7289 = vsel %vm3652, %v7055, 0.0
  %v7290 = vadd.f32 %v7288, %v7289
  %v7291 = vrot.slane %v7290, 4
  %v7292 = vadd.f32 %v7290, %v7291
  %v7293 = vrot.slane %v7292, 2
  %v7294 = vadd.f32 %v7292, %v7293
  %v7295 = vrot.slane %v7294, 1
  %v7296 = vadd.f32 %v7294, %v7295
  %v7297 = vsel %vm3652, %v7058, 0.0
  %v7298 = vsel %vm3652, %v7061, 0.0
  %v7299 = vadd.f32 %v7297, %v7298
  %v7300 = vrot.slane %v7299, 4
  %v7301 = vadd.f32 %v7299, %v7300
  %v7302 = vrot.slane %v7301, 2
  %v7303 = vadd.f32 %v7301, %v7302
  %v7304 = vrot.slane %v7303, 1
  %v7305 = vadd.f32 %v7303, %v7304
  %v7306 = vsel %vm3652, %v7064, 0.0
  %v7307 = vsel %vm3652, %v7067, 0.0
  %v7308 = vadd.f32 %v7306, %v7307
  %v7309 = vrot.slane %v7308, 4
  %v7310 = vadd.f32 %v7308, %v7309
  %v7311 = vrot.slane %v7310, 2
  %v7312 = vadd.f32 %v7310, %v7311
  %v7313 = vrot.slane %v7312, 1
  %v7314 = vadd.f32 %v7312, %v7313
  %v7315 = vsel %vm3652, %v7070, 0.0
  %v7316 = vsel %vm3652, %v7073, 0.0
  %v7317 = vadd.f32 %v7315, %v7316
  %v7318 = vrot.slane %v7317, 4
  %v7319 = vadd.f32 %v7317, %v7318
  %v7320 = vrot.slane %v7319, 2
  %v7321 = vadd.f32 %v7319, %v7320
  %v7322 = vrot.slane %v7321, 1
  %v7323 = vadd.f32 %v7321, %v7322
  %v7324 = vsel %vm3652, %v7076, 0.0
  %v7325 = vsel %vm3652, %v7079, 0.0
  %v7326 = vadd.f32 %v7324, %v7325
  %v7327 = vrot.slane %v7326, 4
  %v7328 = vadd.f32 %v7326, %v7327
  %v7329 = vrot.slane %v7328, 2
  %v7330 = vadd.f32 %v7328, %v7329
  %v7331 = vrot.slane %v7330, 1
  %v7332 = vadd.f32 %v7330, %v7331
  %v7333 = vsel %vm3652, %v7082, 0.0
  %v7334 = vsel %vm3652, %v7085, 0.0
  %v7335 = vadd.f32 %v7333, %v7334
  %v7336 = vrot.slane %v7335, 4
  %v7337 = vadd.f32 %v7335, %v7336
  %v7338 = vrot.slane %v7337, 2
  %v7339 = vadd.f32 %v7337, %v7338
  %v7340 = vrot.slane %v7339, 1
  %v7341 = vadd.f32 %v7339, %v7340
  %v7342 = vsel %vm3652, %v7088, 0.0
  %v7343 = vsel %vm3652, %v7091, 0.0
  %v7344 = vadd.f32 %v7342, %v7343
  %v7345 = vrot.slane %v7344, 4
  %v7346 = vadd.f32 %v7344, %v7345
  %v7347 = vrot.slane %v7346, 2
  %v7348 = vadd.f32 %v7346, %v7347
  %v7349 = vrot.slane %v7348, 1
  %v7350 = vadd.f32 %v7348, %v7349
  %v7351 = vsel %vm3652, %v7094, 0.0
  %v7352 = vsel %vm3652, %v7097, 0.0
  %v7353 = vadd.f32 %v7351, %v7352
  %v7354 = vrot.slane %v7353, 4
  %v7355 = vadd.f32 %v7353, %v7354
  %v7356 = vrot.slane %v7355, 2
  %v7357 = vadd.f32 %v7355, %v7356
  %v7358 = vrot.slane %v7357, 1
  %v7359 = vadd.f32 %v7357, %v7358
  %v7360 = vsel %vm3652, %v7100, 0.0
  %v7361 = vsel %vm3652, %v7103, 0.0
  %v7362 = vadd.f32 %v7360, %v7361
  %v7363 = vrot.slane %v7362, 4
  %v7364 = vadd.f32 %v7362, %v7363
  %v7365 = vrot.slane %v7364, 2
  %v7366 = vadd.f32 %v7364, %v7365
  %v7367 = vrot.slane %v7366, 1
  %v7368 = vadd.f32 %v7366, %v7367
  %v7369 = vsel %vm3652, %v7106, 0.0
  %v7370 = vsel %vm3652, %v7109, 0.0
  %v7371 = vadd.f32 %v7369, %v7370
  %v7372 = vrot.slane %v7371, 4
  %v7373 = vadd.f32 %v7371, %v7372
  %v7374 = vrot.slane %v7373, 2
  %v7375 = vadd.f32 %v7373, %v7374
  %v7376 = vrot.slane %v7375, 1
  %v7377 = vadd.f32 %v7375, %v7376
  %v7378 = vsel %vm3652, %v7112, 0.0
  %v7379 = vsel %vm3652, %v7115, 0.0
  %v7380 = vadd.f32 %v7378, %v7379
  %v7381 = vrot.slane %v7380, 4
  %v7382 = vadd.f32 %v7380, %v7381
  %v7383 = vrot.slane %v7382, 2
  %v7384 = vadd.f32 %v7382, %v7383
  %v7385 = vrot.slane %v7384, 1
  %v7386 = vadd.f32 %v7384, %v7385
  %v7387 = vsel %vm3652, %v7118, 0.0
  %v7388 = vsel %vm3652, %v7121, 0.0
  %v7389 = vadd.f32 %v7387, %v7388
  %v7390 = vrot.slane %v7389, 4
  %v7391 = vadd.f32 %v7389, %v7390
  %v7392 = vrot.slane %v7391, 2
  %v7393 = vadd.f32 %v7391, %v7392
  %v7394 = vrot.slane %v7393, 1
  %v7395 = vadd.f32 %v7393, %v7394
  %v7396 = vsel %vm3652, %v7124, 0.0
  %v7397 = vsel %vm3652, %v7127, 0.0
  %v7398 = vadd.f32 %v7396, %v7397
  %v7399 = vrot.slane %v7398, 4
  %v7400 = vadd.f32 %v7398, %v7399
  %v7401 = vrot.slane %v7400, 2
  %v7402 = vadd.f32 %v7400, %v7401
  %v7403 = vrot.slane %v7402, 1
  %v7404 = vadd.f32 %v7402, %v7403
  %v7405 = vsel %vm3652, %v7130, 0.0
  %v7406 = vsel %vm3652, %v7133, 0.0
  %v7407 = vadd.f32 %v7405, %v7406
  %v7408 = vrot.slane %v7407, 4
  %v7409 = vadd.f32 %v7407, %v7408
  %v7410 = vrot.slane %v7409, 2
  %v7411 = vadd.f32 %v7409, %v7410
  %v7412 = vrot.slane %v7411, 1
  %v7413 = vadd.f32 %v7411, %v7412
  %v7414 = vsel %vm3652, %v7136, 0.0
  %v7415 = vsel %vm3652, %v7139, 0.0
  %v7416 = vadd.f32 %v7414, %v7415
  %v7417 = vrot.slane %v7416, 4
  %v7418 = vadd.f32 %v7416, %v7417
  %v7419 = vrot.slane %v7418, 2
  %v7420 = vadd.f32 %v7418, %v7419
  %v7421 = vrot.slane %v7420, 1
  %v7422 = vadd.f32 %v7420, %v7421
  %v7423 = vsel %vm3652, %v7142, 0.0
  %v7424 = vsel %vm3652, %v7145, 0.0
  %v7425 = vadd.f32 %v7423, %v7424
  %v7426 = vrot.slane %v7425, 4
  %v7427 = vadd.f32 %v7425, %v7426
  %v7428 = vrot.slane %v7427, 2
  %v7429 = vadd.f32 %v7427, %v7428
  %v7430 = vrot.slane %v7429, 1
  %v7431 = vadd.f32 %v7429, %v7430
  %v7432 = vsel %vm3652, %v7148, 0.0
  %v7433 = vsel %vm3652, %v7151, 0.0
  %v7434 = vadd.f32 %v7432, %v7433
  %v7435 = vrot.slane %v7434, 4
  %v7436 = vadd.f32 %v7434, %v7435
  %v7437 = vrot.slane %v7436, 2
  %v7438 = vadd.f32 %v7436, %v7437
  %v7439 = vrot.slane %v7438, 1
  %v7440 = vadd.f32 %v7438, %v7439
  %v7441 = vsel %vm3652, %v6962, -inf
  %v7442 = vsel %vm3652, %v6965, -inf
  %v7443 = vmax.f32 %v7441, %v7442
  %v7444 = vrot.slane %v7443, 4
  %v7445 = vmax.f32 %v7443, %v7444
  %v7446 = vrot.slane %v7445, 2
  %v7447 = vmax.f32 %v7445, %v7446
  %v7448 = vrot.slane %v7447, 1
  %v7449 = vmax.f32 %v7447, %v7448
  %v7450 = vsel %vm3652, %v6968, -inf
  %v7451 = vsel %vm3652, %v6971, -inf
  %v7452 = vmax.f32 %v7450, %v7451
  %v7453 = vrot.slane %v7452, 4
  %v7454 = vmax.f32 %v7452, %v7453
  %v7455 = vrot.slane %v7454, 2
  %v7456 = vmax.f32 %v7454, %v7455
  %v7457 = vrot.slane %v7456, 1
  %v7458 = vmax.f32 %v7456, %v7457
  %v7459 = vsel %vm3652, %v6974, -inf
  %v7460 = vsel %vm3652, %v6977, -inf
  %v7461 = vmax.f32 %v7459, %v7460
  %v7462 = vrot.slane %v7461, 4
  %v7463 = vmax.f32 %v7461, %v7462
  %v7464 = vrot.slane %v7463, 2
  %v7465 = vmax.f32 %v7463, %v7464
  %v7466 = vrot.slane %v7465, 1
  %v7467 = vmax.f32 %v7465, %v7466
  %v7468 = vsel %vm3652, %v6980, -inf
  %v7469 = vsel %vm3652, %v6983, -inf
  %v7470 = vmax.f32 %v7468, %v7469
  %v7471 = vrot.slane %v7470, 4
  %v7472 = vmax.f32 %v7470, %v7471
  %v7473 = vrot.slane %v7472, 2
  %v7474 = vmax.f32 %v7472, %v7473
  %v7475 = vrot.slane %v7474, 1
  %v7476 = vmax.f32 %v7474, %v7475
  %v7477 = vsel %vm3652, %v6986, -inf
  %v7478 = vsel %vm3652, %v6989, -inf
  %v7479 = vmax.f32 %v7477, %v7478
  %v7480 = vrot.slane %v7479, 4
  %v7481 = vmax.f32 %v7479, %v7480
  %v7482 = vrot.slane %v7481, 2
  %v7483 = vmax.f32 %v7481, %v7482
  %v7484 = vrot.slane %v7483, 1
  %v7485 = vmax.f32 %v7483, %v7484
  %v7486 = vsel %vm3652, %v6992, -inf
  %v7487 = vsel %vm3652, %v6995, -inf
  %v7488 = vmax.f32 %v7486, %v7487
  %v7489 = vrot.slane %v7488, 4
  %v7490 = vmax.f32 %v7488, %v7489
  %v7491 = vrot.slane %v7490, 2
  %v7492 = vmax.f32 %v7490, %v7491
  %v7493 = vrot.slane %v7492, 1
  %v7494 = vmax.f32 %v7492, %v7493
  %v7495 = vsel %vm3652, %v6998, -inf
  %v7496 = vsel %vm3652, %v7001, -inf
  %v7497 = vmax.f32 %v7495, %v7496
  %v7498 = vrot.slane %v7497, 4
  %v7499 = vmax.f32 %v7497, %v7498
  %v7500 = vrot.slane %v7499, 2
  %v7501 = vmax.f32 %v7499, %v7500
  %v7502 = vrot.slane %v7501, 1
  %v7503 = vmax.f32 %v7501, %v7502
  %v7504 = vsel %vm3652, %v7004, -inf
  %v7505 = vsel %vm3652, %v7007, -inf
  %v7506 = vmax.f32 %v7504, %v7505
  %v7507 = vrot.slane %v7506, 4
  %v7508 = vmax.f32 %v7506, %v7507
  %v7509 = vrot.slane %v7508, 2
  %v7510 = vmax.f32 %v7508, %v7509
  %v7511 = vrot.slane %v7510, 1
  %v7512 = vmax.f32 %v7510, %v7511
  %v7513 = vsel %vm3652, %v7010, -inf
  %v7514 = vsel %vm3652, %v7013, -inf
  %v7515 = vmax.f32 %v7513, %v7514
  %v7516 = vrot.slane %v7515, 4
  %v7517 = vmax.f32 %v7515, %v7516
  %v7518 = vrot.slane %v7517, 2
  %v7519 = vmax.f32 %v7517, %v7518
  %v7520 = vrot.slane %v7519, 1
  %v7521 = vmax.f32 %v7519, %v7520
  %v7522 = vsel %vm3652, %v7016, -inf
  %v7523 = vsel %vm3652, %v7019, -inf
  %v7524 = vmax.f32 %v7522, %v7523
  %v7525 = vrot.slane %v7524, 4
  %v7526 = vmax.f32 %v7524, %v7525
  %v7527 = vrot.slane %v7526, 2
  %v7528 = vmax.f32 %v7526, %v7527
  %v7529 = vrot.slane %v7528, 1
  %v7530 = vmax.f32 %v7528, %v7529
  %v7531 = vsel %vm3652, %v7022, -inf
  %v7532 = vsel %vm3652, %v7025, -inf
  %v7533 = vmax.f32 %v7531, %v7532
  %v7534 = vrot.slane %v7533, 4
  %v7535 = vmax.f32 %v7533, %v7534
  %v7536 = vrot.slane %v7535, 2
  %v7537 = vmax.f32 %v7535, %v7536
  %v7538 = vrot.slane %v7537, 1
  %v7539 = vmax.f32 %v7537, %v7538
  %v7540 = vsel %vm3652, %v7028, -inf
  %v7541 = vsel %vm3652, %v7031, -inf
  %v7542 = vmax.f32 %v7540, %v7541
  %v7543 = vrot.slane %v7542, 4
  %v7544 = vmax.f32 %v7542, %v7543
  %v7545 = vrot.slane %v7544, 2
  %v7546 = vmax.f32 %v7544, %v7545
  %v7547 = vrot.slane %v7546, 1
  %v7548 = vmax.f32 %v7546, %v7547
  %v7549 = vsel %vm3652, %v7034, -inf
  %v7550 = vsel %vm3652, %v7037, -inf
  %v7551 = vmax.f32 %v7549, %v7550
  %v7552 = vrot.slane %v7551, 4
  %v7553 = vmax.f32 %v7551, %v7552
  %v7554 = vrot.slane %v7553, 2
  %v7555 = vmax.f32 %v7553, %v7554
  %v7556 = vrot.slane %v7555, 1
  %v7557 = vmax.f32 %v7555, %v7556
  %v7558 = vsel %vm3652, %v7040, -inf
  %v7559 = vsel %vm3652, %v7043, -inf
  %v7560 = vmax.f32 %v7558, %v7559
  %v7561 = vrot.slane %v7560, 4
  %v7562 = vmax.f32 %v7560, %v7561
  %v7563 = vrot.slane %v7562, 2
  %v7564 = vmax.f32 %v7562, %v7563
  %v7565 = vrot.slane %v7564, 1
  %v7566 = vmax.f32 %v7564, %v7565
  %v7567 = vsel %vm3652, %v7046, -inf
  %v7568 = vsel %vm3652, %v7049, -inf
  %v7569 = vmax.f32 %v7567, %v7568
  %v7570 = vrot.slane %v7569, 4
  %v7571 = vmax.f32 %v7569, %v7570
  %v7572 = vrot.slane %v7571, 2
  %v7573 = vmax.f32 %v7571, %v7572
  %v7574 = vrot.slane %v7573, 1
  %v7575 = vmax.f32 %v7573, %v7574
  %v7576 = vsel %vm3652, %v7052, -inf
  %v7577 = vsel %vm3652, %v7055, -inf
  %v7578 = vmax.f32 %v7576, %v7577
  %v7579 = vrot.slane %v7578, 4
  %v7580 = vmax.f32 %v7578, %v7579
  %v7581 = vrot.slane %v7580, 2
  %v7582 = vmax.f32 %v7580, %v7581
  %v7583 = vrot.slane %v7582, 1
  %v7584 = vmax.f32 %v7582, %v7583
  %v7585 = vsel %vm3652, %v7058, -inf
  %v7586 = vsel %vm3652, %v7061, -inf
  %v7587 = vmax.f32 %v7585, %v7586
  %v7588 = vrot.slane %v7587, 4
  %v7589 = vmax.f32 %v7587, %v7588
  %v7590 = vrot.slane %v7589, 2
  %v7591 = vmax.f32 %v7589, %v7590
  %v7592 = vrot.slane %v7591, 1
  %v7593 = vmax.f32 %v7591, %v7592
  %v7594 = vsel %vm3652, %v7064, -inf
  %v7595 = vsel %vm3652, %v7067, -inf
  %v7596 = vmax.f32 %v7594, %v7595
  %v7597 = vrot.slane %v7596, 4
  %v7598 = vmax.f32 %v7596, %v7597
  %v7599 = vrot.slane %v7598, 2
  %v7600 = vmax.f32 %v7598, %v7599
  %v7601 = vrot.slane %v7600, 1
  %v7602 = vmax.f32 %v7600, %v7601
  %v7603 = vsel %vm3652, %v7070, -inf
  %v7604 = vsel %vm3652, %v7073, -inf
  %v7605 = vmax.f32 %v7603, %v7604
  %v7606 = vrot.slane %v7605, 4
  %v7607 = vmax.f32 %v7605, %v7606
  %v7608 = vrot.slane %v7607, 2
  %v7609 = vmax.f32 %v7607, %v7608
  %v7610 = vrot.slane %v7609, 1
  %v7611 = vmax.f32 %v7609, %v7610
  %v7612 = vsel %vm3652, %v7076, -inf
  %v7613 = vsel %vm3652, %v7079, -inf
  %v7614 = vmax.f32 %v7612, %v7613
  %v7615 = vrot.slane %v7614, 4
  %v7616 = vmax.f32 %v7614, %v7615
  %v7617 = vrot.slane %v7616, 2
  %v7618 = vmax.f32 %v7616, %v7617
  %v7619 = vrot.slane %v7618, 1
  %v7620 = vmax.f32 %v7618, %v7619
  %v7621 = vsel %vm3652, %v7082, -inf
  %v7622 = vsel %vm3652, %v7085, -inf
  %v7623 = vmax.f32 %v7621, %v7622
  %v7624 = vrot.slane %v7623, 4
  %v7625 = vmax.f32 %v7623, %v7624
  %v7626 = vrot.slane %v7625, 2
  %v7627 = vmax.f32 %v7625, %v7626
  %v7628 = vrot.slane %v7627, 1
  %v7629 = vmax.f32 %v7627, %v7628
  %v7630 = vsel %vm3652, %v7088, -inf
  %v7631 = vsel %vm3652, %v7091, -inf
  %v7632 = vmax.f32 %v7630, %v7631
  %v7633 = vrot.slane %v7632, 4
  %v7634 = vmax.f32 %v7632, %v7633
  %v7635 = vrot.slane %v7634, 2
  %v7636 = vmax.f32 %v7634, %v7635
  %v7637 = vrot.slane %v7636, 1
  %v7638 = vmax.f32 %v7636, %v7637
  %v7639 = vsel %vm3652, %v7094, -inf
  %v7640 = vsel %vm3652, %v7097, -inf
  %v7641 = vmax.f32 %v7639, %v7640
  %v7642 = vrot.slane %v7641, 4
  %v7643 = vmax.f32 %v7641, %v7642
  %v7644 = vrot.slane %v7643, 2
  %v7645 = vmax.f32 %v7643, %v7644
  %v7646 = vrot.slane %v7645, 1
  %v7647 = vmax.f32 %v7645, %v7646
  %v7648 = vsel %vm3652, %v7100, -inf
  %v7649 = vsel %vm3652, %v7103, -inf
  %v7650 = vmax.f32 %v7648, %v7649
  %v7651 = vrot.slane %v7650, 4
  %v7652 = vmax.f32 %v7650, %v7651
  %v7653 = vrot.slane %v7652, 2
  %v7654 = vmax.f32 %v7652, %v7653
  %v7655 = vrot.slane %v7654, 1
  %v7656 = vmax.f32 %v7654, %v7655
  %v7657 = vsel %vm3652, %v7106, -inf
  %v7658 = vsel %vm3652, %v7109, -inf
  %v7659 = vmax.f32 %v7657, %v7658
  %v7660 = vrot.slane %v7659, 4
  %v7661 = vmax.f32 %v7659, %v7660
  %v7662 = vrot.slane %v7661, 2
  %v7663 = vmax.f32 %v7661, %v7662
  %v7664 = vrot.slane %v7663, 1
  %v7665 = vmax.f32 %v7663, %v7664
  %v7666 = vsel %vm3652, %v7112, -inf
  %v7667 = vsel %vm3652, %v7115, -inf
  %v7668 = vmax.f32 %v7666, %v7667
  %v7669 = vrot.slane %v7668, 4
  %v7670 = vmax.f32 %v7668, %v7669
  %v7671 = vrot.slane %v7670, 2
  %v7672 = vmax.f32 %v7670, %v7671
  %v7673 = vrot.slane %v7672, 1
  %v7674 = vmax.f32 %v7672, %v7673
  %v7675 = vsel %vm3652, %v7118, -inf
  %v7676 = vsel %vm3652, %v7121, -inf
  %v7677 = vmax.f32 %v7675, %v7676
  %v7678 = vrot.slane %v7677, 4
  %v7679 = vmax.f32 %v7677, %v7678
  %v7680 = vrot.slane %v7679, 2
  %v7681 = vmax.f32 %v7679, %v7680
  %v7682 = vrot.slane %v7681, 1
  %v7683 = vmax.f32 %v7681, %v7682
  %v7684 = vsel %vm3652, %v7124, -inf
  %v7685 = vsel %vm3652, %v7127, -inf
  %v7686 = vmax.f32 %v7684, %v7685
  %v7687 = vrot.slane %v7686, 4
  %v7688 = vmax.f32 %v7686, %v7687
  %v7689 = vrot.slane %v7688, 2
  %v7690 = vmax.f32 %v7688, %v7689
  %v7691 = vrot.slane %v7690, 1
  %v7692 = vmax.f32 %v7690, %v7691
  %v7693 = vsel %vm3652, %v7130, -inf
  %v7694 = vsel %vm3652, %v7133, -inf
  %v7695 = vmax.f32 %v7693, %v7694
  %v7696 = vrot.slane %v7695, 4
  %v7697 = vmax.f32 %v7695, %v7696
  %v7698 = vrot.slane %v7697, 2
  %v7699 = vmax.f32 %v7697, %v7698
  %v7700 = vrot.slane %v7699, 1
  %v7701 = vmax.f32 %v7699, %v7700
  %v7702 = vsel %vm3652, %v7136, -inf
  %v7703 = vsel %vm3652, %v7139, -inf
  %v7704 = vmax.f32 %v7702, %v7703
  %v7705 = vrot.slane %v7704, 4
  %v7706 = vmax.f32 %v7704, %v7705
  %v7707 = vrot.slane %v7706, 2
  %v7708 = vmax.f32 %v7706, %v7707
  %v7709 = vrot.slane %v7708, 1
  %v7710 = vmax.f32 %v7708, %v7709
  %v7711 = vsel %vm3652, %v7142, -inf
  %v7712 = vsel %vm3652, %v7145, -inf
  %v7713 = vmax.f32 %v7711, %v7712
  %v7714 = vrot.slane %v7713, 4
  %v7715 = vmax.f32 %v7713, %v7714
  %v7716 = vrot.slane %v7715, 2
  %v7717 = vmax.f32 %v7715, %v7716
  %v7718 = vrot.slane %v7717, 1
  %v7719 = vmax.f32 %v7717, %v7718
  %v7720 = vsel %vm3652, %v7148, -inf
  %v7721 = vsel %vm3652, %v7151, -inf
  %v7722 = vmax.f32 %v7720, %v7721
  %v7723 = vrot.slane %v7722, 4
  %v7724 = vmax.f32 %v7722, %v7723
  %v7725 = vrot.slane %v7724, 2
  %v7726 = vmax.f32 %v7724, %v7725
  %v7727 = vrot.slane %v7726, 1
  %v7728 = vmax.f32 %v7726, %v7727
  %v7729 = vld [vmem:[%s6] sm:$0xff]
  %v7730 = vld [vmem:[%s6 + $0x8] sm:$0xff]
  %v7731 = vld [vmem:[%s6 + $0x10] sm:$0xff]
  %v7732 = vld [vmem:[%s6 + $0x18] sm:$0xff]
  %v7733 = vld [vmem:[%s6 + $0x20] sm:$0xff]
  %v7734 = vld [vmem:[%s6 + $0x28] sm:$0xff]
  %v7735 = vld [vmem:[%s6 + $0x30] sm:$0xff]
  %v7736 = vld [vmem:[%s6 + $0x38] sm:$0xff]
  %vm7769 = vcmask 1041409
  %v7770 = vsel %vm7769, %v7458, %v7449
  %vm7771 = vcmask 1042434
  %v7772 = vsel %vm7771, %v7467, %v7770
  %vm7773 = vcmask 1043459
  %v7774 = vsel %vm7773, %v7476, %v7772
  %vm7775 = vcmask 1044484
  %v7776 = vsel %vm7775, %v7485, %v7774
  %vm7777 = vcmask 1045509
  %v7778 = vsel %vm7777, %v7494, %v7776
  %vm7779 = vcmask 1046534
  %v7780 = vsel %vm7779, %v7503, %v7778
  %vm7781 = vcmask 1047559
  %v7782 = vsel %vm7781, %v7512, %v7780
  %v7783 = vsel %vm7769, %v7530, %v7521
  %v7784 = vsel %vm7771, %v7539, %v7783
  %v7785 = vsel %vm7773, %v7548, %v7784
  %v7786 = vsel %vm7775, %v7557, %v7785
  %v7787 = vsel %vm7777, %v7566, %v7786
  %v7788 = vsel %vm7779, %v7575, %v7787
  %v7789 = vsel %vm7781, %v7584, %v7788
  %v7790 = vsel %vm7769, %v7602, %v7593
  %v7791 = vsel %vm7771, %v7611, %v7790
  %v7792 = vsel %vm7773, %v7620, %v7791
  %v7793 = vsel %vm7775, %v7629, %v7792
  %v7794 = vsel %vm7777, %v7638, %v7793
  %v7795 = vsel %vm7779, %v7647, %v7794
  %v7796 = vsel %vm7781, %v7656, %v7795
  %v7797 = vsel %vm7769, %v7674, %v7665
  %v7798 = vsel %vm7771, %v7683, %v7797
  %v7799 = vsel %vm7773, %v7692, %v7798
  %v7800 = vsel %vm7775, %v7701, %v7799
  %v7801 = vsel %vm7777, %v7710, %v7800
  %v7802 = vsel %vm7779, %v7719, %v7801
  %v7803 = vsel %vm7781, %v7728, %v7802
  %v7804 = vsel %vm3652, %v7782, 0
  %v7806 = vsel %vm3652, %v7789, 0
  %v7808 = vsel %vm3652, %v7796, 0
  %v7810 = vsel %vm3652, %v7803, 0
  %7812 = vmatpush.msra.mxu0 0.0
  %7813 = vmatpush.msra.mxu0 0.0
  %7814 = vmatpush.msra.mxu0 0.0
  %7815 = vmatpush.msra.mxu0 0.0
  %7816 = vmatpush.msra.mxu0 0.0
  %7817 = vmatpush.msra.mxu0 0.0
  %7818 = vmatpush.msra.mxu0 0.0
  %7819 = vmatpush.msra.mxu0 0.0
  %7820 = vmatpush.msra.mxu0 0.0
  %7821 = vmatpush.msra.mxu0 0.0
  %7822 = vmatpush.msra.mxu0 0.0
  %7823 = vmatpush.msra.mxu0 0.0
  %7824 = vmatpush.msra.mxu0 %v7736
  %7825 = vmatpush.msra.mxu0 %v7735
  %7826 = vmatpush.msra.mxu0 %v7734
  %7827 = vmatpush.msra.mxu0 %v7733
  %7828 = vmatmul.f32.gmra.mxu0 %v7804
  %v7829 = vpop.f32.mrf.mxu0
  %v7830 = vadd.f32 0.0, %v7829
  %7831 = vmatmul.f32.gmra.mxu0 %v7806
  %v7832 = vpop.f32.mrf.mxu0
  %v7833 = vadd.f32 0.0, %v7832
  %7834 = vmatmul.f32.gmra.mxu0 %v7808
  %v7835 = vpop.f32.mrf.mxu0
  %v7836 = vadd.f32 0.0, %v7835
  %7837 = vmatmul.f32.gmra.mxu0 %v7810
  %v7838 = vpop.f32.mrf.mxu0
  %v7839 = vadd.f32 0.0, %v7838
  %7840 = vdwg.mxu0
  %v7873 = vsel %vm7769, %v7170, %v7161
  %v7874 = vsel %vm7771, %v7179, %v7873
  %v7875 = vsel %vm7773, %v7188, %v7874
  %v7876 = vsel %vm7775, %v7197, %v7875
  %v7877 = vsel %vm7777, %v7206, %v7876
  %v7878 = vsel %vm7779, %v7215, %v7877
  %v7879 = vsel %vm7781, %v7224, %v7878
  %v7880 = vsel %vm7769, %v7242, %v7233
  %v7881 = vsel %vm7771, %v7251, %v7880
  %v7882 = vsel %vm7773, %v7260, %v7881
  %v7883 = vsel %vm7775, %v7269, %v7882
  %v7884 = vsel %vm7777, %v7278, %v7883
  %v7885 = vsel %vm7779, %v7287, %v7884
  %v7886 = vsel %vm7781, %v7296, %v7885
  %v7887 = vsel %vm7769, %v7314, %v7305
  %v7888 = vsel %vm7771, %v7323, %v7887
  %v7889 = vsel %vm7773, %v7332, %v7888
  %v7890 = vsel %vm7775, %v7341, %v7889
  %v7891 = vsel %vm7777, %v7350, %v7890
  %v7892 = vsel %vm7779, %v7359, %v7891
  %v7893 = vsel %vm7781, %v7368, %v7892
  %v7894 = vsel %vm7769, %v7386, %v7377
  %v7895 = vsel %vm7771, %v7395, %v7894
  %v7896 = vsel %vm7773, %v7404, %v7895
  %v7897 = vsel %vm7775, %v7413, %v7896
  %v7898 = vsel %vm7777, %v7422, %v7897
  %v7899 = vsel %vm7779, %v7431, %v7898
  %v7900 = vsel %vm7781, %v7440, %v7899
  %v7901 = vsel %vm3652, %v7879, 0
  %v7903 = vsel %vm3652, %v7886, 0
  %v7905 = vsel %vm3652, %v7893, 0
  %v7907 = vsel %vm3652, %v7900, 0
  %7909 = vmatpush.msra.mxu0 0.0
  %7910 = vmatpush.msra.mxu0 0.0
  %7911 = vmatpush.msra.mxu0 0.0
  %7912 = vmatpush.msra.mxu0 0.0
  %7913 = vmatpush.msra.mxu0 0.0
  %7914 = vmatpush.msra.mxu0 0.0
  %7915 = vmatpush.msra.mxu0 0.0
  %7916 = vmatpush.msra.mxu0 0.0
  %7917 = vmatpush.msra.mxu0 0.0
  %7918 = vmatpush.msra.mxu0 0.0
  %7919 = vmatpush.msra.mxu0 0.0
  %7920 = vmatpush.msra.mxu0 0.0
  %7921 = vmatpush.msra.mxu0 %v7732
  %7922 = vmatpush.msra.mxu0 %v7731
  %7923 = vmatpush.msra.mxu0 %v7730
  %7924 = vmatpush.msra.mxu0 %v7729
  %7925 = vmatmul.f32.gmra.mxu0 %v7901
  %v7926 = vpop.f32.mrf.mxu0
  %v7927 = vadd.f32 %v7830, %v7926
  %7928 = vmatmul.f32.gmra.mxu0 %v7903
  %v7929 = vpop.f32.mrf.mxu0
  %v7930 = vadd.f32 %v7833, %v7929
  %7931 = vmatmul.f32.gmra.mxu0 %v7905
  %v7932 = vpop.f32.mrf.mxu0
  %v7933 = vadd.f32 %v7836, %v7932
  %7934 = vmatmul.f32.gmra.mxu0 %v7907
  %v7935 = vpop.f32.mrf.mxu0
  %v7936 = vadd.f32 %v7839, %v7935
  %7937 = vdwg.mxu0
  %v7938 = vld [vmem:[%s7] sm:$0x1]
  %v7940 = vperm.slane %v7938, 0
  %v7942 = vadd.f32 %v7927, %v7940
  %v7943 = vadd.f32 %v7930, %v7940
  %v7944 = vadd.f32 %v7933, %v7940
  %v7945 = vadd.f32 %v7936, %v7940
  %vm7946 = vcmask 64512
  %7947 = vst.msk [vmem:[%s8] sm:$0xff] %vm7946, %v7942
  %7948 = vst.msk [vmem:[%s8 + $0x8] sm:$0xff] %vm7946, %v7943
  %7949 = vst.msk [vmem:[%s8 + $0x10] sm:$0xff] %vm7946, %v7944
  %7950 = vst.msk [vmem:[%s8 + $0x18] sm:$0xff] %vm7946, %v7945
  // Predicated region
  $region34: #{_chebc_forward_jit.1} parent=0 // pred_check
    _
  $region35: #{_chebc_forward_jit.1} parent=0 // pred_check_branch
    %7952 = sbr.rel (0) target = $region37
  $region36: #{_chebc_forward_jit.1} parent=0 // pred_region
    _
  $region37: #{_chebc_forward_jit.1} parent=0 // pred_fallthru
    _
  // Predicated region
  $region38: #{_chebc_forward_jit.1} parent=0 // pred_check
    _
  $region39: #{_chebc_forward_jit.1} parent=0 // pred_check_branch
    %7954 = sbr.rel (0) target = $region41
  $region40: #{_chebc_forward_jit.1} parent=0 // pred_region
    _
  $region41: #{_chebc_forward_jit.1} parent=0 // pred_fallthru
    _

</llo_original>
